<compile_context>
chip_gen: v5e
topology: v5e:2x2
jax: 0.10.0
libtpu: 0.0.40
codegen_flags: <defaults>
</compile_context>

<pallas_src>
import functools
import math

import jax
import jax.numpy as jnp
from jax.experimental import pallas as pl
from jax.experimental.pallas import tpu as pltpu

CLAMP = 2.0
# FrEIA AllInOneBlock: global_affine_init=1.0, SOFTPLUS parameterization.
GS_INIT = 2.0 * math.log(math.exp(0.5 * 10.0 * 1.0) - 1.0)
_VMEM_LIMIT = 48 * 1024 * 1024   # leaves headroom on v7x (64 MiB physical)


# --------------------------------------------------------------------------
# Pallas kernels
# --------------------------------------------------------------------------
def _extract_kernel(x_ref, wp_ref, bp_ref, lnw_ref, lnb_ref, o_ref, *,
                    hh, ww, s, cin, cout):
    """Backbone stand-in (s*s avg-pool + 1x1 projection) fused with the
    per-scale LayerNorm (torch eps=1e-5, biased variance, affine).

    x_ref holds one sample reshaped (row-major, free) to (H, ww, s*cin) so
    the W-pooling is a sum of static lane slices and the H-pooling a
    leading-dim reshape + reduce."""
    x = x_ref[0]                                       # (H, ww, s*cin) f32
    big_h = hh * s
    acc = jnp.zeros((big_h, ww, cin), jnp.float32)
    for dj in range(s):                                # pool along W
        acc = acc + x[:, :, dj * cin:(dj + 1) * cin]
    acc = acc.reshape(hh, s, ww, cin)                  # pool along H
    pooled = jnp.sum(acc, axis=1) * (1.0 / float(s * s))   # (hh, ww, cin)

    a = pooled.reshape(hh * ww, cin).astype(jnp.bfloat16)
    f = jnp.dot(a, wp_ref[...], preferred_element_type=jnp.float32)
    f = f + bp_ref[...]                                # (hh*ww, cout) f32

    mean = jnp.mean(f, keepdims=True)
    var = jnp.mean((f - mean) * (f - mean), keepdims=True)
    f = (f - mean) * jax.lax.rsqrt(var + 1e-5)
    f = f * lnw_ref[...] + lnb_ref[...]
    o_ref[0] = f.reshape(hh, ww, cout)


def _flow_block_kernel(u_ref, w1_ref, b1_ref, w2_ref, b2_ref,
                       pma_ref, pmb_ref, off_ref,
                       y_ref, jac_ref, en_ref,
                       x1p_ref, hp_ref, *,
                       H, W, c1, c2, hidden, ksz, clamp):
    """One FrEIA AllInOneBlock (permute_soft=False) for one sample."""
    p = (ksz - 1) // 2
    HW = H * W
    C = c1 + c2

    # ---- active half -> (zero-padded) VMEM scratch ------------------------
    x1 = u_ref[0, :, :, :c1]                           # (H, W, c1) f32
    if p:
        x1p_ref[...] = jnp.zeros((H + 2 * p, W + 2 * p, c1), jnp.float32)
        x1p_ref[p:p + H, p:p + W, :] = x1
    else:
        x1p_ref[...] = x1

    # ---- subnet conv1 (k x k, padding='same') + bias + ReLU ---------------
    acc = jnp.zeros((HW, hidden), jnp.float32)
    for di in range(ksz):
        for dj in range(ksz):
            xs = x1p_ref[di:di + H, dj:dj + W, :].astype(jnp.bfloat16)
            acc = acc + jnp.dot(xs.reshape(HW, c1), w1_ref[di, dj],
                                preferred_element_type=jnp.float32)
    hmid = jnp.maximum(acc + b1_ref[...], 0.0)         # (HW, hidden) f32

    if p:
        hp_ref[...] = jnp.zeros((H + 2 * p, W + 2 * p, hidden), jnp.float32)
        hp_ref[p:p + H, p:p + W, :] = hmid.reshape(H, W, hidden)
    else:
        hp_ref[...] = hmid.reshape(H, W, hidden)

    # ---- subnet conv2 ------------------------------------------------------
    acc2 = jnp.zeros((HW, 2 * c2), jnp.float32)
    for di in range(ksz):
        for dj in range(ksz):
            hs = hp_ref[di:di + H, dj:dj + W, :].astype(jnp.bfloat16)
            acc2 = acc2 + jnp.dot(hs.reshape(HW, hidden), w2_ref[di, dj],
                                  preferred_element_type=jnp.float32)
    a = acc2 + b2_ref[...]                             # (HW, 2*c2) f32

    # ---- affine coupling (FrEIA AllInOneBlock._affine, forward) -----------
    s = clamp * jnp.tanh(0.1 * a[:, :c2])
    t = 0.1 * a[:, c2:]
    x2 = u_ref[0, :, :, c1:].reshape(HW, c2)           # passive half, f32
    y2 = x2 * jnp.exp(s) + t

    # ---- global affine + hard permutation fused into one (C, C) matmul ----
    #   out = cat([x1, y2]) @ (diag(scale) @ P) + offset[perm]
    out = (jnp.dot(x1.reshape(HW, c1).astype(jnp.bfloat16), pma_ref[...],
                   preferred_element_type=jnp.float32)
           + jnp.dot(y2.astype(jnp.bfloat16), pmb_ref[...],
                     preferred_element_type=jnp.float32)
           + off_ref[...])

    y_ref[0] = out.reshape(H, W, C)
    jac_ref[0] = jnp.sum(s, keepdims=True)             # coupling log|det J|
    en_ref[0] = jnp.sum(out * out, keepdims=True)      # sum(output**2)


# --------------------------------------------------------------------------
# pallas_call wrappers
# --------------------------------------------------------------------------
def extract_features(x_nhwc, prm, s, cout):
    """Pool + project + LayerNorm one scale.  Grid over the batch."""
    B, H, W, cin = x_nhwc.shape
    hh, ww = H // s, W // s
    xr = x_nhwc.reshape(B, H, ww, s * cin)             # pure (free) reshape
    kern = functools.partial(_extract_kernel, hh=hh, ww=ww, s=s, cin=cin,
                             cout=cout)
    return pl.pallas_call(
        kern,
        grid=(B,),
        in_specs=[
            pl.BlockSpec((1, H, ww, s * cin), lambda b: (b, 0, 0, 0)),
            pl.BlockSpec((cin, cout), lambda b: (0, 0)),
            pl.BlockSpec((1, cout), lambda b: (0, 0)),
            pl.BlockSpec((hh * ww, cout), lambda b: (0, 0)),
            pl.BlockSpec((hh * ww, cout), lambda b: (0, 0)),
        ],
        out_specs=pl.BlockSpec((1, hh, ww, cout), lambda b: (b, 0, 0, 0)),
        out_shape=jax.ShapeDtypeStruct((B, hh, ww, cout), jnp.float32),
        compiler_params=pltpu.CompilerParams(
            dimension_semantics=("parallel",),
            vmem_limit_bytes=_VMEM_LIMIT),
    )(xr, prm['wp'], prm['bp'], prm['ln_w'], prm['ln_b'])


def flow_block(u, blk, clamp=CLAMP):
    """One AllInOneBlock over the whole batch (grid over B)."""
    B, H, W, C = u.shape
    c2 = C // 2
    c1 = C - c2
    ksz = blk['w1'].shape[0]
    hidden = blk['w1'].shape[3]
    p = (ksz - 1) // 2
    kern = functools.partial(_flow_block_kernel, H=H, W=W, c1=c1, c2=c2,
                             hidden=hidden, ksz=ksz, clamp=clamp)
    y, jac, en = pl.pallas_call(
        kern,
        grid=(B,),
        in_specs=[
            pl.BlockSpec((1, H, W, C), lambda b: (b, 0, 0, 0)),
            pl.BlockSpec((ksz, ksz, c1, hidden), lambda b: (0, 0, 0, 0)),
            pl.BlockSpec((1, hidden), lambda b: (0, 0)),
            pl.BlockSpec((ksz, ksz, hidden, 2 * c2), lambda b: (0, 0, 0, 0)),
            pl.BlockSpec((1, 2 * c2), lambda b: (0, 0)),
            pl.BlockSpec((c1, C), lambda b: (0, 0)),
            pl.BlockSpec((c2, C), lambda b: (0, 0)),
            pl.BlockSpec((1, C), lambda b: (0, 0)),
        ],
        out_specs=[
            pl.BlockSpec((1, H, W, C), lambda b: (b, 0, 0, 0)),
            pl.BlockSpec((1, 1, 1), lambda b: (b, 0, 0)),
            pl.BlockSpec((1, 1, 1), lambda b: (b, 0, 0)),
        ],
        out_shape=[
            jax.ShapeDtypeStruct((B, H, W, C), jnp.float32),
            jax.ShapeDtypeStruct((B, 1, 1), jnp.float32),
            jax.ShapeDtypeStruct((B, 1, 1), jnp.float32),
        ],
        scratch_shapes=[
            pltpu.VMEM((H + 2 * p, W + 2 * p, c1), jnp.float32),
            pltpu.VMEM((H + 2 * p, W + 2 * p, hidden), jnp.float32),
        ],
        compiler_params=pltpu.CompilerParams(
            dimension_semantics=("parallel",),
            vmem_limit_bytes=_VMEM_LIMIT),
    )(u, blk['w1'], blk['b1'], blk['w2'], blk['b2'],
      blk['pm_a'], blk['pm_b'], blk['off_p'])
    return y, jac, en


# --------------------------------------------------------------------------
# FastFlow forward
# --------------------------------------------------------------------------
def fastflow_forward(x_nchw, params, channels, scales):
    x = jnp.transpose(x_nchw, (0, 2, 3, 1))            # NCHW -> NHWC, once
    B = x.shape[0]
    total = jnp.float32(0.0)
    for i, (C, s) in enumerate(zip(channels, scales)):
        u = extract_features(x, params['extract'][i], s, C)
        log_jac = jnp.zeros((B,), jnp.float32)
        en = None
        for blk in params['flows'][i]:
            u, jac, en = flow_block(u, blk)
            # per-block log|det J| = coupling term + (H*W)*sum(log(scale))
            log_jac = log_jac + jac[:, 0, 0] + blk['jac_const']
        energy = en[:, 0, 0]                           # sum(output**2) / sample
        total = total + jnp.mean(0.5 * energy - log_jac)
    return {'loss': total}


# --------------------------------------------------------------------------
# deterministic parameter init (stand-in for torch default init)
# --------------------------------------------------------------------------
def init_params(key, cin, channels, scales, input_size, flow_steps,
                hidden_ratio=1.0, conv3x3_only=False):
    params = {'extract': [], 'flows': []}
    for C, s in zip(channels, scales):
        hw_side = input_size // s
        key, k1, k2 = jax.random.split(key, 3)
        wp = 0.1 * jax.random.normal(k1, (cin, C), jnp.float32)
        bp = 0.1 * jax.random.normal(k2, (C,), jnp.float32)
        params['extract'].append({
            'wp': wp.astype(jnp.bfloat16),
            'bp': bp.reshape(1, C),
            # torch LayerNorm([C, h, w]) affine init (weight=1, bias=0),
            # stored channels-last as (h*w, C)
            'ln_w': jnp.ones((hw_side * hw_side, C), jnp.float32),
            'ln_b': jnp.zeros((hw_side * hw_side, C), jnp.float32),
        })

        c2 = C // 2
        c1 = C - c2
        hidden = int(c1 * hidden_ratio)
        blocks = []
        for i in range(flow_steps):
            ksz = 1 if (i % 2 == 1 and not conv3x3_only) else 3
            key, ka, kb, kc, kd, kperm = jax.random.split(key, 6)
            w1 = 0.1 * jax.random.normal(ka, (ksz, ksz, c1, hidden), jnp.float32)
            b1 = 0.05 * jax.random.normal(kb, (hidden,), jnp.float32)
            w2 = 0.1 * jax.random.normal(kc, (ksz, ksz, hidden, 2 * c2),
                                         jnp.float32)
            b2 = 0.05 * jax.random.normal(kd, (2 * c2,), jnp.float32)
            perm = jax.random.permutation(kperm, C)

            # global affine: scale = 0.1 * softplus_{beta=0.5}(global_scale)
            gs = jnp.full((C,), GS_INIT, jnp.float32)
            goff = jnp.zeros((C,), jnp.float32)
            scale_c = 0.2 * jnp.log1p(jnp.exp(0.5 * gs))
            # hard permutation (FrEIA: 1x1 conv with a permutation matrix),
            # with the per-channel global scale folded in:
            #   out = z @ (diag(scale) @ P) + offset[perm]
            pmat = (jax.nn.one_hot(perm, C, dtype=jnp.float32).T
                    * scale_c[:, None])
            blocks.append({
                'w1': w1.astype(jnp.bfloat16),
                'b1': b1.reshape(1, hidden),
                'w2': w2.astype(jnp.bfloat16),
                'b2': b2.reshape(1, 2 * c2),
                'pm_a': pmat[:c1].astype(jnp.bfloat16),
                'pm_b': pmat[c1:].astype(jnp.bfloat16),
                'off_p': goff[perm].reshape(1, C),
                'jac_const': float(hw_side * hw_side)
                             * jnp.sum(jnp.log(scale_c)),
            })
        params['flows'].append(blocks)
    return params


if __name__ == "__main__":
    key = jax.random.PRNGKey(0)
    kx, kp = jax.random.split(key)

    # Small stand-ins for (channels=[256,512,1024], scales=[4,8,16]).
    # input_size=128 keeps every feature-map spatial dim a multiple of 8 so
    # all in-kernel (H*W, C) reshapes stay sublane-aligned.
    B, Cin, input_size = 2, 4, 128
    channels = [8, 16, 32]
    scales = [4, 8, 16]
    flow_steps = 4        # kernel sizes alternate 3,1,3,1 (conv3x3_only=False)

    x = jax.random.normal(kx, (B, Cin, input_size, input_size), jnp.float32)
    params = init_params(kp, Cin, channels, scales, input_size, flow_steps)

    ret = fastflow_forward(x, params, channels, scales)
    loss = jax.block_until_ready(ret['loss'])
    assert bool(jnp.isfinite(loss))
    print("KERNEL_OK")
</pallas_src>

<mosaic_0001>
module attributes {stable_mosaic.version = 11 : i64} {
  func.func @_extract_kernel(%arg0: i32, %arg1: memref<1x128x32x16xf32, #tpu.memory_space<vmem>>, %arg2: memref<4x8xbf16, #tpu.memory_space<vmem>>, %arg3: memref<1x8xf32, #tpu.memory_space<vmem>>, %arg4: memref<1024x8xf32, #tpu.memory_space<vmem>>, %arg5: memref<1024x8xf32, #tpu.memory_space<vmem>>, %arg6: memref<1x32x32x8xf32, #tpu.memory_space<vmem>>) attributes {dimension_semantics = [#tpu.dimension_semantics<parallel>], iteration_bounds = array<i64: 2>, scalar_prefetch = 0 : i64, scratch_operands = 0 : i64, tpu.core_type = #tpu.core_type<tc>, window_params = [{transform_indices = @transform_0, window_bounds = array<i64: 1, 128, 32, 16>}, {pipeline_mode = #tpu.pipeline_mode<synchronous>, transform_indices = @transform_1, window_bounds = array<i64: 4, 8>}, {pipeline_mode = #tpu.pipeline_mode<synchronous>, transform_indices = @transform_2, window_bounds = array<i64: 1, 8>}, {pipeline_mode = #tpu.pipeline_mode<synchronous>, transform_indices = @transform_3, window_bounds = array<i64: 1024, 8>}, {pipeline_mode = #tpu.pipeline_mode<synchronous>, transform_indices = @transform_4, window_bounds = array<i64: 1024, 8>}, {transform_indices = @transform_5, window_bounds = array<i64: 1, 32, 32, 8>}]} {
    %c0 = arith.constant 0 : index
    %c0_0 = arith.constant 0 : index
    %c0_1 = arith.constant 0 : index
    %c0_2 = arith.constant 0 : index
    %0 = vector.load %arg1[%c0, %c0_0, %c0_1, %c0_2] : memref<1x128x32x16xf32, #tpu.memory_space<vmem>>, vector<1x128x32x16xf32>
    %1 = vector.shape_cast %0 : vector<1x128x32x16xf32> to vector<128x32x16xf32>
    %cst = arith.constant 0.000000e+00 : f32
    %2 = vector.broadcast %cst : f32 to vector<128x32x4xf32>
    %3 = vector.extract_strided_slice %1 {offsets = [0, 0, 0], sizes = [128, 32, 4], strides = [1, 1, 1]} : vector<128x32x16xf32> to vector<128x32x4xf32>
    %4 = arith.addf %2, %3 : vector<128x32x4xf32>
    %5 = vector.extract_strided_slice %1 {offsets = [0, 0, 4], sizes = [128, 32, 4], strides = [1, 1, 1]} : vector<128x32x16xf32> to vector<128x32x4xf32>
    %6 = arith.addf %4, %5 : vector<128x32x4xf32>
    %7 = vector.extract_strided_slice %1 {offsets = [0, 0, 8], sizes = [128, 32, 4], strides = [1, 1, 1]} : vector<128x32x16xf32> to vector<128x32x4xf32>
    %8 = arith.addf %6, %7 : vector<128x32x4xf32>
    %9 = vector.extract_strided_slice %1 {offsets = [0, 0, 12], sizes = [128, 32, 4], strides = [1, 1, 1]} : vector<128x32x16xf32> to vector<128x32x4xf32>
    %10 = arith.addf %8, %9 : vector<128x32x4xf32>
    %11 = vector.shape_cast %10 : vector<128x32x4xf32> to vector<32x4x32x4xf32>
    %cst_3 = arith.constant dense<0.000000e+00> : vector<32x32x4xf32>
    %12 = vector.multi_reduction <add>, %11, %cst_3 [1] : vector<32x4x32x4xf32> to vector<32x32x4xf32>
    %cst_4 = arith.constant 6.250000e-02 : f32
    %13 = vector.broadcast %cst_4 : f32 to vector<32x32x4xf32>
    %14 = arith.mulf %12, %13 : vector<32x32x4xf32>
    %15 = vector.shape_cast %14 : vector<32x32x4xf32> to vector<1024x4xf32>
    %16 = arith.truncf %15 : vector<1024x4xf32> to vector<1024x4xbf16>
    %c0_5 = arith.constant 0 : index
    %c0_6 = arith.constant 0 : index
    %17 = vector.load %arg2[%c0_5, %c0_6] : memref<4x8xbf16, #tpu.memory_space<vmem>>, vector<4x8xbf16>
    %cst_7 = arith.constant dense<0.000000e+00> : vector<1024x8xf32>
    %18 = tpu.matmul %16, %17, %cst_7 {dimension_numbers = #tpu.dot_dimension_numbers<[1], [0], [0], [1], [0, 0, 1, 1], [], []>} : vector<1024x4xbf16>, vector<4x8xbf16>, vector<1024x8xf32> -> vector<1024x8xf32>
    %c0_8 = arith.constant 0 : index
    %c0_9 = arith.constant 0 : index
    %19 = vector.load %arg3[%c0_8, %c0_9] : memref<1x8xf32, #tpu.memory_space<vmem>>, vector<1x8xf32>
    %20 = vector.broadcast %19 : vector<1x8xf32> to vector<1024x8xf32>
    %21 = arith.addf %18, %20 : vector<1024x8xf32>
    %22 = vector.shape_cast %21 : vector<1024x8xf32> to vector<1x1024x8xf32>
    %cst_10 = arith.constant dense<0.000000e+00> : vector<1xf32>
    %23 = vector.multi_reduction <add>, %22, %cst_10 [1, 2] : vector<1x1024x8xf32> to vector<1xf32>
    %24 = vector.shape_cast %23 : vector<1xf32> to vector<1x1x1xf32>
    %25 = vector.extract %24[0, 0, 0] : f32 from vector<1x1x1xf32>
    %26 = vector.broadcast %25 : f32 to vector<1x1xf32>
    %cst_11 = arith.constant 8.192000e+03 : f32
    %27 = vector.broadcast %cst_11 : f32 to vector<1x1xf32>
    %28 = arith.divf %26, %27 : vector<1x1xf32>
    %29 = vector.broadcast %28 : vector<1x1xf32> to vector<1024x8xf32>
    %30 = arith.subf %21, %29 : vector<1024x8xf32>
    %31 = vector.broadcast %28 : vector<1x1xf32> to vector<1024x8xf32>
    %32 = arith.subf %21, %31 : vector<1024x8xf32>
    %33 = arith.mulf %30, %32 : vector<1024x8xf32>
    %34 = vector.shape_cast %33 : vector<1024x8xf32> to vector<1x1024x8xf32>
    %cst_12 = arith.constant dense<0.000000e+00> : vector<1xf32>
    %35 = vector.multi_reduction <add>, %34, %cst_12 [1, 2] : vector<1x1024x8xf32> to vector<1xf32>
    %36 = vector.shape_cast %35 : vector<1xf32> to vector<1x1x1xf32>
    %37 = vector.extract %36[0, 0, 0] : f32 from vector<1x1x1xf32>
    %38 = vector.broadcast %37 : f32 to vector<1x1xf32>
    %cst_13 = arith.constant 8.192000e+03 : f32
    %39 = vector.broadcast %cst_13 : f32 to vector<1x1xf32>
    %40 = arith.divf %38, %39 : vector<1x1xf32>
    %41 = vector.broadcast %28 : vector<1x1xf32> to vector<1024x8xf32>
    %42 = arith.subf %21, %41 : vector<1024x8xf32>
    %cst_14 = arith.constant 9.99999974E-6 : f32
    %43 = vector.broadcast %cst_14 : f32 to vector<1x1xf32>
    %44 = arith.addf %40, %43 : vector<1x1xf32>
    %45 = math.rsqrt %44 : vector<1x1xf32>
    %46 = vector.broadcast %45 : vector<1x1xf32> to vector<1024x8xf32>
    %47 = arith.mulf %42, %46 : vector<1024x8xf32>
    %c0_15 = arith.constant 0 : index
    %c0_16 = arith.constant 0 : index
    %48 = vector.load %arg4[%c0_15, %c0_16] : memref<1024x8xf32, #tpu.memory_space<vmem>>, vector<1024x8xf32>
    %49 = arith.mulf %47, %48 : vector<1024x8xf32>
    %c0_17 = arith.constant 0 : index
    %c0_18 = arith.constant 0 : index
    %50 = vector.load %arg5[%c0_17, %c0_18] : memref<1024x8xf32, #tpu.memory_space<vmem>>, vector<1024x8xf32>
    %51 = arith.addf %49, %50 : vector<1024x8xf32>
    %52 = vector.shape_cast %51 : vector<1024x8xf32> to vector<32x32x8xf32>
    %c0_19 = arith.constant 0 : index
    %c0_20 = arith.constant 0 : index
    %c0_21 = arith.constant 0 : index
    %c0_22 = arith.constant 0 : index
    %53 = vector.load %arg6[%c0_19, %c0_20, %c0_21, %c0_22] : memref<1x32x32x8xf32, #tpu.memory_space<vmem>>, vector<1x32x32x8xf32>
    %54 = vector.shape_cast %53 : vector<1x32x32x8xf32> to vector<32x32x8xf32>
    %55 = vector.shape_cast %52 : vector<32x32x8xf32> to vector<1x32x32x8xf32>
    tpu.vector_store %arg6[%c0_19, %c0_20, %c0_21, %c0_22], %55 {strides = array<i32>} : memref<1x32x32x8xf32, #tpu.memory_space<vmem>>, vector<1x32x32x8xf32>,
    return
  }
  func.func @transform_0(%arg0: i32) -> (i32, i32, i32, i32) {
    %c0_i32 = arith.constant 0 : i32
    %c0_i32_0 = arith.constant 0 : i32
    %c0_i32_1 = arith.constant 0 : i32
    %c0_i32_2 = arith.constant 0 : i32
    return %arg0, %c0_i32, %c0_i32_0, %c0_i32_1 : i32, i32, i32, i32
  }
  func.func @transform_1(%arg0: i32) -> (i32, i32) {
    %c0_i32 = arith.constant 0 : i32
    %c0_i32_0 = arith.constant 0 : i32
    %c0_i32_1 = arith.constant 0 : i32
    return %c0_i32, %c0_i32_0 : i32, i32
  }
  func.func @transform_2(%arg0: i32) -> (i32, i32) {
    %c0_i32 = arith.constant 0 : i32
    %c0_i32_0 = arith.constant 0 : i32
    %c0_i32_1 = arith.constant 0 : i32
    return %c0_i32, %c0_i32_0 : i32, i32
  }
  func.func @transform_3(%arg0: i32) -> (i32, i32) {
    %c0_i32 = arith.constant 0 : i32
    %c0_i32_0 = arith.constant 0 : i32
    %c0_i32_1 = arith.constant 0 : i32
    return %c0_i32, %c0_i32_0 : i32, i32
  }
  func.func @transform_4(%arg0: i32) -> (i32, i32) {
    %c0_i32 = arith.constant 0 : i32
    %c0_i32_0 = arith.constant 0 : i32
    %c0_i32_1 = arith.constant 0 : i32
    return %c0_i32, %c0_i32_0 : i32, i32
  }
  func.func @transform_5(%arg0: i32) -> (i32, i32, i32, i32) {
    %c0_i32 = arith.constant 0 : i32
    %c0_i32_0 = arith.constant 0 : i32
    %c0_i32_1 = arith.constant 0 : i32
    %c0_i32_2 = arith.constant 0 : i32
    return %arg0, %c0_i32, %c0_i32_0, %c0_i32_1 : i32, i32, i32, i32
  }
}

</mosaic_0001>

<llo_original>
// kernel: tpu_custom_call.1
$region0: #{tpu_custom_call.1}
  #allocation0 [shape = 'u32[]', space=smem, size = 0x4, offset = 0x4, fixed_abs, tag = 'smem constant byte address 0x4 - core index']
  #allocation1 [shape = 'u32[72,128]{1,0:T(1,128)}', space=vmem, size = 0x9000, scoped, tag = 'internal scratch']
  %s0 = inlined_call_operand.vmem [shape: f32[2,128,32,16], index: 0, kind: input, shape index: {}]
  %s1 = inlined_call_operand.vmem [shape: bf16[4,8], index: 1, kind: input, shape index: {}]
  %s2 = inlined_call_operand.vmem [shape: f32[1,8], index: 2, kind: input, shape index: {}]
  %s3 = inlined_call_operand.vmem [shape: f32[1024,8], index: 3, kind: input, shape index: {}]
  %s4 = inlined_call_operand.vmem [shape: f32[1024,8], index: 4, kind: input, shape index: {}]
  %s5 = inlined_call_operand.vmem [shape: f32[2,32,32,8], index: 5, kind: output, shape index: {}]
  %s6 = sld [smem:[#allocation0]]
  $region53: #{tpu_custom_call.1} parent=0
    _
  %s8 = ssub.s32 1, %s6
  %s9 = scalar_select 0, %s8, %s6
  loop: start=0, step=1, limit=4
  $region2: #{tpu_custom_call.1} parent=0 // loop_pre_header
    _
  $region3: #{tpu_custom_call.1} parent=0 // loop_header
    %s11 = sphi 0, %s15
    %p12 = scmp.ge.s32.totalorder %s11, 4
    %s21 = sphi 0, %s23
    %s24 = sphi 0, %s21
    %s25 = sphi 0, %s24
    %s41 = sphi 0, %s25
    %s45 = sphi 0, %s45
    %s47 = sphi 0, %s45
    %s48 = sphi 0, %s47
    %s62 = sphi 0, %s48
    %s66 = sphi 0, %s66
    %s68 = sphi 0, %s66
    %s69 = sphi 0, %s68
    %s83 = sphi 0, %s69
    %s87 = sphi 0, %s87
    %s89 = sphi 0, %s87
    %s90 = sphi 0, %s89
    %s104 = sphi 0, %s90
    %s108 = sphi 0, %s108
    %s110 = sphi 0, %s108
    %s111 = sphi 0, %s110
    %s125 = sphi 0, %s111
    %s131 = sphi 0, %s133
    %s134 = sphi 0, %s131
    %s135 = sphi 0, %s134
    %s151 = sphi 0, %s135
  $region4: #{tpu_custom_call.1} parent=0 // loop_header_branch
    %14 = sbr.rel (%p12) target = $region8
  $region5: #{tpu_custom_call.1} parent=0 // loop_body
    %s16 = ssub.s32 %s11, 1
    %s17 = ssub.s32 %s11, 2
    %s18 = sadd.s32 %s11, 1
    %s19 = ssub.s32 %s11, %s18
    %p20 = scmp.eq.s32.totalorder %s19, 0
    %s22 = sadd.s32 %s21, 1
    %s23 = scalar_select %p20, %s21, %s22
    %p26 = pneg %p20
    %p27 = scmp.eq.s32.totalorder %s11, 1
    %p28 = por %p26, %p27
    %p29 = scmp.ne.s32.totalorder %s21, %s24
    %p30 = scmp.eq.s32.totalorder %s11, 0
    %p31 = por %p29, %p30
    %p32 = scmp.ne.s32.totalorder %s21, %s24
    %p33 = scmp.eq.s32.totalorder %s16, 1
    %p34 = por %p32, %p33
    %p35 = scmp.ne.s32.totalorder %s24, %s25
    %p36 = scmp.eq.s32.totalorder %s16, 0
    %p37 = por %p35, %p36
    %p38 = scmp.ne.s32.totalorder %s24, %s25
    %p39 = scmp.eq.s32.totalorder %s17, 1
    %p40 = por %p38, %p39
    %p42 = scmp.ne.s32.totalorder %s25, %s41
    %p43 = scmp.eq.s32.totalorder %s17, 0
    %p44 = por %p42, %p43
    %s46 = sadd.s32 %s45, 1
    %p49 = scmp.eq.s32.totalorder %s11, 1
    %p50 = scmp.ne.s32.totalorder %s45, %s47
    %p51 = scmp.eq.s32.totalorder %s11, 0
    %p52 = por %p50, %p51
    %p53 = scmp.ne.s32.totalorder %s45, %s47
    %p54 = scmp.eq.s32.totalorder %s16, 1
    %p55 = por %p53, %p54
    %p56 = scmp.ne.s32.totalorder %s47, %s48
    %p57 = scmp.eq.s32.totalorder %s16, 0
    %p58 = por %p56, %p57
    %p59 = scmp.ne.s32.totalorder %s47, %s48
    %p60 = scmp.eq.s32.totalorder %s17, 1
    %p61 = por %p59, %p60
    %p63 = scmp.ne.s32.totalorder %s48, %s62
    %p64 = scmp.eq.s32.totalorder %s17, 0
    %p65 = por %p63, %p64
    %s67 = sadd.s32 %s66, 1
    %p70 = scmp.eq.s32.totalorder %s11, 1
    %p71 = scmp.ne.s32.totalorder %s66, %s68
    %p72 = scmp.eq.s32.totalorder %s11, 0
    %p73 = por %p71, %p72
    %p74 = scmp.ne.s32.totalorder %s66, %s68
    %p75 = scmp.eq.s32.totalorder %s16, 1
    %p76 = por %p74, %p75
    %p77 = scmp.ne.s32.totalorder %s68, %s69
    %p78 = scmp.eq.s32.totalorder %s16, 0
    %p79 = por %p77, %p78
    %p80 = scmp.ne.s32.totalorder %s68, %s69
    %p81 = scmp.eq.s32.totalorder %s17, 1
    %p82 = por %p80, %p81
    %p84 = scmp.ne.s32.totalorder %s69, %s83
    %p85 = scmp.eq.s32.totalorder %s17, 0
    %p86 = por %p84, %p85
    %s88 = sadd.s32 %s87, 1
    %p91 = scmp.eq.s32.totalorder %s11, 1
    %p92 = scmp.ne.s32.totalorder %s87, %s89
    %p93 = scmp.eq.s32.totalorder %s11, 0
    %p94 = por %p92, %p93
    %p95 = scmp.ne.s32.totalorder %s87, %s89
    %p96 = scmp.eq.s32.totalorder %s16, 1
    %p97 = por %p95, %p96
    %p98 = scmp.ne.s32.totalorder %s89, %s90
    %p99 = scmp.eq.s32.totalorder %s16, 0
    %p100 = por %p98, %p99
    %p101 = scmp.ne.s32.totalorder %s89, %s90
    %p102 = scmp.eq.s32.totalorder %s17, 1
    %p103 = por %p101, %p102
    %p105 = scmp.ne.s32.totalorder %s90, %s104
    %p106 = scmp.eq.s32.totalorder %s17, 0
    %p107 = por %p105, %p106
    %s109 = sadd.s32 %s108, 1
    %p112 = scmp.eq.s32.totalorder %s11, 1
    %p113 = scmp.ne.s32.totalorder %s108, %s110
    %p114 = scmp.eq.s32.totalorder %s11, 0
    %p115 = por %p113, %p114
    %p116 = scmp.ne.s32.totalorder %s108, %s110
    %p117 = scmp.eq.s32.totalorder %s16, 1
    %p118 = por %p116, %p117
    %p119 = scmp.ne.s32.totalorder %s110, %s111
    %p120 = scmp.eq.s32.totalorder %s16, 0
    %p121 = por %p119, %p120
    %p122 = scmp.ne.s32.totalorder %s110, %s111
    %p123 = scmp.eq.s32.totalorder %s17, 1
    %p124 = por %p122, %p123
    %p126 = scmp.ne.s32.totalorder %s111, %s125
    %p127 = scmp.eq.s32.totalorder %s17, 0
    %p128 = por %p126, %p127
    %s129 = ssub.s32 %s11, %s18
    %p130 = scmp.eq.s32.totalorder %s129, 0
    %s132 = sadd.s32 %s131, 1
    %s133 = scalar_select %p130, %s131, %s132
    %p136 = pneg %p130
    %p137 = scmp.eq.s32.totalorder %s11, 1
    %p138 = por %p136, %p137
    %p139 = scmp.ne.s32.totalorder %s131, %s134
    %p140 = scmp.eq.s32.totalorder %s11, 0
    %p141 = por %p139, %p140
    %p142 = scmp.ne.s32.totalorder %s131, %s134
    %p143 = scmp.eq.s32.totalorder %s16, 1
    %p144 = por %p142, %p143
    %p145 = scmp.ne.s32.totalorder %s134, %s135
    %p146 = scmp.eq.s32.totalorder %s16, 0
    %p147 = por %p145, %p146
    %p148 = scmp.ne.s32.totalorder %s134, %s135
    %p149 = scmp.eq.s32.totalorder %s17, 1
    %p150 = por %p148, %p149
    %p152 = scmp.ne.s32.totalorder %s135, %s151
    %p153 = scmp.eq.s32.totalorder %s17, 0
    %p154 = por %p152, %p153
    %p155 = scmp.le.s32.totalorder 1, %s11
    %p156 = scmp.lt.s32.totalorder %s11, 3
    %p157 = pnand %p155, %p156
    %p158 = pneg %p157
    // Predicated region
    $region9: #{tpu_custom_call.1} parent=5 // pred_check
      _
    $region10: #{tpu_custom_call.1} parent=5 // pred_check_branch
      %160 = sbr.rel (%p157) target = $region12
    $region11: #{tpu_custom_call.1} parent=5 // pred_region
      %s161 = ssub.s32 %s11, 1
      // Predicated region
      $region13: #{tpu_custom_call.1} parent=11 // pred_check
        %p162 = pneg %p58
      $region14: #{tpu_custom_call.1} parent=11 // pred_check_branch
        %164 = sbr.rel (%p162) target = $region16
      $region15: #{tpu_custom_call.1} parent=11 // pred_region
        _
      $region16: #{tpu_custom_call.1} parent=11 // pred_fallthru
        _
      // Predicated region
      $region17: #{tpu_custom_call.1} parent=11 // pred_check
        %p165 = pneg %p79
      $region18: #{tpu_custom_call.1} parent=11 // pred_check_branch
        %167 = sbr.rel (%p165) target = $region20
      $region19: #{tpu_custom_call.1} parent=11 // pred_region
        _
      $region20: #{tpu_custom_call.1} parent=11 // pred_fallthru
        _
      // Predicated region
      $region21: #{tpu_custom_call.1} parent=11 // pred_check
        %p168 = pneg %p100
      $region22: #{tpu_custom_call.1} parent=11 // pred_check_branch
        %170 = sbr.rel (%p168) target = $region24
      $region23: #{tpu_custom_call.1} parent=11 // pred_region
        _
      $region24: #{tpu_custom_call.1} parent=11 // pred_fallthru
        _
      // Predicated region
      $region25: #{tpu_custom_call.1} parent=11 // pred_check
        %p171 = pneg %p121
      $region26: #{tpu_custom_call.1} parent=11 // pred_check_branch
        %173 = sbr.rel (%p171) target = $region28
      $region27: #{tpu_custom_call.1} parent=11 // pred_region
        _
      $region28: #{tpu_custom_call.1} parent=11 // pred_fallthru
        _
    $region12: #{tpu_custom_call.1} parent=5 // pred_fallthru
      _
    %p174 = scmp.lt.s32.totalorder %s11, 2
    // Predicated region
    $region29: #{tpu_custom_call.1} parent=5 // pred_check
      %p175 = pneg %p174
    $region30: #{tpu_custom_call.1} parent=5 // pred_check_branch
      %177 = sbr.rel (%p175) target = $region32
    $region31: #{tpu_custom_call.1} parent=5 // pred_region
      // Predicated region
      $region33: #{tpu_custom_call.1} parent=31 // pred_check
        %p178 = pneg %p31
      $region34: #{tpu_custom_call.1} parent=31 // pred_check_branch
        %180 = sbr.rel (%p178) target = $region36
      $region35: #{tpu_custom_call.1} parent=31 // pred_region
        %p181 = scmp.lt.s32.totalorder %s11, 1
        %s182 = scalar_select %p181, %s11, 1
        %s183 = smul.addr %s182, 512
        %s184 = smul.addr %s183, 8
        %s185 = scalar_lea.vmem %s0, %s184
      $region36: #{tpu_custom_call.1} parent=31 // pred_fallthru
        _
    $region32: #{tpu_custom_call.1} parent=5 // pred_fallthru
      _
    %p186 = scmp.le.s32.totalorder 1, %s11
    %p187 = scmp.lt.s32.totalorder %s11, 3
    %p188 = pnand %p186, %p187
    %p189 = pneg %p188
    // Predicated region
    $region37: #{tpu_custom_call.1} parent=5 // pred_check
      _
    $region38: #{tpu_custom_call.1} parent=5 // pred_check_branch
      %191 = sbr.rel (%p188) target = $region40
    $region39: #{tpu_custom_call.1} parent=5 // pred_region
      %s192 = ssub.s32 %s11, 1
      %p193 = scmp.lt.s32.totalorder %s16, 1
      %s194 = scalar_select %p193, %s16, 1
      %s195 = smul.addr %s194, 512
      %s196 = smul.addr %s195, 8
      %s197 = scalar_lea.vmem %s0, %s196
      %p198 = pneg %p37
      %p199 = pneg %p34
      %p200 = pneg %p58
      %p201 = pneg %p55
      %p202 = pneg %p79
      %p203 = pneg %p76
      %p204 = pneg %p100
      %p205 = pneg %p97
      %p206 = pneg %p121
      %p207 = pneg %p118
      %p208 = pneg %p147
      %p209 = pneg %p144
      %p210 = scmp.lt.s32.totalorder %s16, 1
      %s211 = scalar_select %p210, %s16, 1
      %s212 = smul.addr %s211, 128
      %s213 = smul.addr %s212, 8
      %s214 = scalar_lea.vmem %s5, %s213
      %p215 = scmp.lt.s32.totalorder %s16, 1
      %s216 = scalar_select %p215, %s16, 1
      %s217 = smul.addr %s216, 512
      %s218 = smul.addr %s217, 8
      %s219 = scalar_lea.vmem %s0, %s218
      %p220 = scmp.lt.s32.totalorder %s16, 1
      %s221 = scalar_select %p220, %s16, 1
      %s222 = smul.addr %s221, 128
      %s223 = smul.addr %s222, 8
      %s224 = scalar_lea.vmem %s5, %s223
      %v226 = vld [vmem:[%s219] sm:$0xff]
      %v227 = vld [vmem:[%s219 + $0x8] sm:$0xff]
      %v228 = vld [vmem:[%s219 + $0x10] sm:$0xff]
      %v229 = vld [vmem:[%s219 + $0x18] sm:$0xff]
      %v230 = vld [vmem:[%s219 + $0x20] sm:$0xff]
      %v231 = vld [vmem:[%s219 + $0x28] sm:$0xff]
      %v232 = vld [vmem:[%s219 + $0x30] sm:$0xff]
      %v233 = vld [vmem:[%s219 + $0x38] sm:$0xff]
      %v234 = vld [vmem:[%s219 + $0x40] sm:$0xff]
      %v235 = vld [vmem:[%s219 + $0x48] sm:$0xff]
      %v236 = vld [vmem:[%s219 + $0x50] sm:$0xff]
      %v237 = vld [vmem:[%s219 + $0x58] sm:$0xff]
      %v238 = vld [vmem:[%s219 + $0x60] sm:$0xff]
      %v239 = vld [vmem:[%s219 + $0x68] sm:$0xff]
      %v240 = vld [vmem:[%s219 + $0x70] sm:$0xff]
      %v241 = vld [vmem:[%s219 + $0x78] sm:$0xff]
      %v242 = vld [vmem:[%s219 + $0x80] sm:$0xff]
      %v243 = vld [vmem:[%s219 + $0x88] sm:$0xff]
      %v244 = vld [vmem:[%s219 + $0x90] sm:$0xff]
      %v245 = vld [vmem:[%s219 + $0x98] sm:$0xff]
      %v246 = vld [vmem:[%s219 + $0xa0] sm:$0xff]
      %v247 = vld [vmem:[%s219 + $0xa8] sm:$0xff]
      %v248 = vld [vmem:[%s219 + $0xb0] sm:$0xff]
      %v249 = vld [vmem:[%s219 + $0xb8] sm:$0xff]
      %v250 = vld [vmem:[%s219 + $0xc0] sm:$0xff]
      %v251 = vld [vmem:[%s219 + $0xc8] sm:$0xff]
      %v252 = vld [vmem:[%s219 + $0xd0] sm:$0xff]
      %v253 = vld [vmem:[%s219 + $0xd8] sm:$0xff]
      %v254 = vld [vmem:[%s219 + $0xe0] sm:$0xff]
      %v255 = vld [vmem:[%s219 + $0xe8] sm:$0xff]
      %v256 = vld [vmem:[%s219 + $0xf0] sm:$0xff]
      %v257 = vld [vmem:[%s219 + $0xf8] sm:$0xff]
      %v258 = vld [vmem:[%s219 + $0x100] sm:$0xff]
      %v259 = vld [vmem:[%s219 + $0x108] sm:$0xff]
      %v260 = vld [vmem:[%s219 + $0x110] sm:$0xff]
      %v261 = vld [vmem:[%s219 + $0x118] sm:$0xff]
      %v262 = vld [vmem:[%s219 + $0x120] sm:$0xff]
      %v263 = vld [vmem:[%s219 + $0x128] sm:$0xff]
      %v264 = vld [vmem:[%s219 + $0x130] sm:$0xff]
      %v265 = vld [vmem:[%s219 + $0x138] sm:$0xff]
      %v266 = vld [vmem:[%s219 + $0x140] sm:$0xff]
      %v267 = vld [vmem:[%s219 + $0x148] sm:$0xff]
      %v268 = vld [vmem:[%s219 + $0x150] sm:$0xff]
      %v269 = vld [vmem:[%s219 + $0x158] sm:$0xff]
      %v270 = vld [vmem:[%s219 + $0x160] sm:$0xff]
      %v271 = vld [vmem:[%s219 + $0x168] sm:$0xff]
      %v272 = vld [vmem:[%s219 + $0x170] sm:$0xff]
      %v273 = vld [vmem:[%s219 + $0x178] sm:$0xff]
      %v274 = vld [vmem:[%s219 + $0x180] sm:$0xff]
      %v275 = vld [vmem:[%s219 + $0x188] sm:$0xff]
      %v276 = vld [vmem:[%s219 + $0x190] sm:$0xff]
      %v277 = vld [vmem:[%s219 + $0x198] sm:$0xff]
      %v278 = vld [vmem:[%s219 + $0x1a0] sm:$0xff]
      %v279 = vld [vmem:[%s219 + $0x1a8] sm:$0xff]
      %v280 = vld [vmem:[%s219 + $0x1b0] sm:$0xff]
      %v281 = vld [vmem:[%s219 + $0x1b8] sm:$0xff]
      %v282 = vld [vmem:[%s219 + $0x1c0] sm:$0xff]
      %v283 = vld [vmem:[%s219 + $0x1c8] sm:$0xff]
      %v284 = vld [vmem:[%s219 + $0x1d0] sm:$0xff]
      %v285 = vld [vmem:[%s219 + $0x1d8] sm:$0xff]
      %v286 = vld [vmem:[%s219 + $0x1e0] sm:$0xff]
      %v287 = vld [vmem:[%s219 + $0x1e8] sm:$0xff]
      %v288 = vld [vmem:[%s219 + $0x1f0] sm:$0xff]
      %v289 = vld [vmem:[%s219 + $0x1f8] sm:$0xff]
      %v290 = vld [vmem:[%s219 + $0x200] sm:$0xff]
      %v291 = vld [vmem:[%s219 + $0x208] sm:$0xff]
      %v292 = vld [vmem:[%s219 + $0x210] sm:$0xff]
      %v293 = vld [vmem:[%s219 + $0x218] sm:$0xff]
      %v294 = vld [vmem:[%s219 + $0x220] sm:$0xff]
      %v295 = vld [vmem:[%s219 + $0x228] sm:$0xff]
      %v296 = vld [vmem:[%s219 + $0x230] sm:$0xff]
      %v297 = vld [vmem:[%s219 + $0x238] sm:$0xff]
      %v298 = vld [vmem:[%s219 + $0x240] sm:$0xff]
      %v299 = vld [vmem:[%s219 + $0x248] sm:$0xff]
      %v300 = vld [vmem:[%s219 + $0x250] sm:$0xff]
      %v301 = vld [vmem:[%s219 + $0x258] sm:$0xff]
      %v302 = vld [vmem:[%s219 + $0x260] sm:$0xff]
      %v303 = vld [vmem:[%s219 + $0x268] sm:$0xff]
      %v304 = vld [vmem:[%s219 + $0x270] sm:$0xff]
      %v305 = vld [vmem:[%s219 + $0x278] sm:$0xff]
      %v306 = vld [vmem:[%s219 + $0x280] sm:$0xff]
      %v307 = vld [vmem:[%s219 + $0x288] sm:$0xff]
      %v308 = vld [vmem:[%s219 + $0x290] sm:$0xff]
      %v309 = vld [vmem:[%s219 + $0x298] sm:$0xff]
      %v310 = vld [vmem:[%s219 + $0x2a0] sm:$0xff]
      %v311 = vld [vmem:[%s219 + $0x2a8] sm:$0xff]
      %v312 = vld [vmem:[%s219 + $0x2b0] sm:$0xff]
      %v313 = vld [vmem:[%s219 + $0x2b8] sm:$0xff]
      %v314 = vld [vmem:[%s219 + $0x2c0] sm:$0xff]
      %v315 = vld [vmem:[%s219 + $0x2c8] sm:$0xff]
      %v316 = vld [vmem:[%s219 + $0x2d0] sm:$0xff]
      %v317 = vld [vmem:[%s219 + $0x2d8] sm:$0xff]
      %v318 = vld [vmem:[%s219 + $0x2e0] sm:$0xff]
      %v319 = vld [vmem:[%s219 + $0x2e8] sm:$0xff]
      %v320 = vld [vmem:[%s219 + $0x2f0] sm:$0xff]
      %v321 = vld [vmem:[%s219 + $0x2f8] sm:$0xff]
      %v322 = vld [vmem:[%s219 + $0x300] sm:$0xff]
      %v323 = vld [vmem:[%s219 + $0x308] sm:$0xff]
      %v324 = vld [vmem:[%s219 + $0x310] sm:$0xff]
      %v325 = vld [vmem:[%s219 + $0x318] sm:$0xff]
      %v326 = vld [vmem:[%s219 + $0x320] sm:$0xff]
      %v327 = vld [vmem:[%s219 + $0x328] sm:$0xff]
      %v328 = vld [vmem:[%s219 + $0x330] sm:$0xff]
      %v329 = vld [vmem:[%s219 + $0x338] sm:$0xff]
      %v330 = vld [vmem:[%s219 + $0x340] sm:$0xff]
      %v331 = vld [vmem:[%s219 + $0x348] sm:$0xff]
      %v332 = vld [vmem:[%s219 + $0x350] sm:$0xff]
      %v333 = vld [vmem:[%s219 + $0x358] sm:$0xff]
      %v334 = vld [vmem:[%s219 + $0x360] sm:$0xff]
      %v335 = vld [vmem:[%s219 + $0x368] sm:$0xff]
      %v336 = vld [vmem:[%s219 + $0x370] sm:$0xff]
      %v337 = vld [vmem:[%s219 + $0x378] sm:$0xff]
      %v338 = vld [vmem:[%s219 + $0x380] sm:$0xff]
      %v339 = vld [vmem:[%s219 + $0x388] sm:$0xff]
      %v340 = vld [vmem:[%s219 + $0x390] sm:$0xff]
      %v341 = vld [vmem:[%s219 + $0x398] sm:$0xff]
      %v342 = vld [vmem:[%s219 + $0x3a0] sm:$0xff]
      %v343 = vld [vmem:[%s219 + $0x3a8] sm:$0xff]
      %v344 = vld [vmem:[%s219 + $0x3b0] sm:$0xff]
      %v345 = vld [vmem:[%s219 + $0x3b8] sm:$0xff]
      %v346 = vld [vmem:[%s219 + $0x3c0] sm:$0xff]
      %v347 = vld [vmem:[%s219 + $0x3c8] sm:$0xff]
      %v348 = vld [vmem:[%s219 + $0x3d0] sm:$0xff]
      %v349 = vld [vmem:[%s219 + $0x3d8] sm:$0xff]
      %v350 = vld [vmem:[%s219 + $0x3e0] sm:$0xff]
      %v351 = vld [vmem:[%s219 + $0x3e8] sm:$0xff]
      %v352 = vld [vmem:[%s219 + $0x3f0] sm:$0xff]
      %v353 = vld [vmem:[%s219 + $0x3f8] sm:$0xff]
      %v354 = vld [vmem:[%s219 + $0x400] sm:$0xff]
      %v355 = vld [vmem:[%s219 + $0x408] sm:$0xff]
      %v356 = vld [vmem:[%s219 + $0x410] sm:$0xff]
      %v357 = vld [vmem:[%s219 + $0x418] sm:$0xff]
      %v358 = vld [vmem:[%s219 + $0x420] sm:$0xff]
      %v359 = vld [vmem:[%s219 + $0x428] sm:$0xff]
      %v360 = vld [vmem:[%s219 + $0x430] sm:$0xff]
      %v361 = vld [vmem:[%s219 + $0x438] sm:$0xff]
      %v362 = vld [vmem:[%s219 + $0x440] sm:$0xff]
      %v363 = vld [vmem:[%s219 + $0x448] sm:$0xff]
      %v364 = vld [vmem:[%s219 + $0x450] sm:$0xff]
      %v365 = vld [vmem:[%s219 + $0x458] sm:$0xff]
      %v366 = vld [vmem:[%s219 + $0x460] sm:$0xff]
      %v367 = vld [vmem:[%s219 + $0x468] sm:$0xff]
      %v368 = vld [vmem:[%s219 + $0x470] sm:$0xff]
      %v369 = vld [vmem:[%s219 + $0x478] sm:$0xff]
      %v370 = vld [vmem:[%s219 + $0x480] sm:$0xff]
      %v371 = vld [vmem:[%s219 + $0x488] sm:$0xff]
      %v372 = vld [vmem:[%s219 + $0x490] sm:$0xff]
      %v373 = vld [vmem:[%s219 + $0x498] sm:$0xff]
      %v374 = vld [vmem:[%s219 + $0x4a0] sm:$0xff]
      %v375 = vld [vmem:[%s219 + $0x4a8] sm:$0xff]
      %v376 = vld [vmem:[%s219 + $0x4b0] sm:$0xff]
      %v377 = vld [vmem:[%s219 + $0x4b8] sm:$0xff]
      %v378 = vld [vmem:[%s219 + $0x4c0] sm:$0xff]
      %v379 = vld [vmem:[%s219 + $0x4c8] sm:$0xff]
      %v380 = vld [vmem:[%s219 + $0x4d0] sm:$0xff]
      %v381 = vld [vmem:[%s219 + $0x4d8] sm:$0xff]
      %v382 = vld [vmem:[%s219 + $0x4e0] sm:$0xff]
      %v383 = vld [vmem:[%s219 + $0x4e8] sm:$0xff]
      %v384 = vld [vmem:[%s219 + $0x4f0] sm:$0xff]
      %v385 = vld [vmem:[%s219 + $0x4f8] sm:$0xff]
      %v386 = vld [vmem:[%s219 + $0x500] sm:$0xff]
      %v387 = vld [vmem:[%s219 + $0x508] sm:$0xff]
      %v388 = vld [vmem:[%s219 + $0x510] sm:$0xff]
      %v389 = vld [vmem:[%s219 + $0x518] sm:$0xff]
      %v390 = vld [vmem:[%s219 + $0x520] sm:$0xff]
      %v391 = vld [vmem:[%s219 + $0x528] sm:$0xff]
      %v392 = vld [vmem:[%s219 + $0x530] sm:$0xff]
      %v393 = vld [vmem:[%s219 + $0x538] sm:$0xff]
      %v394 = vld [vmem:[%s219 + $0x540] sm:$0xff]
      %v395 = vld [vmem:[%s219 + $0x548] sm:$0xff]
      %v396 = vld [vmem:[%s219 + $0x550] sm:$0xff]
      %v397 = vld [vmem:[%s219 + $0x558] sm:$0xff]
      %v398 = vld [vmem:[%s219 + $0x560] sm:$0xff]
      %v399 = vld [vmem:[%s219 + $0x568] sm:$0xff]
      %v400 = vld [vmem:[%s219 + $0x570] sm:$0xff]
      %v401 = vld [vmem:[%s219 + $0x578] sm:$0xff]
      %v402 = vld [vmem:[%s219 + $0x580] sm:$0xff]
      %v403 = vld [vmem:[%s219 + $0x588] sm:$0xff]
      %v404 = vld [vmem:[%s219 + $0x590] sm:$0xff]
      %v405 = vld [vmem:[%s219 + $0x598] sm:$0xff]
      %v406 = vld [vmem:[%s219 + $0x5a0] sm:$0xff]
      %v407 = vld [vmem:[%s219 + $0x5a8] sm:$0xff]
      %v408 = vld [vmem:[%s219 + $0x5b0] sm:$0xff]
      %v409 = vld [vmem:[%s219 + $0x5b8] sm:$0xff]
      %v410 = vld [vmem:[%s219 + $0x5c0] sm:$0xff]
      %v411 = vld [vmem:[%s219 + $0x5c8] sm:$0xff]
      %v412 = vld [vmem:[%s219 + $0x5d0] sm:$0xff]
      %v413 = vld [vmem:[%s219 + $0x5d8] sm:$0xff]
      %v414 = vld [vmem:[%s219 + $0x5e0] sm:$0xff]
      %v415 = vld [vmem:[%s219 + $0x5e8] sm:$0xff]
      %v416 = vld [vmem:[%s219 + $0x5f0] sm:$0xff]
      %v417 = vld [vmem:[%s219 + $0x5f8] sm:$0xff]
      %v418 = vld [vmem:[%s219 + $0x600] sm:$0xff]
      %v419 = vld [vmem:[%s219 + $0x608] sm:$0xff]
      %v420 = vld [vmem:[%s219 + $0x610] sm:$0xff]
      %v421 = vld [vmem:[%s219 + $0x618] sm:$0xff]
      %v422 = vld [vmem:[%s219 + $0x620] sm:$0xff]
      %v423 = vld [vmem:[%s219 + $0x628] sm:$0xff]
      %v424 = vld [vmem:[%s219 + $0x630] sm:$0xff]
      %v425 = vld [vmem:[%s219 + $0x638] sm:$0xff]
      %v426 = vld [vmem:[%s219 + $0x640] sm:$0xff]
      %v427 = vld [vmem:[%s219 + $0x648] sm:$0xff]
      %v428 = vld [vmem:[%s219 + $0x650] sm:$0xff]
      %v429 = vld [vmem:[%s219 + $0x658] sm:$0xff]
      %v430 = vld [vmem:[%s219 + $0x660] sm:$0xff]
      %v431 = vld [vmem:[%s219 + $0x668] sm:$0xff]
      %v432 = vld [vmem:[%s219 + $0x670] sm:$0xff]
      %v433 = vld [vmem:[%s219 + $0x678] sm:$0xff]
      %v434 = vld [vmem:[%s219 + $0x680] sm:$0xff]
      %v435 = vld [vmem:[%s219 + $0x688] sm:$0xff]
      %v436 = vld [vmem:[%s219 + $0x690] sm:$0xff]
      %v437 = vld [vmem:[%s219 + $0x698] sm:$0xff]
      %v438 = vld [vmem:[%s219 + $0x6a0] sm:$0xff]
      %v439 = vld [vmem:[%s219 + $0x6a8] sm:$0xff]
      %v440 = vld [vmem:[%s219 + $0x6b0] sm:$0xff]
      %v441 = vld [vmem:[%s219 + $0x6b8] sm:$0xff]
      %v442 = vld [vmem:[%s219 + $0x6c0] sm:$0xff]
      %v443 = vld [vmem:[%s219 + $0x6c8] sm:$0xff]
      %v444 = vld [vmem:[%s219 + $0x6d0] sm:$0xff]
      %v445 = vld [vmem:[%s219 + $0x6d8] sm:$0xff]
      %v446 = vld [vmem:[%s219 + $0x6e0] sm:$0xff]
      %v447 = vld [vmem:[%s219 + $0x6e8] sm:$0xff]
      %v448 = vld [vmem:[%s219 + $0x6f0] sm:$0xff]
      %v449 = vld [vmem:[%s219 + $0x6f8] sm:$0xff]
      %v450 = vld [vmem:[%s219 + $0x700] sm:$0xff]
      %v451 = vld [vmem:[%s219 + $0x708] sm:$0xff]
      %v452 = vld [vmem:[%s219 + $0x710] sm:$0xff]
      %v453 = vld [vmem:[%s219 + $0x718] sm:$0xff]
      %v454 = vld [vmem:[%s219 + $0x720] sm:$0xff]
      %v455 = vld [vmem:[%s219 + $0x728] sm:$0xff]
      %v456 = vld [vmem:[%s219 + $0x730] sm:$0xff]
      %v457 = vld [vmem:[%s219 + $0x738] sm:$0xff]
      %v458 = vld [vmem:[%s219 + $0x740] sm:$0xff]
      %v459 = vld [vmem:[%s219 + $0x748] sm:$0xff]
      %v460 = vld [vmem:[%s219 + $0x750] sm:$0xff]
      %v461 = vld [vmem:[%s219 + $0x758] sm:$0xff]
      %v462 = vld [vmem:[%s219 + $0x760] sm:$0xff]
      %v463 = vld [vmem:[%s219 + $0x768] sm:$0xff]
      %v464 = vld [vmem:[%s219 + $0x770] sm:$0xff]
      %v465 = vld [vmem:[%s219 + $0x778] sm:$0xff]
      %v466 = vld [vmem:[%s219 + $0x780] sm:$0xff]
      %v467 = vld [vmem:[%s219 + $0x788] sm:$0xff]
      %v468 = vld [vmem:[%s219 + $0x790] sm:$0xff]
      %v469 = vld [vmem:[%s219 + $0x798] sm:$0xff]
      %v470 = vld [vmem:[%s219 + $0x7a0] sm:$0xff]
      %v471 = vld [vmem:[%s219 + $0x7a8] sm:$0xff]
      %v472 = vld [vmem:[%s219 + $0x7b0] sm:$0xff]
      %v473 = vld [vmem:[%s219 + $0x7b8] sm:$0xff]
      %v474 = vld [vmem:[%s219 + $0x7c0] sm:$0xff]
      %v475 = vld [vmem:[%s219 + $0x7c8] sm:$0xff]
      %v476 = vld [vmem:[%s219 + $0x7d0] sm:$0xff]
      %v477 = vld [vmem:[%s219 + $0x7d8] sm:$0xff]
      %v478 = vld [vmem:[%s219 + $0x7e0] sm:$0xff]
      %v479 = vld [vmem:[%s219 + $0x7e8] sm:$0xff]
      %v480 = vld [vmem:[%s219 + $0x7f0] sm:$0xff]
      %v481 = vld [vmem:[%s219 + $0x7f8] sm:$0xff]
      %v482 = vld [vmem:[%s219 + $0x800] sm:$0xff]
      %v483 = vld [vmem:[%s219 + $0x808] sm:$0xff]
      %v484 = vld [vmem:[%s219 + $0x810] sm:$0xff]
      %v485 = vld [vmem:[%s219 + $0x818] sm:$0xff]
      %v486 = vld [vmem:[%s219 + $0x820] sm:$0xff]
      %v487 = vld [vmem:[%s219 + $0x828] sm:$0xff]
      %v488 = vld [vmem:[%s219 + $0x830] sm:$0xff]
      %v489 = vld [vmem:[%s219 + $0x838] sm:$0xff]
      %v490 = vld [vmem:[%s219 + $0x840] sm:$0xff]
      %v491 = vld [vmem:[%s219 + $0x848] sm:$0xff]
      %v492 = vld [vmem:[%s219 + $0x850] sm:$0xff]
      %v493 = vld [vmem:[%s219 + $0x858] sm:$0xff]
      %v494 = vld [vmem:[%s219 + $0x860] sm:$0xff]
      %v495 = vld [vmem:[%s219 + $0x868] sm:$0xff]
      %v496 = vld [vmem:[%s219 + $0x870] sm:$0xff]
      %v497 = vld [vmem:[%s219 + $0x878] sm:$0xff]
      %v498 = vld [vmem:[%s219 + $0x880] sm:$0xff]
      %v499 = vld [vmem:[%s219 + $0x888] sm:$0xff]
      %v500 = vld [vmem:[%s219 + $0x890] sm:$0xff]
      %v501 = vld [vmem:[%s219 + $0x898] sm:$0xff]
      %v502 = vld [vmem:[%s219 + $0x8a0] sm:$0xff]
      %v503 = vld [vmem:[%s219 + $0x8a8] sm:$0xff]
      %v504 = vld [vmem:[%s219 + $0x8b0] sm:$0xff]
      %v505 = vld [vmem:[%s219 + $0x8b8] sm:$0xff]
      %v506 = vld [vmem:[%s219 + $0x8c0] sm:$0xff]
      %v507 = vld [vmem:[%s219 + $0x8c8] sm:$0xff]
      %v508 = vld [vmem:[%s219 + $0x8d0] sm:$0xff]
      %v509 = vld [vmem:[%s219 + $0x8d8] sm:$0xff]
      %v510 = vld [vmem:[%s219 + $0x8e0] sm:$0xff]
      %v511 = vld [vmem:[%s219 + $0x8e8] sm:$0xff]
      %v512 = vld [vmem:[%s219 + $0x8f0] sm:$0xff]
      %v513 = vld [vmem:[%s219 + $0x8f8] sm:$0xff]
      %v514 = vld [vmem:[%s219 + $0x900] sm:$0xff]
      %v515 = vld [vmem:[%s219 + $0x908] sm:$0xff]
      %v516 = vld [vmem:[%s219 + $0x910] sm:$0xff]
      %v517 = vld [vmem:[%s219 + $0x918] sm:$0xff]
      %v518 = vld [vmem:[%s219 + $0x920] sm:$0xff]
      %v519 = vld [vmem:[%s219 + $0x928] sm:$0xff]
      %v520 = vld [vmem:[%s219 + $0x930] sm:$0xff]
      %v521 = vld [vmem:[%s219 + $0x938] sm:$0xff]
      %v522 = vld [vmem:[%s219 + $0x940] sm:$0xff]
      %v523 = vld [vmem:[%s219 + $0x948] sm:$0xff]
      %v524 = vld [vmem:[%s219 + $0x950] sm:$0xff]
      %v525 = vld [vmem:[%s219 + $0x958] sm:$0xff]
      %v526 = vld [vmem:[%s219 + $0x960] sm:$0xff]
      %v527 = vld [vmem:[%s219 + $0x968] sm:$0xff]
      %v528 = vld [vmem:[%s219 + $0x970] sm:$0xff]
      %v529 = vld [vmem:[%s219 + $0x978] sm:$0xff]
      %v530 = vld [vmem:[%s219 + $0x980] sm:$0xff]
      %v531 = vld [vmem:[%s219 + $0x988] sm:$0xff]
      %v532 = vld [vmem:[%s219 + $0x990] sm:$0xff]
      %v533 = vld [vmem:[%s219 + $0x998] sm:$0xff]
      %v534 = vld [vmem:[%s219 + $0x9a0] sm:$0xff]
      %v535 = vld [vmem:[%s219 + $0x9a8] sm:$0xff]
      %v536 = vld [vmem:[%s219 + $0x9b0] sm:$0xff]
      %v537 = vld [vmem:[%s219 + $0x9b8] sm:$0xff]
      %v538 = vld [vmem:[%s219 + $0x9c0] sm:$0xff]
      %v539 = vld [vmem:[%s219 + $0x9c8] sm:$0xff]
      %v540 = vld [vmem:[%s219 + $0x9d0] sm:$0xff]
      %v541 = vld [vmem:[%s219 + $0x9d8] sm:$0xff]
      %v542 = vld [vmem:[%s219 + $0x9e0] sm:$0xff]
      %v543 = vld [vmem:[%s219 + $0x9e8] sm:$0xff]
      %v544 = vld [vmem:[%s219 + $0x9f0] sm:$0xff]
      %v545 = vld [vmem:[%s219 + $0x9f8] sm:$0xff]
      %v546 = vld [vmem:[%s219 + $0xa00] sm:$0xff]
      %v547 = vld [vmem:[%s219 + $0xa08] sm:$0xff]
      %v548 = vld [vmem:[%s219 + $0xa10] sm:$0xff]
      %v549 = vld [vmem:[%s219 + $0xa18] sm:$0xff]
      %v550 = vld [vmem:[%s219 + $0xa20] sm:$0xff]
      %v551 = vld [vmem:[%s219 + $0xa28] sm:$0xff]
      %v552 = vld [vmem:[%s219 + $0xa30] sm:$0xff]
      %v553 = vld [vmem:[%s219 + $0xa38] sm:$0xff]
      %v554 = vld [vmem:[%s219 + $0xa40] sm:$0xff]
      %v555 = vld [vmem:[%s219 + $0xa48] sm:$0xff]
      %v556 = vld [vmem:[%s219 + $0xa50] sm:$0xff]
      %v557 = vld [vmem:[%s219 + $0xa58] sm:$0xff]
      %v558 = vld [vmem:[%s219 + $0xa60] sm:$0xff]
      %v559 = vld [vmem:[%s219 + $0xa68] sm:$0xff]
      %v560 = vld [vmem:[%s219 + $0xa70] sm:$0xff]
      %v561 = vld [vmem:[%s219 + $0xa78] sm:$0xff]
      %v562 = vld [vmem:[%s219 + $0xa80] sm:$0xff]
      %v563 = vld [vmem:[%s219 + $0xa88] sm:$0xff]
      %v564 = vld [vmem:[%s219 + $0xa90] sm:$0xff]
      %v565 = vld [vmem:[%s219 + $0xa98] sm:$0xff]
      %v566 = vld [vmem:[%s219 + $0xaa0] sm:$0xff]
      %v567 = vld [vmem:[%s219 + $0xaa8] sm:$0xff]
      %v568 = vld [vmem:[%s219 + $0xab0] sm:$0xff]
      %v569 = vld [vmem:[%s219 + $0xab8] sm:$0xff]
      %v570 = vld [vmem:[%s219 + $0xac0] sm:$0xff]
      %v571 = vld [vmem:[%s219 + $0xac8] sm:$0xff]
      %v572 = vld [vmem:[%s219 + $0xad0] sm:$0xff]
      %v573 = vld [vmem:[%s219 + $0xad8] sm:$0xff]
      %v574 = vld [vmem:[%s219 + $0xae0] sm:$0xff]
      %v575 = vld [vmem:[%s219 + $0xae8] sm:$0xff]
      %v576 = vld [vmem:[%s219 + $0xaf0] sm:$0xff]
      %v577 = vld [vmem:[%s219 + $0xaf8] sm:$0xff]
      %v578 = vld [vmem:[%s219 + $0xb00] sm:$0xff]
      %v579 = vld [vmem:[%s219 + $0xb08] sm:$0xff]
      %v580 = vld [vmem:[%s219 + $0xb10] sm:$0xff]
      %v581 = vld [vmem:[%s219 + $0xb18] sm:$0xff]
      %v582 = vld [vmem:[%s219 + $0xb20] sm:$0xff]
      %v583 = vld [vmem:[%s219 + $0xb28] sm:$0xff]
      %v584 = vld [vmem:[%s219 + $0xb30] sm:$0xff]
      %v585 = vld [vmem:[%s219 + $0xb38] sm:$0xff]
      %v586 = vld [vmem:[%s219 + $0xb40] sm:$0xff]
      %v587 = vld [vmem:[%s219 + $0xb48] sm:$0xff]
      %v588 = vld [vmem:[%s219 + $0xb50] sm:$0xff]
      %v589 = vld [vmem:[%s219 + $0xb58] sm:$0xff]
      %v590 = vld [vmem:[%s219 + $0xb60] sm:$0xff]
      %v591 = vld [vmem:[%s219 + $0xb68] sm:$0xff]
      %v592 = vld [vmem:[%s219 + $0xb70] sm:$0xff]
      %v593 = vld [vmem:[%s219 + $0xb78] sm:$0xff]
      %v594 = vld [vmem:[%s219 + $0xb80] sm:$0xff]
      %v595 = vld [vmem:[%s219 + $0xb88] sm:$0xff]
      %v596 = vld [vmem:[%s219 + $0xb90] sm:$0xff]
      %v597 = vld [vmem:[%s219 + $0xb98] sm:$0xff]
      %v598 = vld [vmem:[%s219 + $0xba0] sm:$0xff]
      %v599 = vld [vmem:[%s219 + $0xba8] sm:$0xff]
      %v600 = vld [vmem:[%s219 + $0xbb0] sm:$0xff]
      %v601 = vld [vmem:[%s219 + $0xbb8] sm:$0xff]
      %v602 = vld [vmem:[%s219 + $0xbc0] sm:$0xff]
      %v603 = vld [vmem:[%s219 + $0xbc8] sm:$0xff]
      %v604 = vld [vmem:[%s219 + $0xbd0] sm:$0xff]
      %v605 = vld [vmem:[%s219 + $0xbd8] sm:$0xff]
      %v606 = vld [vmem:[%s219 + $0xbe0] sm:$0xff]
      %v607 = vld [vmem:[%s219 + $0xbe8] sm:$0xff]
      %v608 = vld [vmem:[%s219 + $0xbf0] sm:$0xff]
      %v609 = vld [vmem:[%s219 + $0xbf8] sm:$0xff]
      %v610 = vld [vmem:[%s219 + $0xc00] sm:$0xff]
      %v611 = vld [vmem:[%s219 + $0xc08] sm:$0xff]
      %v612 = vld [vmem:[%s219 + $0xc10] sm:$0xff]
      %v613 = vld [vmem:[%s219 + $0xc18] sm:$0xff]
      %v614 = vld [vmem:[%s219 + $0xc20] sm:$0xff]
      %v615 = vld [vmem:[%s219 + $0xc28] sm:$0xff]
      %v616 = vld [vmem:[%s219 + $0xc30] sm:$0xff]
      %v617 = vld [vmem:[%s219 + $0xc38] sm:$0xff]
      %v618 = vld [vmem:[%s219 + $0xc40] sm:$0xff]
      %v619 = vld [vmem:[%s219 + $0xc48] sm:$0xff]
      %v620 = vld [vmem:[%s219 + $0xc50] sm:$0xff]
      %v621 = vld [vmem:[%s219 + $0xc58] sm:$0xff]
      %v622 = vld [vmem:[%s219 + $0xc60] sm:$0xff]
      %v623 = vld [vmem:[%s219 + $0xc68] sm:$0xff]
      %v624 = vld [vmem:[%s219 + $0xc70] sm:$0xff]
      %v625 = vld [vmem:[%s219 + $0xc78] sm:$0xff]
      %v626 = vld [vmem:[%s219 + $0xc80] sm:$0xff]
      %v627 = vld [vmem:[%s219 + $0xc88] sm:$0xff]
      %v628 = vld [vmem:[%s219 + $0xc90] sm:$0xff]
      %v629 = vld [vmem:[%s219 + $0xc98] sm:$0xff]
      %v630 = vld [vmem:[%s219 + $0xca0] sm:$0xff]
      %v631 = vld [vmem:[%s219 + $0xca8] sm:$0xff]
      %v632 = vld [vmem:[%s219 + $0xcb0] sm:$0xff]
      %v633 = vld [vmem:[%s219 + $0xcb8] sm:$0xff]
      %v634 = vld [vmem:[%s219 + $0xcc0] sm:$0xff]
      %v635 = vld [vmem:[%s219 + $0xcc8] sm:$0xff]
      %v636 = vld [vmem:[%s219 + $0xcd0] sm:$0xff]
      %v637 = vld [vmem:[%s219 + $0xcd8] sm:$0xff]
      %v638 = vld [vmem:[%s219 + $0xce0] sm:$0xff]
      %v639 = vld [vmem:[%s219 + $0xce8] sm:$0xff]
      %v640 = vld [vmem:[%s219 + $0xcf0] sm:$0xff]
      %v641 = vld [vmem:[%s219 + $0xcf8] sm:$0xff]
      %v642 = vld [vmem:[%s219 + $0xd00] sm:$0xff]
      %v643 = vld [vmem:[%s219 + $0xd08] sm:$0xff]
      %v644 = vld [vmem:[%s219 + $0xd10] sm:$0xff]
      %v645 = vld [vmem:[%s219 + $0xd18] sm:$0xff]
      %v646 = vld [vmem:[%s219 + $0xd20] sm:$0xff]
      %v647 = vld [vmem:[%s219 + $0xd28] sm:$0xff]
      %v648 = vld [vmem:[%s219 + $0xd30] sm:$0xff]
      %v649 = vld [vmem:[%s219 + $0xd38] sm:$0xff]
      %v650 = vld [vmem:[%s219 + $0xd40] sm:$0xff]
      %v651 = vld [vmem:[%s219 + $0xd48] sm:$0xff]
      %v652 = vld [vmem:[%s219 + $0xd50] sm:$0xff]
      %v653 = vld [vmem:[%s219 + $0xd58] sm:$0xff]
      %v654 = vld [vmem:[%s219 + $0xd60] sm:$0xff]
      %v655 = vld [vmem:[%s219 + $0xd68] sm:$0xff]
      %v656 = vld [vmem:[%s219 + $0xd70] sm:$0xff]
      %v657 = vld [vmem:[%s219 + $0xd78] sm:$0xff]
      %v658 = vld [vmem:[%s219 + $0xd80] sm:$0xff]
      %v659 = vld [vmem:[%s219 + $0xd88] sm:$0xff]
      %v660 = vld [vmem:[%s219 + $0xd90] sm:$0xff]
      %v661 = vld [vmem:[%s219 + $0xd98] sm:$0xff]
      %v662 = vld [vmem:[%s219 + $0xda0] sm:$0xff]
      %v663 = vld [vmem:[%s219 + $0xda8] sm:$0xff]
      %v664 = vld [vmem:[%s219 + $0xdb0] sm:$0xff]
      %v665 = vld [vmem:[%s219 + $0xdb8] sm:$0xff]
      %v666 = vld [vmem:[%s219 + $0xdc0] sm:$0xff]
      %v667 = vld [vmem:[%s219 + $0xdc8] sm:$0xff]
      %v668 = vld [vmem:[%s219 + $0xdd0] sm:$0xff]
      %v669 = vld [vmem:[%s219 + $0xdd8] sm:$0xff]
      %v670 = vld [vmem:[%s219 + $0xde0] sm:$0xff]
      %v671 = vld [vmem:[%s219 + $0xde8] sm:$0xff]
      %v672 = vld [vmem:[%s219 + $0xdf0] sm:$0xff]
      %v673 = vld [vmem:[%s219 + $0xdf8] sm:$0xff]
      %v674 = vld [vmem:[%s219 + $0xe00] sm:$0xff]
      %v675 = vld [vmem:[%s219 + $0xe08] sm:$0xff]
      %v676 = vld [vmem:[%s219 + $0xe10] sm:$0xff]
      %v677 = vld [vmem:[%s219 + $0xe18] sm:$0xff]
      %v678 = vld [vmem:[%s219 + $0xe20] sm:$0xff]
      %v679 = vld [vmem:[%s219 + $0xe28] sm:$0xff]
      %v680 = vld [vmem:[%s219 + $0xe30] sm:$0xff]
      %v681 = vld [vmem:[%s219 + $0xe38] sm:$0xff]
      %v682 = vld [vmem:[%s219 + $0xe40] sm:$0xff]
      %v683 = vld [vmem:[%s219 + $0xe48] sm:$0xff]
      %v684 = vld [vmem:[%s219 + $0xe50] sm:$0xff]
      %v685 = vld [vmem:[%s219 + $0xe58] sm:$0xff]
      %v686 = vld [vmem:[%s219 + $0xe60] sm:$0xff]
      %v687 = vld [vmem:[%s219 + $0xe68] sm:$0xff]
      %v688 = vld [vmem:[%s219 + $0xe70] sm:$0xff]
      %v689 = vld [vmem:[%s219 + $0xe78] sm:$0xff]
      %v690 = vld [vmem:[%s219 + $0xe80] sm:$0xff]
      %v691 = vld [vmem:[%s219 + $0xe88] sm:$0xff]
      %v692 = vld [vmem:[%s219 + $0xe90] sm:$0xff]
      %v693 = vld [vmem:[%s219 + $0xe98] sm:$0xff]
      %v694 = vld [vmem:[%s219 + $0xea0] sm:$0xff]
      %v695 = vld [vmem:[%s219 + $0xea8] sm:$0xff]
      %v696 = vld [vmem:[%s219 + $0xeb0] sm:$0xff]
      %v697 = vld [vmem:[%s219 + $0xeb8] sm:$0xff]
      %v698 = vld [vmem:[%s219 + $0xec0] sm:$0xff]
      %v699 = vld [vmem:[%s219 + $0xec8] sm:$0xff]
      %v700 = vld [vmem:[%s219 + $0xed0] sm:$0xff]
      %v701 = vld [vmem:[%s219 + $0xed8] sm:$0xff]
      %v702 = vld [vmem:[%s219 + $0xee0] sm:$0xff]
      %v703 = vld [vmem:[%s219 + $0xee8] sm:$0xff]
      %v704 = vld [vmem:[%s219 + $0xef0] sm:$0xff]
      %v705 = vld [vmem:[%s219 + $0xef8] sm:$0xff]
      %v706 = vld [vmem:[%s219 + $0xf00] sm:$0xff]
      %v707 = vld [vmem:[%s219 + $0xf08] sm:$0xff]
      %v708 = vld [vmem:[%s219 + $0xf10] sm:$0xff]
      %v709 = vld [vmem:[%s219 + $0xf18] sm:$0xff]
      %v710 = vld [vmem:[%s219 + $0xf20] sm:$0xff]
      %v711 = vld [vmem:[%s219 + $0xf28] sm:$0xff]
      %v712 = vld [vmem:[%s219 + $0xf30] sm:$0xff]
      %v713 = vld [vmem:[%s219 + $0xf38] sm:$0xff]
      %v714 = vld [vmem:[%s219 + $0xf40] sm:$0xff]
      %v715 = vld [vmem:[%s219 + $0xf48] sm:$0xff]
      %v716 = vld [vmem:[%s219 + $0xf50] sm:$0xff]
      %v717 = vld [vmem:[%s219 + $0xf58] sm:$0xff]
      %v718 = vld [vmem:[%s219 + $0xf60] sm:$0xff]
      %v719 = vld [vmem:[%s219 + $0xf68] sm:$0xff]
      %v720 = vld [vmem:[%s219 + $0xf70] sm:$0xff]
      %v721 = vld [vmem:[%s219 + $0xf78] sm:$0xff]
      %v722 = vld [vmem:[%s219 + $0xf80] sm:$0xff]
      %v723 = vld [vmem:[%s219 + $0xf88] sm:$0xff]
      %v724 = vld [vmem:[%s219 + $0xf90] sm:$0xff]
      %v725 = vld [vmem:[%s219 + $0xf98] sm:$0xff]
      %v726 = vld [vmem:[%s219 + $0xfa0] sm:$0xff]
      %v727 = vld [vmem:[%s219 + $0xfa8] sm:$0xff]
      %v728 = vld [vmem:[%s219 + $0xfb0] sm:$0xff]
      %v729 = vld [vmem:[%s219 + $0xfb8] sm:$0xff]
      %v730 = vld [vmem:[%s219 + $0xfc0] sm:$0xff]
      %v731 = vld [vmem:[%s219 + $0xfc8] sm:$0xff]
      %v732 = vld [vmem:[%s219 + $0xfd0] sm:$0xff]
      %v733 = vld [vmem:[%s219 + $0xfd8] sm:$0xff]
      %v734 = vld [vmem:[%s219 + $0xfe0] sm:$0xff]
      %v735 = vld [vmem:[%s219 + $0xfe8] sm:$0xff]
      %v736 = vld [vmem:[%s219 + $0xff0] sm:$0xff]
      %v737 = vld [vmem:[%s219 + $0xff8] sm:$0xff]
      %v738 = vadd.f32 %v226, 0.0
      %v739 = vadd.f32 %v227, 0.0
      %v740 = vadd.f32 %v228, 0.0
      %v741 = vadd.f32 %v229, 0.0
      %v742 = vadd.f32 %v230, 0.0
      %v743 = vadd.f32 %v231, 0.0
      %v744 = vadd.f32 %v232, 0.0
      %v745 = vadd.f32 %v233, 0.0
      %v746 = vadd.f32 %v234, 0.0
      %v747 = vadd.f32 %v235, 0.0
      %v748 = vadd.f32 %v236, 0.0
      %v749 = vadd.f32 %v237, 0.0
      %v750 = vadd.f32 %v238, 0.0
      %v751 = vadd.f32 %v239, 0.0
      %v752 = vadd.f32 %v240, 0.0
      %v753 = vadd.f32 %v241, 0.0
      %v754 = vadd.f32 %v242, 0.0
      %v755 = vadd.f32 %v243, 0.0
      %v756 = vadd.f32 %v244, 0.0
      %v757 = vadd.f32 %v245, 0.0
      %v758 = vadd.f32 %v246, 0.0
      %v759 = vadd.f32 %v247, 0.0
      %v760 = vadd.f32 %v248, 0.0
      %v761 = vadd.f32 %v249, 0.0
      %v762 = vadd.f32 %v250, 0.0
      %v763 = vadd.f32 %v251, 0.0
      %v764 = vadd.f32 %v252, 0.0
      %v765 = vadd.f32 %v253, 0.0
      %v766 = vadd.f32 %v254, 0.0
      %v767 = vadd.f32 %v255, 0.0
      %v768 = vadd.f32 %v256, 0.0
      %v769 = vadd.f32 %v257, 0.0
      %v770 = vadd.f32 %v258, 0.0
      %v771 = vadd.f32 %v259, 0.0
      %v772 = vadd.f32 %v260, 0.0
      %v773 = vadd.f32 %v261, 0.0
      %v774 = vadd.f32 %v262, 0.0
      %v775 = vadd.f32 %v263, 0.0
      %v776 = vadd.f32 %v264, 0.0
      %v777 = vadd.f32 %v265, 0.0
      %v778 = vadd.f32 %v266, 0.0
      %v779 = vadd.f32 %v267, 0.0
      %v780 = vadd.f32 %v268, 0.0
      %v781 = vadd.f32 %v269, 0.0
      %v782 = vadd.f32 %v270, 0.0
      %v783 = vadd.f32 %v271, 0.0
      %v784 = vadd.f32 %v272, 0.0
      %v785 = vadd.f32 %v273, 0.0
      %v786 = vadd.f32 %v274, 0.0
      %v787 = vadd.f32 %v275, 0.0
      %v788 = vadd.f32 %v276, 0.0
      %v789 = vadd.f32 %v277, 0.0
      %v790 = vadd.f32 %v278, 0.0
      %v791 = vadd.f32 %v279, 0.0
      %v792 = vadd.f32 %v280, 0.0
      %v793 = vadd.f32 %v281, 0.0
      %v794 = vadd.f32 %v282, 0.0
      %v795 = vadd.f32 %v283, 0.0
      %v796 = vadd.f32 %v284, 0.0
      %v797 = vadd.f32 %v285, 0.0
      %v798 = vadd.f32 %v286, 0.0
      %v799 = vadd.f32 %v287, 0.0
      %v800 = vadd.f32 %v288, 0.0
      %v801 = vadd.f32 %v289, 0.0
      %v802 = vadd.f32 %v290, 0.0
      %v803 = vadd.f32 %v291, 0.0
      %v804 = vadd.f32 %v292, 0.0
      %v805 = vadd.f32 %v293, 0.0
      %v806 = vadd.f32 %v294, 0.0
      %v807 = vadd.f32 %v295, 0.0
      %v808 = vadd.f32 %v296, 0.0
      %v809 = vadd.f32 %v297, 0.0
      %v810 = vadd.f32 %v298, 0.0
      %v811 = vadd.f32 %v299, 0.0
      %v812 = vadd.f32 %v300, 0.0
      %v813 = vadd.f32 %v301, 0.0
      %v814 = vadd.f32 %v302, 0.0
      %v815 = vadd.f32 %v303, 0.0
      %v816 = vadd.f32 %v304, 0.0
      %v817 = vadd.f32 %v305, 0.0
      %v818 = vadd.f32 %v306, 0.0
      %v819 = vadd.f32 %v307, 0.0
      %v820 = vadd.f32 %v308, 0.0
      %v821 = vadd.f32 %v309, 0.0
      %v822 = vadd.f32 %v310, 0.0
      %v823 = vadd.f32 %v311, 0.0
      %v824 = vadd.f32 %v312, 0.0
      %v825 = vadd.f32 %v313, 0.0
      %v826 = vadd.f32 %v314, 0.0
      %v827 = vadd.f32 %v315, 0.0
      %v828 = vadd.f32 %v316, 0.0
      %v829 = vadd.f32 %v317, 0.0
      %v830 = vadd.f32 %v318, 0.0
      %v831 = vadd.f32 %v319, 0.0
      %v832 = vadd.f32 %v320, 0.0
      %v833 = vadd.f32 %v321, 0.0
      %v834 = vadd.f32 %v322, 0.0
      %v835 = vadd.f32 %v323, 0.0
      %v836 = vadd.f32 %v324, 0.0
      %v837 = vadd.f32 %v325, 0.0
      %v838 = vadd.f32 %v326, 0.0
      %v839 = vadd.f32 %v327, 0.0
      %v840 = vadd.f32 %v328, 0.0
      %v841 = vadd.f32 %v329, 0.0
      %v842 = vadd.f32 %v330, 0.0
      %v843 = vadd.f32 %v331, 0.0
      %v844 = vadd.f32 %v332, 0.0
      %v845 = vadd.f32 %v333, 0.0
      %v846 = vadd.f32 %v334, 0.0
      %v847 = vadd.f32 %v335, 0.0
      %v848 = vadd.f32 %v336, 0.0
      %v849 = vadd.f32 %v337, 0.0
      %v850 = vadd.f32 %v338, 0.0
      %v851 = vadd.f32 %v339, 0.0
      %v852 = vadd.f32 %v340, 0.0
      %v853 = vadd.f32 %v341, 0.0
      %v854 = vadd.f32 %v342, 0.0
      %v855 = vadd.f32 %v343, 0.0
      %v856 = vadd.f32 %v344, 0.0
      %v857 = vadd.f32 %v345, 0.0
      %v858 = vadd.f32 %v346, 0.0
      %v859 = vadd.f32 %v347, 0.0
      %v860 = vadd.f32 %v348, 0.0
      %v861 = vadd.f32 %v349, 0.0
      %v862 = vadd.f32 %v350, 0.0
      %v863 = vadd.f32 %v351, 0.0
      %v864 = vadd.f32 %v352, 0.0
      %v865 = vadd.f32 %v353, 0.0
      %v866 = vadd.f32 %v354, 0.0
      %v867 = vadd.f32 %v355, 0.0
      %v868 = vadd.f32 %v356, 0.0
      %v869 = vadd.f32 %v357, 0.0
      %v870 = vadd.f32 %v358, 0.0
      %v871 = vadd.f32 %v359, 0.0
      %v872 = vadd.f32 %v360, 0.0
      %v873 = vadd.f32 %v361, 0.0
      %v874 = vadd.f32 %v362, 0.0
      %v875 = vadd.f32 %v363, 0.0
      %v876 = vadd.f32 %v364, 0.0
      %v877 = vadd.f32 %v365, 0.0
      %v878 = vadd.f32 %v366, 0.0
      %v879 = vadd.f32 %v367, 0.0
      %v880 = vadd.f32 %v368, 0.0
      %v881 = vadd.f32 %v369, 0.0
      %v882 = vadd.f32 %v370, 0.0
      %v883 = vadd.f32 %v371, 0.0
      %v884 = vadd.f32 %v372, 0.0
      %v885 = vadd.f32 %v373, 0.0
      %v886 = vadd.f32 %v374, 0.0
      %v887 = vadd.f32 %v375, 0.0
      %v888 = vadd.f32 %v376, 0.0
      %v889 = vadd.f32 %v377, 0.0
      %v890 = vadd.f32 %v378, 0.0
      %v891 = vadd.f32 %v379, 0.0
      %v892 = vadd.f32 %v380, 0.0
      %v893 = vadd.f32 %v381, 0.0
      %v894 = vadd.f32 %v382, 0.0
      %v895 = vadd.f32 %v383, 0.0
      %v896 = vadd.f32 %v384, 0.0
      %v897 = vadd.f32 %v385, 0.0
      %v898 = vadd.f32 %v386, 0.0
      %v899 = vadd.f32 %v387, 0.0
      %v900 = vadd.f32 %v388, 0.0
      %v901 = vadd.f32 %v389, 0.0
      %v902 = vadd.f32 %v390, 0.0
      %v903 = vadd.f32 %v391, 0.0
      %v904 = vadd.f32 %v392, 0.0
      %v905 = vadd.f32 %v393, 0.0
      %v906 = vadd.f32 %v394, 0.0
      %v907 = vadd.f32 %v395, 0.0
      %v908 = vadd.f32 %v396, 0.0
      %v909 = vadd.f32 %v397, 0.0
      %v910 = vadd.f32 %v398, 0.0
      %v911 = vadd.f32 %v399, 0.0
      %v912 = vadd.f32 %v400, 0.0
      %v913 = vadd.f32 %v401, 0.0
      %v914 = vadd.f32 %v402, 0.0
      %v915 = vadd.f32 %v403, 0.0
      %v916 = vadd.f32 %v404, 0.0
      %v917 = vadd.f32 %v405, 0.0
      %v918 = vadd.f32 %v406, 0.0
      %v919 = vadd.f32 %v407, 0.0
      %v920 = vadd.f32 %v408, 0.0
      %v921 = vadd.f32 %v409, 0.0
      %v922 = vadd.f32 %v410, 0.0
      %v923 = vadd.f32 %v411, 0.0
      %v924 = vadd.f32 %v412, 0.0
      %v925 = vadd.f32 %v413, 0.0
      %v926 = vadd.f32 %v414, 0.0
      %v927 = vadd.f32 %v415, 0.0
      %v928 = vadd.f32 %v416, 0.0
      %v929 = vadd.f32 %v417, 0.0
      %v930 = vadd.f32 %v418, 0.0
      %v931 = vadd.f32 %v419, 0.0
      %v932 = vadd.f32 %v420, 0.0
      %v933 = vadd.f32 %v421, 0.0
      %v934 = vadd.f32 %v422, 0.0
      %v935 = vadd.f32 %v423, 0.0
      %v936 = vadd.f32 %v424, 0.0
      %v937 = vadd.f32 %v425, 0.0
      %v938 = vadd.f32 %v426, 0.0
      %v939 = vadd.f32 %v427, 0.0
      %v940 = vadd.f32 %v428, 0.0
      %v941 = vadd.f32 %v429, 0.0
      %v942 = vadd.f32 %v430, 0.0
      %v943 = vadd.f32 %v431, 0.0
      %v944 = vadd.f32 %v432, 0.0
      %v945 = vadd.f32 %v433, 0.0
      %v946 = vadd.f32 %v434, 0.0
      %v947 = vadd.f32 %v435, 0.0
      %v948 = vadd.f32 %v436, 0.0
      %v949 = vadd.f32 %v437, 0.0
      %v950 = vadd.f32 %v438, 0.0
      %v951 = vadd.f32 %v439, 0.0
      %v952 = vadd.f32 %v440, 0.0
      %v953 = vadd.f32 %v441, 0.0
      %v954 = vadd.f32 %v442, 0.0
      %v955 = vadd.f32 %v443, 0.0
      %v956 = vadd.f32 %v444, 0.0
      %v957 = vadd.f32 %v445, 0.0
      %v958 = vadd.f32 %v446, 0.0
      %v959 = vadd.f32 %v447, 0.0
      %v960 = vadd.f32 %v448, 0.0
      %v961 = vadd.f32 %v449, 0.0
      %v962 = vadd.f32 %v450, 0.0
      %v963 = vadd.f32 %v451, 0.0
      %v964 = vadd.f32 %v452, 0.0
      %v965 = vadd.f32 %v453, 0.0
      %v966 = vadd.f32 %v454, 0.0
      %v967 = vadd.f32 %v455, 0.0
      %v968 = vadd.f32 %v456, 0.0
      %v969 = vadd.f32 %v457, 0.0
      %v970 = vadd.f32 %v458, 0.0
      %v971 = vadd.f32 %v459, 0.0
      %v972 = vadd.f32 %v460, 0.0
      %v973 = vadd.f32 %v461, 0.0
      %v974 = vadd.f32 %v462, 0.0
      %v975 = vadd.f32 %v463, 0.0
      %v976 = vadd.f32 %v464, 0.0
      %v977 = vadd.f32 %v465, 0.0
      %v978 = vadd.f32 %v466, 0.0
      %v979 = vadd.f32 %v467, 0.0
      %v980 = vadd.f32 %v468, 0.0
      %v981 = vadd.f32 %v469, 0.0
      %v982 = vadd.f32 %v470, 0.0
      %v983 = vadd.f32 %v471, 0.0
      %v984 = vadd.f32 %v472, 0.0
      %v985 = vadd.f32 %v473, 0.0
      %v986 = vadd.f32 %v474, 0.0
      %v987 = vadd.f32 %v475, 0.0
      %v988 = vadd.f32 %v476, 0.0
      %v989 = vadd.f32 %v477, 0.0
      %v990 = vadd.f32 %v478, 0.0
      %v991 = vadd.f32 %v479, 0.0
      %v992 = vadd.f32 %v480, 0.0
      %v993 = vadd.f32 %v481, 0.0
      %v994 = vadd.f32 %v482, 0.0
      %v995 = vadd.f32 %v483, 0.0
      %v996 = vadd.f32 %v484, 0.0
      %v997 = vadd.f32 %v485, 0.0
      %v998 = vadd.f32 %v486, 0.0
      %v999 = vadd.f32 %v487, 0.0
      %v1000 = vadd.f32 %v488, 0.0
      %v1001 = vadd.f32 %v489, 0.0
      %v1002 = vadd.f32 %v490, 0.0
      %v1003 = vadd.f32 %v491, 0.0
      %v1004 = vadd.f32 %v492, 0.0
      %v1005 = vadd.f32 %v493, 0.0
      %v1006 = vadd.f32 %v494, 0.0
      %v1007 = vadd.f32 %v495, 0.0
      %v1008 = vadd.f32 %v496, 0.0
      %v1009 = vadd.f32 %v497, 0.0
      %v1010 = vadd.f32 %v498, 0.0
      %v1011 = vadd.f32 %v499, 0.0
      %v1012 = vadd.f32 %v500, 0.0
      %v1013 = vadd.f32 %v501, 0.0
      %v1014 = vadd.f32 %v502, 0.0
      %v1015 = vadd.f32 %v503, 0.0
      %v1016 = vadd.f32 %v504, 0.0
      %v1017 = vadd.f32 %v505, 0.0
      %v1018 = vadd.f32 %v506, 0.0
      %v1019 = vadd.f32 %v507, 0.0
      %v1020 = vadd.f32 %v508, 0.0
      %v1021 = vadd.f32 %v509, 0.0
      %v1022 = vadd.f32 %v510, 0.0
      %v1023 = vadd.f32 %v511, 0.0
      %v1024 = vadd.f32 %v512, 0.0
      %v1025 = vadd.f32 %v513, 0.0
      %v1026 = vadd.f32 %v514, 0.0
      %v1027 = vadd.f32 %v515, 0.0
      %v1028 = vadd.f32 %v516, 0.0
      %v1029 = vadd.f32 %v517, 0.0
      %v1030 = vadd.f32 %v518, 0.0
      %v1031 = vadd.f32 %v519, 0.0
      %v1032 = vadd.f32 %v520, 0.0
      %v1033 = vadd.f32 %v521, 0.0
      %v1034 = vadd.f32 %v522, 0.0
      %v1035 = vadd.f32 %v523, 0.0
      %v1036 = vadd.f32 %v524, 0.0
      %v1037 = vadd.f32 %v525, 0.0
      %v1038 = vadd.f32 %v526, 0.0
      %v1039 = vadd.f32 %v527, 0.0
      %v1040 = vadd.f32 %v528, 0.0
      %v1041 = vadd.f32 %v529, 0.0
      %v1042 = vadd.f32 %v530, 0.0
      %v1043 = vadd.f32 %v531, 0.0
      %v1044 = vadd.f32 %v532, 0.0
      %v1045 = vadd.f32 %v533, 0.0
      %v1046 = vadd.f32 %v534, 0.0
      %v1047 = vadd.f32 %v535, 0.0
      %v1048 = vadd.f32 %v536, 0.0
      %v1049 = vadd.f32 %v537, 0.0
      %v1050 = vadd.f32 %v538, 0.0
      %v1051 = vadd.f32 %v539, 0.0
      %v1052 = vadd.f32 %v540, 0.0
      %v1053 = vadd.f32 %v541, 0.0
      %v1054 = vadd.f32 %v542, 0.0
      %v1055 = vadd.f32 %v543, 0.0
      %v1056 = vadd.f32 %v544, 0.0
      %v1057 = vadd.f32 %v545, 0.0
      %v1058 = vadd.f32 %v546, 0.0
      %v1059 = vadd.f32 %v547, 0.0
      %v1060 = vadd.f32 %v548, 0.0
      %v1061 = vadd.f32 %v549, 0.0
      %v1062 = vadd.f32 %v550, 0.0
      %v1063 = vadd.f32 %v551, 0.0
      %v1064 = vadd.f32 %v552, 0.0
      %v1065 = vadd.f32 %v553, 0.0
      %v1066 = vadd.f32 %v554, 0.0
      %v1067 = vadd.f32 %v555, 0.0
      %v1068 = vadd.f32 %v556, 0.0
      %v1069 = vadd.f32 %v557, 0.0
      %v1070 = vadd.f32 %v558, 0.0
      %v1071 = vadd.f32 %v559, 0.0
      %v1072 = vadd.f32 %v560, 0.0
      %v1073 = vadd.f32 %v561, 0.0
      %v1074 = vadd.f32 %v562, 0.0
      %v1075 = vadd.f32 %v563, 0.0
      %v1076 = vadd.f32 %v564, 0.0
      %v1077 = vadd.f32 %v565, 0.0
      %v1078 = vadd.f32 %v566, 0.0
      %v1079 = vadd.f32 %v567, 0.0
      %v1080 = vadd.f32 %v568, 0.0
      %v1081 = vadd.f32 %v569, 0.0
      %v1082 = vadd.f32 %v570, 0.0
      %v1083 = vadd.f32 %v571, 0.0
      %v1084 = vadd.f32 %v572, 0.0
      %v1085 = vadd.f32 %v573, 0.0
      %v1086 = vadd.f32 %v574, 0.0
      %v1087 = vadd.f32 %v575, 0.0
      %v1088 = vadd.f32 %v576, 0.0
      %v1089 = vadd.f32 %v577, 0.0
      %v1090 = vadd.f32 %v578, 0.0
      %v1091 = vadd.f32 %v579, 0.0
      %v1092 = vadd.f32 %v580, 0.0
      %v1093 = vadd.f32 %v581, 0.0
      %v1094 = vadd.f32 %v582, 0.0
      %v1095 = vadd.f32 %v583, 0.0
      %v1096 = vadd.f32 %v584, 0.0
      %v1097 = vadd.f32 %v585, 0.0
      %v1098 = vadd.f32 %v586, 0.0
      %v1099 = vadd.f32 %v587, 0.0
      %v1100 = vadd.f32 %v588, 0.0
      %v1101 = vadd.f32 %v589, 0.0
      %v1102 = vadd.f32 %v590, 0.0
      %v1103 = vadd.f32 %v591, 0.0
      %v1104 = vadd.f32 %v592, 0.0
      %v1105 = vadd.f32 %v593, 0.0
      %v1106 = vadd.f32 %v594, 0.0
      %v1107 = vadd.f32 %v595, 0.0
      %v1108 = vadd.f32 %v596, 0.0
      %v1109 = vadd.f32 %v597, 0.0
      %v1110 = vadd.f32 %v598, 0.0
      %v1111 = vadd.f32 %v599, 0.0
      %v1112 = vadd.f32 %v600, 0.0
      %v1113 = vadd.f32 %v601, 0.0
      %v1114 = vadd.f32 %v602, 0.0
      %v1115 = vadd.f32 %v603, 0.0
      %v1116 = vadd.f32 %v604, 0.0
      %v1117 = vadd.f32 %v605, 0.0
      %v1118 = vadd.f32 %v606, 0.0
      %v1119 = vadd.f32 %v607, 0.0
      %v1120 = vadd.f32 %v608, 0.0
      %v1121 = vadd.f32 %v609, 0.0
      %v1122 = vadd.f32 %v610, 0.0
      %v1123 = vadd.f32 %v611, 0.0
      %v1124 = vadd.f32 %v612, 0.0
      %v1125 = vadd.f32 %v613, 0.0
      %v1126 = vadd.f32 %v614, 0.0
      %v1127 = vadd.f32 %v615, 0.0
      %v1128 = vadd.f32 %v616, 0.0
      %v1129 = vadd.f32 %v617, 0.0
      %v1130 = vadd.f32 %v618, 0.0
      %v1131 = vadd.f32 %v619, 0.0
      %v1132 = vadd.f32 %v620, 0.0
      %v1133 = vadd.f32 %v621, 0.0
      %v1134 = vadd.f32 %v622, 0.0
      %v1135 = vadd.f32 %v623, 0.0
      %v1136 = vadd.f32 %v624, 0.0
      %v1137 = vadd.f32 %v625, 0.0
      %v1138 = vadd.f32 %v626, 0.0
      %v1139 = vadd.f32 %v627, 0.0
      %v1140 = vadd.f32 %v628, 0.0
      %v1141 = vadd.f32 %v629, 0.0
      %v1142 = vadd.f32 %v630, 0.0
      %v1143 = vadd.f32 %v631, 0.0
      %v1144 = vadd.f32 %v632, 0.0
      %v1145 = vadd.f32 %v633, 0.0
      %v1146 = vadd.f32 %v634, 0.0
      %v1147 = vadd.f32 %v635, 0.0
      %v1148 = vadd.f32 %v636, 0.0
      %v1149 = vadd.f32 %v637, 0.0
      %v1150 = vadd.f32 %v638, 0.0
      %v1151 = vadd.f32 %v639, 0.0
      %v1152 = vadd.f32 %v640, 0.0
      %v1153 = vadd.f32 %v641, 0.0
      %v1154 = vadd.f32 %v642, 0.0
      %v1155 = vadd.f32 %v643, 0.0
      %v1156 = vadd.f32 %v644, 0.0
      %v1157 = vadd.f32 %v645, 0.0
      %v1158 = vadd.f32 %v646, 0.0
      %v1159 = vadd.f32 %v647, 0.0
      %v1160 = vadd.f32 %v648, 0.0
      %v1161 = vadd.f32 %v649, 0.0
      %v1162 = vadd.f32 %v650, 0.0
      %v1163 = vadd.f32 %v651, 0.0
      %v1164 = vadd.f32 %v652, 0.0
      %v1165 = vadd.f32 %v653, 0.0
      %v1166 = vadd.f32 %v654, 0.0
      %v1167 = vadd.f32 %v655, 0.0
      %v1168 = vadd.f32 %v656, 0.0
      %v1169 = vadd.f32 %v657, 0.0
      %v1170 = vadd.f32 %v658, 0.0
      %v1171 = vadd.f32 %v659, 0.0
      %v1172 = vadd.f32 %v660, 0.0
      %v1173 = vadd.f32 %v661, 0.0
      %v1174 = vadd.f32 %v662, 0.0
      %v1175 = vadd.f32 %v663, 0.0
      %v1176 = vadd.f32 %v664, 0.0
      %v1177 = vadd.f32 %v665, 0.0
      %v1178 = vadd.f32 %v666, 0.0
      %v1179 = vadd.f32 %v667, 0.0
      %v1180 = vadd.f32 %v668, 0.0
      %v1181 = vadd.f32 %v669, 0.0
      %v1182 = vadd.f32 %v670, 0.0
      %v1183 = vadd.f32 %v671, 0.0
      %v1184 = vadd.f32 %v672, 0.0
      %v1185 = vadd.f32 %v673, 0.0
      %v1186 = vadd.f32 %v674, 0.0
      %v1187 = vadd.f32 %v675, 0.0
      %v1188 = vadd.f32 %v676, 0.0
      %v1189 = vadd.f32 %v677, 0.0
      %v1190 = vadd.f32 %v678, 0.0
      %v1191 = vadd.f32 %v679, 0.0
      %v1192 = vadd.f32 %v680, 0.0
      %v1193 = vadd.f32 %v681, 0.0
      %v1194 = vadd.f32 %v682, 0.0
      %v1195 = vadd.f32 %v683, 0.0
      %v1196 = vadd.f32 %v684, 0.0
      %v1197 = vadd.f32 %v685, 0.0
      %v1198 = vadd.f32 %v686, 0.0
      %v1199 = vadd.f32 %v687, 0.0
      %v1200 = vadd.f32 %v688, 0.0
      %v1201 = vadd.f32 %v689, 0.0
      %v1202 = vadd.f32 %v690, 0.0
      %v1203 = vadd.f32 %v691, 0.0
      %v1204 = vadd.f32 %v692, 0.0
      %v1205 = vadd.f32 %v693, 0.0
      %v1206 = vadd.f32 %v694, 0.0
      %v1207 = vadd.f32 %v695, 0.0
      %v1208 = vadd.f32 %v696, 0.0
      %v1209 = vadd.f32 %v697, 0.0
      %v1210 = vadd.f32 %v698, 0.0
      %v1211 = vadd.f32 %v699, 0.0
      %v1212 = vadd.f32 %v700, 0.0
      %v1213 = vadd.f32 %v701, 0.0
      %v1214 = vadd.f32 %v702, 0.0
      %v1215 = vadd.f32 %v703, 0.0
      %v1216 = vadd.f32 %v704, 0.0
      %v1217 = vadd.f32 %v705, 0.0
      %v1218 = vadd.f32 %v706, 0.0
      %v1219 = vadd.f32 %v707, 0.0
      %v1220 = vadd.f32 %v708, 0.0
      %v1221 = vadd.f32 %v709, 0.0
      %v1222 = vadd.f32 %v710, 0.0
      %v1223 = vadd.f32 %v711, 0.0
      %v1224 = vadd.f32 %v712, 0.0
      %v1225 = vadd.f32 %v713, 0.0
      %v1226 = vadd.f32 %v714, 0.0
      %v1227 = vadd.f32 %v715, 0.0
      %v1228 = vadd.f32 %v716, 0.0
      %v1229 = vadd.f32 %v717, 0.0
      %v1230 = vadd.f32 %v718, 0.0
      %v1231 = vadd.f32 %v719, 0.0
      %v1232 = vadd.f32 %v720, 0.0
      %v1233 = vadd.f32 %v721, 0.0
      %v1234 = vadd.f32 %v722, 0.0
      %v1235 = vadd.f32 %v723, 0.0
      %v1236 = vadd.f32 %v724, 0.0
      %v1237 = vadd.f32 %v725, 0.0
      %v1238 = vadd.f32 %v726, 0.0
      %v1239 = vadd.f32 %v727, 0.0
      %v1240 = vadd.f32 %v728, 0.0
      %v1241 = vadd.f32 %v729, 0.0
      %v1242 = vadd.f32 %v730, 0.0
      %v1243 = vadd.f32 %v731, 0.0
      %v1244 = vadd.f32 %v732, 0.0
      %v1245 = vadd.f32 %v733, 0.0
      %v1246 = vadd.f32 %v734, 0.0
      %v1247 = vadd.f32 %v735, 0.0
      %v1248 = vadd.f32 %v736, 0.0
      %v1249 = vadd.f32 %v737, 0.0
      %1762 = vrot.lane.b32.xlu0 %v226, 124
      %v1763 = vpop.permute.xlu0 %1762
      %1764 = vrot.lane.b32.xlu0 %v227, 124
      %v1765 = vpop.permute.xlu0 %1764
      %1766 = vrot.lane.b32.xlu0 %v228, 124
      %v1767 = vpop.permute.xlu0 %1766
      %1768 = vrot.lane.b32.xlu0 %v229, 124
      %v1769 = vpop.permute.xlu0 %1768
      %1770 = vrot.lane.b32.xlu0 %v230, 124
      %v1771 = vpop.permute.xlu0 %1770
      %1772 = vrot.lane.b32.xlu0 %v231, 124
      %v1773 = vpop.permute.xlu0 %1772
      %1774 = vrot.lane.b32.xlu0 %v232, 124
      %v1775 = vpop.permute.xlu0 %1774
      %1776 = vrot.lane.b32.xlu0 %v233, 124
      %v1777 = vpop.permute.xlu0 %1776
      %1778 = vrot.lane.b32.xlu0 %v234, 124
      %v1779 = vpop.permute.xlu0 %1778
      %1780 = vrot.lane.b32.xlu0 %v235, 124
      %v1781 = vpop.permute.xlu0 %1780
      %1782 = vrot.lane.b32.xlu0 %v236, 124
      %v1783 = vpop.permute.xlu0 %1782
      %1784 = vrot.lane.b32.xlu0 %v237, 124
      %v1785 = vpop.permute.xlu0 %1784
      %1786 = vrot.lane.b32.xlu0 %v238, 124
      %v1787 = vpop.permute.xlu0 %1786
      %1788 = vrot.lane.b32.xlu0 %v239, 124
      %v1789 = vpop.permute.xlu0 %1788
      %1790 = vrot.lane.b32.xlu0 %v240, 124
      %v1791 = vpop.permute.xlu0 %1790
      %1792 = vrot.lane.b32.xlu0 %v241, 124
      %v1793 = vpop.permute.xlu0 %1792
      %1794 = vrot.lane.b32.xlu0 %v242, 124
      %v1795 = vpop.permute.xlu0 %1794
      %1796 = vrot.lane.b32.xlu0 %v243, 124
      %v1797 = vpop.permute.xlu0 %1796
      %1798 = vrot.lane.b32.xlu0 %v244, 124
      %v1799 = vpop.permute.xlu0 %1798
      %1800 = vrot.lane.b32.xlu0 %v245, 124
      %v1801 = vpop.permute.xlu0 %1800
      %1802 = vrot.lane.b32.xlu0 %v246, 124
      %v1803 = vpop.permute.xlu0 %1802
      %1804 = vrot.lane.b32.xlu0 %v247, 124
      %v1805 = vpop.permute.xlu0 %1804
      %1806 = vrot.lane.b32.xlu0 %v248, 124
      %v1807 = vpop.permute.xlu0 %1806
      %1808 = vrot.lane.b32.xlu0 %v249, 124
      %v1809 = vpop.permute.xlu0 %1808
      %1810 = vrot.lane.b32.xlu0 %v250, 124
      %v1811 = vpop.permute.xlu0 %1810
      %1812 = vrot.lane.b32.xlu0 %v251, 124
      %v1813 = vpop.permute.xlu0 %1812
      %1814 = vrot.lane.b32.xlu0 %v252, 124
      %v1815 = vpop.permute.xlu0 %1814
      %1816 = vrot.lane.b32.xlu0 %v253, 124
      %v1817 = vpop.permute.xlu0 %1816
      %1818 = vrot.lane.b32.xlu0 %v254, 124
      %v1819 = vpop.permute.xlu0 %1818
      %1820 = vrot.lane.b32.xlu0 %v255, 124
      %v1821 = vpop.permute.xlu0 %1820
      %1822 = vrot.lane.b32.xlu0 %v256, 124
      %v1823 = vpop.permute.xlu0 %1822
      %1824 = vrot.lane.b32.xlu0 %v257, 124
      %v1825 = vpop.permute.xlu0 %1824
      %1826 = vrot.lane.b32.xlu0 %v258, 124
      %v1827 = vpop.permute.xlu0 %1826
      %1828 = vrot.lane.b32.xlu0 %v259, 124
      %v1829 = vpop.permute.xlu0 %1828
      %1830 = vrot.lane.b32.xlu0 %v260, 124
      %v1831 = vpop.permute.xlu0 %1830
      %1832 = vrot.lane.b32.xlu0 %v261, 124
      %v1833 = vpop.permute.xlu0 %1832
      %1834 = vrot.lane.b32.xlu0 %v262, 124
      %v1835 = vpop.permute.xlu0 %1834
      %1836 = vrot.lane.b32.xlu0 %v263, 124
      %v1837 = vpop.permute.xlu0 %1836
      %1838 = vrot.lane.b32.xlu0 %v264, 124
      %v1839 = vpop.permute.xlu0 %1838
      %1840 = vrot.lane.b32.xlu0 %v265, 124
      %v1841 = vpop.permute.xlu0 %1840
      %1842 = vrot.lane.b32.xlu0 %v266, 124
      %v1843 = vpop.permute.xlu0 %1842
      %1844 = vrot.lane.b32.xlu0 %v267, 124
      %v1845 = vpop.permute.xlu0 %1844
      %1846 = vrot.lane.b32.xlu0 %v268, 124
      %v1847 = vpop.permute.xlu0 %1846
      %1848 = vrot.lane.b32.xlu0 %v269, 124
      %v1849 = vpop.permute.xlu0 %1848
      %1850 = vrot.lane.b32.xlu0 %v270, 124
      %v1851 = vpop.permute.xlu0 %1850
      %1852 = vrot.lane.b32.xlu0 %v271, 124
      %v1853 = vpop.permute.xlu0 %1852
      %1854 = vrot.lane.b32.xlu0 %v272, 124
      %v1855 = vpop.permute.xlu0 %1854
      %1856 = vrot.lane.b32.xlu0 %v273, 124
      %v1857 = vpop.permute.xlu0 %1856
      %1858 = vrot.lane.b32.xlu0 %v274, 124
      %v1859 = vpop.permute.xlu0 %1858
      %1860 = vrot.lane.b32.xlu0 %v275, 124
      %v1861 = vpop.permute.xlu0 %1860
      %1862 = vrot.lane.b32.xlu0 %v276, 124
      %v1863 = vpop.permute.xlu0 %1862
      %1864 = vrot.lane.b32.xlu0 %v277, 124
      %v1865 = vpop.permute.xlu0 %1864
      %1866 = vrot.lane.b32.xlu0 %v278, 124
      %v1867 = vpop.permute.xlu0 %1866
      %1868 = vrot.lane.b32.xlu0 %v279, 124
      %v1869 = vpop.permute.xlu0 %1868
      %1870 = vrot.lane.b32.xlu0 %v280, 124
      %v1871 = vpop.permute.xlu0 %1870
      %1872 = vrot.lane.b32.xlu0 %v281, 124
      %v1873 = vpop.permute.xlu0 %1872
      %1874 = vrot.lane.b32.xlu0 %v282, 124
      %v1875 = vpop.permute.xlu0 %1874
      %1876 = vrot.lane.b32.xlu0 %v283, 124
      %v1877 = vpop.permute.xlu0 %1876
      %1878 = vrot.lane.b32.xlu0 %v284, 124
      %v1879 = vpop.permute.xlu0 %1878
      %1880 = vrot.lane.b32.xlu0 %v285, 124
      %v1881 = vpop.permute.xlu0 %1880
      %1882 = vrot.lane.b32.xlu0 %v286, 124
      %v1883 = vpop.permute.xlu0 %1882
      %1884 = vrot.lane.b32.xlu0 %v287, 124
      %v1885 = vpop.permute.xlu0 %1884
      %1886 = vrot.lane.b32.xlu0 %v288, 124
      %v1887 = vpop.permute.xlu0 %1886
      %1888 = vrot.lane.b32.xlu0 %v289, 124
      %v1889 = vpop.permute.xlu0 %1888
      %1890 = vrot.lane.b32.xlu0 %v290, 124
      %v1891 = vpop.permute.xlu0 %1890
      %1892 = vrot.lane.b32.xlu0 %v291, 124
      %v1893 = vpop.permute.xlu0 %1892
      %1894 = vrot.lane.b32.xlu0 %v292, 124
      %v1895 = vpop.permute.xlu0 %1894
      %1896 = vrot.lane.b32.xlu0 %v293, 124
      %v1897 = vpop.permute.xlu0 %1896
      %1898 = vrot.lane.b32.xlu0 %v294, 124
      %v1899 = vpop.permute.xlu0 %1898
      %1900 = vrot.lane.b32.xlu0 %v295, 124
      %v1901 = vpop.permute.xlu0 %1900
      %1902 = vrot.lane.b32.xlu0 %v296, 124
      %v1903 = vpop.permute.xlu0 %1902
      %1904 = vrot.lane.b32.xlu0 %v297, 124
      %v1905 = vpop.permute.xlu0 %1904
      %1906 = vrot.lane.b32.xlu0 %v298, 124
      %v1907 = vpop.permute.xlu0 %1906
      %1908 = vrot.lane.b32.xlu0 %v299, 124
      %v1909 = vpop.permute.xlu0 %1908
      %1910 = vrot.lane.b32.xlu0 %v300, 124
      %v1911 = vpop.permute.xlu0 %1910
      %1912 = vrot.lane.b32.xlu0 %v301, 124
      %v1913 = vpop.permute.xlu0 %1912
      %1914 = vrot.lane.b32.xlu0 %v302, 124
      %v1915 = vpop.permute.xlu0 %1914
      %1916 = vrot.lane.b32.xlu0 %v303, 124
      %v1917 = vpop.permute.xlu0 %1916
      %1918 = vrot.lane.b32.xlu0 %v304, 124
      %v1919 = vpop.permute.xlu0 %1918
      %1920 = vrot.lane.b32.xlu0 %v305, 124
      %v1921 = vpop.permute.xlu0 %1920
      %1922 = vrot.lane.b32.xlu0 %v306, 124
      %v1923 = vpop.permute.xlu0 %1922
      %1924 = vrot.lane.b32.xlu0 %v307, 124
      %v1925 = vpop.permute.xlu0 %1924
      %1926 = vrot.lane.b32.xlu0 %v308, 124
      %v1927 = vpop.permute.xlu0 %1926
      %1928 = vrot.lane.b32.xlu0 %v309, 124
      %v1929 = vpop.permute.xlu0 %1928
      %1930 = vrot.lane.b32.xlu0 %v310, 124
      %v1931 = vpop.permute.xlu0 %1930
      %1932 = vrot.lane.b32.xlu0 %v311, 124
      %v1933 = vpop.permute.xlu0 %1932
      %1934 = vrot.lane.b32.xlu0 %v312, 124
      %v1935 = vpop.permute.xlu0 %1934
      %1936 = vrot.lane.b32.xlu0 %v313, 124
      %v1937 = vpop.permute.xlu0 %1936
      %1938 = vrot.lane.b32.xlu0 %v314, 124
      %v1939 = vpop.permute.xlu0 %1938
      %1940 = vrot.lane.b32.xlu0 %v315, 124
      %v1941 = vpop.permute.xlu0 %1940
      %1942 = vrot.lane.b32.xlu0 %v316, 124
      %v1943 = vpop.permute.xlu0 %1942
      %1944 = vrot.lane.b32.xlu0 %v317, 124
      %v1945 = vpop.permute.xlu0 %1944
      %1946 = vrot.lane.b32.xlu0 %v318, 124
      %v1947 = vpop.permute.xlu0 %1946
      %1948 = vrot.lane.b32.xlu0 %v319, 124
      %v1949 = vpop.permute.xlu0 %1948
      %1950 = vrot.lane.b32.xlu0 %v320, 124
      %v1951 = vpop.permute.xlu0 %1950
      %1952 = vrot.lane.b32.xlu0 %v321, 124
      %v1953 = vpop.permute.xlu0 %1952
      %1954 = vrot.lane.b32.xlu0 %v322, 124
      %v1955 = vpop.permute.xlu0 %1954
      %1956 = vrot.lane.b32.xlu0 %v323, 124
      %v1957 = vpop.permute.xlu0 %1956
      %1958 = vrot.lane.b32.xlu0 %v324, 124
      %v1959 = vpop.permute.xlu0 %1958
      %1960 = vrot.lane.b32.xlu0 %v325, 124
      %v1961 = vpop.permute.xlu0 %1960
      %1962 = vrot.lane.b32.xlu0 %v326, 124
      %v1963 = vpop.permute.xlu0 %1962
      %1964 = vrot.lane.b32.xlu0 %v327, 124
      %v1965 = vpop.permute.xlu0 %1964
      %1966 = vrot.lane.b32.xlu0 %v328, 124
      %v1967 = vpop.permute.xlu0 %1966
      %1968 = vrot.lane.b32.xlu0 %v329, 124
      %v1969 = vpop.permute.xlu0 %1968
      %1970 = vrot.lane.b32.xlu0 %v330, 124
      %v1971 = vpop.permute.xlu0 %1970
      %1972 = vrot.lane.b32.xlu0 %v331, 124
      %v1973 = vpop.permute.xlu0 %1972
      %1974 = vrot.lane.b32.xlu0 %v332, 124
      %v1975 = vpop.permute.xlu0 %1974
      %1976 = vrot.lane.b32.xlu0 %v333, 124
      %v1977 = vpop.permute.xlu0 %1976
      %1978 = vrot.lane.b32.xlu0 %v334, 124
      %v1979 = vpop.permute.xlu0 %1978
      %1980 = vrot.lane.b32.xlu0 %v335, 124
      %v1981 = vpop.permute.xlu0 %1980
      %1982 = vrot.lane.b32.xlu0 %v336, 124
      %v1983 = vpop.permute.xlu0 %1982
      %1984 = vrot.lane.b32.xlu0 %v337, 124
      %v1985 = vpop.permute.xlu0 %1984
      %1986 = vrot.lane.b32.xlu0 %v338, 124
      %v1987 = vpop.permute.xlu0 %1986
      %1988 = vrot.lane.b32.xlu0 %v339, 124
      %v1989 = vpop.permute.xlu0 %1988
      %1990 = vrot.lane.b32.xlu0 %v340, 124
      %v1991 = vpop.permute.xlu0 %1990
      %1992 = vrot.lane.b32.xlu0 %v341, 124
      %v1993 = vpop.permute.xlu0 %1992
      %1994 = vrot.lane.b32.xlu0 %v342, 124
      %v1995 = vpop.permute.xlu0 %1994
      %1996 = vrot.lane.b32.xlu0 %v343, 124
      %v1997 = vpop.permute.xlu0 %1996
      %1998 = vrot.lane.b32.xlu0 %v344, 124
      %v1999 = vpop.permute.xlu0 %1998
      %2000 = vrot.lane.b32.xlu0 %v345, 124
      %v2001 = vpop.permute.xlu0 %2000
      %2002 = vrot.lane.b32.xlu0 %v346, 124
      %v2003 = vpop.permute.xlu0 %2002
      %2004 = vrot.lane.b32.xlu0 %v347, 124
      %v2005 = vpop.permute.xlu0 %2004
      %2006 = vrot.lane.b32.xlu0 %v348, 124
      %v2007 = vpop.permute.xlu0 %2006
      %2008 = vrot.lane.b32.xlu0 %v349, 124
      %v2009 = vpop.permute.xlu0 %2008
      %2010 = vrot.lane.b32.xlu0 %v350, 124
      %v2011 = vpop.permute.xlu0 %2010
      %2012 = vrot.lane.b32.xlu0 %v351, 124
      %v2013 = vpop.permute.xlu0 %2012
      %2014 = vrot.lane.b32.xlu0 %v352, 124
      %v2015 = vpop.permute.xlu0 %2014
      %2016 = vrot.lane.b32.xlu0 %v353, 124
      %v2017 = vpop.permute.xlu0 %2016
      %2018 = vrot.lane.b32.xlu0 %v354, 124
      %v2019 = vpop.permute.xlu0 %2018
      %2020 = vrot.lane.b32.xlu0 %v355, 124
      %v2021 = vpop.permute.xlu0 %2020
      %2022 = vrot.lane.b32.xlu0 %v356, 124
      %v2023 = vpop.permute.xlu0 %2022
      %2024 = vrot.lane.b32.xlu0 %v357, 124
      %v2025 = vpop.permute.xlu0 %2024
      %2026 = vrot.lane.b32.xlu0 %v358, 124
      %v2027 = vpop.permute.xlu0 %2026
      %2028 = vrot.lane.b32.xlu0 %v359, 124
      %v2029 = vpop.permute.xlu0 %2028
      %2030 = vrot.lane.b32.xlu0 %v360, 124
      %v2031 = vpop.permute.xlu0 %2030
      %2032 = vrot.lane.b32.xlu0 %v361, 124
      %v2033 = vpop.permute.xlu0 %2032
      %2034 = vrot.lane.b32.xlu0 %v362, 124
      %v2035 = vpop.permute.xlu0 %2034
      %2036 = vrot.lane.b32.xlu0 %v363, 124
      %v2037 = vpop.permute.xlu0 %2036
      %2038 = vrot.lane.b32.xlu0 %v364, 124
      %v2039 = vpop.permute.xlu0 %2038
      %2040 = vrot.lane.b32.xlu0 %v365, 124
      %v2041 = vpop.permute.xlu0 %2040
      %2042 = vrot.lane.b32.xlu0 %v366, 124
      %v2043 = vpop.permute.xlu0 %2042
      %2044 = vrot.lane.b32.xlu0 %v367, 124
      %v2045 = vpop.permute.xlu0 %2044
      %2046 = vrot.lane.b32.xlu0 %v368, 124
      %v2047 = vpop.permute.xlu0 %2046
      %2048 = vrot.lane.b32.xlu0 %v369, 124
      %v2049 = vpop.permute.xlu0 %2048
      %2050 = vrot.lane.b32.xlu0 %v370, 124
      %v2051 = vpop.permute.xlu0 %2050
      %2052 = vrot.lane.b32.xlu0 %v371, 124
      %v2053 = vpop.permute.xlu0 %2052
      %2054 = vrot.lane.b32.xlu0 %v372, 124
      %v2055 = vpop.permute.xlu0 %2054
      %2056 = vrot.lane.b32.xlu0 %v373, 124
      %v2057 = vpop.permute.xlu0 %2056
      %2058 = vrot.lane.b32.xlu0 %v374, 124
      %v2059 = vpop.permute.xlu0 %2058
      %2060 = vrot.lane.b32.xlu0 %v375, 124
      %v2061 = vpop.permute.xlu0 %2060
      %2062 = vrot.lane.b32.xlu0 %v376, 124
      %v2063 = vpop.permute.xlu0 %2062
      %2064 = vrot.lane.b32.xlu0 %v377, 124
      %v2065 = vpop.permute.xlu0 %2064
      %2066 = vrot.lane.b32.xlu0 %v378, 124
      %v2067 = vpop.permute.xlu0 %2066
      %2068 = vrot.lane.b32.xlu0 %v379, 124
      %v2069 = vpop.permute.xlu0 %2068
      %2070 = vrot.lane.b32.xlu0 %v380, 124
      %v2071 = vpop.permute.xlu0 %2070
      %2072 = vrot.lane.b32.xlu0 %v381, 124
      %v2073 = vpop.permute.xlu0 %2072
      %2074 = vrot.lane.b32.xlu0 %v382, 124
      %v2075 = vpop.permute.xlu0 %2074
      %2076 = vrot.lane.b32.xlu0 %v383, 124
      %v2077 = vpop.permute.xlu0 %2076
      %2078 = vrot.lane.b32.xlu0 %v384, 124
      %v2079 = vpop.permute.xlu0 %2078
      %2080 = vrot.lane.b32.xlu0 %v385, 124
      %v2081 = vpop.permute.xlu0 %2080
      %2082 = vrot.lane.b32.xlu0 %v386, 124
      %v2083 = vpop.permute.xlu0 %2082
      %2084 = vrot.lane.b32.xlu0 %v387, 124
      %v2085 = vpop.permute.xlu0 %2084
      %2086 = vrot.lane.b32.xlu0 %v388, 124
      %v2087 = vpop.permute.xlu0 %2086
      %2088 = vrot.lane.b32.xlu0 %v389, 124
      %v2089 = vpop.permute.xlu0 %2088
      %2090 = vrot.lane.b32.xlu0 %v390, 124
      %v2091 = vpop.permute.xlu0 %2090
      %2092 = vrot.lane.b32.xlu0 %v391, 124
      %v2093 = vpop.permute.xlu0 %2092
      %2094 = vrot.lane.b32.xlu0 %v392, 124
      %v2095 = vpop.permute.xlu0 %2094
      %2096 = vrot.lane.b32.xlu0 %v393, 124
      %v2097 = vpop.permute.xlu0 %2096
      %2098 = vrot.lane.b32.xlu0 %v394, 124
      %v2099 = vpop.permute.xlu0 %2098
      %2100 = vrot.lane.b32.xlu0 %v395, 124
      %v2101 = vpop.permute.xlu0 %2100
      %2102 = vrot.lane.b32.xlu0 %v396, 124
      %v2103 = vpop.permute.xlu0 %2102
      %2104 = vrot.lane.b32.xlu0 %v397, 124
      %v2105 = vpop.permute.xlu0 %2104
      %2106 = vrot.lane.b32.xlu0 %v398, 124
      %v2107 = vpop.permute.xlu0 %2106
      %2108 = vrot.lane.b32.xlu0 %v399, 124
      %v2109 = vpop.permute.xlu0 %2108
      %2110 = vrot.lane.b32.xlu0 %v400, 124
      %v2111 = vpop.permute.xlu0 %2110
      %2112 = vrot.lane.b32.xlu0 %v401, 124
      %v2113 = vpop.permute.xlu0 %2112
      %2114 = vrot.lane.b32.xlu0 %v402, 124
      %v2115 = vpop.permute.xlu0 %2114
      %2116 = vrot.lane.b32.xlu0 %v403, 124
      %v2117 = vpop.permute.xlu0 %2116
      %2118 = vrot.lane.b32.xlu0 %v404, 124
      %v2119 = vpop.permute.xlu0 %2118
      %2120 = vrot.lane.b32.xlu0 %v405, 124
      %v2121 = vpop.permute.xlu0 %2120
      %2122 = vrot.lane.b32.xlu0 %v406, 124
      %v2123 = vpop.permute.xlu0 %2122
      %2124 = vrot.lane.b32.xlu0 %v407, 124
      %v2125 = vpop.permute.xlu0 %2124
      %2126 = vrot.lane.b32.xlu0 %v408, 124
      %v2127 = vpop.permute.xlu0 %2126
      %2128 = vrot.lane.b32.xlu0 %v409, 124
      %v2129 = vpop.permute.xlu0 %2128
      %2130 = vrot.lane.b32.xlu0 %v410, 124
      %v2131 = vpop.permute.xlu0 %2130
      %2132 = vrot.lane.b32.xlu0 %v411, 124
      %v2133 = vpop.permute.xlu0 %2132
      %2134 = vrot.lane.b32.xlu0 %v412, 124
      %v2135 = vpop.permute.xlu0 %2134
      %2136 = vrot.lane.b32.xlu0 %v413, 124
      %v2137 = vpop.permute.xlu0 %2136
      %2138 = vrot.lane.b32.xlu0 %v414, 124
      %v2139 = vpop.permute.xlu0 %2138
      %2140 = vrot.lane.b32.xlu0 %v415, 124
      %v2141 = vpop.permute.xlu0 %2140
      %2142 = vrot.lane.b32.xlu0 %v416, 124
      %v2143 = vpop.permute.xlu0 %2142
      %2144 = vrot.lane.b32.xlu0 %v417, 124
      %v2145 = vpop.permute.xlu0 %2144
      %2146 = vrot.lane.b32.xlu0 %v418, 124
      %v2147 = vpop.permute.xlu0 %2146
      %2148 = vrot.lane.b32.xlu0 %v419, 124
      %v2149 = vpop.permute.xlu0 %2148
      %2150 = vrot.lane.b32.xlu0 %v420, 124
      %v2151 = vpop.permute.xlu0 %2150
      %2152 = vrot.lane.b32.xlu0 %v421, 124
      %v2153 = vpop.permute.xlu0 %2152
      %2154 = vrot.lane.b32.xlu0 %v422, 124
      %v2155 = vpop.permute.xlu0 %2154
      %2156 = vrot.lane.b32.xlu0 %v423, 124
      %v2157 = vpop.permute.xlu0 %2156
      %2158 = vrot.lane.b32.xlu0 %v424, 124
      %v2159 = vpop.permute.xlu0 %2158
      %2160 = vrot.lane.b32.xlu0 %v425, 124
      %v2161 = vpop.permute.xlu0 %2160
      %2162 = vrot.lane.b32.xlu0 %v426, 124
      %v2163 = vpop.permute.xlu0 %2162
      %2164 = vrot.lane.b32.xlu0 %v427, 124
      %v2165 = vpop.permute.xlu0 %2164
      %2166 = vrot.lane.b32.xlu0 %v428, 124
      %v2167 = vpop.permute.xlu0 %2166
      %2168 = vrot.lane.b32.xlu0 %v429, 124
      %v2169 = vpop.permute.xlu0 %2168
      %2170 = vrot.lane.b32.xlu0 %v430, 124
      %v2171 = vpop.permute.xlu0 %2170
      %2172 = vrot.lane.b32.xlu0 %v431, 124
      %v2173 = vpop.permute.xlu0 %2172
      %2174 = vrot.lane.b32.xlu0 %v432, 124
      %v2175 = vpop.permute.xlu0 %2174
      %2176 = vrot.lane.b32.xlu0 %v433, 124
      %v2177 = vpop.permute.xlu0 %2176
      %2178 = vrot.lane.b32.xlu0 %v434, 124
      %v2179 = vpop.permute.xlu0 %2178
      %2180 = vrot.lane.b32.xlu0 %v435, 124
      %v2181 = vpop.permute.xlu0 %2180
      %2182 = vrot.lane.b32.xlu0 %v436, 124
      %v2183 = vpop.permute.xlu0 %2182
      %2184 = vrot.lane.b32.xlu0 %v437, 124
      %v2185 = vpop.permute.xlu0 %2184
      %2186 = vrot.lane.b32.xlu0 %v438, 124
      %v2187 = vpop.permute.xlu0 %2186
      %2188 = vrot.lane.b32.xlu0 %v439, 124
      %v2189 = vpop.permute.xlu0 %2188
      %2190 = vrot.lane.b32.xlu0 %v440, 124
      %v2191 = vpop.permute.xlu0 %2190
      %2192 = vrot.lane.b32.xlu0 %v441, 124
      %v2193 = vpop.permute.xlu0 %2192
      %2194 = vrot.lane.b32.xlu0 %v442, 124
      %v2195 = vpop.permute.xlu0 %2194
      %2196 = vrot.lane.b32.xlu0 %v443, 124
      %v2197 = vpop.permute.xlu0 %2196
      %2198 = vrot.lane.b32.xlu0 %v444, 124
      %v2199 = vpop.permute.xlu0 %2198
      %2200 = vrot.lane.b32.xlu0 %v445, 124
      %v2201 = vpop.permute.xlu0 %2200
      %2202 = vrot.lane.b32.xlu0 %v446, 124
      %v2203 = vpop.permute.xlu0 %2202
      %2204 = vrot.lane.b32.xlu0 %v447, 124
      %v2205 = vpop.permute.xlu0 %2204
      %2206 = vrot.lane.b32.xlu0 %v448, 124
      %v2207 = vpop.permute.xlu0 %2206
      %2208 = vrot.lane.b32.xlu0 %v449, 124
      %v2209 = vpop.permute.xlu0 %2208
      %2210 = vrot.lane.b32.xlu0 %v450, 124
      %v2211 = vpop.permute.xlu0 %2210
      %2212 = vrot.lane.b32.xlu0 %v451, 124
      %v2213 = vpop.permute.xlu0 %2212
      %2214 = vrot.lane.b32.xlu0 %v452, 124
      %v2215 = vpop.permute.xlu0 %2214
      %2216 = vrot.lane.b32.xlu0 %v453, 124
      %v2217 = vpop.permute.xlu0 %2216
      %2218 = vrot.lane.b32.xlu0 %v454, 124
      %v2219 = vpop.permute.xlu0 %2218
      %2220 = vrot.lane.b32.xlu0 %v455, 124
      %v2221 = vpop.permute.xlu0 %2220
      %2222 = vrot.lane.b32.xlu0 %v456, 124
      %v2223 = vpop.permute.xlu0 %2222
      %2224 = vrot.lane.b32.xlu0 %v457, 124
      %v2225 = vpop.permute.xlu0 %2224
      %2226 = vrot.lane.b32.xlu0 %v458, 124
      %v2227 = vpop.permute.xlu0 %2226
      %2228 = vrot.lane.b32.xlu0 %v459, 124
      %v2229 = vpop.permute.xlu0 %2228
      %2230 = vrot.lane.b32.xlu0 %v460, 124
      %v2231 = vpop.permute.xlu0 %2230
      %2232 = vrot.lane.b32.xlu0 %v461, 124
      %v2233 = vpop.permute.xlu0 %2232
      %2234 = vrot.lane.b32.xlu0 %v462, 124
      %v2235 = vpop.permute.xlu0 %2234
      %2236 = vrot.lane.b32.xlu0 %v463, 124
      %v2237 = vpop.permute.xlu0 %2236
      %2238 = vrot.lane.b32.xlu0 %v464, 124
      %v2239 = vpop.permute.xlu0 %2238
      %2240 = vrot.lane.b32.xlu0 %v465, 124
      %v2241 = vpop.permute.xlu0 %2240
      %2242 = vrot.lane.b32.xlu0 %v466, 124
      %v2243 = vpop.permute.xlu0 %2242
      %2244 = vrot.lane.b32.xlu0 %v467, 124
      %v2245 = vpop.permute.xlu0 %2244
      %2246 = vrot.lane.b32.xlu0 %v468, 124
      %v2247 = vpop.permute.xlu0 %2246
      %2248 = vrot.lane.b32.xlu0 %v469, 124
      %v2249 = vpop.permute.xlu0 %2248
      %2250 = vrot.lane.b32.xlu0 %v470, 124
      %v2251 = vpop.permute.xlu0 %2250
      %2252 = vrot.lane.b32.xlu0 %v471, 124
      %v2253 = vpop.permute.xlu0 %2252
      %2254 = vrot.lane.b32.xlu0 %v472, 124
      %v2255 = vpop.permute.xlu0 %2254
      %2256 = vrot.lane.b32.xlu0 %v473, 124
      %v2257 = vpop.permute.xlu0 %2256
      %2258 = vrot.lane.b32.xlu0 %v474, 124
      %v2259 = vpop.permute.xlu0 %2258
      %2260 = vrot.lane.b32.xlu0 %v475, 124
      %v2261 = vpop.permute.xlu0 %2260
      %2262 = vrot.lane.b32.xlu0 %v476, 124
      %v2263 = vpop.permute.xlu0 %2262
      %2264 = vrot.lane.b32.xlu0 %v477, 124
      %v2265 = vpop.permute.xlu0 %2264
      %2266 = vrot.lane.b32.xlu0 %v478, 124
      %v2267 = vpop.permute.xlu0 %2266
      %2268 = vrot.lane.b32.xlu0 %v479, 124
      %v2269 = vpop.permute.xlu0 %2268
      %2270 = vrot.lane.b32.xlu0 %v480, 124
      %v2271 = vpop.permute.xlu0 %2270
      %2272 = vrot.lane.b32.xlu0 %v481, 124
      %v2273 = vpop.permute.xlu0 %2272
      %2274 = vrot.lane.b32.xlu0 %v482, 124
      %v2275 = vpop.permute.xlu0 %2274
      %2276 = vrot.lane.b32.xlu0 %v483, 124
      %v2277 = vpop.permute.xlu0 %2276
      %2278 = vrot.lane.b32.xlu0 %v484, 124
      %v2279 = vpop.permute.xlu0 %2278
      %2280 = vrot.lane.b32.xlu0 %v485, 124
      %v2281 = vpop.permute.xlu0 %2280
      %2282 = vrot.lane.b32.xlu0 %v486, 124
      %v2283 = vpop.permute.xlu0 %2282
      %2284 = vrot.lane.b32.xlu0 %v487, 124
      %v2285 = vpop.permute.xlu0 %2284
      %2286 = vrot.lane.b32.xlu0 %v488, 124
      %v2287 = vpop.permute.xlu0 %2286
      %2288 = vrot.lane.b32.xlu0 %v489, 124
      %v2289 = vpop.permute.xlu0 %2288
      %2290 = vrot.lane.b32.xlu0 %v490, 124
      %v2291 = vpop.permute.xlu0 %2290
      %2292 = vrot.lane.b32.xlu0 %v491, 124
      %v2293 = vpop.permute.xlu0 %2292
      %2294 = vrot.lane.b32.xlu0 %v492, 124
      %v2295 = vpop.permute.xlu0 %2294
      %2296 = vrot.lane.b32.xlu0 %v493, 124
      %v2297 = vpop.permute.xlu0 %2296
      %2298 = vrot.lane.b32.xlu0 %v494, 124
      %v2299 = vpop.permute.xlu0 %2298
      %2300 = vrot.lane.b32.xlu0 %v495, 124
      %v2301 = vpop.permute.xlu0 %2300
      %2302 = vrot.lane.b32.xlu0 %v496, 124
      %v2303 = vpop.permute.xlu0 %2302
      %2304 = vrot.lane.b32.xlu0 %v497, 124
      %v2305 = vpop.permute.xlu0 %2304
      %2306 = vrot.lane.b32.xlu0 %v498, 124
      %v2307 = vpop.permute.xlu0 %2306
      %2308 = vrot.lane.b32.xlu0 %v499, 124
      %v2309 = vpop.permute.xlu0 %2308
      %2310 = vrot.lane.b32.xlu0 %v500, 124
      %v2311 = vpop.permute.xlu0 %2310
      %2312 = vrot.lane.b32.xlu0 %v501, 124
      %v2313 = vpop.permute.xlu0 %2312
      %2314 = vrot.lane.b32.xlu0 %v502, 124
      %v2315 = vpop.permute.xlu0 %2314
      %2316 = vrot.lane.b32.xlu0 %v503, 124
      %v2317 = vpop.permute.xlu0 %2316
      %2318 = vrot.lane.b32.xlu0 %v504, 124
      %v2319 = vpop.permute.xlu0 %2318
      %2320 = vrot.lane.b32.xlu0 %v505, 124
      %v2321 = vpop.permute.xlu0 %2320
      %2322 = vrot.lane.b32.xlu0 %v506, 124
      %v2323 = vpop.permute.xlu0 %2322
      %2324 = vrot.lane.b32.xlu0 %v507, 124
      %v2325 = vpop.permute.xlu0 %2324
      %2326 = vrot.lane.b32.xlu0 %v508, 124
      %v2327 = vpop.permute.xlu0 %2326
      %2328 = vrot.lane.b32.xlu0 %v509, 124
      %v2329 = vpop.permute.xlu0 %2328
      %2330 = vrot.lane.b32.xlu0 %v510, 124
      %v2331 = vpop.permute.xlu0 %2330
      %2332 = vrot.lane.b32.xlu0 %v511, 124
      %v2333 = vpop.permute.xlu0 %2332
      %2334 = vrot.lane.b32.xlu0 %v512, 124
      %v2335 = vpop.permute.xlu0 %2334
      %2336 = vrot.lane.b32.xlu0 %v513, 124
      %v2337 = vpop.permute.xlu0 %2336
      %2338 = vrot.lane.b32.xlu0 %v514, 124
      %v2339 = vpop.permute.xlu0 %2338
      %2340 = vrot.lane.b32.xlu0 %v515, 124
      %v2341 = vpop.permute.xlu0 %2340
      %2342 = vrot.lane.b32.xlu0 %v516, 124
      %v2343 = vpop.permute.xlu0 %2342
      %2344 = vrot.lane.b32.xlu0 %v517, 124
      %v2345 = vpop.permute.xlu0 %2344
      %2346 = vrot.lane.b32.xlu0 %v518, 124
      %v2347 = vpop.permute.xlu0 %2346
      %2348 = vrot.lane.b32.xlu0 %v519, 124
      %v2349 = vpop.permute.xlu0 %2348
      %2350 = vrot.lane.b32.xlu0 %v520, 124
      %v2351 = vpop.permute.xlu0 %2350
      %2352 = vrot.lane.b32.xlu0 %v521, 124
      %v2353 = vpop.permute.xlu0 %2352
      %2354 = vrot.lane.b32.xlu0 %v522, 124
      %v2355 = vpop.permute.xlu0 %2354
      %2356 = vrot.lane.b32.xlu0 %v523, 124
      %v2357 = vpop.permute.xlu0 %2356
      %2358 = vrot.lane.b32.xlu0 %v524, 124
      %v2359 = vpop.permute.xlu0 %2358
      %2360 = vrot.lane.b32.xlu0 %v525, 124
      %v2361 = vpop.permute.xlu0 %2360
      %2362 = vrot.lane.b32.xlu0 %v526, 124
      %v2363 = vpop.permute.xlu0 %2362
      %2364 = vrot.lane.b32.xlu0 %v527, 124
      %v2365 = vpop.permute.xlu0 %2364
      %2366 = vrot.lane.b32.xlu0 %v528, 124
      %v2367 = vpop.permute.xlu0 %2366
      %2368 = vrot.lane.b32.xlu0 %v529, 124
      %v2369 = vpop.permute.xlu0 %2368
      %2370 = vrot.lane.b32.xlu0 %v530, 124
      %v2371 = vpop.permute.xlu0 %2370
      %2372 = vrot.lane.b32.xlu0 %v531, 124
      %v2373 = vpop.permute.xlu0 %2372
      %2374 = vrot.lane.b32.xlu0 %v532, 124
      %v2375 = vpop.permute.xlu0 %2374
      %2376 = vrot.lane.b32.xlu0 %v533, 124
      %v2377 = vpop.permute.xlu0 %2376
      %2378 = vrot.lane.b32.xlu0 %v534, 124
      %v2379 = vpop.permute.xlu0 %2378
      %2380 = vrot.lane.b32.xlu0 %v535, 124
      %v2381 = vpop.permute.xlu0 %2380
      %2382 = vrot.lane.b32.xlu0 %v536, 124
      %v2383 = vpop.permute.xlu0 %2382
      %2384 = vrot.lane.b32.xlu0 %v537, 124
      %v2385 = vpop.permute.xlu0 %2384
      %2386 = vrot.lane.b32.xlu0 %v538, 124
      %v2387 = vpop.permute.xlu0 %2386
      %2388 = vrot.lane.b32.xlu0 %v539, 124
      %v2389 = vpop.permute.xlu0 %2388
      %2390 = vrot.lane.b32.xlu0 %v540, 124
      %v2391 = vpop.permute.xlu0 %2390
      %2392 = vrot.lane.b32.xlu0 %v541, 124
      %v2393 = vpop.permute.xlu0 %2392
      %2394 = vrot.lane.b32.xlu0 %v542, 124
      %v2395 = vpop.permute.xlu0 %2394
      %2396 = vrot.lane.b32.xlu0 %v543, 124
      %v2397 = vpop.permute.xlu0 %2396
      %2398 = vrot.lane.b32.xlu0 %v544, 124
      %v2399 = vpop.permute.xlu0 %2398
      %2400 = vrot.lane.b32.xlu0 %v545, 124
      %v2401 = vpop.permute.xlu0 %2400
      %2402 = vrot.lane.b32.xlu0 %v546, 124
      %v2403 = vpop.permute.xlu0 %2402
      %2404 = vrot.lane.b32.xlu0 %v547, 124
      %v2405 = vpop.permute.xlu0 %2404
      %2406 = vrot.lane.b32.xlu0 %v548, 124
      %v2407 = vpop.permute.xlu0 %2406
      %2408 = vrot.lane.b32.xlu0 %v549, 124
      %v2409 = vpop.permute.xlu0 %2408
      %2410 = vrot.lane.b32.xlu0 %v550, 124
      %v2411 = vpop.permute.xlu0 %2410
      %2412 = vrot.lane.b32.xlu0 %v551, 124
      %v2413 = vpop.permute.xlu0 %2412
      %2414 = vrot.lane.b32.xlu0 %v552, 124
      %v2415 = vpop.permute.xlu0 %2414
      %2416 = vrot.lane.b32.xlu0 %v553, 124
      %v2417 = vpop.permute.xlu0 %2416
      %2418 = vrot.lane.b32.xlu0 %v554, 124
      %v2419 = vpop.permute.xlu0 %2418
      %2420 = vrot.lane.b32.xlu0 %v555, 124
      %v2421 = vpop.permute.xlu0 %2420
      %2422 = vrot.lane.b32.xlu0 %v556, 124
      %v2423 = vpop.permute.xlu0 %2422
      %2424 = vrot.lane.b32.xlu0 %v557, 124
      %v2425 = vpop.permute.xlu0 %2424
      %2426 = vrot.lane.b32.xlu0 %v558, 124
      %v2427 = vpop.permute.xlu0 %2426
      %2428 = vrot.lane.b32.xlu0 %v559, 124
      %v2429 = vpop.permute.xlu0 %2428
      %2430 = vrot.lane.b32.xlu0 %v560, 124
      %v2431 = vpop.permute.xlu0 %2430
      %2432 = vrot.lane.b32.xlu0 %v561, 124
      %v2433 = vpop.permute.xlu0 %2432
      %2434 = vrot.lane.b32.xlu0 %v562, 124
      %v2435 = vpop.permute.xlu0 %2434
      %2436 = vrot.lane.b32.xlu0 %v563, 124
      %v2437 = vpop.permute.xlu0 %2436
      %2438 = vrot.lane.b32.xlu0 %v564, 124
      %v2439 = vpop.permute.xlu0 %2438
      %2440 = vrot.lane.b32.xlu0 %v565, 124
      %v2441 = vpop.permute.xlu0 %2440
      %2442 = vrot.lane.b32.xlu0 %v566, 124
      %v2443 = vpop.permute.xlu0 %2442
      %2444 = vrot.lane.b32.xlu0 %v567, 124
      %v2445 = vpop.permute.xlu0 %2444
      %2446 = vrot.lane.b32.xlu0 %v568, 124
      %v2447 = vpop.permute.xlu0 %2446
      %2448 = vrot.lane.b32.xlu0 %v569, 124
      %v2449 = vpop.permute.xlu0 %2448
      %2450 = vrot.lane.b32.xlu0 %v570, 124
      %v2451 = vpop.permute.xlu0 %2450
      %2452 = vrot.lane.b32.xlu0 %v571, 124
      %v2453 = vpop.permute.xlu0 %2452
      %2454 = vrot.lane.b32.xlu0 %v572, 124
      %v2455 = vpop.permute.xlu0 %2454
      %2456 = vrot.lane.b32.xlu0 %v573, 124
      %v2457 = vpop.permute.xlu0 %2456
      %2458 = vrot.lane.b32.xlu0 %v574, 124
      %v2459 = vpop.permute.xlu0 %2458
      %2460 = vrot.lane.b32.xlu0 %v575, 124
      %v2461 = vpop.permute.xlu0 %2460
      %2462 = vrot.lane.b32.xlu0 %v576, 124
      %v2463 = vpop.permute.xlu0 %2462
      %2464 = vrot.lane.b32.xlu0 %v577, 124
      %v2465 = vpop.permute.xlu0 %2464
      %2466 = vrot.lane.b32.xlu0 %v578, 124
      %v2467 = vpop.permute.xlu0 %2466
      %2468 = vrot.lane.b32.xlu0 %v579, 124
      %v2469 = vpop.permute.xlu0 %2468
      %2470 = vrot.lane.b32.xlu0 %v580, 124
      %v2471 = vpop.permute.xlu0 %2470
      %2472 = vrot.lane.b32.xlu0 %v581, 124
      %v2473 = vpop.permute.xlu0 %2472
      %2474 = vrot.lane.b32.xlu0 %v582, 124
      %v2475 = vpop.permute.xlu0 %2474
      %2476 = vrot.lane.b32.xlu0 %v583, 124
      %v2477 = vpop.permute.xlu0 %2476
      %2478 = vrot.lane.b32.xlu0 %v584, 124
      %v2479 = vpop.permute.xlu0 %2478
      %2480 = vrot.lane.b32.xlu0 %v585, 124
      %v2481 = vpop.permute.xlu0 %2480
      %2482 = vrot.lane.b32.xlu0 %v586, 124
      %v2483 = vpop.permute.xlu0 %2482
      %2484 = vrot.lane.b32.xlu0 %v587, 124
      %v2485 = vpop.permute.xlu0 %2484
      %2486 = vrot.lane.b32.xlu0 %v588, 124
      %v2487 = vpop.permute.xlu0 %2486
      %2488 = vrot.lane.b32.xlu0 %v589, 124
      %v2489 = vpop.permute.xlu0 %2488
      %2490 = vrot.lane.b32.xlu0 %v590, 124
      %v2491 = vpop.permute.xlu0 %2490
      %2492 = vrot.lane.b32.xlu0 %v591, 124
      %v2493 = vpop.permute.xlu0 %2492
      %2494 = vrot.lane.b32.xlu0 %v592, 124
      %v2495 = vpop.permute.xlu0 %2494
      %2496 = vrot.lane.b32.xlu0 %v593, 124
      %v2497 = vpop.permute.xlu0 %2496
      %2498 = vrot.lane.b32.xlu0 %v594, 124
      %v2499 = vpop.permute.xlu0 %2498
      %2500 = vrot.lane.b32.xlu0 %v595, 124
      %v2501 = vpop.permute.xlu0 %2500
      %2502 = vrot.lane.b32.xlu0 %v596, 124
      %v2503 = vpop.permute.xlu0 %2502
      %2504 = vrot.lane.b32.xlu0 %v597, 124
      %v2505 = vpop.permute.xlu0 %2504
      %2506 = vrot.lane.b32.xlu0 %v598, 124
      %v2507 = vpop.permute.xlu0 %2506
      %2508 = vrot.lane.b32.xlu0 %v599, 124
      %v2509 = vpop.permute.xlu0 %2508
      %2510 = vrot.lane.b32.xlu0 %v600, 124
      %v2511 = vpop.permute.xlu0 %2510
      %2512 = vrot.lane.b32.xlu0 %v601, 124
      %v2513 = vpop.permute.xlu0 %2512
      %2514 = vrot.lane.b32.xlu0 %v602, 124
      %v2515 = vpop.permute.xlu0 %2514
      %2516 = vrot.lane.b32.xlu0 %v603, 124
      %v2517 = vpop.permute.xlu0 %2516
      %2518 = vrot.lane.b32.xlu0 %v604, 124
      %v2519 = vpop.permute.xlu0 %2518
      %2520 = vrot.lane.b32.xlu0 %v605, 124
      %v2521 = vpop.permute.xlu0 %2520
      %2522 = vrot.lane.b32.xlu0 %v606, 124
      %v2523 = vpop.permute.xlu0 %2522
      %2524 = vrot.lane.b32.xlu0 %v607, 124
      %v2525 = vpop.permute.xlu0 %2524
      %2526 = vrot.lane.b32.xlu0 %v608, 124
      %v2527 = vpop.permute.xlu0 %2526
      %2528 = vrot.lane.b32.xlu0 %v609, 124
      %v2529 = vpop.permute.xlu0 %2528
      %2530 = vrot.lane.b32.xlu0 %v610, 124
      %v2531 = vpop.permute.xlu0 %2530
      %2532 = vrot.lane.b32.xlu0 %v611, 124
      %v2533 = vpop.permute.xlu0 %2532
      %2534 = vrot.lane.b32.xlu0 %v612, 124
      %v2535 = vpop.permute.xlu0 %2534
      %2536 = vrot.lane.b32.xlu0 %v613, 124
      %v2537 = vpop.permute.xlu0 %2536
      %2538 = vrot.lane.b32.xlu0 %v614, 124
      %v2539 = vpop.permute.xlu0 %2538
      %2540 = vrot.lane.b32.xlu0 %v615, 124
      %v2541 = vpop.permute.xlu0 %2540
      %2542 = vrot.lane.b32.xlu0 %v616, 124
      %v2543 = vpop.permute.xlu0 %2542
      %2544 = vrot.lane.b32.xlu0 %v617, 124
      %v2545 = vpop.permute.xlu0 %2544
      %2546 = vrot.lane.b32.xlu0 %v618, 124
      %v2547 = vpop.permute.xlu0 %2546
      %2548 = vrot.lane.b32.xlu0 %v619, 124
      %v2549 = vpop.permute.xlu0 %2548
      %2550 = vrot.lane.b32.xlu0 %v620, 124
      %v2551 = vpop.permute.xlu0 %2550
      %2552 = vrot.lane.b32.xlu0 %v621, 124
      %v2553 = vpop.permute.xlu0 %2552
      %2554 = vrot.lane.b32.xlu0 %v622, 124
      %v2555 = vpop.permute.xlu0 %2554
      %2556 = vrot.lane.b32.xlu0 %v623, 124
      %v2557 = vpop.permute.xlu0 %2556
      %2558 = vrot.lane.b32.xlu0 %v624, 124
      %v2559 = vpop.permute.xlu0 %2558
      %2560 = vrot.lane.b32.xlu0 %v625, 124
      %v2561 = vpop.permute.xlu0 %2560
      %2562 = vrot.lane.b32.xlu0 %v626, 124
      %v2563 = vpop.permute.xlu0 %2562
      %2564 = vrot.lane.b32.xlu0 %v627, 124
      %v2565 = vpop.permute.xlu0 %2564
      %2566 = vrot.lane.b32.xlu0 %v628, 124
      %v2567 = vpop.permute.xlu0 %2566
      %2568 = vrot.lane.b32.xlu0 %v629, 124
      %v2569 = vpop.permute.xlu0 %2568
      %2570 = vrot.lane.b32.xlu0 %v630, 124
      %v2571 = vpop.permute.xlu0 %2570
      %2572 = vrot.lane.b32.xlu0 %v631, 124
      %v2573 = vpop.permute.xlu0 %2572
      %2574 = vrot.lane.b32.xlu0 %v632, 124
      %v2575 = vpop.permute.xlu0 %2574
      %2576 = vrot.lane.b32.xlu0 %v633, 124
      %v2577 = vpop.permute.xlu0 %2576
      %2578 = vrot.lane.b32.xlu0 %v634, 124
      %v2579 = vpop.permute.xlu0 %2578
      %2580 = vrot.lane.b32.xlu0 %v635, 124
      %v2581 = vpop.permute.xlu0 %2580
      %2582 = vrot.lane.b32.xlu0 %v636, 124
      %v2583 = vpop.permute.xlu0 %2582
      %2584 = vrot.lane.b32.xlu0 %v637, 124
      %v2585 = vpop.permute.xlu0 %2584
      %2586 = vrot.lane.b32.xlu0 %v638, 124
      %v2587 = vpop.permute.xlu0 %2586
      %2588 = vrot.lane.b32.xlu0 %v639, 124
      %v2589 = vpop.permute.xlu0 %2588
      %2590 = vrot.lane.b32.xlu0 %v640, 124
      %v2591 = vpop.permute.xlu0 %2590
      %2592 = vrot.lane.b32.xlu0 %v641, 124
      %v2593 = vpop.permute.xlu0 %2592
      %2594 = vrot.lane.b32.xlu0 %v642, 124
      %v2595 = vpop.permute.xlu0 %2594
      %2596 = vrot.lane.b32.xlu0 %v643, 124
      %v2597 = vpop.permute.xlu0 %2596
      %2598 = vrot.lane.b32.xlu0 %v644, 124
      %v2599 = vpop.permute.xlu0 %2598
      %2600 = vrot.lane.b32.xlu0 %v645, 124
      %v2601 = vpop.permute.xlu0 %2600
      %2602 = vrot.lane.b32.xlu0 %v646, 124
      %v2603 = vpop.permute.xlu0 %2602
      %2604 = vrot.lane.b32.xlu0 %v647, 124
      %v2605 = vpop.permute.xlu0 %2604
      %2606 = vrot.lane.b32.xlu0 %v648, 124
      %v2607 = vpop.permute.xlu0 %2606
      %2608 = vrot.lane.b32.xlu0 %v649, 124
      %v2609 = vpop.permute.xlu0 %2608
      %2610 = vrot.lane.b32.xlu0 %v650, 124
      %v2611 = vpop.permute.xlu0 %2610
      %2612 = vrot.lane.b32.xlu0 %v651, 124
      %v2613 = vpop.permute.xlu0 %2612
      %2614 = vrot.lane.b32.xlu0 %v652, 124
      %v2615 = vpop.permute.xlu0 %2614
      %2616 = vrot.lane.b32.xlu0 %v653, 124
      %v2617 = vpop.permute.xlu0 %2616
      %2618 = vrot.lane.b32.xlu0 %v654, 124
      %v2619 = vpop.permute.xlu0 %2618
      %2620 = vrot.lane.b32.xlu0 %v655, 124
      %v2621 = vpop.permute.xlu0 %2620
      %2622 = vrot.lane.b32.xlu0 %v656, 124
      %v2623 = vpop.permute.xlu0 %2622
      %2624 = vrot.lane.b32.xlu0 %v657, 124
      %v2625 = vpop.permute.xlu0 %2624
      %2626 = vrot.lane.b32.xlu0 %v658, 124
      %v2627 = vpop.permute.xlu0 %2626
      %2628 = vrot.lane.b32.xlu0 %v659, 124
      %v2629 = vpop.permute.xlu0 %2628
      %2630 = vrot.lane.b32.xlu0 %v660, 124
      %v2631 = vpop.permute.xlu0 %2630
      %2632 = vrot.lane.b32.xlu0 %v661, 124
      %v2633 = vpop.permute.xlu0 %2632
      %2634 = vrot.lane.b32.xlu0 %v662, 124
      %v2635 = vpop.permute.xlu0 %2634
      %2636 = vrot.lane.b32.xlu0 %v663, 124
      %v2637 = vpop.permute.xlu0 %2636
      %2638 = vrot.lane.b32.xlu0 %v664, 124
      %v2639 = vpop.permute.xlu0 %2638
      %2640 = vrot.lane.b32.xlu0 %v665, 124
      %v2641 = vpop.permute.xlu0 %2640
      %2642 = vrot.lane.b32.xlu0 %v666, 124
      %v2643 = vpop.permute.xlu0 %2642
      %2644 = vrot.lane.b32.xlu0 %v667, 124
      %v2645 = vpop.permute.xlu0 %2644
      %2646 = vrot.lane.b32.xlu0 %v668, 124
      %v2647 = vpop.permute.xlu0 %2646
      %2648 = vrot.lane.b32.xlu0 %v669, 124
      %v2649 = vpop.permute.xlu0 %2648
      %2650 = vrot.lane.b32.xlu0 %v670, 124
      %v2651 = vpop.permute.xlu0 %2650
      %2652 = vrot.lane.b32.xlu0 %v671, 124
      %v2653 = vpop.permute.xlu0 %2652
      %2654 = vrot.lane.b32.xlu0 %v672, 124
      %v2655 = vpop.permute.xlu0 %2654
      %2656 = vrot.lane.b32.xlu0 %v673, 124
      %v2657 = vpop.permute.xlu0 %2656
      %2658 = vrot.lane.b32.xlu0 %v674, 124
      %v2659 = vpop.permute.xlu0 %2658
      %2660 = vrot.lane.b32.xlu0 %v675, 124
      %v2661 = vpop.permute.xlu0 %2660
      %2662 = vrot.lane.b32.xlu0 %v676, 124
      %v2663 = vpop.permute.xlu0 %2662
      %2664 = vrot.lane.b32.xlu0 %v677, 124
      %v2665 = vpop.permute.xlu0 %2664
      %2666 = vrot.lane.b32.xlu0 %v678, 124
      %v2667 = vpop.permute.xlu0 %2666
      %2668 = vrot.lane.b32.xlu0 %v679, 124
      %v2669 = vpop.permute.xlu0 %2668
      %2670 = vrot.lane.b32.xlu0 %v680, 124
      %v2671 = vpop.permute.xlu0 %2670
      %2672 = vrot.lane.b32.xlu0 %v681, 124
      %v2673 = vpop.permute.xlu0 %2672
      %2674 = vrot.lane.b32.xlu0 %v682, 124
      %v2675 = vpop.permute.xlu0 %2674
      %2676 = vrot.lane.b32.xlu0 %v683, 124
      %v2677 = vpop.permute.xlu0 %2676
      %2678 = vrot.lane.b32.xlu0 %v684, 124
      %v2679 = vpop.permute.xlu0 %2678
      %2680 = vrot.lane.b32.xlu0 %v685, 124
      %v2681 = vpop.permute.xlu0 %2680
      %2682 = vrot.lane.b32.xlu0 %v686, 124
      %v2683 = vpop.permute.xlu0 %2682
      %2684 = vrot.lane.b32.xlu0 %v687, 124
      %v2685 = vpop.permute.xlu0 %2684
      %2686 = vrot.lane.b32.xlu0 %v688, 124
      %v2687 = vpop.permute.xlu0 %2686
      %2688 = vrot.lane.b32.xlu0 %v689, 124
      %v2689 = vpop.permute.xlu0 %2688
      %2690 = vrot.lane.b32.xlu0 %v690, 124
      %v2691 = vpop.permute.xlu0 %2690
      %2692 = vrot.lane.b32.xlu0 %v691, 124
      %v2693 = vpop.permute.xlu0 %2692
      %2694 = vrot.lane.b32.xlu0 %v692, 124
      %v2695 = vpop.permute.xlu0 %2694
      %2696 = vrot.lane.b32.xlu0 %v693, 124
      %v2697 = vpop.permute.xlu0 %2696
      %2698 = vrot.lane.b32.xlu0 %v694, 124
      %v2699 = vpop.permute.xlu0 %2698
      %2700 = vrot.lane.b32.xlu0 %v695, 124
      %v2701 = vpop.permute.xlu0 %2700
      %2702 = vrot.lane.b32.xlu0 %v696, 124
      %v2703 = vpop.permute.xlu0 %2702
      %2704 = vrot.lane.b32.xlu0 %v697, 124
      %v2705 = vpop.permute.xlu0 %2704
      %2706 = vrot.lane.b32.xlu0 %v698, 124
      %v2707 = vpop.permute.xlu0 %2706
      %2708 = vrot.lane.b32.xlu0 %v699, 124
      %v2709 = vpop.permute.xlu0 %2708
      %2710 = vrot.lane.b32.xlu0 %v700, 124
      %v2711 = vpop.permute.xlu0 %2710
      %2712 = vrot.lane.b32.xlu0 %v701, 124
      %v2713 = vpop.permute.xlu0 %2712
      %2714 = vrot.lane.b32.xlu0 %v702, 124
      %v2715 = vpop.permute.xlu0 %2714
      %2716 = vrot.lane.b32.xlu0 %v703, 124
      %v2717 = vpop.permute.xlu0 %2716
      %2718 = vrot.lane.b32.xlu0 %v704, 124
      %v2719 = vpop.permute.xlu0 %2718
      %2720 = vrot.lane.b32.xlu0 %v705, 124
      %v2721 = vpop.permute.xlu0 %2720
      %2722 = vrot.lane.b32.xlu0 %v706, 124
      %v2723 = vpop.permute.xlu0 %2722
      %2724 = vrot.lane.b32.xlu0 %v707, 124
      %v2725 = vpop.permute.xlu0 %2724
      %2726 = vrot.lane.b32.xlu0 %v708, 124
      %v2727 = vpop.permute.xlu0 %2726
      %2728 = vrot.lane.b32.xlu0 %v709, 124
      %v2729 = vpop.permute.xlu0 %2728
      %2730 = vrot.lane.b32.xlu0 %v710, 124
      %v2731 = vpop.permute.xlu0 %2730
      %2732 = vrot.lane.b32.xlu0 %v711, 124
      %v2733 = vpop.permute.xlu0 %2732
      %2734 = vrot.lane.b32.xlu0 %v712, 124
      %v2735 = vpop.permute.xlu0 %2734
      %2736 = vrot.lane.b32.xlu0 %v713, 124
      %v2737 = vpop.permute.xlu0 %2736
      %2738 = vrot.lane.b32.xlu0 %v714, 124
      %v2739 = vpop.permute.xlu0 %2738
      %2740 = vrot.lane.b32.xlu0 %v715, 124
      %v2741 = vpop.permute.xlu0 %2740
      %2742 = vrot.lane.b32.xlu0 %v716, 124
      %v2743 = vpop.permute.xlu0 %2742
      %2744 = vrot.lane.b32.xlu0 %v717, 124
      %v2745 = vpop.permute.xlu0 %2744
      %2746 = vrot.lane.b32.xlu0 %v718, 124
      %v2747 = vpop.permute.xlu0 %2746
      %2748 = vrot.lane.b32.xlu0 %v719, 124
      %v2749 = vpop.permute.xlu0 %2748
      %2750 = vrot.lane.b32.xlu0 %v720, 124
      %v2751 = vpop.permute.xlu0 %2750
      %2752 = vrot.lane.b32.xlu0 %v721, 124
      %v2753 = vpop.permute.xlu0 %2752
      %2754 = vrot.lane.b32.xlu0 %v722, 124
      %v2755 = vpop.permute.xlu0 %2754
      %2756 = vrot.lane.b32.xlu0 %v723, 124
      %v2757 = vpop.permute.xlu0 %2756
      %2758 = vrot.lane.b32.xlu0 %v724, 124
      %v2759 = vpop.permute.xlu0 %2758
      %2760 = vrot.lane.b32.xlu0 %v725, 124
      %v2761 = vpop.permute.xlu0 %2760
      %2762 = vrot.lane.b32.xlu0 %v726, 124
      %v2763 = vpop.permute.xlu0 %2762
      %2764 = vrot.lane.b32.xlu0 %v727, 124
      %v2765 = vpop.permute.xlu0 %2764
      %2766 = vrot.lane.b32.xlu0 %v728, 124
      %v2767 = vpop.permute.xlu0 %2766
      %2768 = vrot.lane.b32.xlu0 %v729, 124
      %v2769 = vpop.permute.xlu0 %2768
      %2770 = vrot.lane.b32.xlu0 %v730, 124
      %v2771 = vpop.permute.xlu0 %2770
      %2772 = vrot.lane.b32.xlu0 %v731, 124
      %v2773 = vpop.permute.xlu0 %2772
      %2774 = vrot.lane.b32.xlu0 %v732, 124
      %v2775 = vpop.permute.xlu0 %2774
      %2776 = vrot.lane.b32.xlu0 %v733, 124
      %v2777 = vpop.permute.xlu0 %2776
      %2778 = vrot.lane.b32.xlu0 %v734, 124
      %v2779 = vpop.permute.xlu0 %2778
      %2780 = vrot.lane.b32.xlu0 %v735, 124
      %v2781 = vpop.permute.xlu0 %2780
      %2782 = vrot.lane.b32.xlu0 %v736, 124
      %v2783 = vpop.permute.xlu0 %2782
      %2784 = vrot.lane.b32.xlu0 %v737, 124
      %v2785 = vpop.permute.xlu0 %2784
      %v3298 = vadd.f32 %v738, %v1763
      %v3299 = vadd.f32 %v739, %v1765
      %v3300 = vadd.f32 %v740, %v1767
      %v3301 = vadd.f32 %v741, %v1769
      %v3302 = vadd.f32 %v742, %v1771
      %v3303 = vadd.f32 %v743, %v1773
      %v3304 = vadd.f32 %v744, %v1775
      %v3305 = vadd.f32 %v745, %v1777
      %v3306 = vadd.f32 %v746, %v1779
      %v3307 = vadd.f32 %v747, %v1781
      %v3308 = vadd.f32 %v748, %v1783
      %v3309 = vadd.f32 %v749, %v1785
      %v3310 = vadd.f32 %v750, %v1787
      %v3311 = vadd.f32 %v751, %v1789
      %v3312 = vadd.f32 %v752, %v1791
      %v3313 = vadd.f32 %v753, %v1793
      %v3314 = vadd.f32 %v754, %v1795
      %v3315 = vadd.f32 %v755, %v1797
      %v3316 = vadd.f32 %v756, %v1799
      %v3317 = vadd.f32 %v757, %v1801
      %v3318 = vadd.f32 %v758, %v1803
      %v3319 = vadd.f32 %v759, %v1805
      %v3320 = vadd.f32 %v760, %v1807
      %v3321 = vadd.f32 %v761, %v1809
      %v3322 = vadd.f32 %v762, %v1811
      %v3323 = vadd.f32 %v763, %v1813
      %v3324 = vadd.f32 %v764, %v1815
      %v3325 = vadd.f32 %v765, %v1817
      %v3326 = vadd.f32 %v766, %v1819
      %v3327 = vadd.f32 %v767, %v1821
      %v3328 = vadd.f32 %v768, %v1823
      %v3329 = vadd.f32 %v769, %v1825
      %v3330 = vadd.f32 %v770, %v1827
      %v3331 = vadd.f32 %v771, %v1829
      %v3332 = vadd.f32 %v772, %v1831
      %v3333 = vadd.f32 %v773, %v1833
      %v3334 = vadd.f32 %v774, %v1835
      %v3335 = vadd.f32 %v775, %v1837
      %v3336 = vadd.f32 %v776, %v1839
      %v3337 = vadd.f32 %v777, %v1841
      %v3338 = vadd.f32 %v778, %v1843
      %v3339 = vadd.f32 %v779, %v1845
      %v3340 = vadd.f32 %v780, %v1847
      %v3341 = vadd.f32 %v781, %v1849
      %v3342 = vadd.f32 %v782, %v1851
      %v3343 = vadd.f32 %v783, %v1853
      %v3344 = vadd.f32 %v784, %v1855
      %v3345 = vadd.f32 %v785, %v1857
      %v3346 = vadd.f32 %v786, %v1859
      %v3347 = vadd.f32 %v787, %v1861
      %v3348 = vadd.f32 %v788, %v1863
      %v3349 = vadd.f32 %v789, %v1865
      %v3350 = vadd.f32 %v790, %v1867
      %v3351 = vadd.f32 %v791, %v1869
      %v3352 = vadd.f32 %v792, %v1871
      %v3353 = vadd.f32 %v793, %v1873
      %v3354 = vadd.f32 %v794, %v1875
      %v3355 = vadd.f32 %v795, %v1877
      %v3356 = vadd.f32 %v796, %v1879
      %v3357 = vadd.f32 %v797, %v1881
      %v3358 = vadd.f32 %v798, %v1883
      %v3359 = vadd.f32 %v799, %v1885
      %v3360 = vadd.f32 %v800, %v1887
      %v3361 = vadd.f32 %v801, %v1889
      %v3362 = vadd.f32 %v802, %v1891
      %v3363 = vadd.f32 %v803, %v1893
      %v3364 = vadd.f32 %v804, %v1895
      %v3365 = vadd.f32 %v805, %v1897
      %v3366 = vadd.f32 %v806, %v1899
      %v3367 = vadd.f32 %v807, %v1901
      %v3368 = vadd.f32 %v808, %v1903
      %v3369 = vadd.f32 %v809, %v1905
      %v3370 = vadd.f32 %v810, %v1907
      %v3371 = vadd.f32 %v811, %v1909
      %v3372 = vadd.f32 %v812, %v1911
      %v3373 = vadd.f32 %v813, %v1913
      %v3374 = vadd.f32 %v814, %v1915
      %v3375 = vadd.f32 %v815, %v1917
      %v3376 = vadd.f32 %v816, %v1919
      %v3377 = vadd.f32 %v817, %v1921
      %v3378 = vadd.f32 %v818, %v1923
      %v3379 = vadd.f32 %v819, %v1925
      %v3380 = vadd.f32 %v820, %v1927
      %v3381 = vadd.f32 %v821, %v1929
      %v3382 = vadd.f32 %v822, %v1931
      %v3383 = vadd.f32 %v823, %v1933
      %v3384 = vadd.f32 %v824, %v1935
      %v3385 = vadd.f32 %v825, %v1937
      %v3386 = vadd.f32 %v826, %v1939
      %v3387 = vadd.f32 %v827, %v1941
      %v3388 = vadd.f32 %v828, %v1943
      %v3389 = vadd.f32 %v829, %v1945
      %v3390 = vadd.f32 %v830, %v1947
      %v3391 = vadd.f32 %v831, %v1949
      %v3392 = vadd.f32 %v832, %v1951
      %v3393 = vadd.f32 %v833, %v1953
      %v3394 = vadd.f32 %v834, %v1955
      %v3395 = vadd.f32 %v835, %v1957
      %v3396 = vadd.f32 %v836, %v1959
      %v3397 = vadd.f32 %v837, %v1961
      %v3398 = vadd.f32 %v838, %v1963
      %v3399 = vadd.f32 %v839, %v1965
      %v3400 = vadd.f32 %v840, %v1967
      %v3401 = vadd.f32 %v841, %v1969
      %v3402 = vadd.f32 %v842, %v1971
      %v3403 = vadd.f32 %v843, %v1973
      %v3404 = vadd.f32 %v844, %v1975
      %v3405 = vadd.f32 %v845, %v1977
      %v3406 = vadd.f32 %v846, %v1979
      %v3407 = vadd.f32 %v847, %v1981
      %v3408 = vadd.f32 %v848, %v1983
      %v3409 = vadd.f32 %v849, %v1985
      %v3410 = vadd.f32 %v850, %v1987
      %v3411 = vadd.f32 %v851, %v1989
      %v3412 = vadd.f32 %v852, %v1991
      %v3413 = vadd.f32 %v853, %v1993
      %v3414 = vadd.f32 %v854, %v1995
      %v3415 = vadd.f32 %v855, %v1997
      %v3416 = vadd.f32 %v856, %v1999
      %v3417 = vadd.f32 %v857, %v2001
      %v3418 = vadd.f32 %v858, %v2003
      %v3419 = vadd.f32 %v859, %v2005
      %v3420 = vadd.f32 %v860, %v2007
      %v3421 = vadd.f32 %v861, %v2009
      %v3422 = vadd.f32 %v862, %v2011
      %v3423 = vadd.f32 %v863, %v2013
      %v3424 = vadd.f32 %v864, %v2015
      %v3425 = vadd.f32 %v865, %v2017
      %v3426 = vadd.f32 %v866, %v2019
      %v3427 = vadd.f32 %v867, %v2021
      %v3428 = vadd.f32 %v868, %v2023
      %v3429 = vadd.f32 %v869, %v2025
      %v3430 = vadd.f32 %v870, %v2027
      %v3431 = vadd.f32 %v871, %v2029
      %v3432 = vadd.f32 %v872, %v2031
      %v3433 = vadd.f32 %v873, %v2033
      %v3434 = vadd.f32 %v874, %v2035
      %v3435 = vadd.f32 %v875, %v2037
      %v3436 = vadd.f32 %v876, %v2039
      %v3437 = vadd.f32 %v877, %v2041
      %v3438 = vadd.f32 %v878, %v2043
      %v3439 = vadd.f32 %v879, %v2045
      %v3440 = vadd.f32 %v880, %v2047
      %v3441 = vadd.f32 %v881, %v2049
      %v3442 = vadd.f32 %v882, %v2051
      %v3443 = vadd.f32 %v883, %v2053
      %v3444 = vadd.f32 %v884, %v2055
      %v3445 = vadd.f32 %v885, %v2057
      %v3446 = vadd.f32 %v886, %v2059
      %v3447 = vadd.f32 %v887, %v2061
      %v3448 = vadd.f32 %v888, %v2063
      %v3449 = vadd.f32 %v889, %v2065
      %v3450 = vadd.f32 %v890, %v2067
      %v3451 = vadd.f32 %v891, %v2069
      %v3452 = vadd.f32 %v892, %v2071
      %v3453 = vadd.f32 %v893, %v2073
      %v3454 = vadd.f32 %v894, %v2075
      %v3455 = vadd.f32 %v895, %v2077
      %v3456 = vadd.f32 %v896, %v2079
      %v3457 = vadd.f32 %v897, %v2081
      %v3458 = vadd.f32 %v898, %v2083
      %v3459 = vadd.f32 %v899, %v2085
      %v3460 = vadd.f32 %v900, %v2087
      %v3461 = vadd.f32 %v901, %v2089
      %v3462 = vadd.f32 %v902, %v2091
      %v3463 = vadd.f32 %v903, %v2093
      %v3464 = vadd.f32 %v904, %v2095
      %v3465 = vadd.f32 %v905, %v2097
      %v3466 = vadd.f32 %v906, %v2099
      %v3467 = vadd.f32 %v907, %v2101
      %v3468 = vadd.f32 %v908, %v2103
      %v3469 = vadd.f32 %v909, %v2105
      %v3470 = vadd.f32 %v910, %v2107
      %v3471 = vadd.f32 %v911, %v2109
      %v3472 = vadd.f32 %v912, %v2111
      %v3473 = vadd.f32 %v913, %v2113
      %v3474 = vadd.f32 %v914, %v2115
      %v3475 = vadd.f32 %v915, %v2117
      %v3476 = vadd.f32 %v916, %v2119
      %v3477 = vadd.f32 %v917, %v2121
      %v3478 = vadd.f32 %v918, %v2123
      %v3479 = vadd.f32 %v919, %v2125
      %v3480 = vadd.f32 %v920, %v2127
      %v3481 = vadd.f32 %v921, %v2129
      %v3482 = vadd.f32 %v922, %v2131
      %v3483 = vadd.f32 %v923, %v2133
      %v3484 = vadd.f32 %v924, %v2135
      %v3485 = vadd.f32 %v925, %v2137
      %v3486 = vadd.f32 %v926, %v2139
      %v3487 = vadd.f32 %v927, %v2141
      %v3488 = vadd.f32 %v928, %v2143
      %v3489 = vadd.f32 %v929, %v2145
      %v3490 = vadd.f32 %v930, %v2147
      %v3491 = vadd.f32 %v931, %v2149
      %v3492 = vadd.f32 %v932, %v2151
      %v3493 = vadd.f32 %v933, %v2153
      %v3494 = vadd.f32 %v934, %v2155
      %v3495 = vadd.f32 %v935, %v2157
      %v3496 = vadd.f32 %v936, %v2159
      %v3497 = vadd.f32 %v937, %v2161
      %v3498 = vadd.f32 %v938, %v2163
      %v3499 = vadd.f32 %v939, %v2165
      %v3500 = vadd.f32 %v940, %v2167
      %v3501 = vadd.f32 %v941, %v2169
      %v3502 = vadd.f32 %v942, %v2171
      %v3503 = vadd.f32 %v943, %v2173
      %v3504 = vadd.f32 %v944, %v2175
      %v3505 = vadd.f32 %v945, %v2177
      %v3506 = vadd.f32 %v946, %v2179
      %v3507 = vadd.f32 %v947, %v2181
      %v3508 = vadd.f32 %v948, %v2183
      %v3509 = vadd.f32 %v949, %v2185
      %v3510 = vadd.f32 %v950, %v2187
      %v3511 = vadd.f32 %v951, %v2189
      %v3512 = vadd.f32 %v952, %v2191
      %v3513 = vadd.f32 %v953, %v2193
      %v3514 = vadd.f32 %v954, %v2195
      %v3515 = vadd.f32 %v955, %v2197
      %v3516 = vadd.f32 %v956, %v2199
      %v3517 = vadd.f32 %v957, %v2201
      %v3518 = vadd.f32 %v958, %v2203
      %v3519 = vadd.f32 %v959, %v2205
      %v3520 = vadd.f32 %v960, %v2207
      %v3521 = vadd.f32 %v961, %v2209
      %v3522 = vadd.f32 %v962, %v2211
      %v3523 = vadd.f32 %v963, %v2213
      %v3524 = vadd.f32 %v964, %v2215
      %v3525 = vadd.f32 %v965, %v2217
      %v3526 = vadd.f32 %v966, %v2219
      %v3527 = vadd.f32 %v967, %v2221
      %v3528 = vadd.f32 %v968, %v2223
      %v3529 = vadd.f32 %v969, %v2225
      %v3530 = vadd.f32 %v970, %v2227
      %v3531 = vadd.f32 %v971, %v2229
      %v3532 = vadd.f32 %v972, %v2231
      %v3533 = vadd.f32 %v973, %v2233
      %v3534 = vadd.f32 %v974, %v2235
      %v3535 = vadd.f32 %v975, %v2237
      %v3536 = vadd.f32 %v976, %v2239
      %v3537 = vadd.f32 %v977, %v2241
      %v3538 = vadd.f32 %v978, %v2243
      %v3539 = vadd.f32 %v979, %v2245
      %v3540 = vadd.f32 %v980, %v2247
      %v3541 = vadd.f32 %v981, %v2249
      %v3542 = vadd.f32 %v982, %v2251
      %v3543 = vadd.f32 %v983, %v2253
      %v3544 = vadd.f32 %v984, %v2255
      %v3545 = vadd.f32 %v985, %v2257
      %v3546 = vadd.f32 %v986, %v2259
      %v3547 = vadd.f32 %v987, %v2261
      %v3548 = vadd.f32 %v988, %v2263
      %v3549 = vadd.f32 %v989, %v2265
      %v3550 = vadd.f32 %v990, %v2267
      %v3551 = vadd.f32 %v991, %v2269
      %v3552 = vadd.f32 %v992, %v2271
      %v3553 = vadd.f32 %v993, %v2273
      %v3554 = vadd.f32 %v994, %v2275
      %v3555 = vadd.f32 %v995, %v2277
      %v3556 = vadd.f32 %v996, %v2279
      %v3557 = vadd.f32 %v997, %v2281
      %v3558 = vadd.f32 %v998, %v2283
      %v3559 = vadd.f32 %v999, %v2285
      %v3560 = vadd.f32 %v1000, %v2287
      %v3561 = vadd.f32 %v1001, %v2289
      %v3562 = vadd.f32 %v1002, %v2291
      %v3563 = vadd.f32 %v1003, %v2293
      %v3564 = vadd.f32 %v1004, %v2295
      %v3565 = vadd.f32 %v1005, %v2297
      %v3566 = vadd.f32 %v1006, %v2299
      %v3567 = vadd.f32 %v1007, %v2301
      %v3568 = vadd.f32 %v1008, %v2303
      %v3569 = vadd.f32 %v1009, %v2305
      %v3570 = vadd.f32 %v1010, %v2307
      %v3571 = vadd.f32 %v1011, %v2309
      %v3572 = vadd.f32 %v1012, %v2311
      %v3573 = vadd.f32 %v1013, %v2313
      %v3574 = vadd.f32 %v1014, %v2315
      %v3575 = vadd.f32 %v1015, %v2317
      %v3576 = vadd.f32 %v1016, %v2319
      %v3577 = vadd.f32 %v1017, %v2321
      %v3578 = vadd.f32 %v1018, %v2323
      %v3579 = vadd.f32 %v1019, %v2325
      %v3580 = vadd.f32 %v1020, %v2327
      %v3581 = vadd.f32 %v1021, %v2329
      %v3582 = vadd.f32 %v1022, %v2331
      %v3583 = vadd.f32 %v1023, %v2333
      %v3584 = vadd.f32 %v1024, %v2335
      %v3585 = vadd.f32 %v1025, %v2337
      %v3586 = vadd.f32 %v1026, %v2339
      %v3587 = vadd.f32 %v1027, %v2341
      %v3588 = vadd.f32 %v1028, %v2343
      %v3589 = vadd.f32 %v1029, %v2345
      %v3590 = vadd.f32 %v1030, %v2347
      %v3591 = vadd.f32 %v1031, %v2349
      %v3592 = vadd.f32 %v1032, %v2351
      %v3593 = vadd.f32 %v1033, %v2353
      %v3594 = vadd.f32 %v1034, %v2355
      %v3595 = vadd.f32 %v1035, %v2357
      %v3596 = vadd.f32 %v1036, %v2359
      %v3597 = vadd.f32 %v1037, %v2361
      %v3598 = vadd.f32 %v1038, %v2363
      %v3599 = vadd.f32 %v1039, %v2365
      %v3600 = vadd.f32 %v1040, %v2367
      %v3601 = vadd.f32 %v1041, %v2369
      %v3602 = vadd.f32 %v1042, %v2371
      %v3603 = vadd.f32 %v1043, %v2373
      %v3604 = vadd.f32 %v1044, %v2375
      %v3605 = vadd.f32 %v1045, %v2377
      %v3606 = vadd.f32 %v1046, %v2379
      %v3607 = vadd.f32 %v1047, %v2381
      %v3608 = vadd.f32 %v1048, %v2383
      %v3609 = vadd.f32 %v1049, %v2385
      %v3610 = vadd.f32 %v1050, %v2387
      %v3611 = vadd.f32 %v1051, %v2389
      %v3612 = vadd.f32 %v1052, %v2391
      %v3613 = vadd.f32 %v1053, %v2393
      %v3614 = vadd.f32 %v1054, %v2395
      %v3615 = vadd.f32 %v1055, %v2397
      %v3616 = vadd.f32 %v1056, %v2399
      %v3617 = vadd.f32 %v1057, %v2401
      %v3618 = vadd.f32 %v1058, %v2403
      %v3619 = vadd.f32 %v1059, %v2405
      %v3620 = vadd.f32 %v1060, %v2407
      %v3621 = vadd.f32 %v1061, %v2409
      %v3622 = vadd.f32 %v1062, %v2411
      %v3623 = vadd.f32 %v1063, %v2413
      %v3624 = vadd.f32 %v1064, %v2415
      %v3625 = vadd.f32 %v1065, %v2417
      %v3626 = vadd.f32 %v1066, %v2419
      %v3627 = vadd.f32 %v1067, %v2421
      %v3628 = vadd.f32 %v1068, %v2423
      %v3629 = vadd.f32 %v1069, %v2425
      %v3630 = vadd.f32 %v1070, %v2427
      %v3631 = vadd.f32 %v1071, %v2429
      %v3632 = vadd.f32 %v1072, %v2431
      %v3633 = vadd.f32 %v1073, %v2433
      %v3634 = vadd.f32 %v1074, %v2435
      %v3635 = vadd.f32 %v1075, %v2437
      %v3636 = vadd.f32 %v1076, %v2439
      %v3637 = vadd.f32 %v1077, %v2441
      %v3638 = vadd.f32 %v1078, %v2443
      %v3639 = vadd.f32 %v1079, %v2445
      %v3640 = vadd.f32 %v1080, %v2447
      %v3641 = vadd.f32 %v1081, %v2449
      %v3642 = vadd.f32 %v1082, %v2451
      %v3643 = vadd.f32 %v1083, %v2453
      %v3644 = vadd.f32 %v1084, %v2455
      %v3645 = vadd.f32 %v1085, %v2457
      %v3646 = vadd.f32 %v1086, %v2459
      %v3647 = vadd.f32 %v1087, %v2461
      %v3648 = vadd.f32 %v1088, %v2463
      %v3649 = vadd.f32 %v1089, %v2465
      %v3650 = vadd.f32 %v1090, %v2467
      %v3651 = vadd.f32 %v1091, %v2469
      %v3652 = vadd.f32 %v1092, %v2471
      %v3653 = vadd.f32 %v1093, %v2473
      %v3654 = vadd.f32 %v1094, %v2475
      %v3655 = vadd.f32 %v1095, %v2477
      %v3656 = vadd.f32 %v1096, %v2479
      %v3657 = vadd.f32 %v1097, %v2481
      %v3658 = vadd.f32 %v1098, %v2483
      %v3659 = vadd.f32 %v1099, %v2485
      %v3660 = vadd.f32 %v1100, %v2487
      %v3661 = vadd.f32 %v1101, %v2489
      %v3662 = vadd.f32 %v1102, %v2491
      %v3663 = vadd.f32 %v1103, %v2493
      %v3664 = vadd.f32 %v1104, %v2495
      %v3665 = vadd.f32 %v1105, %v2497
      %v3666 = vadd.f32 %v1106, %v2499
      %v3667 = vadd.f32 %v1107, %v2501
      %v3668 = vadd.f32 %v1108, %v2503
      %v3669 = vadd.f32 %v1109, %v2505
      %v3670 = vadd.f32 %v1110, %v2507
      %v3671 = vadd.f32 %v1111, %v2509
      %v3672 = vadd.f32 %v1112, %v2511
      %v3673 = vadd.f32 %v1113, %v2513
      %v3674 = vadd.f32 %v1114, %v2515
      %v3675 = vadd.f32 %v1115, %v2517
      %v3676 = vadd.f32 %v1116, %v2519
      %v3677 = vadd.f32 %v1117, %v2521
      %v3678 = vadd.f32 %v1118, %v2523
      %v3679 = vadd.f32 %v1119, %v2525
      %v3680 = vadd.f32 %v1120, %v2527
      %v3681 = vadd.f32 %v1121, %v2529
      %v3682 = vadd.f32 %v1122, %v2531
      %v3683 = vadd.f32 %v1123, %v2533
      %v3684 = vadd.f32 %v1124, %v2535
      %v3685 = vadd.f32 %v1125, %v2537
      %v3686 = vadd.f32 %v1126, %v2539
      %v3687 = vadd.f32 %v1127, %v2541
      %v3688 = vadd.f32 %v1128, %v2543
      %v3689 = vadd.f32 %v1129, %v2545
      %v3690 = vadd.f32 %v1130, %v2547
      %v3691 = vadd.f32 %v1131, %v2549
      %v3692 = vadd.f32 %v1132, %v2551
      %v3693 = vadd.f32 %v1133, %v2553
      %v3694 = vadd.f32 %v1134, %v2555
      %v3695 = vadd.f32 %v1135, %v2557
      %v3696 = vadd.f32 %v1136, %v2559
      %v3697 = vadd.f32 %v1137, %v2561
      %v3698 = vadd.f32 %v1138, %v2563
      %v3699 = vadd.f32 %v1139, %v2565
      %v3700 = vadd.f32 %v1140, %v2567
      %v3701 = vadd.f32 %v1141, %v2569
      %v3702 = vadd.f32 %v1142, %v2571
      %v3703 = vadd.f32 %v1143, %v2573
      %v3704 = vadd.f32 %v1144, %v2575
      %v3705 = vadd.f32 %v1145, %v2577
      %v3706 = vadd.f32 %v1146, %v2579
      %v3707 = vadd.f32 %v1147, %v2581
      %v3708 = vadd.f32 %v1148, %v2583
      %v3709 = vadd.f32 %v1149, %v2585
      %v3710 = vadd.f32 %v1150, %v2587
      %v3711 = vadd.f32 %v1151, %v2589
      %v3712 = vadd.f32 %v1152, %v2591
      %v3713 = vadd.f32 %v1153, %v2593
      %v3714 = vadd.f32 %v1154, %v2595
      %v3715 = vadd.f32 %v1155, %v2597
      %v3716 = vadd.f32 %v1156, %v2599
      %v3717 = vadd.f32 %v1157, %v2601
      %v3718 = vadd.f32 %v1158, %v2603
      %v3719 = vadd.f32 %v1159, %v2605
      %v3720 = vadd.f32 %v1160, %v2607
      %v3721 = vadd.f32 %v1161, %v2609
      %v3722 = vadd.f32 %v1162, %v2611
      %v3723 = vadd.f32 %v1163, %v2613
      %v3724 = vadd.f32 %v1164, %v2615
      %v3725 = vadd.f32 %v1165, %v2617
      %v3726 = vadd.f32 %v1166, %v2619
      %v3727 = vadd.f32 %v1167, %v2621
      %v3728 = vadd.f32 %v1168, %v2623
      %v3729 = vadd.f32 %v1169, %v2625
      %v3730 = vadd.f32 %v1170, %v2627
      %v3731 = vadd.f32 %v1171, %v2629
      %v3732 = vadd.f32 %v1172, %v2631
      %v3733 = vadd.f32 %v1173, %v2633
      %v3734 = vadd.f32 %v1174, %v2635
      %v3735 = vadd.f32 %v1175, %v2637
      %v3736 = vadd.f32 %v1176, %v2639
      %v3737 = vadd.f32 %v1177, %v2641
      %v3738 = vadd.f32 %v1178, %v2643
      %v3739 = vadd.f32 %v1179, %v2645
      %v3740 = vadd.f32 %v1180, %v2647
      %v3741 = vadd.f32 %v1181, %v2649
      %v3742 = vadd.f32 %v1182, %v2651
      %v3743 = vadd.f32 %v1183, %v2653
      %v3744 = vadd.f32 %v1184, %v2655
      %v3745 = vadd.f32 %v1185, %v2657
      %v3746 = vadd.f32 %v1186, %v2659
      %v3747 = vadd.f32 %v1187, %v2661
      %v3748 = vadd.f32 %v1188, %v2663
      %v3749 = vadd.f32 %v1189, %v2665
      %v3750 = vadd.f32 %v1190, %v2667
      %v3751 = vadd.f32 %v1191, %v2669
      %v3752 = vadd.f32 %v1192, %v2671
      %v3753 = vadd.f32 %v1193, %v2673
      %v3754 = vadd.f32 %v1194, %v2675
      %v3755 = vadd.f32 %v1195, %v2677
      %v3756 = vadd.f32 %v1196, %v2679
      %v3757 = vadd.f32 %v1197, %v2681
      %v3758 = vadd.f32 %v1198, %v2683
      %v3759 = vadd.f32 %v1199, %v2685
      %v3760 = vadd.f32 %v1200, %v2687
      %v3761 = vadd.f32 %v1201, %v2689
      %v3762 = vadd.f32 %v1202, %v2691
      %v3763 = vadd.f32 %v1203, %v2693
      %v3764 = vadd.f32 %v1204, %v2695
      %v3765 = vadd.f32 %v1205, %v2697
      %v3766 = vadd.f32 %v1206, %v2699
      %v3767 = vadd.f32 %v1207, %v2701
      %v3768 = vadd.f32 %v1208, %v2703
      %v3769 = vadd.f32 %v1209, %v2705
      %v3770 = vadd.f32 %v1210, %v2707
      %v3771 = vadd.f32 %v1211, %v2709
      %v3772 = vadd.f32 %v1212, %v2711
      %v3773 = vadd.f32 %v1213, %v2713
      %v3774 = vadd.f32 %v1214, %v2715
      %v3775 = vadd.f32 %v1215, %v2717
      %v3776 = vadd.f32 %v1216, %v2719
      %v3777 = vadd.f32 %v1217, %v2721
      %v3778 = vadd.f32 %v1218, %v2723
      %v3779 = vadd.f32 %v1219, %v2725
      %v3780 = vadd.f32 %v1220, %v2727
      %v3781 = vadd.f32 %v1221, %v2729
      %v3782 = vadd.f32 %v1222, %v2731
      %v3783 = vadd.f32 %v1223, %v2733
      %v3784 = vadd.f32 %v1224, %v2735
      %v3785 = vadd.f32 %v1225, %v2737
      %v3786 = vadd.f32 %v1226, %v2739
      %v3787 = vadd.f32 %v1227, %v2741
      %v3788 = vadd.f32 %v1228, %v2743
      %v3789 = vadd.f32 %v1229, %v2745
      %v3790 = vadd.f32 %v1230, %v2747
      %v3791 = vadd.f32 %v1231, %v2749
      %v3792 = vadd.f32 %v1232, %v2751
      %v3793 = vadd.f32 %v1233, %v2753
      %v3794 = vadd.f32 %v1234, %v2755
      %v3795 = vadd.f32 %v1235, %v2757
      %v3796 = vadd.f32 %v1236, %v2759
      %v3797 = vadd.f32 %v1237, %v2761
      %v3798 = vadd.f32 %v1238, %v2763
      %v3799 = vadd.f32 %v1239, %v2765
      %v3800 = vadd.f32 %v1240, %v2767
      %v3801 = vadd.f32 %v1241, %v2769
      %v3802 = vadd.f32 %v1242, %v2771
      %v3803 = vadd.f32 %v1243, %v2773
      %v3804 = vadd.f32 %v1244, %v2775
      %v3805 = vadd.f32 %v1245, %v2777
      %v3806 = vadd.f32 %v1246, %v2779
      %v3807 = vadd.f32 %v1247, %v2781
      %v3808 = vadd.f32 %v1248, %v2783
      %v3809 = vadd.f32 %v1249, %v2785
      %3810 = vrot.lane.b32.xlu0 %v226, 120
      %v3811 = vpop.permute.xlu0 %3810
      %3812 = vrot.lane.b32.xlu0 %v227, 120
      %v3813 = vpop.permute.xlu0 %3812
      %3814 = vrot.lane.b32.xlu0 %v228, 120
      %v3815 = vpop.permute.xlu0 %3814
      %3816 = vrot.lane.b32.xlu0 %v229, 120
      %v3817 = vpop.permute.xlu0 %3816
      %3818 = vrot.lane.b32.xlu0 %v230, 120
      %v3819 = vpop.permute.xlu0 %3818
      %3820 = vrot.lane.b32.xlu0 %v231, 120
      %v3821 = vpop.permute.xlu0 %3820
      %3822 = vrot.lane.b32.xlu0 %v232, 120
      %v3823 = vpop.permute.xlu0 %3822
      %3824 = vrot.lane.b32.xlu0 %v233, 120
      %v3825 = vpop.permute.xlu0 %3824
      %3826 = vrot.lane.b32.xlu0 %v234, 120
      %v3827 = vpop.permute.xlu0 %3826
      %3828 = vrot.lane.b32.xlu0 %v235, 120
      %v3829 = vpop.permute.xlu0 %3828
      %3830 = vrot.lane.b32.xlu0 %v236, 120
      %v3831 = vpop.permute.xlu0 %3830
      %3832 = vrot.lane.b32.xlu0 %v237, 120
      %v3833 = vpop.permute.xlu0 %3832
      %3834 = vrot.lane.b32.xlu0 %v238, 120
      %v3835 = vpop.permute.xlu0 %3834
      %3836 = vrot.lane.b32.xlu0 %v239, 120
      %v3837 = vpop.permute.xlu0 %3836
      %3838 = vrot.lane.b32.xlu0 %v240, 120
      %v3839 = vpop.permute.xlu0 %3838
      %3840 = vrot.lane.b32.xlu0 %v241, 120
      %v3841 = vpop.permute.xlu0 %3840
      %3842 = vrot.lane.b32.xlu0 %v242, 120
      %v3843 = vpop.permute.xlu0 %3842
      %3844 = vrot.lane.b32.xlu0 %v243, 120
      %v3845 = vpop.permute.xlu0 %3844
      %3846 = vrot.lane.b32.xlu0 %v244, 120
      %v3847 = vpop.permute.xlu0 %3846
      %3848 = vrot.lane.b32.xlu0 %v245, 120
      %v3849 = vpop.permute.xlu0 %3848
      %3850 = vrot.lane.b32.xlu0 %v246, 120
      %v3851 = vpop.permute.xlu0 %3850
      %3852 = vrot.lane.b32.xlu0 %v247, 120
      %v3853 = vpop.permute.xlu0 %3852
      %3854 = vrot.lane.b32.xlu0 %v248, 120
      %v3855 = vpop.permute.xlu0 %3854
      %3856 = vrot.lane.b32.xlu0 %v249, 120
      %v3857 = vpop.permute.xlu0 %3856
      %3858 = vrot.lane.b32.xlu0 %v250, 120
      %v3859 = vpop.permute.xlu0 %3858
      %3860 = vrot.lane.b32.xlu0 %v251, 120
      %v3861 = vpop.permute.xlu0 %3860
      %3862 = vrot.lane.b32.xlu0 %v252, 120
      %v3863 = vpop.permute.xlu0 %3862
      %3864 = vrot.lane.b32.xlu0 %v253, 120
      %v3865 = vpop.permute.xlu0 %3864
      %3866 = vrot.lane.b32.xlu0 %v254, 120
      %v3867 = vpop.permute.xlu0 %3866
      %3868 = vrot.lane.b32.xlu0 %v255, 120
      %v3869 = vpop.permute.xlu0 %3868
      %3870 = vrot.lane.b32.xlu0 %v256, 120
      %v3871 = vpop.permute.xlu0 %3870
      %3872 = vrot.lane.b32.xlu0 %v257, 120
      %v3873 = vpop.permute.xlu0 %3872
      %3874 = vrot.lane.b32.xlu0 %v258, 120
      %v3875 = vpop.permute.xlu0 %3874
      %3876 = vrot.lane.b32.xlu0 %v259, 120
      %v3877 = vpop.permute.xlu0 %3876
      %3878 = vrot.lane.b32.xlu0 %v260, 120
      %v3879 = vpop.permute.xlu0 %3878
      %3880 = vrot.lane.b32.xlu0 %v261, 120
      %v3881 = vpop.permute.xlu0 %3880
      %3882 = vrot.lane.b32.xlu0 %v262, 120
      %v3883 = vpop.permute.xlu0 %3882
      %3884 = vrot.lane.b32.xlu0 %v263, 120
      %v3885 = vpop.permute.xlu0 %3884
      %3886 = vrot.lane.b32.xlu0 %v264, 120
      %v3887 = vpop.permute.xlu0 %3886
      %3888 = vrot.lane.b32.xlu0 %v265, 120
      %v3889 = vpop.permute.xlu0 %3888
      %3890 = vrot.lane.b32.xlu0 %v266, 120
      %v3891 = vpop.permute.xlu0 %3890
      %3892 = vrot.lane.b32.xlu0 %v267, 120
      %v3893 = vpop.permute.xlu0 %3892
      %3894 = vrot.lane.b32.xlu0 %v268, 120
      %v3895 = vpop.permute.xlu0 %3894
      %3896 = vrot.lane.b32.xlu0 %v269, 120
      %v3897 = vpop.permute.xlu0 %3896
      %3898 = vrot.lane.b32.xlu0 %v270, 120
      %v3899 = vpop.permute.xlu0 %3898
      %3900 = vrot.lane.b32.xlu0 %v271, 120
      %v3901 = vpop.permute.xlu0 %3900
      %3902 = vrot.lane.b32.xlu0 %v272, 120
      %v3903 = vpop.permute.xlu0 %3902
      %3904 = vrot.lane.b32.xlu0 %v273, 120
      %v3905 = vpop.permute.xlu0 %3904
      %3906 = vrot.lane.b32.xlu0 %v274, 120
      %v3907 = vpop.permute.xlu0 %3906
      %3908 = vrot.lane.b32.xlu0 %v275, 120
      %v3909 = vpop.permute.xlu0 %3908
      %3910 = vrot.lane.b32.xlu0 %v276, 120
      %v3911 = vpop.permute.xlu0 %3910
      %3912 = vrot.lane.b32.xlu0 %v277, 120
      %v3913 = vpop.permute.xlu0 %3912
      %3914 = vrot.lane.b32.xlu0 %v278, 120
      %v3915 = vpop.permute.xlu0 %3914
      %3916 = vrot.lane.b32.xlu0 %v279, 120
      %v3917 = vpop.permute.xlu0 %3916
      %3918 = vrot.lane.b32.xlu0 %v280, 120
      %v3919 = vpop.permute.xlu0 %3918
      %3920 = vrot.lane.b32.xlu0 %v281, 120
      %v3921 = vpop.permute.xlu0 %3920
      %3922 = vrot.lane.b32.xlu0 %v282, 120
      %v3923 = vpop.permute.xlu0 %3922
      %3924 = vrot.lane.b32.xlu0 %v283, 120
      %v3925 = vpop.permute.xlu0 %3924
      %3926 = vrot.lane.b32.xlu0 %v284, 120
      %v3927 = vpop.permute.xlu0 %3926
      %3928 = vrot.lane.b32.xlu0 %v285, 120
      %v3929 = vpop.permute.xlu0 %3928
      %3930 = vrot.lane.b32.xlu0 %v286, 120
      %v3931 = vpop.permute.xlu0 %3930
      %3932 = vrot.lane.b32.xlu0 %v287, 120
      %v3933 = vpop.permute.xlu0 %3932
      %3934 = vrot.lane.b32.xlu0 %v288, 120
      %v3935 = vpop.permute.xlu0 %3934
      %3936 = vrot.lane.b32.xlu0 %v289, 120
      %v3937 = vpop.permute.xlu0 %3936
      %3938 = vrot.lane.b32.xlu0 %v290, 120
      %v3939 = vpop.permute.xlu0 %3938
      %3940 = vrot.lane.b32.xlu0 %v291, 120
      %v3941 = vpop.permute.xlu0 %3940
      %3942 = vrot.lane.b32.xlu0 %v292, 120
      %v3943 = vpop.permute.xlu0 %3942
      %3944 = vrot.lane.b32.xlu0 %v293, 120
      %v3945 = vpop.permute.xlu0 %3944
      %3946 = vrot.lane.b32.xlu0 %v294, 120
      %v3947 = vpop.permute.xlu0 %3946
      %3948 = vrot.lane.b32.xlu0 %v295, 120
      %v3949 = vpop.permute.xlu0 %3948
      %3950 = vrot.lane.b32.xlu0 %v296, 120
      %v3951 = vpop.permute.xlu0 %3950
      %3952 = vrot.lane.b32.xlu0 %v297, 120
      %v3953 = vpop.permute.xlu0 %3952
      %3954 = vrot.lane.b32.xlu0 %v298, 120
      %v3955 = vpop.permute.xlu0 %3954
      %3956 = vrot.lane.b32.xlu0 %v299, 120
      %v3957 = vpop.permute.xlu0 %3956
      %3958 = vrot.lane.b32.xlu0 %v300, 120
      %v3959 = vpop.permute.xlu0 %3958
      %3960 = vrot.lane.b32.xlu0 %v301, 120
      %v3961 = vpop.permute.xlu0 %3960
      %3962 = vrot.lane.b32.xlu0 %v302, 120
      %v3963 = vpop.permute.xlu0 %3962
      %3964 = vrot.lane.b32.xlu0 %v303, 120
      %v3965 = vpop.permute.xlu0 %3964
      %3966 = vrot.lane.b32.xlu0 %v304, 120
      %v3967 = vpop.permute.xlu0 %3966
      %3968 = vrot.lane.b32.xlu0 %v305, 120
      %v3969 = vpop.permute.xlu0 %3968
      %3970 = vrot.lane.b32.xlu0 %v306, 120
      %v3971 = vpop.permute.xlu0 %3970
      %3972 = vrot.lane.b32.xlu0 %v307, 120
      %v3973 = vpop.permute.xlu0 %3972
      %3974 = vrot.lane.b32.xlu0 %v308, 120
      %v3975 = vpop.permute.xlu0 %3974
      %3976 = vrot.lane.b32.xlu0 %v309, 120
      %v3977 = vpop.permute.xlu0 %3976
      %3978 = vrot.lane.b32.xlu0 %v310, 120
      %v3979 = vpop.permute.xlu0 %3978
      %3980 = vrot.lane.b32.xlu0 %v311, 120
      %v3981 = vpop.permute.xlu0 %3980
      %3982 = vrot.lane.b32.xlu0 %v312, 120
      %v3983 = vpop.permute.xlu0 %3982
      %3984 = vrot.lane.b32.xlu0 %v313, 120
      %v3985 = vpop.permute.xlu0 %3984
      %3986 = vrot.lane.b32.xlu0 %v314, 120
      %v3987 = vpop.permute.xlu0 %3986
      %3988 = vrot.lane.b32.xlu0 %v315, 120
      %v3989 = vpop.permute.xlu0 %3988
      %3990 = vrot.lane.b32.xlu0 %v316, 120
      %v3991 = vpop.permute.xlu0 %3990
      %3992 = vrot.lane.b32.xlu0 %v317, 120
      %v3993 = vpop.permute.xlu0 %3992
      %3994 = vrot.lane.b32.xlu0 %v318, 120
      %v3995 = vpop.permute.xlu0 %3994
      %3996 = vrot.lane.b32.xlu0 %v319, 120
      %v3997 = vpop.permute.xlu0 %3996
      %3998 = vrot.lane.b32.xlu0 %v320, 120
      %v3999 = vpop.permute.xlu0 %3998
      %4000 = vrot.lane.b32.xlu0 %v321, 120
      %v4001 = vpop.permute.xlu0 %4000
      %4002 = vrot.lane.b32.xlu0 %v322, 120
      %v4003 = vpop.permute.xlu0 %4002
      %4004 = vrot.lane.b32.xlu0 %v323, 120
      %v4005 = vpop.permute.xlu0 %4004
      %4006 = vrot.lane.b32.xlu0 %v324, 120
      %v4007 = vpop.permute.xlu0 %4006
      %4008 = vrot.lane.b32.xlu0 %v325, 120
      %v4009 = vpop.permute.xlu0 %4008
      %4010 = vrot.lane.b32.xlu0 %v326, 120
      %v4011 = vpop.permute.xlu0 %4010
      %4012 = vrot.lane.b32.xlu0 %v327, 120
      %v4013 = vpop.permute.xlu0 %4012
      %4014 = vrot.lane.b32.xlu0 %v328, 120
      %v4015 = vpop.permute.xlu0 %4014
      %4016 = vrot.lane.b32.xlu0 %v329, 120
      %v4017 = vpop.permute.xlu0 %4016
      %4018 = vrot.lane.b32.xlu0 %v330, 120
      %v4019 = vpop.permute.xlu0 %4018
      %4020 = vrot.lane.b32.xlu0 %v331, 120
      %v4021 = vpop.permute.xlu0 %4020
      %4022 = vrot.lane.b32.xlu0 %v332, 120
      %v4023 = vpop.permute.xlu0 %4022
      %4024 = vrot.lane.b32.xlu0 %v333, 120
      %v4025 = vpop.permute.xlu0 %4024
      %4026 = vrot.lane.b32.xlu0 %v334, 120
      %v4027 = vpop.permute.xlu0 %4026
      %4028 = vrot.lane.b32.xlu0 %v335, 120
      %v4029 = vpop.permute.xlu0 %4028
      %4030 = vrot.lane.b32.xlu0 %v336, 120
      %v4031 = vpop.permute.xlu0 %4030
      %4032 = vrot.lane.b32.xlu0 %v337, 120
      %v4033 = vpop.permute.xlu0 %4032
      %4034 = vrot.lane.b32.xlu0 %v338, 120
      %v4035 = vpop.permute.xlu0 %4034
      %4036 = vrot.lane.b32.xlu0 %v339, 120
      %v4037 = vpop.permute.xlu0 %4036
      %4038 = vrot.lane.b32.xlu0 %v340, 120
      %v4039 = vpop.permute.xlu0 %4038
      %4040 = vrot.lane.b32.xlu0 %v341, 120
      %v4041 = vpop.permute.xlu0 %4040
      %4042 = vrot.lane.b32.xlu0 %v342, 120
      %v4043 = vpop.permute.xlu0 %4042
      %4044 = vrot.lane.b32.xlu0 %v343, 120
      %v4045 = vpop.permute.xlu0 %4044
      %4046 = vrot.lane.b32.xlu0 %v344, 120
      %v4047 = vpop.permute.xlu0 %4046
      %4048 = vrot.lane.b32.xlu0 %v345, 120
      %v4049 = vpop.permute.xlu0 %4048
      %4050 = vrot.lane.b32.xlu0 %v346, 120
      %v4051 = vpop.permute.xlu0 %4050
      %4052 = vrot.lane.b32.xlu0 %v347, 120
      %v4053 = vpop.permute.xlu0 %4052
      %4054 = vrot.lane.b32.xlu0 %v348, 120
      %v4055 = vpop.permute.xlu0 %4054
      %4056 = vrot.lane.b32.xlu0 %v349, 120
      %v4057 = vpop.permute.xlu0 %4056
      %4058 = vrot.lane.b32.xlu0 %v350, 120
      %v4059 = vpop.permute.xlu0 %4058
      %4060 = vrot.lane.b32.xlu0 %v351, 120
      %v4061 = vpop.permute.xlu0 %4060
      %4062 = vrot.lane.b32.xlu0 %v352, 120
      %v4063 = vpop.permute.xlu0 %4062
      %4064 = vrot.lane.b32.xlu0 %v353, 120
      %v4065 = vpop.permute.xlu0 %4064
      %4066 = vrot.lane.b32.xlu0 %v354, 120
      %v4067 = vpop.permute.xlu0 %4066
      %4068 = vrot.lane.b32.xlu0 %v355, 120
      %v4069 = vpop.permute.xlu0 %4068
      %4070 = vrot.lane.b32.xlu0 %v356, 120
      %v4071 = vpop.permute.xlu0 %4070
      %4072 = vrot.lane.b32.xlu0 %v357, 120
      %v4073 = vpop.permute.xlu0 %4072
      %4074 = vrot.lane.b32.xlu0 %v358, 120
      %v4075 = vpop.permute.xlu0 %4074
      %4076 = vrot.lane.b32.xlu0 %v359, 120
      %v4077 = vpop.permute.xlu0 %4076
      %4078 = vrot.lane.b32.xlu0 %v360, 120
      %v4079 = vpop.permute.xlu0 %4078
      %4080 = vrot.lane.b32.xlu0 %v361, 120
      %v4081 = vpop.permute.xlu0 %4080
      %4082 = vrot.lane.b32.xlu0 %v362, 120
      %v4083 = vpop.permute.xlu0 %4082
      %4084 = vrot.lane.b32.xlu0 %v363, 120
      %v4085 = vpop.permute.xlu0 %4084
      %4086 = vrot.lane.b32.xlu0 %v364, 120
      %v4087 = vpop.permute.xlu0 %4086
      %4088 = vrot.lane.b32.xlu0 %v365, 120
      %v4089 = vpop.permute.xlu0 %4088
      %4090 = vrot.lane.b32.xlu0 %v366, 120
      %v4091 = vpop.permute.xlu0 %4090
      %4092 = vrot.lane.b32.xlu0 %v367, 120
      %v4093 = vpop.permute.xlu0 %4092
      %4094 = vrot.lane.b32.xlu0 %v368, 120
      %v4095 = vpop.permute.xlu0 %4094
      %4096 = vrot.lane.b32.xlu0 %v369, 120
      %v4097 = vpop.permute.xlu0 %4096
      %4098 = vrot.lane.b32.xlu0 %v370, 120
      %v4099 = vpop.permute.xlu0 %4098
      %4100 = vrot.lane.b32.xlu0 %v371, 120
      %v4101 = vpop.permute.xlu0 %4100
      %4102 = vrot.lane.b32.xlu0 %v372, 120
      %v4103 = vpop.permute.xlu0 %4102
      %4104 = vrot.lane.b32.xlu0 %v373, 120
      %v4105 = vpop.permute.xlu0 %4104
      %4106 = vrot.lane.b32.xlu0 %v374, 120
      %v4107 = vpop.permute.xlu0 %4106
      %4108 = vrot.lane.b32.xlu0 %v375, 120
      %v4109 = vpop.permute.xlu0 %4108
      %4110 = vrot.lane.b32.xlu0 %v376, 120
      %v4111 = vpop.permute.xlu0 %4110
      %4112 = vrot.lane.b32.xlu0 %v377, 120
      %v4113 = vpop.permute.xlu0 %4112
      %4114 = vrot.lane.b32.xlu0 %v378, 120
      %v4115 = vpop.permute.xlu0 %4114
      %4116 = vrot.lane.b32.xlu0 %v379, 120
      %v4117 = vpop.permute.xlu0 %4116
      %4118 = vrot.lane.b32.xlu0 %v380, 120
      %v4119 = vpop.permute.xlu0 %4118
      %4120 = vrot.lane.b32.xlu0 %v381, 120
      %v4121 = vpop.permute.xlu0 %4120
      %4122 = vrot.lane.b32.xlu0 %v382, 120
      %v4123 = vpop.permute.xlu0 %4122
      %4124 = vrot.lane.b32.xlu0 %v383, 120
      %v4125 = vpop.permute.xlu0 %4124
      %4126 = vrot.lane.b32.xlu0 %v384, 120
      %v4127 = vpop.permute.xlu0 %4126
      %4128 = vrot.lane.b32.xlu0 %v385, 120
      %v4129 = vpop.permute.xlu0 %4128
      %4130 = vrot.lane.b32.xlu0 %v386, 120
      %v4131 = vpop.permute.xlu0 %4130
      %4132 = vrot.lane.b32.xlu0 %v387, 120
      %v4133 = vpop.permute.xlu0 %4132
      %4134 = vrot.lane.b32.xlu0 %v388, 120
      %v4135 = vpop.permute.xlu0 %4134
      %4136 = vrot.lane.b32.xlu0 %v389, 120
      %v4137 = vpop.permute.xlu0 %4136
      %4138 = vrot.lane.b32.xlu0 %v390, 120
      %v4139 = vpop.permute.xlu0 %4138
      %4140 = vrot.lane.b32.xlu0 %v391, 120
      %v4141 = vpop.permute.xlu0 %4140
      %4142 = vrot.lane.b32.xlu0 %v392, 120
      %v4143 = vpop.permute.xlu0 %4142
      %4144 = vrot.lane.b32.xlu0 %v393, 120
      %v4145 = vpop.permute.xlu0 %4144
      %4146 = vrot.lane.b32.xlu0 %v394, 120
      %v4147 = vpop.permute.xlu0 %4146
      %4148 = vrot.lane.b32.xlu0 %v395, 120
      %v4149 = vpop.permute.xlu0 %4148
      %4150 = vrot.lane.b32.xlu0 %v396, 120
      %v4151 = vpop.permute.xlu0 %4150
      %4152 = vrot.lane.b32.xlu0 %v397, 120
      %v4153 = vpop.permute.xlu0 %4152
      %4154 = vrot.lane.b32.xlu0 %v398, 120
      %v4155 = vpop.permute.xlu0 %4154
      %4156 = vrot.lane.b32.xlu0 %v399, 120
      %v4157 = vpop.permute.xlu0 %4156
      %4158 = vrot.lane.b32.xlu0 %v400, 120
      %v4159 = vpop.permute.xlu0 %4158
      %4160 = vrot.lane.b32.xlu0 %v401, 120
      %v4161 = vpop.permute.xlu0 %4160
      %4162 = vrot.lane.b32.xlu0 %v402, 120
      %v4163 = vpop.permute.xlu0 %4162
      %4164 = vrot.lane.b32.xlu0 %v403, 120
      %v4165 = vpop.permute.xlu0 %4164
      %4166 = vrot.lane.b32.xlu0 %v404, 120
      %v4167 = vpop.permute.xlu0 %4166
      %4168 = vrot.lane.b32.xlu0 %v405, 120
      %v4169 = vpop.permute.xlu0 %4168
      %4170 = vrot.lane.b32.xlu0 %v406, 120
      %v4171 = vpop.permute.xlu0 %4170
      %4172 = vrot.lane.b32.xlu0 %v407, 120
      %v4173 = vpop.permute.xlu0 %4172
      %4174 = vrot.lane.b32.xlu0 %v408, 120
      %v4175 = vpop.permute.xlu0 %4174
      %4176 = vrot.lane.b32.xlu0 %v409, 120
      %v4177 = vpop.permute.xlu0 %4176
      %4178 = vrot.lane.b32.xlu0 %v410, 120
      %v4179 = vpop.permute.xlu0 %4178
      %4180 = vrot.lane.b32.xlu0 %v411, 120
      %v4181 = vpop.permute.xlu0 %4180
      %4182 = vrot.lane.b32.xlu0 %v412, 120
      %v4183 = vpop.permute.xlu0 %4182
      %4184 = vrot.lane.b32.xlu0 %v413, 120
      %v4185 = vpop.permute.xlu0 %4184
      %4186 = vrot.lane.b32.xlu0 %v414, 120
      %v4187 = vpop.permute.xlu0 %4186
      %4188 = vrot.lane.b32.xlu0 %v415, 120
      %v4189 = vpop.permute.xlu0 %4188
      %4190 = vrot.lane.b32.xlu0 %v416, 120
      %v4191 = vpop.permute.xlu0 %4190
      %4192 = vrot.lane.b32.xlu0 %v417, 120
      %v4193 = vpop.permute.xlu0 %4192
      %4194 = vrot.lane.b32.xlu0 %v418, 120
      %v4195 = vpop.permute.xlu0 %4194
      %4196 = vrot.lane.b32.xlu0 %v419, 120
      %v4197 = vpop.permute.xlu0 %4196
      %4198 = vrot.lane.b32.xlu0 %v420, 120
      %v4199 = vpop.permute.xlu0 %4198
      %4200 = vrot.lane.b32.xlu0 %v421, 120
      %v4201 = vpop.permute.xlu0 %4200
      %4202 = vrot.lane.b32.xlu0 %v422, 120
      %v4203 = vpop.permute.xlu0 %4202
      %4204 = vrot.lane.b32.xlu0 %v423, 120
      %v4205 = vpop.permute.xlu0 %4204
      %4206 = vrot.lane.b32.xlu0 %v424, 120
      %v4207 = vpop.permute.xlu0 %4206
      %4208 = vrot.lane.b32.xlu0 %v425, 120
      %v4209 = vpop.permute.xlu0 %4208
      %4210 = vrot.lane.b32.xlu0 %v426, 120
      %v4211 = vpop.permute.xlu0 %4210
      %4212 = vrot.lane.b32.xlu0 %v427, 120
      %v4213 = vpop.permute.xlu0 %4212
      %4214 = vrot.lane.b32.xlu0 %v428, 120
      %v4215 = vpop.permute.xlu0 %4214
      %4216 = vrot.lane.b32.xlu0 %v429, 120
      %v4217 = vpop.permute.xlu0 %4216
      %4218 = vrot.lane.b32.xlu0 %v430, 120
      %v4219 = vpop.permute.xlu0 %4218
      %4220 = vrot.lane.b32.xlu0 %v431, 120
      %v4221 = vpop.permute.xlu0 %4220
      %4222 = vrot.lane.b32.xlu0 %v432, 120
      %v4223 = vpop.permute.xlu0 %4222
      %4224 = vrot.lane.b32.xlu0 %v433, 120
      %v4225 = vpop.permute.xlu0 %4224
      %4226 = vrot.lane.b32.xlu0 %v434, 120
      %v4227 = vpop.permute.xlu0 %4226
      %4228 = vrot.lane.b32.xlu0 %v435, 120
      %v4229 = vpop.permute.xlu0 %4228
      %4230 = vrot.lane.b32.xlu0 %v436, 120
      %v4231 = vpop.permute.xlu0 %4230
      %4232 = vrot.lane.b32.xlu0 %v437, 120
      %v4233 = vpop.permute.xlu0 %4232
      %4234 = vrot.lane.b32.xlu0 %v438, 120
      %v4235 = vpop.permute.xlu0 %4234
      %4236 = vrot.lane.b32.xlu0 %v439, 120
      %v4237 = vpop.permute.xlu0 %4236
      %4238 = vrot.lane.b32.xlu0 %v440, 120
      %v4239 = vpop.permute.xlu0 %4238
      %4240 = vrot.lane.b32.xlu0 %v441, 120
      %v4241 = vpop.permute.xlu0 %4240
      %4242 = vrot.lane.b32.xlu0 %v442, 120
      %v4243 = vpop.permute.xlu0 %4242
      %4244 = vrot.lane.b32.xlu0 %v443, 120
      %v4245 = vpop.permute.xlu0 %4244
      %4246 = vrot.lane.b32.xlu0 %v444, 120
      %v4247 = vpop.permute.xlu0 %4246
      %4248 = vrot.lane.b32.xlu0 %v445, 120
      %v4249 = vpop.permute.xlu0 %4248
      %4250 = vrot.lane.b32.xlu0 %v446, 120
      %v4251 = vpop.permute.xlu0 %4250
      %4252 = vrot.lane.b32.xlu0 %v447, 120
      %v4253 = vpop.permute.xlu0 %4252
      %4254 = vrot.lane.b32.xlu0 %v448, 120
      %v4255 = vpop.permute.xlu0 %4254
      %4256 = vrot.lane.b32.xlu0 %v449, 120
      %v4257 = vpop.permute.xlu0 %4256
      %4258 = vrot.lane.b32.xlu0 %v450, 120
      %v4259 = vpop.permute.xlu0 %4258
      %4260 = vrot.lane.b32.xlu0 %v451, 120
      %v4261 = vpop.permute.xlu0 %4260
      %4262 = vrot.lane.b32.xlu0 %v452, 120
      %v4263 = vpop.permute.xlu0 %4262
      %4264 = vrot.lane.b32.xlu0 %v453, 120
      %v4265 = vpop.permute.xlu0 %4264
      %4266 = vrot.lane.b32.xlu0 %v454, 120
      %v4267 = vpop.permute.xlu0 %4266
      %4268 = vrot.lane.b32.xlu0 %v455, 120
      %v4269 = vpop.permute.xlu0 %4268
      %4270 = vrot.lane.b32.xlu0 %v456, 120
      %v4271 = vpop.permute.xlu0 %4270
      %4272 = vrot.lane.b32.xlu0 %v457, 120
      %v4273 = vpop.permute.xlu0 %4272
      %4274 = vrot.lane.b32.xlu0 %v458, 120
      %v4275 = vpop.permute.xlu0 %4274
      %4276 = vrot.lane.b32.xlu0 %v459, 120
      %v4277 = vpop.permute.xlu0 %4276
      %4278 = vrot.lane.b32.xlu0 %v460, 120
      %v4279 = vpop.permute.xlu0 %4278
      %4280 = vrot.lane.b32.xlu0 %v461, 120
      %v4281 = vpop.permute.xlu0 %4280
      %4282 = vrot.lane.b32.xlu0 %v462, 120
      %v4283 = vpop.permute.xlu0 %4282
      %4284 = vrot.lane.b32.xlu0 %v463, 120
      %v4285 = vpop.permute.xlu0 %4284
      %4286 = vrot.lane.b32.xlu0 %v464, 120
      %v4287 = vpop.permute.xlu0 %4286
      %4288 = vrot.lane.b32.xlu0 %v465, 120
      %v4289 = vpop.permute.xlu0 %4288
      %4290 = vrot.lane.b32.xlu0 %v466, 120
      %v4291 = vpop.permute.xlu0 %4290
      %4292 = vrot.lane.b32.xlu0 %v467, 120
      %v4293 = vpop.permute.xlu0 %4292
      %4294 = vrot.lane.b32.xlu0 %v468, 120
      %v4295 = vpop.permute.xlu0 %4294
      %4296 = vrot.lane.b32.xlu0 %v469, 120
      %v4297 = vpop.permute.xlu0 %4296
      %4298 = vrot.lane.b32.xlu0 %v470, 120
      %v4299 = vpop.permute.xlu0 %4298
      %4300 = vrot.lane.b32.xlu0 %v471, 120
      %v4301 = vpop.permute.xlu0 %4300
      %4302 = vrot.lane.b32.xlu0 %v472, 120
      %v4303 = vpop.permute.xlu0 %4302
      %4304 = vrot.lane.b32.xlu0 %v473, 120
      %v4305 = vpop.permute.xlu0 %4304
      %4306 = vrot.lane.b32.xlu0 %v474, 120
      %v4307 = vpop.permute.xlu0 %4306
      %4308 = vrot.lane.b32.xlu0 %v475, 120
      %v4309 = vpop.permute.xlu0 %4308
      %4310 = vrot.lane.b32.xlu0 %v476, 120
      %v4311 = vpop.permute.xlu0 %4310
      %4312 = vrot.lane.b32.xlu0 %v477, 120
      %v4313 = vpop.permute.xlu0 %4312
      %4314 = vrot.lane.b32.xlu0 %v478, 120
      %v4315 = vpop.permute.xlu0 %4314
      %4316 = vrot.lane.b32.xlu0 %v479, 120
      %v4317 = vpop.permute.xlu0 %4316
      %4318 = vrot.lane.b32.xlu0 %v480, 120
      %v4319 = vpop.permute.xlu0 %4318
      %4320 = vrot.lane.b32.xlu0 %v481, 120
      %v4321 = vpop.permute.xlu0 %4320
      %4322 = vrot.lane.b32.xlu0 %v482, 120
      %v4323 = vpop.permute.xlu0 %4322
      %4324 = vrot.lane.b32.xlu0 %v483, 120
      %v4325 = vpop.permute.xlu0 %4324
      %4326 = vrot.lane.b32.xlu0 %v484, 120
      %v4327 = vpop.permute.xlu0 %4326
      %4328 = vrot.lane.b32.xlu0 %v485, 120
      %v4329 = vpop.permute.xlu0 %4328
      %4330 = vrot.lane.b32.xlu0 %v486, 120
      %v4331 = vpop.permute.xlu0 %4330
      %4332 = vrot.lane.b32.xlu0 %v487, 120
      %v4333 = vpop.permute.xlu0 %4332
      %4334 = vrot.lane.b32.xlu0 %v488, 120
      %v4335 = vpop.permute.xlu0 %4334
      %4336 = vrot.lane.b32.xlu0 %v489, 120
      %v4337 = vpop.permute.xlu0 %4336
      %4338 = vrot.lane.b32.xlu0 %v490, 120
      %v4339 = vpop.permute.xlu0 %4338
      %4340 = vrot.lane.b32.xlu0 %v491, 120
      %v4341 = vpop.permute.xlu0 %4340
      %4342 = vrot.lane.b32.xlu0 %v492, 120
      %v4343 = vpop.permute.xlu0 %4342
      %4344 = vrot.lane.b32.xlu0 %v493, 120
      %v4345 = vpop.permute.xlu0 %4344
      %4346 = vrot.lane.b32.xlu0 %v494, 120
      %v4347 = vpop.permute.xlu0 %4346
      %4348 = vrot.lane.b32.xlu0 %v495, 120
      %v4349 = vpop.permute.xlu0 %4348
      %4350 = vrot.lane.b32.xlu0 %v496, 120
      %v4351 = vpop.permute.xlu0 %4350
      %4352 = vrot.lane.b32.xlu0 %v497, 120
      %v4353 = vpop.permute.xlu0 %4352
      %4354 = vrot.lane.b32.xlu0 %v498, 120
      %v4355 = vpop.permute.xlu0 %4354
      %4356 = vrot.lane.b32.xlu0 %v499, 120
      %v4357 = vpop.permute.xlu0 %4356
      %4358 = vrot.lane.b32.xlu0 %v500, 120
      %v4359 = vpop.permute.xlu0 %4358
      %4360 = vrot.lane.b32.xlu0 %v501, 120
      %v4361 = vpop.permute.xlu0 %4360
      %4362 = vrot.lane.b32.xlu0 %v502, 120
      %v4363 = vpop.permute.xlu0 %4362
      %4364 = vrot.lane.b32.xlu0 %v503, 120
      %v4365 = vpop.permute.xlu0 %4364
      %4366 = vrot.lane.b32.xlu0 %v504, 120
      %v4367 = vpop.permute.xlu0 %4366
      %4368 = vrot.lane.b32.xlu0 %v505, 120
      %v4369 = vpop.permute.xlu0 %4368
      %4370 = vrot.lane.b32.xlu0 %v506, 120
      %v4371 = vpop.permute.xlu0 %4370
      %4372 = vrot.lane.b32.xlu0 %v507, 120
      %v4373 = vpop.permute.xlu0 %4372
      %4374 = vrot.lane.b32.xlu0 %v508, 120
      %v4375 = vpop.permute.xlu0 %4374
      %4376 = vrot.lane.b32.xlu0 %v509, 120
      %v4377 = vpop.permute.xlu0 %4376
      %4378 = vrot.lane.b32.xlu0 %v510, 120
      %v4379 = vpop.permute.xlu0 %4378
      %4380 = vrot.lane.b32.xlu0 %v511, 120
      %v4381 = vpop.permute.xlu0 %4380
      %4382 = vrot.lane.b32.xlu0 %v512, 120
      %v4383 = vpop.permute.xlu0 %4382
      %4384 = vrot.lane.b32.xlu0 %v513, 120
      %v4385 = vpop.permute.xlu0 %4384
      %4386 = vrot.lane.b32.xlu0 %v514, 120
      %v4387 = vpop.permute.xlu0 %4386
      %4388 = vrot.lane.b32.xlu0 %v515, 120
      %v4389 = vpop.permute.xlu0 %4388
      %4390 = vrot.lane.b32.xlu0 %v516, 120
      %v4391 = vpop.permute.xlu0 %4390
      %4392 = vrot.lane.b32.xlu0 %v517, 120
      %v4393 = vpop.permute.xlu0 %4392
      %4394 = vrot.lane.b32.xlu0 %v518, 120
      %v4395 = vpop.permute.xlu0 %4394
      %4396 = vrot.lane.b32.xlu0 %v519, 120
      %v4397 = vpop.permute.xlu0 %4396
      %4398 = vrot.lane.b32.xlu0 %v520, 120
      %v4399 = vpop.permute.xlu0 %4398
      %4400 = vrot.lane.b32.xlu0 %v521, 120
      %v4401 = vpop.permute.xlu0 %4400
      %4402 = vrot.lane.b32.xlu0 %v522, 120
      %v4403 = vpop.permute.xlu0 %4402
      %4404 = vrot.lane.b32.xlu0 %v523, 120
      %v4405 = vpop.permute.xlu0 %4404
      %4406 = vrot.lane.b32.xlu0 %v524, 120
      %v4407 = vpop.permute.xlu0 %4406
      %4408 = vrot.lane.b32.xlu0 %v525, 120
      %v4409 = vpop.permute.xlu0 %4408
      %4410 = vrot.lane.b32.xlu0 %v526, 120
      %v4411 = vpop.permute.xlu0 %4410
      %4412 = vrot.lane.b32.xlu0 %v527, 120
      %v4413 = vpop.permute.xlu0 %4412
      %4414 = vrot.lane.b32.xlu0 %v528, 120
      %v4415 = vpop.permute.xlu0 %4414
      %4416 = vrot.lane.b32.xlu0 %v529, 120
      %v4417 = vpop.permute.xlu0 %4416
      %4418 = vrot.lane.b32.xlu0 %v530, 120
      %v4419 = vpop.permute.xlu0 %4418
      %4420 = vrot.lane.b32.xlu0 %v531, 120
      %v4421 = vpop.permute.xlu0 %4420
      %4422 = vrot.lane.b32.xlu0 %v532, 120
      %v4423 = vpop.permute.xlu0 %4422
      %4424 = vrot.lane.b32.xlu0 %v533, 120
      %v4425 = vpop.permute.xlu0 %4424
      %4426 = vrot.lane.b32.xlu0 %v534, 120
      %v4427 = vpop.permute.xlu0 %4426
      %4428 = vrot.lane.b32.xlu0 %v535, 120
      %v4429 = vpop.permute.xlu0 %4428
      %4430 = vrot.lane.b32.xlu0 %v536, 120
      %v4431 = vpop.permute.xlu0 %4430
      %4432 = vrot.lane.b32.xlu0 %v537, 120
      %v4433 = vpop.permute.xlu0 %4432
      %4434 = vrot.lane.b32.xlu0 %v538, 120
      %v4435 = vpop.permute.xlu0 %4434
      %4436 = vrot.lane.b32.xlu0 %v539, 120
      %v4437 = vpop.permute.xlu0 %4436
      %4438 = vrot.lane.b32.xlu0 %v540, 120
      %v4439 = vpop.permute.xlu0 %4438
      %4440 = vrot.lane.b32.xlu0 %v541, 120
      %v4441 = vpop.permute.xlu0 %4440
      %4442 = vrot.lane.b32.xlu0 %v542, 120
      %v4443 = vpop.permute.xlu0 %4442
      %4444 = vrot.lane.b32.xlu0 %v543, 120
      %v4445 = vpop.permute.xlu0 %4444
      %4446 = vrot.lane.b32.xlu0 %v544, 120
      %v4447 = vpop.permute.xlu0 %4446
      %4448 = vrot.lane.b32.xlu0 %v545, 120
      %v4449 = vpop.permute.xlu0 %4448
      %4450 = vrot.lane.b32.xlu0 %v546, 120
      %v4451 = vpop.permute.xlu0 %4450
      %4452 = vrot.lane.b32.xlu0 %v547, 120
      %v4453 = vpop.permute.xlu0 %4452
      %4454 = vrot.lane.b32.xlu0 %v548, 120
      %v4455 = vpop.permute.xlu0 %4454
      %4456 = vrot.lane.b32.xlu0 %v549, 120
      %v4457 = vpop.permute.xlu0 %4456
      %4458 = vrot.lane.b32.xlu0 %v550, 120
      %v4459 = vpop.permute.xlu0 %4458
      %4460 = vrot.lane.b32.xlu0 %v551, 120
      %v4461 = vpop.permute.xlu0 %4460
      %4462 = vrot.lane.b32.xlu0 %v552, 120
      %v4463 = vpop.permute.xlu0 %4462
      %4464 = vrot.lane.b32.xlu0 %v553, 120
      %v4465 = vpop.permute.xlu0 %4464
      %4466 = vrot.lane.b32.xlu0 %v554, 120
      %v4467 = vpop.permute.xlu0 %4466
      %4468 = vrot.lane.b32.xlu0 %v555, 120
      %v4469 = vpop.permute.xlu0 %4468
      %4470 = vrot.lane.b32.xlu0 %v556, 120
      %v4471 = vpop.permute.xlu0 %4470
      %4472 = vrot.lane.b32.xlu0 %v557, 120
      %v4473 = vpop.permute.xlu0 %4472
      %4474 = vrot.lane.b32.xlu0 %v558, 120
      %v4475 = vpop.permute.xlu0 %4474
      %4476 = vrot.lane.b32.xlu0 %v559, 120
      %v4477 = vpop.permute.xlu0 %4476
      %4478 = vrot.lane.b32.xlu0 %v560, 120
      %v4479 = vpop.permute.xlu0 %4478
      %4480 = vrot.lane.b32.xlu0 %v561, 120
      %v4481 = vpop.permute.xlu0 %4480
      %4482 = vrot.lane.b32.xlu0 %v562, 120
      %v4483 = vpop.permute.xlu0 %4482
      %4484 = vrot.lane.b32.xlu0 %v563, 120
      %v4485 = vpop.permute.xlu0 %4484
      %4486 = vrot.lane.b32.xlu0 %v564, 120
      %v4487 = vpop.permute.xlu0 %4486
      %4488 = vrot.lane.b32.xlu0 %v565, 120
      %v4489 = vpop.permute.xlu0 %4488
      %4490 = vrot.lane.b32.xlu0 %v566, 120
      %v4491 = vpop.permute.xlu0 %4490
      %4492 = vrot.lane.b32.xlu0 %v567, 120
      %v4493 = vpop.permute.xlu0 %4492
      %4494 = vrot.lane.b32.xlu0 %v568, 120
      %v4495 = vpop.permute.xlu0 %4494
      %4496 = vrot.lane.b32.xlu0 %v569, 120
      %v4497 = vpop.permute.xlu0 %4496
      %4498 = vrot.lane.b32.xlu0 %v570, 120
      %v4499 = vpop.permute.xlu0 %4498
      %4500 = vrot.lane.b32.xlu0 %v571, 120
      %v4501 = vpop.permute.xlu0 %4500
      %4502 = vrot.lane.b32.xlu0 %v572, 120
      %v4503 = vpop.permute.xlu0 %4502
      %4504 = vrot.lane.b32.xlu0 %v573, 120
      %v4505 = vpop.permute.xlu0 %4504
      %4506 = vrot.lane.b32.xlu0 %v574, 120
      %v4507 = vpop.permute.xlu0 %4506
      %4508 = vrot.lane.b32.xlu0 %v575, 120
      %v4509 = vpop.permute.xlu0 %4508
      %4510 = vrot.lane.b32.xlu0 %v576, 120
      %v4511 = vpop.permute.xlu0 %4510
      %4512 = vrot.lane.b32.xlu0 %v577, 120
      %v4513 = vpop.permute.xlu0 %4512
      %4514 = vrot.lane.b32.xlu0 %v578, 120
      %v4515 = vpop.permute.xlu0 %4514
      %4516 = vrot.lane.b32.xlu0 %v579, 120
      %v4517 = vpop.permute.xlu0 %4516
      %4518 = vrot.lane.b32.xlu0 %v580, 120
      %v4519 = vpop.permute.xlu0 %4518
      %4520 = vrot.lane.b32.xlu0 %v581, 120
      %v4521 = vpop.permute.xlu0 %4520
      %4522 = vrot.lane.b32.xlu0 %v582, 120
      %v4523 = vpop.permute.xlu0 %4522
      %4524 = vrot.lane.b32.xlu0 %v583, 120
      %v4525 = vpop.permute.xlu0 %4524
      %4526 = vrot.lane.b32.xlu0 %v584, 120
      %v4527 = vpop.permute.xlu0 %4526
      %4528 = vrot.lane.b32.xlu0 %v585, 120
      %v4529 = vpop.permute.xlu0 %4528
      %4530 = vrot.lane.b32.xlu0 %v586, 120
      %v4531 = vpop.permute.xlu0 %4530
      %4532 = vrot.lane.b32.xlu0 %v587, 120
      %v4533 = vpop.permute.xlu0 %4532
      %4534 = vrot.lane.b32.xlu0 %v588, 120
      %v4535 = vpop.permute.xlu0 %4534
      %4536 = vrot.lane.b32.xlu0 %v589, 120
      %v4537 = vpop.permute.xlu0 %4536
      %4538 = vrot.lane.b32.xlu0 %v590, 120
      %v4539 = vpop.permute.xlu0 %4538
      %4540 = vrot.lane.b32.xlu0 %v591, 120
      %v4541 = vpop.permute.xlu0 %4540
      %4542 = vrot.lane.b32.xlu0 %v592, 120
      %v4543 = vpop.permute.xlu0 %4542
      %4544 = vrot.lane.b32.xlu0 %v593, 120
      %v4545 = vpop.permute.xlu0 %4544
      %4546 = vrot.lane.b32.xlu0 %v594, 120
      %v4547 = vpop.permute.xlu0 %4546
      %4548 = vrot.lane.b32.xlu0 %v595, 120
      %v4549 = vpop.permute.xlu0 %4548
      %4550 = vrot.lane.b32.xlu0 %v596, 120
      %v4551 = vpop.permute.xlu0 %4550
      %4552 = vrot.lane.b32.xlu0 %v597, 120
      %v4553 = vpop.permute.xlu0 %4552
      %4554 = vrot.lane.b32.xlu0 %v598, 120
      %v4555 = vpop.permute.xlu0 %4554
      %4556 = vrot.lane.b32.xlu0 %v599, 120
      %v4557 = vpop.permute.xlu0 %4556
      %4558 = vrot.lane.b32.xlu0 %v600, 120
      %v4559 = vpop.permute.xlu0 %4558
      %4560 = vrot.lane.b32.xlu0 %v601, 120
      %v4561 = vpop.permute.xlu0 %4560
      %4562 = vrot.lane.b32.xlu0 %v602, 120
      %v4563 = vpop.permute.xlu0 %4562
      %4564 = vrot.lane.b32.xlu0 %v603, 120
      %v4565 = vpop.permute.xlu0 %4564
      %4566 = vrot.lane.b32.xlu0 %v604, 120
      %v4567 = vpop.permute.xlu0 %4566
      %4568 = vrot.lane.b32.xlu0 %v605, 120
      %v4569 = vpop.permute.xlu0 %4568
      %4570 = vrot.lane.b32.xlu0 %v606, 120
      %v4571 = vpop.permute.xlu0 %4570
      %4572 = vrot.lane.b32.xlu0 %v607, 120
      %v4573 = vpop.permute.xlu0 %4572
      %4574 = vrot.lane.b32.xlu0 %v608, 120
      %v4575 = vpop.permute.xlu0 %4574
      %4576 = vrot.lane.b32.xlu0 %v609, 120
      %v4577 = vpop.permute.xlu0 %4576
      %4578 = vrot.lane.b32.xlu0 %v610, 120
      %v4579 = vpop.permute.xlu0 %4578
      %4580 = vrot.lane.b32.xlu0 %v611, 120
      %v4581 = vpop.permute.xlu0 %4580
      %4582 = vrot.lane.b32.xlu0 %v612, 120
      %v4583 = vpop.permute.xlu0 %4582
      %4584 = vrot.lane.b32.xlu0 %v613, 120
      %v4585 = vpop.permute.xlu0 %4584
      %4586 = vrot.lane.b32.xlu0 %v614, 120
      %v4587 = vpop.permute.xlu0 %4586
      %4588 = vrot.lane.b32.xlu0 %v615, 120
      %v4589 = vpop.permute.xlu0 %4588
      %4590 = vrot.lane.b32.xlu0 %v616, 120
      %v4591 = vpop.permute.xlu0 %4590
      %4592 = vrot.lane.b32.xlu0 %v617, 120
      %v4593 = vpop.permute.xlu0 %4592
      %4594 = vrot.lane.b32.xlu0 %v618, 120
      %v4595 = vpop.permute.xlu0 %4594
      %4596 = vrot.lane.b32.xlu0 %v619, 120
      %v4597 = vpop.permute.xlu0 %4596
      %4598 = vrot.lane.b32.xlu0 %v620, 120
      %v4599 = vpop.permute.xlu0 %4598
      %4600 = vrot.lane.b32.xlu0 %v621, 120
      %v4601 = vpop.permute.xlu0 %4600
      %4602 = vrot.lane.b32.xlu0 %v622, 120
      %v4603 = vpop.permute.xlu0 %4602
      %4604 = vrot.lane.b32.xlu0 %v623, 120
      %v4605 = vpop.permute.xlu0 %4604
      %4606 = vrot.lane.b32.xlu0 %v624, 120
      %v4607 = vpop.permute.xlu0 %4606
      %4608 = vrot.lane.b32.xlu0 %v625, 120
      %v4609 = vpop.permute.xlu0 %4608
      %4610 = vrot.lane.b32.xlu0 %v626, 120
      %v4611 = vpop.permute.xlu0 %4610
      %4612 = vrot.lane.b32.xlu0 %v627, 120
      %v4613 = vpop.permute.xlu0 %4612
      %4614 = vrot.lane.b32.xlu0 %v628, 120
      %v4615 = vpop.permute.xlu0 %4614
      %4616 = vrot.lane.b32.xlu0 %v629, 120
      %v4617 = vpop.permute.xlu0 %4616
      %4618 = vrot.lane.b32.xlu0 %v630, 120
      %v4619 = vpop.permute.xlu0 %4618
      %4620 = vrot.lane.b32.xlu0 %v631, 120
      %v4621 = vpop.permute.xlu0 %4620
      %4622 = vrot.lane.b32.xlu0 %v632, 120
      %v4623 = vpop.permute.xlu0 %4622
      %4624 = vrot.lane.b32.xlu0 %v633, 120
      %v4625 = vpop.permute.xlu0 %4624
      %4626 = vrot.lane.b32.xlu0 %v634, 120
      %v4627 = vpop.permute.xlu0 %4626
      %4628 = vrot.lane.b32.xlu0 %v635, 120
      %v4629 = vpop.permute.xlu0 %4628
      %4630 = vrot.lane.b32.xlu0 %v636, 120
      %v4631 = vpop.permute.xlu0 %4630
      %4632 = vrot.lane.b32.xlu0 %v637, 120
      %v4633 = vpop.permute.xlu0 %4632
      %4634 = vrot.lane.b32.xlu0 %v638, 120
      %v4635 = vpop.permute.xlu0 %4634
      %4636 = vrot.lane.b32.xlu0 %v639, 120
      %v4637 = vpop.permute.xlu0 %4636
      %4638 = vrot.lane.b32.xlu0 %v640, 120
      %v4639 = vpop.permute.xlu0 %4638
      %4640 = vrot.lane.b32.xlu0 %v641, 120
      %v4641 = vpop.permute.xlu0 %4640
      %4642 = vrot.lane.b32.xlu0 %v642, 120
      %v4643 = vpop.permute.xlu0 %4642
      %4644 = vrot.lane.b32.xlu0 %v643, 120
      %v4645 = vpop.permute.xlu0 %4644
      %4646 = vrot.lane.b32.xlu0 %v644, 120
      %v4647 = vpop.permute.xlu0 %4646
      %4648 = vrot.lane.b32.xlu0 %v645, 120
      %v4649 = vpop.permute.xlu0 %4648
      %4650 = vrot.lane.b32.xlu0 %v646, 120
      %v4651 = vpop.permute.xlu0 %4650
      %4652 = vrot.lane.b32.xlu0 %v647, 120
      %v4653 = vpop.permute.xlu0 %4652
      %4654 = vrot.lane.b32.xlu0 %v648, 120
      %v4655 = vpop.permute.xlu0 %4654
      %4656 = vrot.lane.b32.xlu0 %v649, 120
      %v4657 = vpop.permute.xlu0 %4656
      %4658 = vrot.lane.b32.xlu0 %v650, 120
      %v4659 = vpop.permute.xlu0 %4658
      %4660 = vrot.lane.b32.xlu0 %v651, 120
      %v4661 = vpop.permute.xlu0 %4660
      %4662 = vrot.lane.b32.xlu0 %v652, 120
      %v4663 = vpop.permute.xlu0 %4662
      %4664 = vrot.lane.b32.xlu0 %v653, 120
      %v4665 = vpop.permute.xlu0 %4664
      %4666 = vrot.lane.b32.xlu0 %v654, 120
      %v4667 = vpop.permute.xlu0 %4666
      %4668 = vrot.lane.b32.xlu0 %v655, 120
      %v4669 = vpop.permute.xlu0 %4668
      %4670 = vrot.lane.b32.xlu0 %v656, 120
      %v4671 = vpop.permute.xlu0 %4670
      %4672 = vrot.lane.b32.xlu0 %v657, 120
      %v4673 = vpop.permute.xlu0 %4672
      %4674 = vrot.lane.b32.xlu0 %v658, 120
      %v4675 = vpop.permute.xlu0 %4674
      %4676 = vrot.lane.b32.xlu0 %v659, 120
      %v4677 = vpop.permute.xlu0 %4676
      %4678 = vrot.lane.b32.xlu0 %v660, 120
      %v4679 = vpop.permute.xlu0 %4678
      %4680 = vrot.lane.b32.xlu0 %v661, 120
      %v4681 = vpop.permute.xlu0 %4680
      %4682 = vrot.lane.b32.xlu0 %v662, 120
      %v4683 = vpop.permute.xlu0 %4682
      %4684 = vrot.lane.b32.xlu0 %v663, 120
      %v4685 = vpop.permute.xlu0 %4684
      %4686 = vrot.lane.b32.xlu0 %v664, 120
      %v4687 = vpop.permute.xlu0 %4686
      %4688 = vrot.lane.b32.xlu0 %v665, 120
      %v4689 = vpop.permute.xlu0 %4688
      %4690 = vrot.lane.b32.xlu0 %v666, 120
      %v4691 = vpop.permute.xlu0 %4690
      %4692 = vrot.lane.b32.xlu0 %v667, 120
      %v4693 = vpop.permute.xlu0 %4692
      %4694 = vrot.lane.b32.xlu0 %v668, 120
      %v4695 = vpop.permute.xlu0 %4694
      %4696 = vrot.lane.b32.xlu0 %v669, 120
      %v4697 = vpop.permute.xlu0 %4696
      %4698 = vrot.lane.b32.xlu0 %v670, 120
      %v4699 = vpop.permute.xlu0 %4698
      %4700 = vrot.lane.b32.xlu0 %v671, 120
      %v4701 = vpop.permute.xlu0 %4700
      %4702 = vrot.lane.b32.xlu0 %v672, 120
      %v4703 = vpop.permute.xlu0 %4702
      %4704 = vrot.lane.b32.xlu0 %v673, 120
      %v4705 = vpop.permute.xlu0 %4704
      %4706 = vrot.lane.b32.xlu0 %v674, 120
      %v4707 = vpop.permute.xlu0 %4706
      %4708 = vrot.lane.b32.xlu0 %v675, 120
      %v4709 = vpop.permute.xlu0 %4708
      %4710 = vrot.lane.b32.xlu0 %v676, 120
      %v4711 = vpop.permute.xlu0 %4710
      %4712 = vrot.lane.b32.xlu0 %v677, 120
      %v4713 = vpop.permute.xlu0 %4712
      %4714 = vrot.lane.b32.xlu0 %v678, 120
      %v4715 = vpop.permute.xlu0 %4714
      %4716 = vrot.lane.b32.xlu0 %v679, 120
      %v4717 = vpop.permute.xlu0 %4716
      %4718 = vrot.lane.b32.xlu0 %v680, 120
      %v4719 = vpop.permute.xlu0 %4718
      %4720 = vrot.lane.b32.xlu0 %v681, 120
      %v4721 = vpop.permute.xlu0 %4720
      %4722 = vrot.lane.b32.xlu0 %v682, 120
      %v4723 = vpop.permute.xlu0 %4722
      %4724 = vrot.lane.b32.xlu0 %v683, 120
      %v4725 = vpop.permute.xlu0 %4724
      %4726 = vrot.lane.b32.xlu0 %v684, 120
      %v4727 = vpop.permute.xlu0 %4726
      %4728 = vrot.lane.b32.xlu0 %v685, 120
      %v4729 = vpop.permute.xlu0 %4728
      %4730 = vrot.lane.b32.xlu0 %v686, 120
      %v4731 = vpop.permute.xlu0 %4730
      %4732 = vrot.lane.b32.xlu0 %v687, 120
      %v4733 = vpop.permute.xlu0 %4732
      %4734 = vrot.lane.b32.xlu0 %v688, 120
      %v4735 = vpop.permute.xlu0 %4734
      %4736 = vrot.lane.b32.xlu0 %v689, 120
      %v4737 = vpop.permute.xlu0 %4736
      %4738 = vrot.lane.b32.xlu0 %v690, 120
      %v4739 = vpop.permute.xlu0 %4738
      %4740 = vrot.lane.b32.xlu0 %v691, 120
      %v4741 = vpop.permute.xlu0 %4740
      %4742 = vrot.lane.b32.xlu0 %v692, 120
      %v4743 = vpop.permute.xlu0 %4742
      %4744 = vrot.lane.b32.xlu0 %v693, 120
      %v4745 = vpop.permute.xlu0 %4744
      %4746 = vrot.lane.b32.xlu0 %v694, 120
      %v4747 = vpop.permute.xlu0 %4746
      %4748 = vrot.lane.b32.xlu0 %v695, 120
      %v4749 = vpop.permute.xlu0 %4748
      %4750 = vrot.lane.b32.xlu0 %v696, 120
      %v4751 = vpop.permute.xlu0 %4750
      %4752 = vrot.lane.b32.xlu0 %v697, 120
      %v4753 = vpop.permute.xlu0 %4752
      %4754 = vrot.lane.b32.xlu0 %v698, 120
      %v4755 = vpop.permute.xlu0 %4754
      %4756 = vrot.lane.b32.xlu0 %v699, 120
      %v4757 = vpop.permute.xlu0 %4756
      %4758 = vrot.lane.b32.xlu0 %v700, 120
      %v4759 = vpop.permute.xlu0 %4758
      %4760 = vrot.lane.b32.xlu0 %v701, 120
      %v4761 = vpop.permute.xlu0 %4760
      %4762 = vrot.lane.b32.xlu0 %v702, 120
      %v4763 = vpop.permute.xlu0 %4762
      %4764 = vrot.lane.b32.xlu0 %v703, 120
      %v4765 = vpop.permute.xlu0 %4764
      %4766 = vrot.lane.b32.xlu0 %v704, 120
      %v4767 = vpop.permute.xlu0 %4766
      %4768 = vrot.lane.b32.xlu0 %v705, 120
      %v4769 = vpop.permute.xlu0 %4768
      %4770 = vrot.lane.b32.xlu0 %v706, 120
      %v4771 = vpop.permute.xlu0 %4770
      %4772 = vrot.lane.b32.xlu0 %v707, 120
      %v4773 = vpop.permute.xlu0 %4772
      %4774 = vrot.lane.b32.xlu0 %v708, 120
      %v4775 = vpop.permute.xlu0 %4774
      %4776 = vrot.lane.b32.xlu0 %v709, 120
      %v4777 = vpop.permute.xlu0 %4776
      %4778 = vrot.lane.b32.xlu0 %v710, 120
      %v4779 = vpop.permute.xlu0 %4778
      %4780 = vrot.lane.b32.xlu0 %v711, 120
      %v4781 = vpop.permute.xlu0 %4780
      %4782 = vrot.lane.b32.xlu0 %v712, 120
      %v4783 = vpop.permute.xlu0 %4782
      %4784 = vrot.lane.b32.xlu0 %v713, 120
      %v4785 = vpop.permute.xlu0 %4784
      %4786 = vrot.lane.b32.xlu0 %v714, 120
      %v4787 = vpop.permute.xlu0 %4786
      %4788 = vrot.lane.b32.xlu0 %v715, 120
      %v4789 = vpop.permute.xlu0 %4788
      %4790 = vrot.lane.b32.xlu0 %v716, 120
      %v4791 = vpop.permute.xlu0 %4790
      %4792 = vrot.lane.b32.xlu0 %v717, 120
      %v4793 = vpop.permute.xlu0 %4792
      %4794 = vrot.lane.b32.xlu0 %v718, 120
      %v4795 = vpop.permute.xlu0 %4794
      %4796 = vrot.lane.b32.xlu0 %v719, 120
      %v4797 = vpop.permute.xlu0 %4796
      %4798 = vrot.lane.b32.xlu0 %v720, 120
      %v4799 = vpop.permute.xlu0 %4798
      %4800 = vrot.lane.b32.xlu0 %v721, 120
      %v4801 = vpop.permute.xlu0 %4800
      %4802 = vrot.lane.b32.xlu0 %v722, 120
      %v4803 = vpop.permute.xlu0 %4802
      %4804 = vrot.lane.b32.xlu0 %v723, 120
      %v4805 = vpop.permute.xlu0 %4804
      %4806 = vrot.lane.b32.xlu0 %v724, 120
      %v4807 = vpop.permute.xlu0 %4806
      %4808 = vrot.lane.b32.xlu0 %v725, 120
      %v4809 = vpop.permute.xlu0 %4808
      %4810 = vrot.lane.b32.xlu0 %v726, 120
      %v4811 = vpop.permute.xlu0 %4810
      %4812 = vrot.lane.b32.xlu0 %v727, 120
      %v4813 = vpop.permute.xlu0 %4812
      %4814 = vrot.lane.b32.xlu0 %v728, 120
      %v4815 = vpop.permute.xlu0 %4814
      %4816 = vrot.lane.b32.xlu0 %v729, 120
      %v4817 = vpop.permute.xlu0 %4816
      %4818 = vrot.lane.b32.xlu0 %v730, 120
      %v4819 = vpop.permute.xlu0 %4818
      %4820 = vrot.lane.b32.xlu0 %v731, 120
      %v4821 = vpop.permute.xlu0 %4820
      %4822 = vrot.lane.b32.xlu0 %v732, 120
      %v4823 = vpop.permute.xlu0 %4822
      %4824 = vrot.lane.b32.xlu0 %v733, 120
      %v4825 = vpop.permute.xlu0 %4824
      %4826 = vrot.lane.b32.xlu0 %v734, 120
      %v4827 = vpop.permute.xlu0 %4826
      %4828 = vrot.lane.b32.xlu0 %v735, 120
      %v4829 = vpop.permute.xlu0 %4828
      %4830 = vrot.lane.b32.xlu0 %v736, 120
      %v4831 = vpop.permute.xlu0 %4830
      %4832 = vrot.lane.b32.xlu0 %v737, 120
      %v4833 = vpop.permute.xlu0 %4832
      %v5346 = vadd.f32 %v3298, %v3811
      %v5347 = vadd.f32 %v3299, %v3813
      %v5348 = vadd.f32 %v3300, %v3815
      %v5349 = vadd.f32 %v3301, %v3817
      %v5350 = vadd.f32 %v3302, %v3819
      %v5351 = vadd.f32 %v3303, %v3821
      %v5352 = vadd.f32 %v3304, %v3823
      %v5353 = vadd.f32 %v3305, %v3825
      %v5354 = vadd.f32 %v3306, %v3827
      %v5355 = vadd.f32 %v3307, %v3829
      %v5356 = vadd.f32 %v3308, %v3831
      %v5357 = vadd.f32 %v3309, %v3833
      %v5358 = vadd.f32 %v3310, %v3835
      %v5359 = vadd.f32 %v3311, %v3837
      %v5360 = vadd.f32 %v3312, %v3839
      %v5361 = vadd.f32 %v3313, %v3841
      %v5362 = vadd.f32 %v3314, %v3843
      %v5363 = vadd.f32 %v3315, %v3845
      %v5364 = vadd.f32 %v3316, %v3847
      %v5365 = vadd.f32 %v3317, %v3849
      %v5366 = vadd.f32 %v3318, %v3851
      %v5367 = vadd.f32 %v3319, %v3853
      %v5368 = vadd.f32 %v3320, %v3855
      %v5369 = vadd.f32 %v3321, %v3857
      %v5370 = vadd.f32 %v3322, %v3859
      %v5371 = vadd.f32 %v3323, %v3861
      %v5372 = vadd.f32 %v3324, %v3863
      %v5373 = vadd.f32 %v3325, %v3865
      %v5374 = vadd.f32 %v3326, %v3867
      %v5375 = vadd.f32 %v3327, %v3869
      %v5376 = vadd.f32 %v3328, %v3871
      %v5377 = vadd.f32 %v3329, %v3873
      %v5378 = vadd.f32 %v3330, %v3875
      %v5379 = vadd.f32 %v3331, %v3877
      %v5380 = vadd.f32 %v3332, %v3879
      %v5381 = vadd.f32 %v3333, %v3881
      %v5382 = vadd.f32 %v3334, %v3883
      %v5383 = vadd.f32 %v3335, %v3885
      %v5384 = vadd.f32 %v3336, %v3887
      %v5385 = vadd.f32 %v3337, %v3889
      %v5386 = vadd.f32 %v3338, %v3891
      %v5387 = vadd.f32 %v3339, %v3893
      %v5388 = vadd.f32 %v3340, %v3895
      %v5389 = vadd.f32 %v3341, %v3897
      %v5390 = vadd.f32 %v3342, %v3899
      %v5391 = vadd.f32 %v3343, %v3901
      %v5392 = vadd.f32 %v3344, %v3903
      %v5393 = vadd.f32 %v3345, %v3905
      %v5394 = vadd.f32 %v3346, %v3907
      %v5395 = vadd.f32 %v3347, %v3909
      %v5396 = vadd.f32 %v3348, %v3911
      %v5397 = vadd.f32 %v3349, %v3913
      %v5398 = vadd.f32 %v3350, %v3915
      %v5399 = vadd.f32 %v3351, %v3917
      %v5400 = vadd.f32 %v3352, %v3919
      %v5401 = vadd.f32 %v3353, %v3921
      %v5402 = vadd.f32 %v3354, %v3923
      %v5403 = vadd.f32 %v3355, %v3925
      %v5404 = vadd.f32 %v3356, %v3927
      %v5405 = vadd.f32 %v3357, %v3929
      %v5406 = vadd.f32 %v3358, %v3931
      %v5407 = vadd.f32 %v3359, %v3933
      %v5408 = vadd.f32 %v3360, %v3935
      %v5409 = vadd.f32 %v3361, %v3937
      %v5410 = vadd.f32 %v3362, %v3939
      %v5411 = vadd.f32 %v3363, %v3941
      %v5412 = vadd.f32 %v3364, %v3943
      %v5413 = vadd.f32 %v3365, %v3945
      %v5414 = vadd.f32 %v3366, %v3947
      %v5415 = vadd.f32 %v3367, %v3949
      %v5416 = vadd.f32 %v3368, %v3951
      %v5417 = vadd.f32 %v3369, %v3953
      %v5418 = vadd.f32 %v3370, %v3955
      %v5419 = vadd.f32 %v3371, %v3957
      %v5420 = vadd.f32 %v3372, %v3959
      %v5421 = vadd.f32 %v3373, %v3961
      %v5422 = vadd.f32 %v3374, %v3963
      %v5423 = vadd.f32 %v3375, %v3965
      %v5424 = vadd.f32 %v3376, %v3967
      %v5425 = vadd.f32 %v3377, %v3969
      %v5426 = vadd.f32 %v3378, %v3971
      %v5427 = vadd.f32 %v3379, %v3973
      %v5428 = vadd.f32 %v3380, %v3975
      %v5429 = vadd.f32 %v3381, %v3977
      %v5430 = vadd.f32 %v3382, %v3979
      %v5431 = vadd.f32 %v3383, %v3981
      %v5432 = vadd.f32 %v3384, %v3983
      %v5433 = vadd.f32 %v3385, %v3985
      %v5434 = vadd.f32 %v3386, %v3987
      %v5435 = vadd.f32 %v3387, %v3989
      %v5436 = vadd.f32 %v3388, %v3991
      %v5437 = vadd.f32 %v3389, %v3993
      %v5438 = vadd.f32 %v3390, %v3995
      %v5439 = vadd.f32 %v3391, %v3997
      %v5440 = vadd.f32 %v3392, %v3999
      %v5441 = vadd.f32 %v3393, %v4001
      %v5442 = vadd.f32 %v3394, %v4003
      %v5443 = vadd.f32 %v3395, %v4005
      %v5444 = vadd.f32 %v3396, %v4007
      %v5445 = vadd.f32 %v3397, %v4009
      %v5446 = vadd.f32 %v3398, %v4011
      %v5447 = vadd.f32 %v3399, %v4013
      %v5448 = vadd.f32 %v3400, %v4015
      %v5449 = vadd.f32 %v3401, %v4017
      %v5450 = vadd.f32 %v3402, %v4019
      %v5451 = vadd.f32 %v3403, %v4021
      %v5452 = vadd.f32 %v3404, %v4023
      %v5453 = vadd.f32 %v3405, %v4025
      %v5454 = vadd.f32 %v3406, %v4027
      %v5455 = vadd.f32 %v3407, %v4029
      %v5456 = vadd.f32 %v3408, %v4031
      %v5457 = vadd.f32 %v3409, %v4033
      %v5458 = vadd.f32 %v3410, %v4035
      %v5459 = vadd.f32 %v3411, %v4037
      %v5460 = vadd.f32 %v3412, %v4039
      %v5461 = vadd.f32 %v3413, %v4041
      %v5462 = vadd.f32 %v3414, %v4043
      %v5463 = vadd.f32 %v3415, %v4045
      %v5464 = vadd.f32 %v3416, %v4047
      %v5465 = vadd.f32 %v3417, %v4049
      %v5466 = vadd.f32 %v3418, %v4051
      %v5467 = vadd.f32 %v3419, %v4053
      %v5468 = vadd.f32 %v3420, %v4055
      %v5469 = vadd.f32 %v3421, %v4057
      %v5470 = vadd.f32 %v3422, %v4059
      %v5471 = vadd.f32 %v3423, %v4061
      %v5472 = vadd.f32 %v3424, %v4063
      %v5473 = vadd.f32 %v3425, %v4065
      %v5474 = vadd.f32 %v3426, %v4067
      %v5475 = vadd.f32 %v3427, %v4069
      %v5476 = vadd.f32 %v3428, %v4071
      %v5477 = vadd.f32 %v3429, %v4073
      %v5478 = vadd.f32 %v3430, %v4075
      %v5479 = vadd.f32 %v3431, %v4077
      %v5480 = vadd.f32 %v3432, %v4079
      %v5481 = vadd.f32 %v3433, %v4081
      %v5482 = vadd.f32 %v3434, %v4083
      %v5483 = vadd.f32 %v3435, %v4085
      %v5484 = vadd.f32 %v3436, %v4087
      %v5485 = vadd.f32 %v3437, %v4089
      %v5486 = vadd.f32 %v3438, %v4091
      %v5487 = vadd.f32 %v3439, %v4093
      %v5488 = vadd.f32 %v3440, %v4095
      %v5489 = vadd.f32 %v3441, %v4097
      %v5490 = vadd.f32 %v3442, %v4099
      %v5491 = vadd.f32 %v3443, %v4101
      %v5492 = vadd.f32 %v3444, %v4103
      %v5493 = vadd.f32 %v3445, %v4105
      %v5494 = vadd.f32 %v3446, %v4107
      %v5495 = vadd.f32 %v3447, %v4109
      %v5496 = vadd.f32 %v3448, %v4111
      %v5497 = vadd.f32 %v3449, %v4113
      %v5498 = vadd.f32 %v3450, %v4115
      %v5499 = vadd.f32 %v3451, %v4117
      %v5500 = vadd.f32 %v3452, %v4119
      %v5501 = vadd.f32 %v3453, %v4121
      %v5502 = vadd.f32 %v3454, %v4123
      %v5503 = vadd.f32 %v3455, %v4125
      %v5504 = vadd.f32 %v3456, %v4127
      %v5505 = vadd.f32 %v3457, %v4129
      %v5506 = vadd.f32 %v3458, %v4131
      %v5507 = vadd.f32 %v3459, %v4133
      %v5508 = vadd.f32 %v3460, %v4135
      %v5509 = vadd.f32 %v3461, %v4137
      %v5510 = vadd.f32 %v3462, %v4139
      %v5511 = vadd.f32 %v3463, %v4141
      %v5512 = vadd.f32 %v3464, %v4143
      %v5513 = vadd.f32 %v3465, %v4145
      %v5514 = vadd.f32 %v3466, %v4147
      %v5515 = vadd.f32 %v3467, %v4149
      %v5516 = vadd.f32 %v3468, %v4151
      %v5517 = vadd.f32 %v3469, %v4153
      %v5518 = vadd.f32 %v3470, %v4155
      %v5519 = vadd.f32 %v3471, %v4157
      %v5520 = vadd.f32 %v3472, %v4159
      %v5521 = vadd.f32 %v3473, %v4161
      %v5522 = vadd.f32 %v3474, %v4163
      %v5523 = vadd.f32 %v3475, %v4165
      %v5524 = vadd.f32 %v3476, %v4167
      %v5525 = vadd.f32 %v3477, %v4169
      %v5526 = vadd.f32 %v3478, %v4171
      %v5527 = vadd.f32 %v3479, %v4173
      %v5528 = vadd.f32 %v3480, %v4175
      %v5529 = vadd.f32 %v3481, %v4177
      %v5530 = vadd.f32 %v3482, %v4179
      %v5531 = vadd.f32 %v3483, %v4181
      %v5532 = vadd.f32 %v3484, %v4183
      %v5533 = vadd.f32 %v3485, %v4185
      %v5534 = vadd.f32 %v3486, %v4187
      %v5535 = vadd.f32 %v3487, %v4189
      %v5536 = vadd.f32 %v3488, %v4191
      %v5537 = vadd.f32 %v3489, %v4193
      %v5538 = vadd.f32 %v3490, %v4195
      %v5539 = vadd.f32 %v3491, %v4197
      %v5540 = vadd.f32 %v3492, %v4199
      %v5541 = vadd.f32 %v3493, %v4201
      %v5542 = vadd.f32 %v3494, %v4203
      %v5543 = vadd.f32 %v3495, %v4205
      %v5544 = vadd.f32 %v3496, %v4207
      %v5545 = vadd.f32 %v3497, %v4209
      %v5546 = vadd.f32 %v3498, %v4211
      %v5547 = vadd.f32 %v3499, %v4213
      %v5548 = vadd.f32 %v3500, %v4215
      %v5549 = vadd.f32 %v3501, %v4217
      %v5550 = vadd.f32 %v3502, %v4219
      %v5551 = vadd.f32 %v3503, %v4221
      %v5552 = vadd.f32 %v3504, %v4223
      %v5553 = vadd.f32 %v3505, %v4225
      %v5554 = vadd.f32 %v3506, %v4227
      %v5555 = vadd.f32 %v3507, %v4229
      %v5556 = vadd.f32 %v3508, %v4231
      %v5557 = vadd.f32 %v3509, %v4233
      %v5558 = vadd.f32 %v3510, %v4235
      %v5559 = vadd.f32 %v3511, %v4237
      %v5560 = vadd.f32 %v3512, %v4239
      %v5561 = vadd.f32 %v3513, %v4241
      %v5562 = vadd.f32 %v3514, %v4243
      %v5563 = vadd.f32 %v3515, %v4245
      %v5564 = vadd.f32 %v3516, %v4247
      %v5565 = vadd.f32 %v3517, %v4249
      %v5566 = vadd.f32 %v3518, %v4251
      %v5567 = vadd.f32 %v3519, %v4253
      %v5568 = vadd.f32 %v3520, %v4255
      %v5569 = vadd.f32 %v3521, %v4257
      %v5570 = vadd.f32 %v3522, %v4259
      %v5571 = vadd.f32 %v3523, %v4261
      %v5572 = vadd.f32 %v3524, %v4263
      %v5573 = vadd.f32 %v3525, %v4265
      %v5574 = vadd.f32 %v3526, %v4267
      %v5575 = vadd.f32 %v3527, %v4269
      %v5576 = vadd.f32 %v3528, %v4271
      %v5577 = vadd.f32 %v3529, %v4273
      %v5578 = vadd.f32 %v3530, %v4275
      %v5579 = vadd.f32 %v3531, %v4277
      %v5580 = vadd.f32 %v3532, %v4279
      %v5581 = vadd.f32 %v3533, %v4281
      %v5582 = vadd.f32 %v3534, %v4283
      %v5583 = vadd.f32 %v3535, %v4285
      %v5584 = vadd.f32 %v3536, %v4287
      %v5585 = vadd.f32 %v3537, %v4289
      %v5586 = vadd.f32 %v3538, %v4291
      %v5587 = vadd.f32 %v3539, %v4293
      %v5588 = vadd.f32 %v3540, %v4295
      %v5589 = vadd.f32 %v3541, %v4297
      %v5590 = vadd.f32 %v3542, %v4299
      %v5591 = vadd.f32 %v3543, %v4301
      %v5592 = vadd.f32 %v3544, %v4303
      %v5593 = vadd.f32 %v3545, %v4305
      %v5594 = vadd.f32 %v3546, %v4307
      %v5595 = vadd.f32 %v3547, %v4309
      %v5596 = vadd.f32 %v3548, %v4311
      %v5597 = vadd.f32 %v3549, %v4313
      %v5598 = vadd.f32 %v3550, %v4315
      %v5599 = vadd.f32 %v3551, %v4317
      %v5600 = vadd.f32 %v3552, %v4319
      %v5601 = vadd.f32 %v3553, %v4321
      %v5602 = vadd.f32 %v3554, %v4323
      %v5603 = vadd.f32 %v3555, %v4325
      %v5604 = vadd.f32 %v3556, %v4327
      %v5605 = vadd.f32 %v3557, %v4329
      %v5606 = vadd.f32 %v3558, %v4331
      %v5607 = vadd.f32 %v3559, %v4333
      %v5608 = vadd.f32 %v3560, %v4335
      %v5609 = vadd.f32 %v3561, %v4337
      %v5610 = vadd.f32 %v3562, %v4339
      %v5611 = vadd.f32 %v3563, %v4341
      %v5612 = vadd.f32 %v3564, %v4343
      %v5613 = vadd.f32 %v3565, %v4345
      %v5614 = vadd.f32 %v3566, %v4347
      %v5615 = vadd.f32 %v3567, %v4349
      %v5616 = vadd.f32 %v3568, %v4351
      %v5617 = vadd.f32 %v3569, %v4353
      %v5618 = vadd.f32 %v3570, %v4355
      %v5619 = vadd.f32 %v3571, %v4357
      %v5620 = vadd.f32 %v3572, %v4359
      %v5621 = vadd.f32 %v3573, %v4361
      %v5622 = vadd.f32 %v3574, %v4363
      %v5623 = vadd.f32 %v3575, %v4365
      %v5624 = vadd.f32 %v3576, %v4367
      %v5625 = vadd.f32 %v3577, %v4369
      %v5626 = vadd.f32 %v3578, %v4371
      %v5627 = vadd.f32 %v3579, %v4373
      %v5628 = vadd.f32 %v3580, %v4375
      %v5629 = vadd.f32 %v3581, %v4377
      %v5630 = vadd.f32 %v3582, %v4379
      %v5631 = vadd.f32 %v3583, %v4381
      %v5632 = vadd.f32 %v3584, %v4383
      %v5633 = vadd.f32 %v3585, %v4385
      %v5634 = vadd.f32 %v3586, %v4387
      %v5635 = vadd.f32 %v3587, %v4389
      %v5636 = vadd.f32 %v3588, %v4391
      %v5637 = vadd.f32 %v3589, %v4393
      %v5638 = vadd.f32 %v3590, %v4395
      %v5639 = vadd.f32 %v3591, %v4397
      %v5640 = vadd.f32 %v3592, %v4399
      %v5641 = vadd.f32 %v3593, %v4401
      %v5642 = vadd.f32 %v3594, %v4403
      %v5643 = vadd.f32 %v3595, %v4405
      %v5644 = vadd.f32 %v3596, %v4407
      %v5645 = vadd.f32 %v3597, %v4409
      %v5646 = vadd.f32 %v3598, %v4411
      %v5647 = vadd.f32 %v3599, %v4413
      %v5648 = vadd.f32 %v3600, %v4415
      %v5649 = vadd.f32 %v3601, %v4417
      %v5650 = vadd.f32 %v3602, %v4419
      %v5651 = vadd.f32 %v3603, %v4421
      %v5652 = vadd.f32 %v3604, %v4423
      %v5653 = vadd.f32 %v3605, %v4425
      %v5654 = vadd.f32 %v3606, %v4427
      %v5655 = vadd.f32 %v3607, %v4429
      %v5656 = vadd.f32 %v3608, %v4431
      %v5657 = vadd.f32 %v3609, %v4433
      %v5658 = vadd.f32 %v3610, %v4435
      %v5659 = vadd.f32 %v3611, %v4437
      %v5660 = vadd.f32 %v3612, %v4439
      %v5661 = vadd.f32 %v3613, %v4441
      %v5662 = vadd.f32 %v3614, %v4443
      %v5663 = vadd.f32 %v3615, %v4445
      %v5664 = vadd.f32 %v3616, %v4447
      %v5665 = vadd.f32 %v3617, %v4449
      %v5666 = vadd.f32 %v3618, %v4451
      %v5667 = vadd.f32 %v3619, %v4453
      %v5668 = vadd.f32 %v3620, %v4455
      %v5669 = vadd.f32 %v3621, %v4457
      %v5670 = vadd.f32 %v3622, %v4459
      %v5671 = vadd.f32 %v3623, %v4461
      %v5672 = vadd.f32 %v3624, %v4463
      %v5673 = vadd.f32 %v3625, %v4465
      %v5674 = vadd.f32 %v3626, %v4467
      %v5675 = vadd.f32 %v3627, %v4469
      %v5676 = vadd.f32 %v3628, %v4471
      %v5677 = vadd.f32 %v3629, %v4473
      %v5678 = vadd.f32 %v3630, %v4475
      %v5679 = vadd.f32 %v3631, %v4477
      %v5680 = vadd.f32 %v3632, %v4479
      %v5681 = vadd.f32 %v3633, %v4481
      %v5682 = vadd.f32 %v3634, %v4483
      %v5683 = vadd.f32 %v3635, %v4485
      %v5684 = vadd.f32 %v3636, %v4487
      %v5685 = vadd.f32 %v3637, %v4489
      %v5686 = vadd.f32 %v3638, %v4491
      %v5687 = vadd.f32 %v3639, %v4493
      %v5688 = vadd.f32 %v3640, %v4495
      %v5689 = vadd.f32 %v3641, %v4497
      %v5690 = vadd.f32 %v3642, %v4499
      %v5691 = vadd.f32 %v3643, %v4501
      %v5692 = vadd.f32 %v3644, %v4503
      %v5693 = vadd.f32 %v3645, %v4505
      %v5694 = vadd.f32 %v3646, %v4507
      %v5695 = vadd.f32 %v3647, %v4509
      %v5696 = vadd.f32 %v3648, %v4511
      %v5697 = vadd.f32 %v3649, %v4513
      %v5698 = vadd.f32 %v3650, %v4515
      %v5699 = vadd.f32 %v3651, %v4517
      %v5700 = vadd.f32 %v3652, %v4519
      %v5701 = vadd.f32 %v3653, %v4521
      %v5702 = vadd.f32 %v3654, %v4523
      %v5703 = vadd.f32 %v3655, %v4525
      %v5704 = vadd.f32 %v3656, %v4527
      %v5705 = vadd.f32 %v3657, %v4529
      %v5706 = vadd.f32 %v3658, %v4531
      %v5707 = vadd.f32 %v3659, %v4533
      %v5708 = vadd.f32 %v3660, %v4535
      %v5709 = vadd.f32 %v3661, %v4537
      %v5710 = vadd.f32 %v3662, %v4539
      %v5711 = vadd.f32 %v3663, %v4541
      %v5712 = vadd.f32 %v3664, %v4543
      %v5713 = vadd.f32 %v3665, %v4545
      %v5714 = vadd.f32 %v3666, %v4547
      %v5715 = vadd.f32 %v3667, %v4549
      %v5716 = vadd.f32 %v3668, %v4551
      %v5717 = vadd.f32 %v3669, %v4553
      %v5718 = vadd.f32 %v3670, %v4555
      %v5719 = vadd.f32 %v3671, %v4557
      %v5720 = vadd.f32 %v3672, %v4559
      %v5721 = vadd.f32 %v3673, %v4561
      %v5722 = vadd.f32 %v3674, %v4563
      %v5723 = vadd.f32 %v3675, %v4565
      %v5724 = vadd.f32 %v3676, %v4567
      %v5725 = vadd.f32 %v3677, %v4569
      %v5726 = vadd.f32 %v3678, %v4571
      %v5727 = vadd.f32 %v3679, %v4573
      %v5728 = vadd.f32 %v3680, %v4575
      %v5729 = vadd.f32 %v3681, %v4577
      %v5730 = vadd.f32 %v3682, %v4579
      %v5731 = vadd.f32 %v3683, %v4581
      %v5732 = vadd.f32 %v3684, %v4583
      %v5733 = vadd.f32 %v3685, %v4585
      %v5734 = vadd.f32 %v3686, %v4587
      %v5735 = vadd.f32 %v3687, %v4589
      %v5736 = vadd.f32 %v3688, %v4591
      %v5737 = vadd.f32 %v3689, %v4593
      %v5738 = vadd.f32 %v3690, %v4595
      %v5739 = vadd.f32 %v3691, %v4597
      %v5740 = vadd.f32 %v3692, %v4599
      %v5741 = vadd.f32 %v3693, %v4601
      %v5742 = vadd.f32 %v3694, %v4603
      %v5743 = vadd.f32 %v3695, %v4605
      %v5744 = vadd.f32 %v3696, %v4607
      %v5745 = vadd.f32 %v3697, %v4609
      %v5746 = vadd.f32 %v3698, %v4611
      %v5747 = vadd.f32 %v3699, %v4613
      %v5748 = vadd.f32 %v3700, %v4615
      %v5749 = vadd.f32 %v3701, %v4617
      %v5750 = vadd.f32 %v3702, %v4619
      %v5751 = vadd.f32 %v3703, %v4621
      %v5752 = vadd.f32 %v3704, %v4623
      %v5753 = vadd.f32 %v3705, %v4625
      %v5754 = vadd.f32 %v3706, %v4627
      %v5755 = vadd.f32 %v3707, %v4629
      %v5756 = vadd.f32 %v3708, %v4631
      %v5757 = vadd.f32 %v3709, %v4633
      %v5758 = vadd.f32 %v3710, %v4635
      %v5759 = vadd.f32 %v3711, %v4637
      %v5760 = vadd.f32 %v3712, %v4639
      %v5761 = vadd.f32 %v3713, %v4641
      %v5762 = vadd.f32 %v3714, %v4643
      %v5763 = vadd.f32 %v3715, %v4645
      %v5764 = vadd.f32 %v3716, %v4647
      %v5765 = vadd.f32 %v3717, %v4649
      %v5766 = vadd.f32 %v3718, %v4651
      %v5767 = vadd.f32 %v3719, %v4653
      %v5768 = vadd.f32 %v3720, %v4655
      %v5769 = vadd.f32 %v3721, %v4657
      %v5770 = vadd.f32 %v3722, %v4659
      %v5771 = vadd.f32 %v3723, %v4661
      %v5772 = vadd.f32 %v3724, %v4663
      %v5773 = vadd.f32 %v3725, %v4665
      %v5774 = vadd.f32 %v3726, %v4667
      %v5775 = vadd.f32 %v3727, %v4669
      %v5776 = vadd.f32 %v3728, %v4671
      %v5777 = vadd.f32 %v3729, %v4673
      %v5778 = vadd.f32 %v3730, %v4675
      %v5779 = vadd.f32 %v3731, %v4677
      %v5780 = vadd.f32 %v3732, %v4679
      %v5781 = vadd.f32 %v3733, %v4681
      %v5782 = vadd.f32 %v3734, %v4683
      %v5783 = vadd.f32 %v3735, %v4685
      %v5784 = vadd.f32 %v3736, %v4687
      %v5785 = vadd.f32 %v3737, %v4689
      %v5786 = vadd.f32 %v3738, %v4691
      %v5787 = vadd.f32 %v3739, %v4693
      %v5788 = vadd.f32 %v3740, %v4695
      %v5789 = vadd.f32 %v3741, %v4697
      %v5790 = vadd.f32 %v3742, %v4699
      %v5791 = vadd.f32 %v3743, %v4701
      %v5792 = vadd.f32 %v3744, %v4703
      %v5793 = vadd.f32 %v3745, %v4705
      %v5794 = vadd.f32 %v3746, %v4707
      %v5795 = vadd.f32 %v3747, %v4709
      %v5796 = vadd.f32 %v3748, %v4711
      %v5797 = vadd.f32 %v3749, %v4713
      %v5798 = vadd.f32 %v3750, %v4715
      %v5799 = vadd.f32 %v3751, %v4717
      %v5800 = vadd.f32 %v3752, %v4719
      %v5801 = vadd.f32 %v3753, %v4721
      %v5802 = vadd.f32 %v3754, %v4723
      %v5803 = vadd.f32 %v3755, %v4725
      %v5804 = vadd.f32 %v3756, %v4727
      %v5805 = vadd.f32 %v3757, %v4729
      %v5806 = vadd.f32 %v3758, %v4731
      %v5807 = vadd.f32 %v3759, %v4733
      %v5808 = vadd.f32 %v3760, %v4735
      %v5809 = vadd.f32 %v3761, %v4737
      %v5810 = vadd.f32 %v3762, %v4739
      %v5811 = vadd.f32 %v3763, %v4741
      %v5812 = vadd.f32 %v3764, %v4743
      %v5813 = vadd.f32 %v3765, %v4745
      %v5814 = vadd.f32 %v3766, %v4747
      %v5815 = vadd.f32 %v3767, %v4749
      %v5816 = vadd.f32 %v3768, %v4751
      %v5817 = vadd.f32 %v3769, %v4753
      %v5818 = vadd.f32 %v3770, %v4755
      %v5819 = vadd.f32 %v3771, %v4757
      %v5820 = vadd.f32 %v3772, %v4759
      %v5821 = vadd.f32 %v3773, %v4761
      %v5822 = vadd.f32 %v3774, %v4763
      %v5823 = vadd.f32 %v3775, %v4765
      %v5824 = vadd.f32 %v3776, %v4767
      %v5825 = vadd.f32 %v3777, %v4769
      %v5826 = vadd.f32 %v3778, %v4771
      %v5827 = vadd.f32 %v3779, %v4773
      %v5828 = vadd.f32 %v3780, %v4775
      %v5829 = vadd.f32 %v3781, %v4777
      %v5830 = vadd.f32 %v3782, %v4779
      %v5831 = vadd.f32 %v3783, %v4781
      %v5832 = vadd.f32 %v3784, %v4783
      %v5833 = vadd.f32 %v3785, %v4785
      %v5834 = vadd.f32 %v3786, %v4787
      %v5835 = vadd.f32 %v3787, %v4789
      %v5836 = vadd.f32 %v3788, %v4791
      %v5837 = vadd.f32 %v3789, %v4793
      %v5838 = vadd.f32 %v3790, %v4795
      %v5839 = vadd.f32 %v3791, %v4797
      %v5840 = vadd.f32 %v3792, %v4799
      %v5841 = vadd.f32 %v3793, %v4801
      %v5842 = vadd.f32 %v3794, %v4803
      %v5843 = vadd.f32 %v3795, %v4805
      %v5844 = vadd.f32 %v3796, %v4807
      %v5845 = vadd.f32 %v3797, %v4809
      %v5846 = vadd.f32 %v3798, %v4811
      %v5847 = vadd.f32 %v3799, %v4813
      %v5848 = vadd.f32 %v3800, %v4815
      %v5849 = vadd.f32 %v3801, %v4817
      %v5850 = vadd.f32 %v3802, %v4819
      %v5851 = vadd.f32 %v3803, %v4821
      %v5852 = vadd.f32 %v3804, %v4823
      %v5853 = vadd.f32 %v3805, %v4825
      %v5854 = vadd.f32 %v3806, %v4827
      %v5855 = vadd.f32 %v3807, %v4829
      %v5856 = vadd.f32 %v3808, %v4831
      %v5857 = vadd.f32 %v3809, %v4833
      %5858 = vrot.lane.b32.xlu0 %v226, 116
      %v5859 = vpop.permute.xlu0 %5858
      %5860 = vrot.lane.b32.xlu0 %v227, 116
      %v5861 = vpop.permute.xlu0 %5860
      %5862 = vrot.lane.b32.xlu0 %v228, 116
      %v5863 = vpop.permute.xlu0 %5862
      %5864 = vrot.lane.b32.xlu0 %v229, 116
      %v5865 = vpop.permute.xlu0 %5864
      %5866 = vrot.lane.b32.xlu0 %v230, 116
      %v5867 = vpop.permute.xlu0 %5866
      %5868 = vrot.lane.b32.xlu0 %v231, 116
      %v5869 = vpop.permute.xlu0 %5868
      %5870 = vrot.lane.b32.xlu0 %v232, 116
      %v5871 = vpop.permute.xlu0 %5870
      %5872 = vrot.lane.b32.xlu0 %v233, 116
      %v5873 = vpop.permute.xlu0 %5872
      %5874 = vrot.lane.b32.xlu0 %v234, 116
      %v5875 = vpop.permute.xlu0 %5874
      %5876 = vrot.lane.b32.xlu0 %v235, 116
      %v5877 = vpop.permute.xlu0 %5876
      %5878 = vrot.lane.b32.xlu0 %v236, 116
      %v5879 = vpop.permute.xlu0 %5878
      %5880 = vrot.lane.b32.xlu0 %v237, 116
      %v5881 = vpop.permute.xlu0 %5880
      %5882 = vrot.lane.b32.xlu0 %v238, 116
      %v5883 = vpop.permute.xlu0 %5882
      %5884 = vrot.lane.b32.xlu0 %v239, 116
      %v5885 = vpop.permute.xlu0 %5884
      %5886 = vrot.lane.b32.xlu0 %v240, 116
      %v5887 = vpop.permute.xlu0 %5886
      %5888 = vrot.lane.b32.xlu0 %v241, 116
      %v5889 = vpop.permute.xlu0 %5888
      %5890 = vrot.lane.b32.xlu0 %v242, 116
      %v5891 = vpop.permute.xlu0 %5890
      %5892 = vrot.lane.b32.xlu0 %v243, 116
      %v5893 = vpop.permute.xlu0 %5892
      %5894 = vrot.lane.b32.xlu0 %v244, 116
      %v5895 = vpop.permute.xlu0 %5894
      %5896 = vrot.lane.b32.xlu0 %v245, 116
      %v5897 = vpop.permute.xlu0 %5896
      %5898 = vrot.lane.b32.xlu0 %v246, 116
      %v5899 = vpop.permute.xlu0 %5898
      %5900 = vrot.lane.b32.xlu0 %v247, 116
      %v5901 = vpop.permute.xlu0 %5900
      %5902 = vrot.lane.b32.xlu0 %v248, 116
      %v5903 = vpop.permute.xlu0 %5902
      %5904 = vrot.lane.b32.xlu0 %v249, 116
      %v5905 = vpop.permute.xlu0 %5904
      %5906 = vrot.lane.b32.xlu0 %v250, 116
      %v5907 = vpop.permute.xlu0 %5906
      %5908 = vrot.lane.b32.xlu0 %v251, 116
      %v5909 = vpop.permute.xlu0 %5908
      %5910 = vrot.lane.b32.xlu0 %v252, 116
      %v5911 = vpop.permute.xlu0 %5910
      %5912 = vrot.lane.b32.xlu0 %v253, 116
      %v5913 = vpop.permute.xlu0 %5912
      %5914 = vrot.lane.b32.xlu0 %v254, 116
      %v5915 = vpop.permute.xlu0 %5914
      %5916 = vrot.lane.b32.xlu0 %v255, 116
      %v5917 = vpop.permute.xlu0 %5916
      %5918 = vrot.lane.b32.xlu0 %v256, 116
      %v5919 = vpop.permute.xlu0 %5918
      %5920 = vrot.lane.b32.xlu0 %v257, 116
      %v5921 = vpop.permute.xlu0 %5920
      %5922 = vrot.lane.b32.xlu0 %v258, 116
      %v5923 = vpop.permute.xlu0 %5922
      %5924 = vrot.lane.b32.xlu0 %v259, 116
      %v5925 = vpop.permute.xlu0 %5924
      %5926 = vrot.lane.b32.xlu0 %v260, 116
      %v5927 = vpop.permute.xlu0 %5926
      %5928 = vrot.lane.b32.xlu0 %v261, 116
      %v5929 = vpop.permute.xlu0 %5928
      %5930 = vrot.lane.b32.xlu0 %v262, 116
      %v5931 = vpop.permute.xlu0 %5930
      %5932 = vrot.lane.b32.xlu0 %v263, 116
      %v5933 = vpop.permute.xlu0 %5932
      %5934 = vrot.lane.b32.xlu0 %v264, 116
      %v5935 = vpop.permute.xlu0 %5934
      %5936 = vrot.lane.b32.xlu0 %v265, 116
      %v5937 = vpop.permute.xlu0 %5936
      %5938 = vrot.lane.b32.xlu0 %v266, 116
      %v5939 = vpop.permute.xlu0 %5938
      %5940 = vrot.lane.b32.xlu0 %v267, 116
      %v5941 = vpop.permute.xlu0 %5940
      %5942 = vrot.lane.b32.xlu0 %v268, 116
      %v5943 = vpop.permute.xlu0 %5942
      %5944 = vrot.lane.b32.xlu0 %v269, 116
      %v5945 = vpop.permute.xlu0 %5944
      %5946 = vrot.lane.b32.xlu0 %v270, 116
      %v5947 = vpop.permute.xlu0 %5946
      %5948 = vrot.lane.b32.xlu0 %v271, 116
      %v5949 = vpop.permute.xlu0 %5948
      %5950 = vrot.lane.b32.xlu0 %v272, 116
      %v5951 = vpop.permute.xlu0 %5950
      %5952 = vrot.lane.b32.xlu0 %v273, 116
      %v5953 = vpop.permute.xlu0 %5952
      %5954 = vrot.lane.b32.xlu0 %v274, 116
      %v5955 = vpop.permute.xlu0 %5954
      %5956 = vrot.lane.b32.xlu0 %v275, 116
      %v5957 = vpop.permute.xlu0 %5956
      %5958 = vrot.lane.b32.xlu0 %v276, 116
      %v5959 = vpop.permute.xlu0 %5958
      %5960 = vrot.lane.b32.xlu0 %v277, 116
      %v5961 = vpop.permute.xlu0 %5960
      %5962 = vrot.lane.b32.xlu0 %v278, 116
      %v5963 = vpop.permute.xlu0 %5962
      %5964 = vrot.lane.b32.xlu0 %v279, 116
      %v5965 = vpop.permute.xlu0 %5964
      %5966 = vrot.lane.b32.xlu0 %v280, 116
      %v5967 = vpop.permute.xlu0 %5966
      %5968 = vrot.lane.b32.xlu0 %v281, 116
      %v5969 = vpop.permute.xlu0 %5968
      %5970 = vrot.lane.b32.xlu0 %v282, 116
      %v5971 = vpop.permute.xlu0 %5970
      %5972 = vrot.lane.b32.xlu0 %v283, 116
      %v5973 = vpop.permute.xlu0 %5972
      %5974 = vrot.lane.b32.xlu0 %v284, 116
      %v5975 = vpop.permute.xlu0 %5974
      %5976 = vrot.lane.b32.xlu0 %v285, 116
      %v5977 = vpop.permute.xlu0 %5976
      %5978 = vrot.lane.b32.xlu0 %v286, 116
      %v5979 = vpop.permute.xlu0 %5978
      %5980 = vrot.lane.b32.xlu0 %v287, 116
      %v5981 = vpop.permute.xlu0 %5980
      %5982 = vrot.lane.b32.xlu0 %v288, 116
      %v5983 = vpop.permute.xlu0 %5982
      %5984 = vrot.lane.b32.xlu0 %v289, 116
      %v5985 = vpop.permute.xlu0 %5984
      %5986 = vrot.lane.b32.xlu0 %v290, 116
      %v5987 = vpop.permute.xlu0 %5986
      %5988 = vrot.lane.b32.xlu0 %v291, 116
      %v5989 = vpop.permute.xlu0 %5988
      %5990 = vrot.lane.b32.xlu0 %v292, 116
      %v5991 = vpop.permute.xlu0 %5990
      %5992 = vrot.lane.b32.xlu0 %v293, 116
      %v5993 = vpop.permute.xlu0 %5992
      %5994 = vrot.lane.b32.xlu0 %v294, 116
      %v5995 = vpop.permute.xlu0 %5994
      %5996 = vrot.lane.b32.xlu0 %v295, 116
      %v5997 = vpop.permute.xlu0 %5996
      %5998 = vrot.lane.b32.xlu0 %v296, 116
      %v5999 = vpop.permute.xlu0 %5998
      %6000 = vrot.lane.b32.xlu0 %v297, 116
      %v6001 = vpop.permute.xlu0 %6000
      %6002 = vrot.lane.b32.xlu0 %v298, 116
      %v6003 = vpop.permute.xlu0 %6002
      %6004 = vrot.lane.b32.xlu0 %v299, 116
      %v6005 = vpop.permute.xlu0 %6004
      %6006 = vrot.lane.b32.xlu0 %v300, 116
      %v6007 = vpop.permute.xlu0 %6006
      %6008 = vrot.lane.b32.xlu0 %v301, 116
      %v6009 = vpop.permute.xlu0 %6008
      %6010 = vrot.lane.b32.xlu0 %v302, 116
      %v6011 = vpop.permute.xlu0 %6010
      %6012 = vrot.lane.b32.xlu0 %v303, 116
      %v6013 = vpop.permute.xlu0 %6012
      %6014 = vrot.lane.b32.xlu0 %v304, 116
      %v6015 = vpop.permute.xlu0 %6014
      %6016 = vrot.lane.b32.xlu0 %v305, 116
      %v6017 = vpop.permute.xlu0 %6016
      %6018 = vrot.lane.b32.xlu0 %v306, 116
      %v6019 = vpop.permute.xlu0 %6018
      %6020 = vrot.lane.b32.xlu0 %v307, 116
      %v6021 = vpop.permute.xlu0 %6020
      %6022 = vrot.lane.b32.xlu0 %v308, 116
      %v6023 = vpop.permute.xlu0 %6022
      %6024 = vrot.lane.b32.xlu0 %v309, 116
      %v6025 = vpop.permute.xlu0 %6024
      %6026 = vrot.lane.b32.xlu0 %v310, 116
      %v6027 = vpop.permute.xlu0 %6026
      %6028 = vrot.lane.b32.xlu0 %v311, 116
      %v6029 = vpop.permute.xlu0 %6028
      %6030 = vrot.lane.b32.xlu0 %v312, 116
      %v6031 = vpop.permute.xlu0 %6030
      %6032 = vrot.lane.b32.xlu0 %v313, 116
      %v6033 = vpop.permute.xlu0 %6032
      %6034 = vrot.lane.b32.xlu0 %v314, 116
      %v6035 = vpop.permute.xlu0 %6034
      %6036 = vrot.lane.b32.xlu0 %v315, 116
      %v6037 = vpop.permute.xlu0 %6036
      %6038 = vrot.lane.b32.xlu0 %v316, 116
      %v6039 = vpop.permute.xlu0 %6038
      %6040 = vrot.lane.b32.xlu0 %v317, 116
      %v6041 = vpop.permute.xlu0 %6040
      %6042 = vrot.lane.b32.xlu0 %v318, 116
      %v6043 = vpop.permute.xlu0 %6042
      %6044 = vrot.lane.b32.xlu0 %v319, 116
      %v6045 = vpop.permute.xlu0 %6044
      %6046 = vrot.lane.b32.xlu0 %v320, 116
      %v6047 = vpop.permute.xlu0 %6046
      %6048 = vrot.lane.b32.xlu0 %v321, 116
      %v6049 = vpop.permute.xlu0 %6048
      %6050 = vrot.lane.b32.xlu0 %v322, 116
      %v6051 = vpop.permute.xlu0 %6050
      %6052 = vrot.lane.b32.xlu0 %v323, 116
      %v6053 = vpop.permute.xlu0 %6052
      %6054 = vrot.lane.b32.xlu0 %v324, 116
      %v6055 = vpop.permute.xlu0 %6054
      %6056 = vrot.lane.b32.xlu0 %v325, 116
      %v6057 = vpop.permute.xlu0 %6056
      %6058 = vrot.lane.b32.xlu0 %v326, 116
      %v6059 = vpop.permute.xlu0 %6058
      %6060 = vrot.lane.b32.xlu0 %v327, 116
      %v6061 = vpop.permute.xlu0 %6060
      %6062 = vrot.lane.b32.xlu0 %v328, 116
      %v6063 = vpop.permute.xlu0 %6062
      %6064 = vrot.lane.b32.xlu0 %v329, 116
      %v6065 = vpop.permute.xlu0 %6064
      %6066 = vrot.lane.b32.xlu0 %v330, 116
      %v6067 = vpop.permute.xlu0 %6066
      %6068 = vrot.lane.b32.xlu0 %v331, 116
      %v6069 = vpop.permute.xlu0 %6068
      %6070 = vrot.lane.b32.xlu0 %v332, 116
      %v6071 = vpop.permute.xlu0 %6070
      %6072 = vrot.lane.b32.xlu0 %v333, 116
      %v6073 = vpop.permute.xlu0 %6072
      %6074 = vrot.lane.b32.xlu0 %v334, 116
      %v6075 = vpop.permute.xlu0 %6074
      %6076 = vrot.lane.b32.xlu0 %v335, 116
      %v6077 = vpop.permute.xlu0 %6076
      %6078 = vrot.lane.b32.xlu0 %v336, 116
      %v6079 = vpop.permute.xlu0 %6078
      %6080 = vrot.lane.b32.xlu0 %v337, 116
      %v6081 = vpop.permute.xlu0 %6080
      %6082 = vrot.lane.b32.xlu0 %v338, 116
      %v6083 = vpop.permute.xlu0 %6082
      %6084 = vrot.lane.b32.xlu0 %v339, 116
      %v6085 = vpop.permute.xlu0 %6084
      %6086 = vrot.lane.b32.xlu0 %v340, 116
      %v6087 = vpop.permute.xlu0 %6086
      %6088 = vrot.lane.b32.xlu0 %v341, 116
      %v6089 = vpop.permute.xlu0 %6088
      %6090 = vrot.lane.b32.xlu0 %v342, 116
      %v6091 = vpop.permute.xlu0 %6090
      %6092 = vrot.lane.b32.xlu0 %v343, 116
      %v6093 = vpop.permute.xlu0 %6092
      %6094 = vrot.lane.b32.xlu0 %v344, 116
      %v6095 = vpop.permute.xlu0 %6094
      %6096 = vrot.lane.b32.xlu0 %v345, 116
      %v6097 = vpop.permute.xlu0 %6096
      %6098 = vrot.lane.b32.xlu0 %v346, 116
      %v6099 = vpop.permute.xlu0 %6098
      %6100 = vrot.lane.b32.xlu0 %v347, 116
      %v6101 = vpop.permute.xlu0 %6100
      %6102 = vrot.lane.b32.xlu0 %v348, 116
      %v6103 = vpop.permute.xlu0 %6102
      %6104 = vrot.lane.b32.xlu0 %v349, 116
      %v6105 = vpop.permute.xlu0 %6104
      %6106 = vrot.lane.b32.xlu0 %v350, 116
      %v6107 = vpop.permute.xlu0 %6106
      %6108 = vrot.lane.b32.xlu0 %v351, 116
      %v6109 = vpop.permute.xlu0 %6108
      %6110 = vrot.lane.b32.xlu0 %v352, 116
      %v6111 = vpop.permute.xlu0 %6110
      %6112 = vrot.lane.b32.xlu0 %v353, 116
      %v6113 = vpop.permute.xlu0 %6112
      %6114 = vrot.lane.b32.xlu0 %v354, 116
      %v6115 = vpop.permute.xlu0 %6114
      %6116 = vrot.lane.b32.xlu0 %v355, 116
      %v6117 = vpop.permute.xlu0 %6116
      %6118 = vrot.lane.b32.xlu0 %v356, 116
      %v6119 = vpop.permute.xlu0 %6118
      %6120 = vrot.lane.b32.xlu0 %v357, 116
      %v6121 = vpop.permute.xlu0 %6120
      %6122 = vrot.lane.b32.xlu0 %v358, 116
      %v6123 = vpop.permute.xlu0 %6122
      %6124 = vrot.lane.b32.xlu0 %v359, 116
      %v6125 = vpop.permute.xlu0 %6124
      %6126 = vrot.lane.b32.xlu0 %v360, 116
      %v6127 = vpop.permute.xlu0 %6126
      %6128 = vrot.lane.b32.xlu0 %v361, 116
      %v6129 = vpop.permute.xlu0 %6128
      %6130 = vrot.lane.b32.xlu0 %v362, 116
      %v6131 = vpop.permute.xlu0 %6130
      %6132 = vrot.lane.b32.xlu0 %v363, 116
      %v6133 = vpop.permute.xlu0 %6132
      %6134 = vrot.lane.b32.xlu0 %v364, 116
      %v6135 = vpop.permute.xlu0 %6134
      %6136 = vrot.lane.b32.xlu0 %v365, 116
      %v6137 = vpop.permute.xlu0 %6136
      %6138 = vrot.lane.b32.xlu0 %v366, 116
      %v6139 = vpop.permute.xlu0 %6138
      %6140 = vrot.lane.b32.xlu0 %v367, 116
      %v6141 = vpop.permute.xlu0 %6140
      %6142 = vrot.lane.b32.xlu0 %v368, 116
      %v6143 = vpop.permute.xlu0 %6142
      %6144 = vrot.lane.b32.xlu0 %v369, 116
      %v6145 = vpop.permute.xlu0 %6144
      %6146 = vrot.lane.b32.xlu0 %v370, 116
      %v6147 = vpop.permute.xlu0 %6146
      %6148 = vrot.lane.b32.xlu0 %v371, 116
      %v6149 = vpop.permute.xlu0 %6148
      %6150 = vrot.lane.b32.xlu0 %v372, 116
      %v6151 = vpop.permute.xlu0 %6150
      %6152 = vrot.lane.b32.xlu0 %v373, 116
      %v6153 = vpop.permute.xlu0 %6152
      %6154 = vrot.lane.b32.xlu0 %v374, 116
      %v6155 = vpop.permute.xlu0 %6154
      %6156 = vrot.lane.b32.xlu0 %v375, 116
      %v6157 = vpop.permute.xlu0 %6156
      %6158 = vrot.lane.b32.xlu0 %v376, 116
      %v6159 = vpop.permute.xlu0 %6158
      %6160 = vrot.lane.b32.xlu0 %v377, 116
      %v6161 = vpop.permute.xlu0 %6160
      %6162 = vrot.lane.b32.xlu0 %v378, 116
      %v6163 = vpop.permute.xlu0 %6162
      %6164 = vrot.lane.b32.xlu0 %v379, 116
      %v6165 = vpop.permute.xlu0 %6164
      %6166 = vrot.lane.b32.xlu0 %v380, 116
      %v6167 = vpop.permute.xlu0 %6166
      %6168 = vrot.lane.b32.xlu0 %v381, 116
      %v6169 = vpop.permute.xlu0 %6168
      %6170 = vrot.lane.b32.xlu0 %v382, 116
      %v6171 = vpop.permute.xlu0 %6170
      %6172 = vrot.lane.b32.xlu0 %v383, 116
      %v6173 = vpop.permute.xlu0 %6172
      %6174 = vrot.lane.b32.xlu0 %v384, 116
      %v6175 = vpop.permute.xlu0 %6174
      %6176 = vrot.lane.b32.xlu0 %v385, 116
      %v6177 = vpop.permute.xlu0 %6176
      %6178 = vrot.lane.b32.xlu0 %v386, 116
      %v6179 = vpop.permute.xlu0 %6178
      %6180 = vrot.lane.b32.xlu0 %v387, 116
      %v6181 = vpop.permute.xlu0 %6180
      %6182 = vrot.lane.b32.xlu0 %v388, 116
      %v6183 = vpop.permute.xlu0 %6182
      %6184 = vrot.lane.b32.xlu0 %v389, 116
      %v6185 = vpop.permute.xlu0 %6184
      %6186 = vrot.lane.b32.xlu0 %v390, 116
      %v6187 = vpop.permute.xlu0 %6186
      %6188 = vrot.lane.b32.xlu0 %v391, 116
      %v6189 = vpop.permute.xlu0 %6188
      %6190 = vrot.lane.b32.xlu0 %v392, 116
      %v6191 = vpop.permute.xlu0 %6190
      %6192 = vrot.lane.b32.xlu0 %v393, 116
      %v6193 = vpop.permute.xlu0 %6192
      %6194 = vrot.lane.b32.xlu0 %v394, 116
      %v6195 = vpop.permute.xlu0 %6194
      %6196 = vrot.lane.b32.xlu0 %v395, 116
      %v6197 = vpop.permute.xlu0 %6196
      %6198 = vrot.lane.b32.xlu0 %v396, 116
      %v6199 = vpop.permute.xlu0 %6198
      %6200 = vrot.lane.b32.xlu0 %v397, 116
      %v6201 = vpop.permute.xlu0 %6200
      %6202 = vrot.lane.b32.xlu0 %v398, 116
      %v6203 = vpop.permute.xlu0 %6202
      %6204 = vrot.lane.b32.xlu0 %v399, 116
      %v6205 = vpop.permute.xlu0 %6204
      %6206 = vrot.lane.b32.xlu0 %v400, 116
      %v6207 = vpop.permute.xlu0 %6206
      %6208 = vrot.lane.b32.xlu0 %v401, 116
      %v6209 = vpop.permute.xlu0 %6208
      %6210 = vrot.lane.b32.xlu0 %v402, 116
      %v6211 = vpop.permute.xlu0 %6210
      %6212 = vrot.lane.b32.xlu0 %v403, 116
      %v6213 = vpop.permute.xlu0 %6212
      %6214 = vrot.lane.b32.xlu0 %v404, 116
      %v6215 = vpop.permute.xlu0 %6214
      %6216 = vrot.lane.b32.xlu0 %v405, 116
      %v6217 = vpop.permute.xlu0 %6216
      %6218 = vrot.lane.b32.xlu0 %v406, 116
      %v6219 = vpop.permute.xlu0 %6218
      %6220 = vrot.lane.b32.xlu0 %v407, 116
      %v6221 = vpop.permute.xlu0 %6220
      %6222 = vrot.lane.b32.xlu0 %v408, 116
      %v6223 = vpop.permute.xlu0 %6222
      %6224 = vrot.lane.b32.xlu0 %v409, 116
      %v6225 = vpop.permute.xlu0 %6224
      %6226 = vrot.lane.b32.xlu0 %v410, 116
      %v6227 = vpop.permute.xlu0 %6226
      %6228 = vrot.lane.b32.xlu0 %v411, 116
      %v6229 = vpop.permute.xlu0 %6228
      %6230 = vrot.lane.b32.xlu0 %v412, 116
      %v6231 = vpop.permute.xlu0 %6230
      %6232 = vrot.lane.b32.xlu0 %v413, 116
      %v6233 = vpop.permute.xlu0 %6232
      %6234 = vrot.lane.b32.xlu0 %v414, 116
      %v6235 = vpop.permute.xlu0 %6234
      %6236 = vrot.lane.b32.xlu0 %v415, 116
      %v6237 = vpop.permute.xlu0 %6236
      %6238 = vrot.lane.b32.xlu0 %v416, 116
      %v6239 = vpop.permute.xlu0 %6238
      %6240 = vrot.lane.b32.xlu0 %v417, 116
      %v6241 = vpop.permute.xlu0 %6240
      %6242 = vrot.lane.b32.xlu0 %v418, 116
      %v6243 = vpop.permute.xlu0 %6242
      %6244 = vrot.lane.b32.xlu0 %v419, 116
      %v6245 = vpop.permute.xlu0 %6244
      %6246 = vrot.lane.b32.xlu0 %v420, 116
      %v6247 = vpop.permute.xlu0 %6246
      %6248 = vrot.lane.b32.xlu0 %v421, 116
      %v6249 = vpop.permute.xlu0 %6248
      %6250 = vrot.lane.b32.xlu0 %v422, 116
      %v6251 = vpop.permute.xlu0 %6250
      %6252 = vrot.lane.b32.xlu0 %v423, 116
      %v6253 = vpop.permute.xlu0 %6252
      %6254 = vrot.lane.b32.xlu0 %v424, 116
      %v6255 = vpop.permute.xlu0 %6254
      %6256 = vrot.lane.b32.xlu0 %v425, 116
      %v6257 = vpop.permute.xlu0 %6256
      %6258 = vrot.lane.b32.xlu0 %v426, 116
      %v6259 = vpop.permute.xlu0 %6258
      %6260 = vrot.lane.b32.xlu0 %v427, 116
      %v6261 = vpop.permute.xlu0 %6260
      %6262 = vrot.lane.b32.xlu0 %v428, 116
      %v6263 = vpop.permute.xlu0 %6262
      %6264 = vrot.lane.b32.xlu0 %v429, 116
      %v6265 = vpop.permute.xlu0 %6264
      %6266 = vrot.lane.b32.xlu0 %v430, 116
      %v6267 = vpop.permute.xlu0 %6266
      %6268 = vrot.lane.b32.xlu0 %v431, 116
      %v6269 = vpop.permute.xlu0 %6268
      %6270 = vrot.lane.b32.xlu0 %v432, 116
      %v6271 = vpop.permute.xlu0 %6270
      %6272 = vrot.lane.b32.xlu0 %v433, 116
      %v6273 = vpop.permute.xlu0 %6272
      %6274 = vrot.lane.b32.xlu0 %v434, 116
      %v6275 = vpop.permute.xlu0 %6274
      %6276 = vrot.lane.b32.xlu0 %v435, 116
      %v6277 = vpop.permute.xlu0 %6276
      %6278 = vrot.lane.b32.xlu0 %v436, 116
      %v6279 = vpop.permute.xlu0 %6278
      %6280 = vrot.lane.b32.xlu0 %v437, 116
      %v6281 = vpop.permute.xlu0 %6280
      %6282 = vrot.lane.b32.xlu0 %v438, 116
      %v6283 = vpop.permute.xlu0 %6282
      %6284 = vrot.lane.b32.xlu0 %v439, 116
      %v6285 = vpop.permute.xlu0 %6284
      %6286 = vrot.lane.b32.xlu0 %v440, 116
      %v6287 = vpop.permute.xlu0 %6286
      %6288 = vrot.lane.b32.xlu0 %v441, 116
      %v6289 = vpop.permute.xlu0 %6288
      %6290 = vrot.lane.b32.xlu0 %v442, 116
      %v6291 = vpop.permute.xlu0 %6290
      %6292 = vrot.lane.b32.xlu0 %v443, 116
      %v6293 = vpop.permute.xlu0 %6292
      %6294 = vrot.lane.b32.xlu0 %v444, 116
      %v6295 = vpop.permute.xlu0 %6294
      %6296 = vrot.lane.b32.xlu0 %v445, 116
      %v6297 = vpop.permute.xlu0 %6296
      %6298 = vrot.lane.b32.xlu0 %v446, 116
      %v6299 = vpop.permute.xlu0 %6298
      %6300 = vrot.lane.b32.xlu0 %v447, 116
      %v6301 = vpop.permute.xlu0 %6300
      %6302 = vrot.lane.b32.xlu0 %v448, 116
      %v6303 = vpop.permute.xlu0 %6302
      %6304 = vrot.lane.b32.xlu0 %v449, 116
      %v6305 = vpop.permute.xlu0 %6304
      %6306 = vrot.lane.b32.xlu0 %v450, 116
      %v6307 = vpop.permute.xlu0 %6306
      %6308 = vrot.lane.b32.xlu0 %v451, 116
      %v6309 = vpop.permute.xlu0 %6308
      %6310 = vrot.lane.b32.xlu0 %v452, 116
      %v6311 = vpop.permute.xlu0 %6310
      %6312 = vrot.lane.b32.xlu0 %v453, 116
      %v6313 = vpop.permute.xlu0 %6312
      %6314 = vrot.lane.b32.xlu0 %v454, 116
      %v6315 = vpop.permute.xlu0 %6314
      %6316 = vrot.lane.b32.xlu0 %v455, 116
      %v6317 = vpop.permute.xlu0 %6316
      %6318 = vrot.lane.b32.xlu0 %v456, 116
      %v6319 = vpop.permute.xlu0 %6318
      %6320 = vrot.lane.b32.xlu0 %v457, 116
      %v6321 = vpop.permute.xlu0 %6320
      %6322 = vrot.lane.b32.xlu0 %v458, 116
      %v6323 = vpop.permute.xlu0 %6322
      %6324 = vrot.lane.b32.xlu0 %v459, 116
      %v6325 = vpop.permute.xlu0 %6324
      %6326 = vrot.lane.b32.xlu0 %v460, 116
      %v6327 = vpop.permute.xlu0 %6326
      %6328 = vrot.lane.b32.xlu0 %v461, 116
      %v6329 = vpop.permute.xlu0 %6328
      %6330 = vrot.lane.b32.xlu0 %v462, 116
      %v6331 = vpop.permute.xlu0 %6330
      %6332 = vrot.lane.b32.xlu0 %v463, 116
      %v6333 = vpop.permute.xlu0 %6332
      %6334 = vrot.lane.b32.xlu0 %v464, 116
      %v6335 = vpop.permute.xlu0 %6334
      %6336 = vrot.lane.b32.xlu0 %v465, 116
      %v6337 = vpop.permute.xlu0 %6336
      %6338 = vrot.lane.b32.xlu0 %v466, 116
      %v6339 = vpop.permute.xlu0 %6338
      %6340 = vrot.lane.b32.xlu0 %v467, 116
      %v6341 = vpop.permute.xlu0 %6340
      %6342 = vrot.lane.b32.xlu0 %v468, 116
      %v6343 = vpop.permute.xlu0 %6342
      %6344 = vrot.lane.b32.xlu0 %v469, 116
      %v6345 = vpop.permute.xlu0 %6344
      %6346 = vrot.lane.b32.xlu0 %v470, 116
      %v6347 = vpop.permute.xlu0 %6346
      %6348 = vrot.lane.b32.xlu0 %v471, 116
      %v6349 = vpop.permute.xlu0 %6348
      %6350 = vrot.lane.b32.xlu0 %v472, 116
      %v6351 = vpop.permute.xlu0 %6350
      %6352 = vrot.lane.b32.xlu0 %v473, 116
      %v6353 = vpop.permute.xlu0 %6352
      %6354 = vrot.lane.b32.xlu0 %v474, 116
      %v6355 = vpop.permute.xlu0 %6354
      %6356 = vrot.lane.b32.xlu0 %v475, 116
      %v6357 = vpop.permute.xlu0 %6356
      %6358 = vrot.lane.b32.xlu0 %v476, 116
      %v6359 = vpop.permute.xlu0 %6358
      %6360 = vrot.lane.b32.xlu0 %v477, 116
      %v6361 = vpop.permute.xlu0 %6360
      %6362 = vrot.lane.b32.xlu0 %v478, 116
      %v6363 = vpop.permute.xlu0 %6362
      %6364 = vrot.lane.b32.xlu0 %v479, 116
      %v6365 = vpop.permute.xlu0 %6364
      %6366 = vrot.lane.b32.xlu0 %v480, 116
      %v6367 = vpop.permute.xlu0 %6366
      %6368 = vrot.lane.b32.xlu0 %v481, 116
      %v6369 = vpop.permute.xlu0 %6368
      %6370 = vrot.lane.b32.xlu0 %v482, 116
      %v6371 = vpop.permute.xlu0 %6370
      %6372 = vrot.lane.b32.xlu0 %v483, 116
      %v6373 = vpop.permute.xlu0 %6372
      %6374 = vrot.lane.b32.xlu0 %v484, 116
      %v6375 = vpop.permute.xlu0 %6374
      %6376 = vrot.lane.b32.xlu0 %v485, 116
      %v6377 = vpop.permute.xlu0 %6376
      %6378 = vrot.lane.b32.xlu0 %v486, 116
      %v6379 = vpop.permute.xlu0 %6378
      %6380 = vrot.lane.b32.xlu0 %v487, 116
      %v6381 = vpop.permute.xlu0 %6380
      %6382 = vrot.lane.b32.xlu0 %v488, 116
      %v6383 = vpop.permute.xlu0 %6382
      %6384 = vrot.lane.b32.xlu0 %v489, 116
      %v6385 = vpop.permute.xlu0 %6384
      %6386 = vrot.lane.b32.xlu0 %v490, 116
      %v6387 = vpop.permute.xlu0 %6386
      %6388 = vrot.lane.b32.xlu0 %v491, 116
      %v6389 = vpop.permute.xlu0 %6388
      %6390 = vrot.lane.b32.xlu0 %v492, 116
      %v6391 = vpop.permute.xlu0 %6390
      %6392 = vrot.lane.b32.xlu0 %v493, 116
      %v6393 = vpop.permute.xlu0 %6392
      %6394 = vrot.lane.b32.xlu0 %v494, 116
      %v6395 = vpop.permute.xlu0 %6394
      %6396 = vrot.lane.b32.xlu0 %v495, 116
      %v6397 = vpop.permute.xlu0 %6396
      %6398 = vrot.lane.b32.xlu0 %v496, 116
      %v6399 = vpop.permute.xlu0 %6398
      %6400 = vrot.lane.b32.xlu0 %v497, 116
      %v6401 = vpop.permute.xlu0 %6400
      %6402 = vrot.lane.b32.xlu0 %v498, 116
      %v6403 = vpop.permute.xlu0 %6402
      %6404 = vrot.lane.b32.xlu0 %v499, 116
      %v6405 = vpop.permute.xlu0 %6404
      %6406 = vrot.lane.b32.xlu0 %v500, 116
      %v6407 = vpop.permute.xlu0 %6406
      %6408 = vrot.lane.b32.xlu0 %v501, 116
      %v6409 = vpop.permute.xlu0 %6408
      %6410 = vrot.lane.b32.xlu0 %v502, 116
      %v6411 = vpop.permute.xlu0 %6410
      %6412 = vrot.lane.b32.xlu0 %v503, 116
      %v6413 = vpop.permute.xlu0 %6412
      %6414 = vrot.lane.b32.xlu0 %v504, 116
      %v6415 = vpop.permute.xlu0 %6414
      %6416 = vrot.lane.b32.xlu0 %v505, 116
      %v6417 = vpop.permute.xlu0 %6416
      %6418 = vrot.lane.b32.xlu0 %v506, 116
      %v6419 = vpop.permute.xlu0 %6418
      %6420 = vrot.lane.b32.xlu0 %v507, 116
      %v6421 = vpop.permute.xlu0 %6420
      %6422 = vrot.lane.b32.xlu0 %v508, 116
      %v6423 = vpop.permute.xlu0 %6422
      %6424 = vrot.lane.b32.xlu0 %v509, 116
      %v6425 = vpop.permute.xlu0 %6424
      %6426 = vrot.lane.b32.xlu0 %v510, 116
      %v6427 = vpop.permute.xlu0 %6426
      %6428 = vrot.lane.b32.xlu0 %v511, 116
      %v6429 = vpop.permute.xlu0 %6428
      %6430 = vrot.lane.b32.xlu0 %v512, 116
      %v6431 = vpop.permute.xlu0 %6430
      %6432 = vrot.lane.b32.xlu0 %v513, 116
      %v6433 = vpop.permute.xlu0 %6432
      %6434 = vrot.lane.b32.xlu0 %v514, 116
      %v6435 = vpop.permute.xlu0 %6434
      %6436 = vrot.lane.b32.xlu0 %v515, 116
      %v6437 = vpop.permute.xlu0 %6436
      %6438 = vrot.lane.b32.xlu0 %v516, 116
      %v6439 = vpop.permute.xlu0 %6438
      %6440 = vrot.lane.b32.xlu0 %v517, 116
      %v6441 = vpop.permute.xlu0 %6440
      %6442 = vrot.lane.b32.xlu0 %v518, 116
      %v6443 = vpop.permute.xlu0 %6442
      %6444 = vrot.lane.b32.xlu0 %v519, 116
      %v6445 = vpop.permute.xlu0 %6444
      %6446 = vrot.lane.b32.xlu0 %v520, 116
      %v6447 = vpop.permute.xlu0 %6446
      %6448 = vrot.lane.b32.xlu0 %v521, 116
      %v6449 = vpop.permute.xlu0 %6448
      %6450 = vrot.lane.b32.xlu0 %v522, 116
      %v6451 = vpop.permute.xlu0 %6450
      %6452 = vrot.lane.b32.xlu0 %v523, 116
      %v6453 = vpop.permute.xlu0 %6452
      %6454 = vrot.lane.b32.xlu0 %v524, 116
      %v6455 = vpop.permute.xlu0 %6454
      %6456 = vrot.lane.b32.xlu0 %v525, 116
      %v6457 = vpop.permute.xlu0 %6456
      %6458 = vrot.lane.b32.xlu0 %v526, 116
      %v6459 = vpop.permute.xlu0 %6458
      %6460 = vrot.lane.b32.xlu0 %v527, 116
      %v6461 = vpop.permute.xlu0 %6460
      %6462 = vrot.lane.b32.xlu0 %v528, 116
      %v6463 = vpop.permute.xlu0 %6462
      %6464 = vrot.lane.b32.xlu0 %v529, 116
      %v6465 = vpop.permute.xlu0 %6464
      %6466 = vrot.lane.b32.xlu0 %v530, 116
      %v6467 = vpop.permute.xlu0 %6466
      %6468 = vrot.lane.b32.xlu0 %v531, 116
      %v6469 = vpop.permute.xlu0 %6468
      %6470 = vrot.lane.b32.xlu0 %v532, 116
      %v6471 = vpop.permute.xlu0 %6470
      %6472 = vrot.lane.b32.xlu0 %v533, 116
      %v6473 = vpop.permute.xlu0 %6472
      %6474 = vrot.lane.b32.xlu0 %v534, 116
      %v6475 = vpop.permute.xlu0 %6474
      %6476 = vrot.lane.b32.xlu0 %v535, 116
      %v6477 = vpop.permute.xlu0 %6476
      %6478 = vrot.lane.b32.xlu0 %v536, 116
      %v6479 = vpop.permute.xlu0 %6478
      %6480 = vrot.lane.b32.xlu0 %v537, 116
      %v6481 = vpop.permute.xlu0 %6480
      %6482 = vrot.lane.b32.xlu0 %v538, 116
      %v6483 = vpop.permute.xlu0 %6482
      %6484 = vrot.lane.b32.xlu0 %v539, 116
      %v6485 = vpop.permute.xlu0 %6484
      %6486 = vrot.lane.b32.xlu0 %v540, 116
      %v6487 = vpop.permute.xlu0 %6486
      %6488 = vrot.lane.b32.xlu0 %v541, 116
      %v6489 = vpop.permute.xlu0 %6488
      %6490 = vrot.lane.b32.xlu0 %v542, 116
      %v6491 = vpop.permute.xlu0 %6490
      %6492 = vrot.lane.b32.xlu0 %v543, 116
      %v6493 = vpop.permute.xlu0 %6492
      %6494 = vrot.lane.b32.xlu0 %v544, 116
      %v6495 = vpop.permute.xlu0 %6494
      %6496 = vrot.lane.b32.xlu0 %v545, 116
      %v6497 = vpop.permute.xlu0 %6496
      %6498 = vrot.lane.b32.xlu0 %v546, 116
      %v6499 = vpop.permute.xlu0 %6498
      %6500 = vrot.lane.b32.xlu0 %v547, 116
      %v6501 = vpop.permute.xlu0 %6500
      %6502 = vrot.lane.b32.xlu0 %v548, 116
      %v6503 = vpop.permute.xlu0 %6502
      %6504 = vrot.lane.b32.xlu0 %v549, 116
      %v6505 = vpop.permute.xlu0 %6504
      %6506 = vrot.lane.b32.xlu0 %v550, 116
      %v6507 = vpop.permute.xlu0 %6506
      %6508 = vrot.lane.b32.xlu0 %v551, 116
      %v6509 = vpop.permute.xlu0 %6508
      %6510 = vrot.lane.b32.xlu0 %v552, 116
      %v6511 = vpop.permute.xlu0 %6510
      %6512 = vrot.lane.b32.xlu0 %v553, 116
      %v6513 = vpop.permute.xlu0 %6512
      %6514 = vrot.lane.b32.xlu0 %v554, 116
      %v6515 = vpop.permute.xlu0 %6514
      %6516 = vrot.lane.b32.xlu0 %v555, 116
      %v6517 = vpop.permute.xlu0 %6516
      %6518 = vrot.lane.b32.xlu0 %v556, 116
      %v6519 = vpop.permute.xlu0 %6518
      %6520 = vrot.lane.b32.xlu0 %v557, 116
      %v6521 = vpop.permute.xlu0 %6520
      %6522 = vrot.lane.b32.xlu0 %v558, 116
      %v6523 = vpop.permute.xlu0 %6522
      %6524 = vrot.lane.b32.xlu0 %v559, 116
      %v6525 = vpop.permute.xlu0 %6524
      %6526 = vrot.lane.b32.xlu0 %v560, 116
      %v6527 = vpop.permute.xlu0 %6526
      %6528 = vrot.lane.b32.xlu0 %v561, 116
      %v6529 = vpop.permute.xlu0 %6528
      %6530 = vrot.lane.b32.xlu0 %v562, 116
      %v6531 = vpop.permute.xlu0 %6530
      %6532 = vrot.lane.b32.xlu0 %v563, 116
      %v6533 = vpop.permute.xlu0 %6532
      %6534 = vrot.lane.b32.xlu0 %v564, 116
      %v6535 = vpop.permute.xlu0 %6534
      %6536 = vrot.lane.b32.xlu0 %v565, 116
      %v6537 = vpop.permute.xlu0 %6536
      %6538 = vrot.lane.b32.xlu0 %v566, 116
      %v6539 = vpop.permute.xlu0 %6538
      %6540 = vrot.lane.b32.xlu0 %v567, 116
      %v6541 = vpop.permute.xlu0 %6540
      %6542 = vrot.lane.b32.xlu0 %v568, 116
      %v6543 = vpop.permute.xlu0 %6542
      %6544 = vrot.lane.b32.xlu0 %v569, 116
      %v6545 = vpop.permute.xlu0 %6544
      %6546 = vrot.lane.b32.xlu0 %v570, 116
      %v6547 = vpop.permute.xlu0 %6546
      %6548 = vrot.lane.b32.xlu0 %v571, 116
      %v6549 = vpop.permute.xlu0 %6548
      %6550 = vrot.lane.b32.xlu0 %v572, 116
      %v6551 = vpop.permute.xlu0 %6550
      %6552 = vrot.lane.b32.xlu0 %v573, 116
      %v6553 = vpop.permute.xlu0 %6552
      %6554 = vrot.lane.b32.xlu0 %v574, 116
      %v6555 = vpop.permute.xlu0 %6554
      %6556 = vrot.lane.b32.xlu0 %v575, 116
      %v6557 = vpop.permute.xlu0 %6556
      %6558 = vrot.lane.b32.xlu0 %v576, 116
      %v6559 = vpop.permute.xlu0 %6558
      %6560 = vrot.lane.b32.xlu0 %v577, 116
      %v6561 = vpop.permute.xlu0 %6560
      %6562 = vrot.lane.b32.xlu0 %v578, 116
      %v6563 = vpop.permute.xlu0 %6562
      %6564 = vrot.lane.b32.xlu0 %v579, 116
      %v6565 = vpop.permute.xlu0 %6564
      %6566 = vrot.lane.b32.xlu0 %v580, 116
      %v6567 = vpop.permute.xlu0 %6566
      %6568 = vrot.lane.b32.xlu0 %v581, 116
      %v6569 = vpop.permute.xlu0 %6568
      %6570 = vrot.lane.b32.xlu0 %v582, 116
      %v6571 = vpop.permute.xlu0 %6570
      %6572 = vrot.lane.b32.xlu0 %v583, 116
      %v6573 = vpop.permute.xlu0 %6572
      %6574 = vrot.lane.b32.xlu0 %v584, 116
      %v6575 = vpop.permute.xlu0 %6574
      %6576 = vrot.lane.b32.xlu0 %v585, 116
      %v6577 = vpop.permute.xlu0 %6576
      %6578 = vrot.lane.b32.xlu0 %v586, 116
      %v6579 = vpop.permute.xlu0 %6578
      %6580 = vrot.lane.b32.xlu0 %v587, 116
      %v6581 = vpop.permute.xlu0 %6580
      %6582 = vrot.lane.b32.xlu0 %v588, 116
      %v6583 = vpop.permute.xlu0 %6582
      %6584 = vrot.lane.b32.xlu0 %v589, 116
      %v6585 = vpop.permute.xlu0 %6584
      %6586 = vrot.lane.b32.xlu0 %v590, 116
      %v6587 = vpop.permute.xlu0 %6586
      %6588 = vrot.lane.b32.xlu0 %v591, 116
      %v6589 = vpop.permute.xlu0 %6588
      %6590 = vrot.lane.b32.xlu0 %v592, 116
      %v6591 = vpop.permute.xlu0 %6590
      %6592 = vrot.lane.b32.xlu0 %v593, 116
      %v6593 = vpop.permute.xlu0 %6592
      %6594 = vrot.lane.b32.xlu0 %v594, 116
      %v6595 = vpop.permute.xlu0 %6594
      %6596 = vrot.lane.b32.xlu0 %v595, 116
      %v6597 = vpop.permute.xlu0 %6596
      %6598 = vrot.lane.b32.xlu0 %v596, 116
      %v6599 = vpop.permute.xlu0 %6598
      %6600 = vrot.lane.b32.xlu0 %v597, 116
      %v6601 = vpop.permute.xlu0 %6600
      %6602 = vrot.lane.b32.xlu0 %v598, 116
      %v6603 = vpop.permute.xlu0 %6602
      %6604 = vrot.lane.b32.xlu0 %v599, 116
      %v6605 = vpop.permute.xlu0 %6604
      %6606 = vrot.lane.b32.xlu0 %v600, 116
      %v6607 = vpop.permute.xlu0 %6606
      %6608 = vrot.lane.b32.xlu0 %v601, 116
      %v6609 = vpop.permute.xlu0 %6608
      %6610 = vrot.lane.b32.xlu0 %v602, 116
      %v6611 = vpop.permute.xlu0 %6610
      %6612 = vrot.lane.b32.xlu0 %v603, 116
      %v6613 = vpop.permute.xlu0 %6612
      %6614 = vrot.lane.b32.xlu0 %v604, 116
      %v6615 = vpop.permute.xlu0 %6614
      %6616 = vrot.lane.b32.xlu0 %v605, 116
      %v6617 = vpop.permute.xlu0 %6616
      %6618 = vrot.lane.b32.xlu0 %v606, 116
      %v6619 = vpop.permute.xlu0 %6618
      %6620 = vrot.lane.b32.xlu0 %v607, 116
      %v6621 = vpop.permute.xlu0 %6620
      %6622 = vrot.lane.b32.xlu0 %v608, 116
      %v6623 = vpop.permute.xlu0 %6622
      %6624 = vrot.lane.b32.xlu0 %v609, 116
      %v6625 = vpop.permute.xlu0 %6624
      %6626 = vrot.lane.b32.xlu0 %v610, 116
      %v6627 = vpop.permute.xlu0 %6626
      %6628 = vrot.lane.b32.xlu0 %v611, 116
      %v6629 = vpop.permute.xlu0 %6628
      %6630 = vrot.lane.b32.xlu0 %v612, 116
      %v6631 = vpop.permute.xlu0 %6630
      %6632 = vrot.lane.b32.xlu0 %v613, 116
      %v6633 = vpop.permute.xlu0 %6632
      %6634 = vrot.lane.b32.xlu0 %v614, 116
      %v6635 = vpop.permute.xlu0 %6634
      %6636 = vrot.lane.b32.xlu0 %v615, 116
      %v6637 = vpop.permute.xlu0 %6636
      %6638 = vrot.lane.b32.xlu0 %v616, 116
      %v6639 = vpop.permute.xlu0 %6638
      %6640 = vrot.lane.b32.xlu0 %v617, 116
      %v6641 = vpop.permute.xlu0 %6640
      %6642 = vrot.lane.b32.xlu0 %v618, 116
      %v6643 = vpop.permute.xlu0 %6642
      %6644 = vrot.lane.b32.xlu0 %v619, 116
      %v6645 = vpop.permute.xlu0 %6644
      %6646 = vrot.lane.b32.xlu0 %v620, 116
      %v6647 = vpop.permute.xlu0 %6646
      %6648 = vrot.lane.b32.xlu0 %v621, 116
      %v6649 = vpop.permute.xlu0 %6648
      %6650 = vrot.lane.b32.xlu0 %v622, 116
      %v6651 = vpop.permute.xlu0 %6650
      %6652 = vrot.lane.b32.xlu0 %v623, 116
      %v6653 = vpop.permute.xlu0 %6652
      %6654 = vrot.lane.b32.xlu0 %v624, 116
      %v6655 = vpop.permute.xlu0 %6654
      %6656 = vrot.lane.b32.xlu0 %v625, 116
      %v6657 = vpop.permute.xlu0 %6656
      %6658 = vrot.lane.b32.xlu0 %v626, 116
      %v6659 = vpop.permute.xlu0 %6658
      %6660 = vrot.lane.b32.xlu0 %v627, 116
      %v6661 = vpop.permute.xlu0 %6660
      %6662 = vrot.lane.b32.xlu0 %v628, 116
      %v6663 = vpop.permute.xlu0 %6662
      %6664 = vrot.lane.b32.xlu0 %v629, 116
      %v6665 = vpop.permute.xlu0 %6664
      %6666 = vrot.lane.b32.xlu0 %v630, 116
      %v6667 = vpop.permute.xlu0 %6666
      %6668 = vrot.lane.b32.xlu0 %v631, 116
      %v6669 = vpop.permute.xlu0 %6668
      %6670 = vrot.lane.b32.xlu0 %v632, 116
      %v6671 = vpop.permute.xlu0 %6670
      %6672 = vrot.lane.b32.xlu0 %v633, 116
      %v6673 = vpop.permute.xlu0 %6672
      %6674 = vrot.lane.b32.xlu0 %v634, 116
      %v6675 = vpop.permute.xlu0 %6674
      %6676 = vrot.lane.b32.xlu0 %v635, 116
      %v6677 = vpop.permute.xlu0 %6676
      %6678 = vrot.lane.b32.xlu0 %v636, 116
      %v6679 = vpop.permute.xlu0 %6678
      %6680 = vrot.lane.b32.xlu0 %v637, 116
      %v6681 = vpop.permute.xlu0 %6680
      %6682 = vrot.lane.b32.xlu0 %v638, 116
      %v6683 = vpop.permute.xlu0 %6682
      %6684 = vrot.lane.b32.xlu0 %v639, 116
      %v6685 = vpop.permute.xlu0 %6684
      %6686 = vrot.lane.b32.xlu0 %v640, 116
      %v6687 = vpop.permute.xlu0 %6686
      %6688 = vrot.lane.b32.xlu0 %v641, 116
      %v6689 = vpop.permute.xlu0 %6688
      %6690 = vrot.lane.b32.xlu0 %v642, 116
      %v6691 = vpop.permute.xlu0 %6690
      %6692 = vrot.lane.b32.xlu0 %v643, 116
      %v6693 = vpop.permute.xlu0 %6692
      %6694 = vrot.lane.b32.xlu0 %v644, 116
      %v6695 = vpop.permute.xlu0 %6694
      %6696 = vrot.lane.b32.xlu0 %v645, 116
      %v6697 = vpop.permute.xlu0 %6696
      %6698 = vrot.lane.b32.xlu0 %v646, 116
      %v6699 = vpop.permute.xlu0 %6698
      %6700 = vrot.lane.b32.xlu0 %v647, 116
      %v6701 = vpop.permute.xlu0 %6700
      %6702 = vrot.lane.b32.xlu0 %v648, 116
      %v6703 = vpop.permute.xlu0 %6702
      %6704 = vrot.lane.b32.xlu0 %v649, 116
      %v6705 = vpop.permute.xlu0 %6704
      %6706 = vrot.lane.b32.xlu0 %v650, 116
      %v6707 = vpop.permute.xlu0 %6706
      %6708 = vrot.lane.b32.xlu0 %v651, 116
      %v6709 = vpop.permute.xlu0 %6708
      %6710 = vrot.lane.b32.xlu0 %v652, 116
      %v6711 = vpop.permute.xlu0 %6710
      %6712 = vrot.lane.b32.xlu0 %v653, 116
      %v6713 = vpop.permute.xlu0 %6712
      %6714 = vrot.lane.b32.xlu0 %v654, 116
      %v6715 = vpop.permute.xlu0 %6714
      %6716 = vrot.lane.b32.xlu0 %v655, 116
      %v6717 = vpop.permute.xlu0 %6716
      %6718 = vrot.lane.b32.xlu0 %v656, 116
      %v6719 = vpop.permute.xlu0 %6718
      %6720 = vrot.lane.b32.xlu0 %v657, 116
      %v6721 = vpop.permute.xlu0 %6720
      %6722 = vrot.lane.b32.xlu0 %v658, 116
      %v6723 = vpop.permute.xlu0 %6722
      %6724 = vrot.lane.b32.xlu0 %v659, 116
      %v6725 = vpop.permute.xlu0 %6724
      %6726 = vrot.lane.b32.xlu0 %v660, 116
      %v6727 = vpop.permute.xlu0 %6726
      %6728 = vrot.lane.b32.xlu0 %v661, 116
      %v6729 = vpop.permute.xlu0 %6728
      %6730 = vrot.lane.b32.xlu0 %v662, 116
      %v6731 = vpop.permute.xlu0 %6730
      %6732 = vrot.lane.b32.xlu0 %v663, 116
      %v6733 = vpop.permute.xlu0 %6732
      %6734 = vrot.lane.b32.xlu0 %v664, 116
      %v6735 = vpop.permute.xlu0 %6734
      %6736 = vrot.lane.b32.xlu0 %v665, 116
      %v6737 = vpop.permute.xlu0 %6736
      %6738 = vrot.lane.b32.xlu0 %v666, 116
      %v6739 = vpop.permute.xlu0 %6738
      %6740 = vrot.lane.b32.xlu0 %v667, 116
      %v6741 = vpop.permute.xlu0 %6740
      %6742 = vrot.lane.b32.xlu0 %v668, 116
      %v6743 = vpop.permute.xlu0 %6742
      %6744 = vrot.lane.b32.xlu0 %v669, 116
      %v6745 = vpop.permute.xlu0 %6744
      %6746 = vrot.lane.b32.xlu0 %v670, 116
      %v6747 = vpop.permute.xlu0 %6746
      %6748 = vrot.lane.b32.xlu0 %v671, 116
      %v6749 = vpop.permute.xlu0 %6748
      %6750 = vrot.lane.b32.xlu0 %v672, 116
      %v6751 = vpop.permute.xlu0 %6750
      %6752 = vrot.lane.b32.xlu0 %v673, 116
      %v6753 = vpop.permute.xlu0 %6752
      %6754 = vrot.lane.b32.xlu0 %v674, 116
      %v6755 = vpop.permute.xlu0 %6754
      %6756 = vrot.lane.b32.xlu0 %v675, 116
      %v6757 = vpop.permute.xlu0 %6756
      %6758 = vrot.lane.b32.xlu0 %v676, 116
      %v6759 = vpop.permute.xlu0 %6758
      %6760 = vrot.lane.b32.xlu0 %v677, 116
      %v6761 = vpop.permute.xlu0 %6760
      %6762 = vrot.lane.b32.xlu0 %v678, 116
      %v6763 = vpop.permute.xlu0 %6762
      %6764 = vrot.lane.b32.xlu0 %v679, 116
      %v6765 = vpop.permute.xlu0 %6764
      %6766 = vrot.lane.b32.xlu0 %v680, 116
      %v6767 = vpop.permute.xlu0 %6766
      %6768 = vrot.lane.b32.xlu0 %v681, 116
      %v6769 = vpop.permute.xlu0 %6768
      %6770 = vrot.lane.b32.xlu0 %v682, 116
      %v6771 = vpop.permute.xlu0 %6770
      %6772 = vrot.lane.b32.xlu0 %v683, 116
      %v6773 = vpop.permute.xlu0 %6772
      %6774 = vrot.lane.b32.xlu0 %v684, 116
      %v6775 = vpop.permute.xlu0 %6774
      %6776 = vrot.lane.b32.xlu0 %v685, 116
      %v6777 = vpop.permute.xlu0 %6776
      %6778 = vrot.lane.b32.xlu0 %v686, 116
      %v6779 = vpop.permute.xlu0 %6778
      %6780 = vrot.lane.b32.xlu0 %v687, 116
      %v6781 = vpop.permute.xlu0 %6780
      %6782 = vrot.lane.b32.xlu0 %v688, 116
      %v6783 = vpop.permute.xlu0 %6782
      %6784 = vrot.lane.b32.xlu0 %v689, 116
      %v6785 = vpop.permute.xlu0 %6784
      %6786 = vrot.lane.b32.xlu0 %v690, 116
      %v6787 = vpop.permute.xlu0 %6786
      %6788 = vrot.lane.b32.xlu0 %v691, 116
      %v6789 = vpop.permute.xlu0 %6788
      %6790 = vrot.lane.b32.xlu0 %v692, 116
      %v6791 = vpop.permute.xlu0 %6790
      %6792 = vrot.lane.b32.xlu0 %v693, 116
      %v6793 = vpop.permute.xlu0 %6792
      %6794 = vrot.lane.b32.xlu0 %v694, 116
      %v6795 = vpop.permute.xlu0 %6794
      %6796 = vrot.lane.b32.xlu0 %v695, 116
      %v6797 = vpop.permute.xlu0 %6796
      %6798 = vrot.lane.b32.xlu0 %v696, 116
      %v6799 = vpop.permute.xlu0 %6798
      %6800 = vrot.lane.b32.xlu0 %v697, 116
      %v6801 = vpop.permute.xlu0 %6800
      %6802 = vrot.lane.b32.xlu0 %v698, 116
      %v6803 = vpop.permute.xlu0 %6802
      %6804 = vrot.lane.b32.xlu0 %v699, 116
      %v6805 = vpop.permute.xlu0 %6804
      %6806 = vrot.lane.b32.xlu0 %v700, 116
      %v6807 = vpop.permute.xlu0 %6806
      %6808 = vrot.lane.b32.xlu0 %v701, 116
      %v6809 = vpop.permute.xlu0 %6808
      %6810 = vrot.lane.b32.xlu0 %v702, 116
      %v6811 = vpop.permute.xlu0 %6810
      %6812 = vrot.lane.b32.xlu0 %v703, 116
      %v6813 = vpop.permute.xlu0 %6812
      %6814 = vrot.lane.b32.xlu0 %v704, 116
      %v6815 = vpop.permute.xlu0 %6814
      %6816 = vrot.lane.b32.xlu0 %v705, 116
      %v6817 = vpop.permute.xlu0 %6816
      %6818 = vrot.lane.b32.xlu0 %v706, 116
      %v6819 = vpop.permute.xlu0 %6818
      %6820 = vrot.lane.b32.xlu0 %v707, 116
      %v6821 = vpop.permute.xlu0 %6820
      %6822 = vrot.lane.b32.xlu0 %v708, 116
      %v6823 = vpop.permute.xlu0 %6822
      %6824 = vrot.lane.b32.xlu0 %v709, 116
      %v6825 = vpop.permute.xlu0 %6824
      %6826 = vrot.lane.b32.xlu0 %v710, 116
      %v6827 = vpop.permute.xlu0 %6826
      %6828 = vrot.lane.b32.xlu0 %v711, 116
      %v6829 = vpop.permute.xlu0 %6828
      %6830 = vrot.lane.b32.xlu0 %v712, 116
      %v6831 = vpop.permute.xlu0 %6830
      %6832 = vrot.lane.b32.xlu0 %v713, 116
      %v6833 = vpop.permute.xlu0 %6832
      %6834 = vrot.lane.b32.xlu0 %v714, 116
      %v6835 = vpop.permute.xlu0 %6834
      %6836 = vrot.lane.b32.xlu0 %v715, 116
      %v6837 = vpop.permute.xlu0 %6836
      %6838 = vrot.lane.b32.xlu0 %v716, 116
      %v6839 = vpop.permute.xlu0 %6838
      %6840 = vrot.lane.b32.xlu0 %v717, 116
      %v6841 = vpop.permute.xlu0 %6840
      %6842 = vrot.lane.b32.xlu0 %v718, 116
      %v6843 = vpop.permute.xlu0 %6842
      %6844 = vrot.lane.b32.xlu0 %v719, 116
      %v6845 = vpop.permute.xlu0 %6844
      %6846 = vrot.lane.b32.xlu0 %v720, 116
      %v6847 = vpop.permute.xlu0 %6846
      %6848 = vrot.lane.b32.xlu0 %v721, 116
      %v6849 = vpop.permute.xlu0 %6848
      %6850 = vrot.lane.b32.xlu0 %v722, 116
      %v6851 = vpop.permute.xlu0 %6850
      %6852 = vrot.lane.b32.xlu0 %v723, 116
      %v6853 = vpop.permute.xlu0 %6852
      %6854 = vrot.lane.b32.xlu0 %v724, 116
      %v6855 = vpop.permute.xlu0 %6854
      %6856 = vrot.lane.b32.xlu0 %v725, 116
      %v6857 = vpop.permute.xlu0 %6856
      %6858 = vrot.lane.b32.xlu0 %v726, 116
      %v6859 = vpop.permute.xlu0 %6858
      %6860 = vrot.lane.b32.xlu0 %v727, 116
      %v6861 = vpop.permute.xlu0 %6860
      %6862 = vrot.lane.b32.xlu0 %v728, 116
      %v6863 = vpop.permute.xlu0 %6862
      %6864 = vrot.lane.b32.xlu0 %v729, 116
      %v6865 = vpop.permute.xlu0 %6864
      %6866 = vrot.lane.b32.xlu0 %v730, 116
      %v6867 = vpop.permute.xlu0 %6866
      %6868 = vrot.lane.b32.xlu0 %v731, 116
      %v6869 = vpop.permute.xlu0 %6868
      %6870 = vrot.lane.b32.xlu0 %v732, 116
      %v6871 = vpop.permute.xlu0 %6870
      %6872 = vrot.lane.b32.xlu0 %v733, 116
      %v6873 = vpop.permute.xlu0 %6872
      %6874 = vrot.lane.b32.xlu0 %v734, 116
      %v6875 = vpop.permute.xlu0 %6874
      %6876 = vrot.lane.b32.xlu0 %v735, 116
      %v6877 = vpop.permute.xlu0 %6876
      %6878 = vrot.lane.b32.xlu0 %v736, 116
      %v6879 = vpop.permute.xlu0 %6878
      %6880 = vrot.lane.b32.xlu0 %v737, 116
      %v6881 = vpop.permute.xlu0 %6880
      %v7394 = vadd.f32 %v5346, %v5859
      %v7395 = vadd.f32 %v5347, %v5861
      %v7396 = vadd.f32 %v5348, %v5863
      %v7397 = vadd.f32 %v5349, %v5865
      %v7398 = vadd.f32 %v5350, %v5867
      %v7399 = vadd.f32 %v5351, %v5869
      %v7400 = vadd.f32 %v5352, %v5871
      %v7401 = vadd.f32 %v5353, %v5873
      %v7402 = vadd.f32 %v5354, %v5875
      %v7403 = vadd.f32 %v5355, %v5877
      %v7404 = vadd.f32 %v5356, %v5879
      %v7405 = vadd.f32 %v5357, %v5881
      %v7406 = vadd.f32 %v5358, %v5883
      %v7407 = vadd.f32 %v5359, %v5885
      %v7408 = vadd.f32 %v5360, %v5887
      %v7409 = vadd.f32 %v5361, %v5889
      %v7410 = vadd.f32 %v5362, %v5891
      %v7411 = vadd.f32 %v5363, %v5893
      %v7412 = vadd.f32 %v5364, %v5895
      %v7413 = vadd.f32 %v5365, %v5897
      %v7414 = vadd.f32 %v5366, %v5899
      %v7415 = vadd.f32 %v5367, %v5901
      %v7416 = vadd.f32 %v5368, %v5903
      %v7417 = vadd.f32 %v5369, %v5905
      %v7418 = vadd.f32 %v5370, %v5907
      %v7419 = vadd.f32 %v5371, %v5909
      %v7420 = vadd.f32 %v5372, %v5911
      %v7421 = vadd.f32 %v5373, %v5913
      %v7422 = vadd.f32 %v5374, %v5915
      %v7423 = vadd.f32 %v5375, %v5917
      %v7424 = vadd.f32 %v5376, %v5919
      %v7425 = vadd.f32 %v5377, %v5921
      %v7426 = vadd.f32 %v5378, %v5923
      %v7427 = vadd.f32 %v5379, %v5925
      %v7428 = vadd.f32 %v5380, %v5927
      %v7429 = vadd.f32 %v5381, %v5929
      %v7430 = vadd.f32 %v5382, %v5931
      %v7431 = vadd.f32 %v5383, %v5933
      %v7432 = vadd.f32 %v5384, %v5935
      %v7433 = vadd.f32 %v5385, %v5937
      %v7434 = vadd.f32 %v5386, %v5939
      %v7435 = vadd.f32 %v5387, %v5941
      %v7436 = vadd.f32 %v5388, %v5943
      %v7437 = vadd.f32 %v5389, %v5945
      %v7438 = vadd.f32 %v5390, %v5947
      %v7439 = vadd.f32 %v5391, %v5949
      %v7440 = vadd.f32 %v5392, %v5951
      %v7441 = vadd.f32 %v5393, %v5953
      %v7442 = vadd.f32 %v5394, %v5955
      %v7443 = vadd.f32 %v5395, %v5957
      %v7444 = vadd.f32 %v5396, %v5959
      %v7445 = vadd.f32 %v5397, %v5961
      %v7446 = vadd.f32 %v5398, %v5963
      %v7447 = vadd.f32 %v5399, %v5965
      %v7448 = vadd.f32 %v5400, %v5967
      %v7449 = vadd.f32 %v5401, %v5969
      %v7450 = vadd.f32 %v5402, %v5971
      %v7451 = vadd.f32 %v5403, %v5973
      %v7452 = vadd.f32 %v5404, %v5975
      %v7453 = vadd.f32 %v5405, %v5977
      %v7454 = vadd.f32 %v5406, %v5979
      %v7455 = vadd.f32 %v5407, %v5981
      %v7456 = vadd.f32 %v5408, %v5983
      %v7457 = vadd.f32 %v5409, %v5985
      %v7458 = vadd.f32 %v5410, %v5987
      %v7459 = vadd.f32 %v5411, %v5989
      %v7460 = vadd.f32 %v5412, %v5991
      %v7461 = vadd.f32 %v5413, %v5993
      %v7462 = vadd.f32 %v5414, %v5995
      %v7463 = vadd.f32 %v5415, %v5997
      %v7464 = vadd.f32 %v5416, %v5999
      %v7465 = vadd.f32 %v5417, %v6001
      %v7466 = vadd.f32 %v5418, %v6003
      %v7467 = vadd.f32 %v5419, %v6005
      %v7468 = vadd.f32 %v5420, %v6007
      %v7469 = vadd.f32 %v5421, %v6009
      %v7470 = vadd.f32 %v5422, %v6011
      %v7471 = vadd.f32 %v5423, %v6013
      %v7472 = vadd.f32 %v5424, %v6015
      %v7473 = vadd.f32 %v5425, %v6017
      %v7474 = vadd.f32 %v5426, %v6019
      %v7475 = vadd.f32 %v5427, %v6021
      %v7476 = vadd.f32 %v5428, %v6023
      %v7477 = vadd.f32 %v5429, %v6025
      %v7478 = vadd.f32 %v5430, %v6027
      %v7479 = vadd.f32 %v5431, %v6029
      %v7480 = vadd.f32 %v5432, %v6031
      %v7481 = vadd.f32 %v5433, %v6033
      %v7482 = vadd.f32 %v5434, %v6035
      %v7483 = vadd.f32 %v5435, %v6037
      %v7484 = vadd.f32 %v5436, %v6039
      %v7485 = vadd.f32 %v5437, %v6041
      %v7486 = vadd.f32 %v5438, %v6043
      %v7487 = vadd.f32 %v5439, %v6045
      %v7488 = vadd.f32 %v5440, %v6047
      %v7489 = vadd.f32 %v5441, %v6049
      %v7490 = vadd.f32 %v5442, %v6051
      %v7491 = vadd.f32 %v5443, %v6053
      %v7492 = vadd.f32 %v5444, %v6055
      %v7493 = vadd.f32 %v5445, %v6057
      %v7494 = vadd.f32 %v5446, %v6059
      %v7495 = vadd.f32 %v5447, %v6061
      %v7496 = vadd.f32 %v5448, %v6063
      %v7497 = vadd.f32 %v5449, %v6065
      %v7498 = vadd.f32 %v5450, %v6067
      %v7499 = vadd.f32 %v5451, %v6069
      %v7500 = vadd.f32 %v5452, %v6071
      %v7501 = vadd.f32 %v5453, %v6073
      %v7502 = vadd.f32 %v5454, %v6075
      %v7503 = vadd.f32 %v5455, %v6077
      %v7504 = vadd.f32 %v5456, %v6079
      %v7505 = vadd.f32 %v5457, %v6081
      %v7506 = vadd.f32 %v5458, %v6083
      %v7507 = vadd.f32 %v5459, %v6085
      %v7508 = vadd.f32 %v5460, %v6087
      %v7509 = vadd.f32 %v5461, %v6089
      %v7510 = vadd.f32 %v5462, %v6091
      %v7511 = vadd.f32 %v5463, %v6093
      %v7512 = vadd.f32 %v5464, %v6095
      %v7513 = vadd.f32 %v5465, %v6097
      %v7514 = vadd.f32 %v5466, %v6099
      %v7515 = vadd.f32 %v5467, %v6101
      %v7516 = vadd.f32 %v5468, %v6103
      %v7517 = vadd.f32 %v5469, %v6105
      %v7518 = vadd.f32 %v5470, %v6107
      %v7519 = vadd.f32 %v5471, %v6109
      %v7520 = vadd.f32 %v5472, %v6111
      %v7521 = vadd.f32 %v5473, %v6113
      %v7522 = vadd.f32 %v5474, %v6115
      %v7523 = vadd.f32 %v5475, %v6117
      %v7524 = vadd.f32 %v5476, %v6119
      %v7525 = vadd.f32 %v5477, %v6121
      %v7526 = vadd.f32 %v5478, %v6123
      %v7527 = vadd.f32 %v5479, %v6125
      %v7528 = vadd.f32 %v5480, %v6127
      %v7529 = vadd.f32 %v5481, %v6129
      %v7530 = vadd.f32 %v5482, %v6131
      %v7531 = vadd.f32 %v5483, %v6133
      %v7532 = vadd.f32 %v5484, %v6135
      %v7533 = vadd.f32 %v5485, %v6137
      %v7534 = vadd.f32 %v5486, %v6139
      %v7535 = vadd.f32 %v5487, %v6141
      %v7536 = vadd.f32 %v5488, %v6143
      %v7537 = vadd.f32 %v5489, %v6145
      %v7538 = vadd.f32 %v5490, %v6147
      %v7539 = vadd.f32 %v5491, %v6149
      %v7540 = vadd.f32 %v5492, %v6151
      %v7541 = vadd.f32 %v5493, %v6153
      %v7542 = vadd.f32 %v5494, %v6155
      %v7543 = vadd.f32 %v5495, %v6157
      %v7544 = vadd.f32 %v5496, %v6159
      %v7545 = vadd.f32 %v5497, %v6161
      %v7546 = vadd.f32 %v5498, %v6163
      %v7547 = vadd.f32 %v5499, %v6165
      %v7548 = vadd.f32 %v5500, %v6167
      %v7549 = vadd.f32 %v5501, %v6169
      %v7550 = vadd.f32 %v5502, %v6171
      %v7551 = vadd.f32 %v5503, %v6173
      %v7552 = vadd.f32 %v5504, %v6175
      %v7553 = vadd.f32 %v5505, %v6177
      %v7554 = vadd.f32 %v5506, %v6179
      %v7555 = vadd.f32 %v5507, %v6181
      %v7556 = vadd.f32 %v5508, %v6183
      %v7557 = vadd.f32 %v5509, %v6185
      %v7558 = vadd.f32 %v5510, %v6187
      %v7559 = vadd.f32 %v5511, %v6189
      %v7560 = vadd.f32 %v5512, %v6191
      %v7561 = vadd.f32 %v5513, %v6193
      %v7562 = vadd.f32 %v5514, %v6195
      %v7563 = vadd.f32 %v5515, %v6197
      %v7564 = vadd.f32 %v5516, %v6199
      %v7565 = vadd.f32 %v5517, %v6201
      %v7566 = vadd.f32 %v5518, %v6203
      %v7567 = vadd.f32 %v5519, %v6205
      %v7568 = vadd.f32 %v5520, %v6207
      %v7569 = vadd.f32 %v5521, %v6209
      %v7570 = vadd.f32 %v5522, %v6211
      %v7571 = vadd.f32 %v5523, %v6213
      %v7572 = vadd.f32 %v5524, %v6215
      %v7573 = vadd.f32 %v5525, %v6217
      %v7574 = vadd.f32 %v5526, %v6219
      %v7575 = vadd.f32 %v5527, %v6221
      %v7576 = vadd.f32 %v5528, %v6223
      %v7577 = vadd.f32 %v5529, %v6225
      %v7578 = vadd.f32 %v5530, %v6227
      %v7579 = vadd.f32 %v5531, %v6229
      %v7580 = vadd.f32 %v5532, %v6231
      %v7581 = vadd.f32 %v5533, %v6233
      %v7582 = vadd.f32 %v5534, %v6235
      %v7583 = vadd.f32 %v5535, %v6237
      %v7584 = vadd.f32 %v5536, %v6239
      %v7585 = vadd.f32 %v5537, %v6241
      %v7586 = vadd.f32 %v5538, %v6243
      %v7587 = vadd.f32 %v5539, %v6245
      %v7588 = vadd.f32 %v5540, %v6247
      %v7589 = vadd.f32 %v5541, %v6249
      %v7590 = vadd.f32 %v5542, %v6251
      %v7591 = vadd.f32 %v5543, %v6253
      %v7592 = vadd.f32 %v5544, %v6255
      %v7593 = vadd.f32 %v5545, %v6257
      %v7594 = vadd.f32 %v5546, %v6259
      %v7595 = vadd.f32 %v5547, %v6261
      %v7596 = vadd.f32 %v5548, %v6263
      %v7597 = vadd.f32 %v5549, %v6265
      %v7598 = vadd.f32 %v5550, %v6267
      %v7599 = vadd.f32 %v5551, %v6269
      %v7600 = vadd.f32 %v5552, %v6271
      %v7601 = vadd.f32 %v5553, %v6273
      %v7602 = vadd.f32 %v5554, %v6275
      %v7603 = vadd.f32 %v5555, %v6277
      %v7604 = vadd.f32 %v5556, %v6279
      %v7605 = vadd.f32 %v5557, %v6281
      %v7606 = vadd.f32 %v5558, %v6283
      %v7607 = vadd.f32 %v5559, %v6285
      %v7608 = vadd.f32 %v5560, %v6287
      %v7609 = vadd.f32 %v5561, %v6289
      %v7610 = vadd.f32 %v5562, %v6291
      %v7611 = vadd.f32 %v5563, %v6293
      %v7612 = vadd.f32 %v5564, %v6295
      %v7613 = vadd.f32 %v5565, %v6297
      %v7614 = vadd.f32 %v5566, %v6299
      %v7615 = vadd.f32 %v5567, %v6301
      %v7616 = vadd.f32 %v5568, %v6303
      %v7617 = vadd.f32 %v5569, %v6305
      %v7618 = vadd.f32 %v5570, %v6307
      %v7619 = vadd.f32 %v5571, %v6309
      %v7620 = vadd.f32 %v5572, %v6311
      %v7621 = vadd.f32 %v5573, %v6313
      %v7622 = vadd.f32 %v5574, %v6315
      %v7623 = vadd.f32 %v5575, %v6317
      %v7624 = vadd.f32 %v5576, %v6319
      %v7625 = vadd.f32 %v5577, %v6321
      %v7626 = vadd.f32 %v5578, %v6323
      %v7627 = vadd.f32 %v5579, %v6325
      %v7628 = vadd.f32 %v5580, %v6327
      %v7629 = vadd.f32 %v5581, %v6329
      %v7630 = vadd.f32 %v5582, %v6331
      %v7631 = vadd.f32 %v5583, %v6333
      %v7632 = vadd.f32 %v5584, %v6335
      %v7633 = vadd.f32 %v5585, %v6337
      %v7634 = vadd.f32 %v5586, %v6339
      %v7635 = vadd.f32 %v5587, %v6341
      %v7636 = vadd.f32 %v5588, %v6343
      %v7637 = vadd.f32 %v5589, %v6345
      %v7638 = vadd.f32 %v5590, %v6347
      %v7639 = vadd.f32 %v5591, %v6349
      %v7640 = vadd.f32 %v5592, %v6351
      %v7641 = vadd.f32 %v5593, %v6353
      %v7642 = vadd.f32 %v5594, %v6355
      %v7643 = vadd.f32 %v5595, %v6357
      %v7644 = vadd.f32 %v5596, %v6359
      %v7645 = vadd.f32 %v5597, %v6361
      %v7646 = vadd.f32 %v5598, %v6363
      %v7647 = vadd.f32 %v5599, %v6365
      %v7648 = vadd.f32 %v5600, %v6367
      %v7649 = vadd.f32 %v5601, %v6369
      %v7650 = vadd.f32 %v5602, %v6371
      %v7651 = vadd.f32 %v5603, %v6373
      %v7652 = vadd.f32 %v5604, %v6375
      %v7653 = vadd.f32 %v5605, %v6377
      %v7654 = vadd.f32 %v5606, %v6379
      %v7655 = vadd.f32 %v5607, %v6381
      %v7656 = vadd.f32 %v5608, %v6383
      %v7657 = vadd.f32 %v5609, %v6385
      %v7658 = vadd.f32 %v5610, %v6387
      %v7659 = vadd.f32 %v5611, %v6389
      %v7660 = vadd.f32 %v5612, %v6391
      %v7661 = vadd.f32 %v5613, %v6393
      %v7662 = vadd.f32 %v5614, %v6395
      %v7663 = vadd.f32 %v5615, %v6397
      %v7664 = vadd.f32 %v5616, %v6399
      %v7665 = vadd.f32 %v5617, %v6401
      %v7666 = vadd.f32 %v5618, %v6403
      %v7667 = vadd.f32 %v5619, %v6405
      %v7668 = vadd.f32 %v5620, %v6407
      %v7669 = vadd.f32 %v5621, %v6409
      %v7670 = vadd.f32 %v5622, %v6411
      %v7671 = vadd.f32 %v5623, %v6413
      %v7672 = vadd.f32 %v5624, %v6415
      %v7673 = vadd.f32 %v5625, %v6417
      %v7674 = vadd.f32 %v5626, %v6419
      %v7675 = vadd.f32 %v5627, %v6421
      %v7676 = vadd.f32 %v5628, %v6423
      %v7677 = vadd.f32 %v5629, %v6425
      %v7678 = vadd.f32 %v5630, %v6427
      %v7679 = vadd.f32 %v5631, %v6429
      %v7680 = vadd.f32 %v5632, %v6431
      %v7681 = vadd.f32 %v5633, %v6433
      %v7682 = vadd.f32 %v5634, %v6435
      %v7683 = vadd.f32 %v5635, %v6437
      %v7684 = vadd.f32 %v5636, %v6439
      %v7685 = vadd.f32 %v5637, %v6441
      %v7686 = vadd.f32 %v5638, %v6443
      %v7687 = vadd.f32 %v5639, %v6445
      %v7688 = vadd.f32 %v5640, %v6447
      %v7689 = vadd.f32 %v5641, %v6449
      %v7690 = vadd.f32 %v5642, %v6451
      %v7691 = vadd.f32 %v5643, %v6453
      %v7692 = vadd.f32 %v5644, %v6455
      %v7693 = vadd.f32 %v5645, %v6457
      %v7694 = vadd.f32 %v5646, %v6459
      %v7695 = vadd.f32 %v5647, %v6461
      %v7696 = vadd.f32 %v5648, %v6463
      %v7697 = vadd.f32 %v5649, %v6465
      %v7698 = vadd.f32 %v5650, %v6467
      %v7699 = vadd.f32 %v5651, %v6469
      %v7700 = vadd.f32 %v5652, %v6471
      %v7701 = vadd.f32 %v5653, %v6473
      %v7702 = vadd.f32 %v5654, %v6475
      %v7703 = vadd.f32 %v5655, %v6477
      %v7704 = vadd.f32 %v5656, %v6479
      %v7705 = vadd.f32 %v5657, %v6481
      %v7706 = vadd.f32 %v5658, %v6483
      %v7707 = vadd.f32 %v5659, %v6485
      %v7708 = vadd.f32 %v5660, %v6487
      %v7709 = vadd.f32 %v5661, %v6489
      %v7710 = vadd.f32 %v5662, %v6491
      %v7711 = vadd.f32 %v5663, %v6493
      %v7712 = vadd.f32 %v5664, %v6495
      %v7713 = vadd.f32 %v5665, %v6497
      %v7714 = vadd.f32 %v5666, %v6499
      %v7715 = vadd.f32 %v5667, %v6501
      %v7716 = vadd.f32 %v5668, %v6503
      %v7717 = vadd.f32 %v5669, %v6505
      %v7718 = vadd.f32 %v5670, %v6507
      %v7719 = vadd.f32 %v5671, %v6509
      %v7720 = vadd.f32 %v5672, %v6511
      %v7721 = vadd.f32 %v5673, %v6513
      %v7722 = vadd.f32 %v5674, %v6515
      %v7723 = vadd.f32 %v5675, %v6517
      %v7724 = vadd.f32 %v5676, %v6519
      %v7725 = vadd.f32 %v5677, %v6521
      %v7726 = vadd.f32 %v5678, %v6523
      %v7727 = vadd.f32 %v5679, %v6525
      %v7728 = vadd.f32 %v5680, %v6527
      %v7729 = vadd.f32 %v5681, %v6529
      %v7730 = vadd.f32 %v5682, %v6531
      %v7731 = vadd.f32 %v5683, %v6533
      %v7732 = vadd.f32 %v5684, %v6535
      %v7733 = vadd.f32 %v5685, %v6537
      %v7734 = vadd.f32 %v5686, %v6539
      %v7735 = vadd.f32 %v5687, %v6541
      %v7736 = vadd.f32 %v5688, %v6543
      %v7737 = vadd.f32 %v5689, %v6545
      %v7738 = vadd.f32 %v5690, %v6547
      %v7739 = vadd.f32 %v5691, %v6549
      %v7740 = vadd.f32 %v5692, %v6551
      %v7741 = vadd.f32 %v5693, %v6553
      %v7742 = vadd.f32 %v5694, %v6555
      %v7743 = vadd.f32 %v5695, %v6557
      %v7744 = vadd.f32 %v5696, %v6559
      %v7745 = vadd.f32 %v5697, %v6561
      %v7746 = vadd.f32 %v5698, %v6563
      %v7747 = vadd.f32 %v5699, %v6565
      %v7748 = vadd.f32 %v5700, %v6567
      %v7749 = vadd.f32 %v5701, %v6569
      %v7750 = vadd.f32 %v5702, %v6571
      %v7751 = vadd.f32 %v5703, %v6573
      %v7752 = vadd.f32 %v5704, %v6575
      %v7753 = vadd.f32 %v5705, %v6577
      %v7754 = vadd.f32 %v5706, %v6579
      %v7755 = vadd.f32 %v5707, %v6581
      %v7756 = vadd.f32 %v5708, %v6583
      %v7757 = vadd.f32 %v5709, %v6585
      %v7758 = vadd.f32 %v5710, %v6587
      %v7759 = vadd.f32 %v5711, %v6589
      %v7760 = vadd.f32 %v5712, %v6591
      %v7761 = vadd.f32 %v5713, %v6593
      %v7762 = vadd.f32 %v5714, %v6595
      %v7763 = vadd.f32 %v5715, %v6597
      %v7764 = vadd.f32 %v5716, %v6599
      %v7765 = vadd.f32 %v5717, %v6601
      %v7766 = vadd.f32 %v5718, %v6603
      %v7767 = vadd.f32 %v5719, %v6605
      %v7768 = vadd.f32 %v5720, %v6607
      %v7769 = vadd.f32 %v5721, %v6609
      %v7770 = vadd.f32 %v5722, %v6611
      %v7771 = vadd.f32 %v5723, %v6613
      %v7772 = vadd.f32 %v5724, %v6615
      %v7773 = vadd.f32 %v5725, %v6617
      %v7774 = vadd.f32 %v5726, %v6619
      %v7775 = vadd.f32 %v5727, %v6621
      %v7776 = vadd.f32 %v5728, %v6623
      %v7777 = vadd.f32 %v5729, %v6625
      %v7778 = vadd.f32 %v5730, %v6627
      %v7779 = vadd.f32 %v5731, %v6629
      %v7780 = vadd.f32 %v5732, %v6631
      %v7781 = vadd.f32 %v5733, %v6633
      %v7782 = vadd.f32 %v5734, %v6635
      %v7783 = vadd.f32 %v5735, %v6637
      %v7784 = vadd.f32 %v5736, %v6639
      %v7785 = vadd.f32 %v5737, %v6641
      %v7786 = vadd.f32 %v5738, %v6643
      %v7787 = vadd.f32 %v5739, %v6645
      %v7788 = vadd.f32 %v5740, %v6647
      %v7789 = vadd.f32 %v5741, %v6649
      %v7790 = vadd.f32 %v5742, %v6651
      %v7791 = vadd.f32 %v5743, %v6653
      %v7792 = vadd.f32 %v5744, %v6655
      %v7793 = vadd.f32 %v5745, %v6657
      %v7794 = vadd.f32 %v5746, %v6659
      %v7795 = vadd.f32 %v5747, %v6661
      %v7796 = vadd.f32 %v5748, %v6663
      %v7797 = vadd.f32 %v5749, %v6665
      %v7798 = vadd.f32 %v5750, %v6667
      %v7799 = vadd.f32 %v5751, %v6669
      %v7800 = vadd.f32 %v5752, %v6671
      %v7801 = vadd.f32 %v5753, %v6673
      %v7802 = vadd.f32 %v5754, %v6675
      %v7803 = vadd.f32 %v5755, %v6677
      %v7804 = vadd.f32 %v5756, %v6679
      %v7805 = vadd.f32 %v5757, %v6681
      %v7806 = vadd.f32 %v5758, %v6683
      %v7807 = vadd.f32 %v5759, %v6685
      %v7808 = vadd.f32 %v5760, %v6687
      %v7809 = vadd.f32 %v5761, %v6689
      %v7810 = vadd.f32 %v5762, %v6691
      %v7811 = vadd.f32 %v5763, %v6693
      %v7812 = vadd.f32 %v5764, %v6695
      %v7813 = vadd.f32 %v5765, %v6697
      %v7814 = vadd.f32 %v5766, %v6699
      %v7815 = vadd.f32 %v5767, %v6701
      %v7816 = vadd.f32 %v5768, %v6703
      %v7817 = vadd.f32 %v5769, %v6705
      %v7818 = vadd.f32 %v5770, %v6707
      %v7819 = vadd.f32 %v5771, %v6709
      %v7820 = vadd.f32 %v5772, %v6711
      %v7821 = vadd.f32 %v5773, %v6713
      %v7822 = vadd.f32 %v5774, %v6715
      %v7823 = vadd.f32 %v5775, %v6717
      %v7824 = vadd.f32 %v5776, %v6719
      %v7825 = vadd.f32 %v5777, %v6721
      %v7826 = vadd.f32 %v5778, %v6723
      %v7827 = vadd.f32 %v5779, %v6725
      %v7828 = vadd.f32 %v5780, %v6727
      %v7829 = vadd.f32 %v5781, %v6729
      %v7830 = vadd.f32 %v5782, %v6731
      %v7831 = vadd.f32 %v5783, %v6733
      %v7832 = vadd.f32 %v5784, %v6735
      %v7833 = vadd.f32 %v5785, %v6737
      %v7834 = vadd.f32 %v5786, %v6739
      %v7835 = vadd.f32 %v5787, %v6741
      %v7836 = vadd.f32 %v5788, %v6743
      %v7837 = vadd.f32 %v5789, %v6745
      %v7838 = vadd.f32 %v5790, %v6747
      %v7839 = vadd.f32 %v5791, %v6749
      %v7840 = vadd.f32 %v5792, %v6751
      %v7841 = vadd.f32 %v5793, %v6753
      %v7842 = vadd.f32 %v5794, %v6755
      %v7843 = vadd.f32 %v5795, %v6757
      %v7844 = vadd.f32 %v5796, %v6759
      %v7845 = vadd.f32 %v5797, %v6761
      %v7846 = vadd.f32 %v5798, %v6763
      %v7847 = vadd.f32 %v5799, %v6765
      %v7848 = vadd.f32 %v5800, %v6767
      %v7849 = vadd.f32 %v5801, %v6769
      %v7850 = vadd.f32 %v5802, %v6771
      %v7851 = vadd.f32 %v5803, %v6773
      %v7852 = vadd.f32 %v5804, %v6775
      %v7853 = vadd.f32 %v5805, %v6777
      %v7854 = vadd.f32 %v5806, %v6779
      %v7855 = vadd.f32 %v5807, %v6781
      %v7856 = vadd.f32 %v5808, %v6783
      %v7857 = vadd.f32 %v5809, %v6785
      %v7858 = vadd.f32 %v5810, %v6787
      %v7859 = vadd.f32 %v5811, %v6789
      %v7860 = vadd.f32 %v5812, %v6791
      %v7861 = vadd.f32 %v5813, %v6793
      %v7862 = vadd.f32 %v5814, %v6795
      %v7863 = vadd.f32 %v5815, %v6797
      %v7864 = vadd.f32 %v5816, %v6799
      %v7865 = vadd.f32 %v5817, %v6801
      %v7866 = vadd.f32 %v5818, %v6803
      %v7867 = vadd.f32 %v5819, %v6805
      %v7868 = vadd.f32 %v5820, %v6807
      %v7869 = vadd.f32 %v5821, %v6809
      %v7870 = vadd.f32 %v5822, %v6811
      %v7871 = vadd.f32 %v5823, %v6813
      %v7872 = vadd.f32 %v5824, %v6815
      %v7873 = vadd.f32 %v5825, %v6817
      %v7874 = vadd.f32 %v5826, %v6819
      %v7875 = vadd.f32 %v5827, %v6821
      %v7876 = vadd.f32 %v5828, %v6823
      %v7877 = vadd.f32 %v5829, %v6825
      %v7878 = vadd.f32 %v5830, %v6827
      %v7879 = vadd.f32 %v5831, %v6829
      %v7880 = vadd.f32 %v5832, %v6831
      %v7881 = vadd.f32 %v5833, %v6833
      %v7882 = vadd.f32 %v5834, %v6835
      %v7883 = vadd.f32 %v5835, %v6837
      %v7884 = vadd.f32 %v5836, %v6839
      %v7885 = vadd.f32 %v5837, %v6841
      %v7886 = vadd.f32 %v5838, %v6843
      %v7887 = vadd.f32 %v5839, %v6845
      %v7888 = vadd.f32 %v5840, %v6847
      %v7889 = vadd.f32 %v5841, %v6849
      %v7890 = vadd.f32 %v5842, %v6851
      %v7891 = vadd.f32 %v5843, %v6853
      %v7892 = vadd.f32 %v5844, %v6855
      %v7893 = vadd.f32 %v5845, %v6857
      %v7894 = vadd.f32 %v5846, %v6859
      %v7895 = vadd.f32 %v5847, %v6861
      %v7896 = vadd.f32 %v5848, %v6863
      %v7897 = vadd.f32 %v5849, %v6865
      %v7898 = vadd.f32 %v5850, %v6867
      %v7899 = vadd.f32 %v5851, %v6869
      %v7900 = vadd.f32 %v5852, %v6871
      %v7901 = vadd.f32 %v5853, %v6873
      %v7902 = vadd.f32 %v5854, %v6875
      %v7903 = vadd.f32 %v5855, %v6877
      %v7904 = vadd.f32 %v5856, %v6879
      %v7905 = vadd.f32 %v5857, %v6881
      %vm7906 = vcmask 31744
      %v7907 = vsel %vm7906, %v7394, 0.0
      %v7908 = vsel %vm7906, %v7398, 0.0
      %v7909 = vadd.f32 %v7907, %v7908
      %v7910 = vsel %vm7906, %v7402, 0.0
      %v7911 = vadd.f32 %v7909, %v7910
      %v7912 = vsel %vm7906, %v7406, 0.0
      %v7913 = vadd.f32 %v7911, %v7912
      %v7914 = vsel %vm7906, %v7395, 0.0
      %v7915 = vsel %vm7906, %v7399, 0.0
      %v7916 = vadd.f32 %v7914, %v7915
      %v7917 = vsel %vm7906, %v7403, 0.0
      %v7918 = vadd.f32 %v7916, %v7917
      %v7919 = vsel %vm7906, %v7407, 0.0
      %v7920 = vadd.f32 %v7918, %v7919
      %v7921 = vsel %vm7906, %v7396, 0.0
      %v7922 = vsel %vm7906, %v7400, 0.0
      %v7923 = vadd.f32 %v7921, %v7922
      %v7924 = vsel %vm7906, %v7404, 0.0
      %v7925 = vadd.f32 %v7923, %v7924
      %v7926 = vsel %vm7906, %v7408, 0.0
      %v7927 = vadd.f32 %v7925, %v7926
      %v7928 = vsel %vm7906, %v7397, 0.0
      %v7929 = vsel %vm7906, %v7401, 0.0
      %v7930 = vadd.f32 %v7928, %v7929
      %v7931 = vsel %vm7906, %v7405, 0.0
      %v7932 = vadd.f32 %v7930, %v7931
      %v7933 = vsel %vm7906, %v7409, 0.0
      %v7934 = vadd.f32 %v7932, %v7933
      %v7935 = vsel %vm7906, %v7410, 0.0
      %v7936 = vsel %vm7906, %v7414, 0.0
      %v7937 = vadd.f32 %v7935, %v7936
      %v7938 = vsel %vm7906, %v7418, 0.0
      %v7939 = vadd.f32 %v7937, %v7938
      %v7940 = vsel %vm7906, %v7422, 0.0
      %v7941 = vadd.f32 %v7939, %v7940
      %v7942 = vsel %vm7906, %v7411, 0.0
      %v7943 = vsel %vm7906, %v7415, 0.0
      %v7944 = vadd.f32 %v7942, %v7943
      %v7945 = vsel %vm7906, %v7419, 0.0
      %v7946 = vadd.f32 %v7944, %v7945
      %v7947 = vsel %vm7906, %v7423, 0.0
      %v7948 = vadd.f32 %v7946, %v7947
      %v7949 = vsel %vm7906, %v7412, 0.0
      %v7950 = vsel %vm7906, %v7416, 0.0
      %v7951 = vadd.f32 %v7949, %v7950
      %v7952 = vsel %vm7906, %v7420, 0.0
      %v7953 = vadd.f32 %v7951, %v7952
      %v7954 = vsel %vm7906, %v7424, 0.0
      %v7955 = vadd.f32 %v7953, %v7954
      %v7956 = vsel %vm7906, %v7413, 0.0
      %v7957 = vsel %vm7906, %v7417, 0.0
      %v7958 = vadd.f32 %v7956, %v7957
      %v7959 = vsel %vm7906, %v7421, 0.0
      %v7960 = vadd.f32 %v7958, %v7959
      %v7961 = vsel %vm7906, %v7425, 0.0
      %v7962 = vadd.f32 %v7960, %v7961
      %v7963 = vsel %vm7906, %v7426, 0.0
      %v7964 = vsel %vm7906, %v7430, 0.0
      %v7965 = vadd.f32 %v7963, %v7964
      %v7966 = vsel %vm7906, %v7434, 0.0
      %v7967 = vadd.f32 %v7965, %v7966
      %v7968 = vsel %vm7906, %v7438, 0.0
      %v7969 = vadd.f32 %v7967, %v7968
      %v7970 = vsel %vm7906, %v7427, 0.0
      %v7971 = vsel %vm7906, %v7431, 0.0
      %v7972 = vadd.f32 %v7970, %v7971
      %v7973 = vsel %vm7906, %v7435, 0.0
      %v7974 = vadd.f32 %v7972, %v7973
      %v7975 = vsel %vm7906, %v7439, 0.0
      %v7976 = vadd.f32 %v7974, %v7975
      %v7977 = vsel %vm7906, %v7428, 0.0
      %v7978 = vsel %vm7906, %v7432, 0.0
      %v7979 = vadd.f32 %v7977, %v7978
      %v7980 = vsel %vm7906, %v7436, 0.0
      %v7981 = vadd.f32 %v7979, %v7980
      %v7982 = vsel %vm7906, %v7440, 0.0
      %v7983 = vadd.f32 %v7981, %v7982
      %v7984 = vsel %vm7906, %v7429, 0.0
      %v7985 = vsel %vm7906, %v7433, 0.0
      %v7986 = vadd.f32 %v7984, %v7985
      %v7987 = vsel %vm7906, %v7437, 0.0
      %v7988 = vadd.f32 %v7986, %v7987
      %v7989 = vsel %vm7906, %v7441, 0.0
      %v7990 = vadd.f32 %v7988, %v7989
      %v7991 = vsel %vm7906, %v7442, 0.0
      %v7992 = vsel %vm7906, %v7446, 0.0
      %v7993 = vadd.f32 %v7991, %v7992
      %v7994 = vsel %vm7906, %v7450, 0.0
      %v7995 = vadd.f32 %v7993, %v7994
      %v7996 = vsel %vm7906, %v7454, 0.0
      %v7997 = vadd.f32 %v7995, %v7996
      %v7998 = vsel %vm7906, %v7443, 0.0
      %v7999 = vsel %vm7906, %v7447, 0.0
      %v8000 = vadd.f32 %v7998, %v7999
      %v8001 = vsel %vm7906, %v7451, 0.0
      %v8002 = vadd.f32 %v8000, %v8001
      %v8003 = vsel %vm7906, %v7455, 0.0
      %v8004 = vadd.f32 %v8002, %v8003
      %v8005 = vsel %vm7906, %v7444, 0.0
      %v8006 = vsel %vm7906, %v7448, 0.0
      %v8007 = vadd.f32 %v8005, %v8006
      %v8008 = vsel %vm7906, %v7452, 0.0
      %v8009 = vadd.f32 %v8007, %v8008
      %v8010 = vsel %vm7906, %v7456, 0.0
      %v8011 = vadd.f32 %v8009, %v8010
      %v8012 = vsel %vm7906, %v7445, 0.0
      %v8013 = vsel %vm7906, %v7449, 0.0
      %v8014 = vadd.f32 %v8012, %v8013
      %v8015 = vsel %vm7906, %v7453, 0.0
      %v8016 = vadd.f32 %v8014, %v8015
      %v8017 = vsel %vm7906, %v7457, 0.0
      %v8018 = vadd.f32 %v8016, %v8017
      %v8019 = vsel %vm7906, %v7458, 0.0
      %v8020 = vsel %vm7906, %v7462, 0.0
      %v8021 = vadd.f32 %v8019, %v8020
      %v8022 = vsel %vm7906, %v7466, 0.0
      %v8023 = vadd.f32 %v8021, %v8022
      %v8024 = vsel %vm7906, %v7470, 0.0
      %v8025 = vadd.f32 %v8023, %v8024
      %v8026 = vsel %vm7906, %v7459, 0.0
      %v8027 = vsel %vm7906, %v7463, 0.0
      %v8028 = vadd.f32 %v8026, %v8027
      %v8029 = vsel %vm7906, %v7467, 0.0
      %v8030 = vadd.f32 %v8028, %v8029
      %v8031 = vsel %vm7906, %v7471, 0.0
      %v8032 = vadd.f32 %v8030, %v8031
      %v8033 = vsel %vm7906, %v7460, 0.0
      %v8034 = vsel %vm7906, %v7464, 0.0
      %v8035 = vadd.f32 %v8033, %v8034
      %v8036 = vsel %vm7906, %v7468, 0.0
      %v8037 = vadd.f32 %v8035, %v8036
      %v8038 = vsel %vm7906, %v7472, 0.0
      %v8039 = vadd.f32 %v8037, %v8038
      %v8040 = vsel %vm7906, %v7461, 0.0
      %v8041 = vsel %vm7906, %v7465, 0.0
      %v8042 = vadd.f32 %v8040, %v8041
      %v8043 = vsel %vm7906, %v7469, 0.0
      %v8044 = vadd.f32 %v8042, %v8043
      %v8045 = vsel %vm7906, %v7473, 0.0
      %v8046 = vadd.f32 %v8044, %v8045
      %v8047 = vsel %vm7906, %v7474, 0.0
      %v8048 = vsel %vm7906, %v7478, 0.0
      %v8049 = vadd.f32 %v8047, %v8048
      %v8050 = vsel %vm7906, %v7482, 0.0
      %v8051 = vadd.f32 %v8049, %v8050
      %v8052 = vsel %vm7906, %v7486, 0.0
      %v8053 = vadd.f32 %v8051, %v8052
      %v8054 = vsel %vm7906, %v7475, 0.0
      %v8055 = vsel %vm7906, %v7479, 0.0
      %v8056 = vadd.f32 %v8054, %v8055
      %v8057 = vsel %vm7906, %v7483, 0.0
      %v8058 = vadd.f32 %v8056, %v8057
      %v8059 = vsel %vm7906, %v7487, 0.0
      %v8060 = vadd.f32 %v8058, %v8059
      %v8061 = vsel %vm7906, %v7476, 0.0
      %v8062 = vsel %vm7906, %v7480, 0.0
      %v8063 = vadd.f32 %v8061, %v8062
      %v8064 = vsel %vm7906, %v7484, 0.0
      %v8065 = vadd.f32 %v8063, %v8064
      %v8066 = vsel %vm7906, %v7488, 0.0
      %v8067 = vadd.f32 %v8065, %v8066
      %v8068 = vsel %vm7906, %v7477, 0.0
      %v8069 = vsel %vm7906, %v7481, 0.0
      %v8070 = vadd.f32 %v8068, %v8069
      %v8071 = vsel %vm7906, %v7485, 0.0
      %v8072 = vadd.f32 %v8070, %v8071
      %v8073 = vsel %vm7906, %v7489, 0.0
      %v8074 = vadd.f32 %v8072, %v8073
      %v8075 = vsel %vm7906, %v7490, 0.0
      %v8076 = vsel %vm7906, %v7494, 0.0
      %v8077 = vadd.f32 %v8075, %v8076
      %v8078 = vsel %vm7906, %v7498, 0.0
      %v8079 = vadd.f32 %v8077, %v8078
      %v8080 = vsel %vm7906, %v7502, 0.0
      %v8081 = vadd.f32 %v8079, %v8080
      %v8082 = vsel %vm7906, %v7491, 0.0
      %v8083 = vsel %vm7906, %v7495, 0.0
      %v8084 = vadd.f32 %v8082, %v8083
      %v8085 = vsel %vm7906, %v7499, 0.0
      %v8086 = vadd.f32 %v8084, %v8085
      %v8087 = vsel %vm7906, %v7503, 0.0
      %v8088 = vadd.f32 %v8086, %v8087
      %v8089 = vsel %vm7906, %v7492, 0.0
      %v8090 = vsel %vm7906, %v7496, 0.0
      %v8091 = vadd.f32 %v8089, %v8090
      %v8092 = vsel %vm7906, %v7500, 0.0
      %v8093 = vadd.f32 %v8091, %v8092
      %v8094 = vsel %vm7906, %v7504, 0.0
      %v8095 = vadd.f32 %v8093, %v8094
      %v8096 = vsel %vm7906, %v7493, 0.0
      %v8097 = vsel %vm7906, %v7497, 0.0
      %v8098 = vadd.f32 %v8096, %v8097
      %v8099 = vsel %vm7906, %v7501, 0.0
      %v8100 = vadd.f32 %v8098, %v8099
      %v8101 = vsel %vm7906, %v7505, 0.0
      %v8102 = vadd.f32 %v8100, %v8101
      %v8103 = vsel %vm7906, %v7506, 0.0
      %v8104 = vsel %vm7906, %v7510, 0.0
      %v8105 = vadd.f32 %v8103, %v8104
      %v8106 = vsel %vm7906, %v7514, 0.0
      %v8107 = vadd.f32 %v8105, %v8106
      %v8108 = vsel %vm7906, %v7518, 0.0
      %v8109 = vadd.f32 %v8107, %v8108
      %v8110 = vsel %vm7906, %v7507, 0.0
      %v8111 = vsel %vm7906, %v7511, 0.0
      %v8112 = vadd.f32 %v8110, %v8111
      %v8113 = vsel %vm7906, %v7515, 0.0
      %v8114 = vadd.f32 %v8112, %v8113
      %v8115 = vsel %vm7906, %v7519, 0.0
      %v8116 = vadd.f32 %v8114, %v8115
      %v8117 = vsel %vm7906, %v7508, 0.0
      %v8118 = vsel %vm7906, %v7512, 0.0
      %v8119 = vadd.f32 %v8117, %v8118
      %v8120 = vsel %vm7906, %v7516, 0.0
      %v8121 = vadd.f32 %v8119, %v8120
      %v8122 = vsel %vm7906, %v7520, 0.0
      %v8123 = vadd.f32 %v8121, %v8122
      %v8124 = vsel %vm7906, %v7509, 0.0
      %v8125 = vsel %vm7906, %v7513, 0.0
      %v8126 = vadd.f32 %v8124, %v8125
      %v8127 = vsel %vm7906, %v7517, 0.0
      %v8128 = vadd.f32 %v8126, %v8127
      %v8129 = vsel %vm7906, %v7521, 0.0
      %v8130 = vadd.f32 %v8128, %v8129
      %v8131 = vsel %vm7906, %v7522, 0.0
      %v8132 = vsel %vm7906, %v7526, 0.0
      %v8133 = vadd.f32 %v8131, %v8132
      %v8134 = vsel %vm7906, %v7530, 0.0
      %v8135 = vadd.f32 %v8133, %v8134
      %v8136 = vsel %vm7906, %v7534, 0.0
      %v8137 = vadd.f32 %v8135, %v8136
      %v8138 = vsel %vm7906, %v7523, 0.0
      %v8139 = vsel %vm7906, %v7527, 0.0
      %v8140 = vadd.f32 %v8138, %v8139
      %v8141 = vsel %vm7906, %v7531, 0.0
      %v8142 = vadd.f32 %v8140, %v8141
      %v8143 = vsel %vm7906, %v7535, 0.0
      %v8144 = vadd.f32 %v8142, %v8143
      %v8145 = vsel %vm7906, %v7524, 0.0
      %v8146 = vsel %vm7906, %v7528, 0.0
      %v8147 = vadd.f32 %v8145, %v8146
      %v8148 = vsel %vm7906, %v7532, 0.0
      %v8149 = vadd.f32 %v8147, %v8148
      %v8150 = vsel %vm7906, %v7536, 0.0
      %v8151 = vadd.f32 %v8149, %v8150
      %v8152 = vsel %vm7906, %v7525, 0.0
      %v8153 = vsel %vm7906, %v7529, 0.0
      %v8154 = vadd.f32 %v8152, %v8153
      %v8155 = vsel %vm7906, %v7533, 0.0
      %v8156 = vadd.f32 %v8154, %v8155
      %v8157 = vsel %vm7906, %v7537, 0.0
      %v8158 = vadd.f32 %v8156, %v8157
      %v8159 = vsel %vm7906, %v7538, 0.0
      %v8160 = vsel %vm7906, %v7542, 0.0
      %v8161 = vadd.f32 %v8159, %v8160
      %v8162 = vsel %vm7906, %v7546, 0.0
      %v8163 = vadd.f32 %v8161, %v8162
      %v8164 = vsel %vm7906, %v7550, 0.0
      %v8165 = vadd.f32 %v8163, %v8164
      %v8166 = vsel %vm7906, %v7539, 0.0
      %v8167 = vsel %vm7906, %v7543, 0.0
      %v8168 = vadd.f32 %v8166, %v8167
      %v8169 = vsel %vm7906, %v7547, 0.0
      %v8170 = vadd.f32 %v8168, %v8169
      %v8171 = vsel %vm7906, %v7551, 0.0
      %v8172 = vadd.f32 %v8170, %v8171
      %v8173 = vsel %vm7906, %v7540, 0.0
      %v8174 = vsel %vm7906, %v7544, 0.0
      %v8175 = vadd.f32 %v8173, %v8174
      %v8176 = vsel %vm7906, %v7548, 0.0
      %v8177 = vadd.f32 %v8175, %v8176
      %v8178 = vsel %vm7906, %v7552, 0.0
      %v8179 = vadd.f32 %v8177, %v8178
      %v8180 = vsel %vm7906, %v7541, 0.0
      %v8181 = vsel %vm7906, %v7545, 0.0
      %v8182 = vadd.f32 %v8180, %v8181
      %v8183 = vsel %vm7906, %v7549, 0.0
      %v8184 = vadd.f32 %v8182, %v8183
      %v8185 = vsel %vm7906, %v7553, 0.0
      %v8186 = vadd.f32 %v8184, %v8185
      %v8187 = vsel %vm7906, %v7554, 0.0
      %v8188 = vsel %vm7906, %v7558, 0.0
      %v8189 = vadd.f32 %v8187, %v8188
      %v8190 = vsel %vm7906, %v7562, 0.0
      %v8191 = vadd.f32 %v8189, %v8190
      %v8192 = vsel %vm7906, %v7566, 0.0
      %v8193 = vadd.f32 %v8191, %v8192
      %v8194 = vsel %vm7906, %v7555, 0.0
      %v8195 = vsel %vm7906, %v7559, 0.0
      %v8196 = vadd.f32 %v8194, %v8195
      %v8197 = vsel %vm7906, %v7563, 0.0
      %v8198 = vadd.f32 %v8196, %v8197
      %v8199 = vsel %vm7906, %v7567, 0.0
      %v8200 = vadd.f32 %v8198, %v8199
      %v8201 = vsel %vm7906, %v7556, 0.0
      %v8202 = vsel %vm7906, %v7560, 0.0
      %v8203 = vadd.f32 %v8201, %v8202
      %v8204 = vsel %vm7906, %v7564, 0.0
      %v8205 = vadd.f32 %v8203, %v8204
      %v8206 = vsel %vm7906, %v7568, 0.0
      %v8207 = vadd.f32 %v8205, %v8206
      %v8208 = vsel %vm7906, %v7557, 0.0
      %v8209 = vsel %vm7906, %v7561, 0.0
      %v8210 = vadd.f32 %v8208, %v8209
      %v8211 = vsel %vm7906, %v7565, 0.0
      %v8212 = vadd.f32 %v8210, %v8211
      %v8213 = vsel %vm7906, %v7569, 0.0
      %v8214 = vadd.f32 %v8212, %v8213
      %v8215 = vsel %vm7906, %v7570, 0.0
      %v8216 = vsel %vm7906, %v7574, 0.0
      %v8217 = vadd.f32 %v8215, %v8216
      %v8218 = vsel %vm7906, %v7578, 0.0
      %v8219 = vadd.f32 %v8217, %v8218
      %v8220 = vsel %vm7906, %v7582, 0.0
      %v8221 = vadd.f32 %v8219, %v8220
      %v8222 = vsel %vm7906, %v7571, 0.0
      %v8223 = vsel %vm7906, %v7575, 0.0
      %v8224 = vadd.f32 %v8222, %v8223
      %v8225 = vsel %vm7906, %v7579, 0.0
      %v8226 = vadd.f32 %v8224, %v8225
      %v8227 = vsel %vm7906, %v7583, 0.0
      %v8228 = vadd.f32 %v8226, %v8227
      %v8229 = vsel %vm7906, %v7572, 0.0
      %v8230 = vsel %vm7906, %v7576, 0.0
      %v8231 = vadd.f32 %v8229, %v8230
      %v8232 = vsel %vm7906, %v7580, 0.0
      %v8233 = vadd.f32 %v8231, %v8232
      %v8234 = vsel %vm7906, %v7584, 0.0
      %v8235 = vadd.f32 %v8233, %v8234
      %v8236 = vsel %vm7906, %v7573, 0.0
      %v8237 = vsel %vm7906, %v7577, 0.0
      %v8238 = vadd.f32 %v8236, %v8237
      %v8239 = vsel %vm7906, %v7581, 0.0
      %v8240 = vadd.f32 %v8238, %v8239
      %v8241 = vsel %vm7906, %v7585, 0.0
      %v8242 = vadd.f32 %v8240, %v8241
      %v8243 = vsel %vm7906, %v7586, 0.0
      %v8244 = vsel %vm7906, %v7590, 0.0
      %v8245 = vadd.f32 %v8243, %v8244
      %v8246 = vsel %vm7906, %v7594, 0.0
      %v8247 = vadd.f32 %v8245, %v8246
      %v8248 = vsel %vm7906, %v7598, 0.0
      %v8249 = vadd.f32 %v8247, %v8248
      %v8250 = vsel %vm7906, %v7587, 0.0
      %v8251 = vsel %vm7906, %v7591, 0.0
      %v8252 = vadd.f32 %v8250, %v8251
      %v8253 = vsel %vm7906, %v7595, 0.0
      %v8254 = vadd.f32 %v8252, %v8253
      %v8255 = vsel %vm7906, %v7599, 0.0
      %v8256 = vadd.f32 %v8254, %v8255
      %v8257 = vsel %vm7906, %v7588, 0.0
      %v8258 = vsel %vm7906, %v7592, 0.0
      %v8259 = vadd.f32 %v8257, %v8258
      %v8260 = vsel %vm7906, %v7596, 0.0
      %v8261 = vadd.f32 %v8259, %v8260
      %v8262 = vsel %vm7906, %v7600, 0.0
      %v8263 = vadd.f32 %v8261, %v8262
      %v8264 = vsel %vm7906, %v7589, 0.0
      %v8265 = vsel %vm7906, %v7593, 0.0
      %v8266 = vadd.f32 %v8264, %v8265
      %v8267 = vsel %vm7906, %v7597, 0.0
      %v8268 = vadd.f32 %v8266, %v8267
      %v8269 = vsel %vm7906, %v7601, 0.0
      %v8270 = vadd.f32 %v8268, %v8269
      %v8271 = vsel %vm7906, %v7602, 0.0
      %v8272 = vsel %vm7906, %v7606, 0.0
      %v8273 = vadd.f32 %v8271, %v8272
      %v8274 = vsel %vm7906, %v7610, 0.0
      %v8275 = vadd.f32 %v8273, %v8274
      %v8276 = vsel %vm7906, %v7614, 0.0
      %v8277 = vadd.f32 %v8275, %v8276
      %v8278 = vsel %vm7906, %v7603, 0.0
      %v8279 = vsel %vm7906, %v7607, 0.0
      %v8280 = vadd.f32 %v8278, %v8279
      %v8281 = vsel %vm7906, %v7611, 0.0
      %v8282 = vadd.f32 %v8280, %v8281
      %v8283 = vsel %vm7906, %v7615, 0.0
      %v8284 = vadd.f32 %v8282, %v8283
      %v8285 = vsel %vm7906, %v7604, 0.0
      %v8286 = vsel %vm7906, %v7608, 0.0
      %v8287 = vadd.f32 %v8285, %v8286
      %v8288 = vsel %vm7906, %v7612, 0.0
      %v8289 = vadd.f32 %v8287, %v8288
      %v8290 = vsel %vm7906, %v7616, 0.0
      %v8291 = vadd.f32 %v8289, %v8290
      %v8292 = vsel %vm7906, %v7605, 0.0
      %v8293 = vsel %vm7906, %v7609, 0.0
      %v8294 = vadd.f32 %v8292, %v8293
      %v8295 = vsel %vm7906, %v7613, 0.0
      %v8296 = vadd.f32 %v8294, %v8295
      %v8297 = vsel %vm7906, %v7617, 0.0
      %v8298 = vadd.f32 %v8296, %v8297
      %v8299 = vsel %vm7906, %v7618, 0.0
      %v8300 = vsel %vm7906, %v7622, 0.0
      %v8301 = vadd.f32 %v8299, %v8300
      %v8302 = vsel %vm7906, %v7626, 0.0
      %v8303 = vadd.f32 %v8301, %v8302
      %v8304 = vsel %vm7906, %v7630, 0.0
      %v8305 = vadd.f32 %v8303, %v8304
      %v8306 = vsel %vm7906, %v7619, 0.0
      %v8307 = vsel %vm7906, %v7623, 0.0
      %v8308 = vadd.f32 %v8306, %v8307
      %v8309 = vsel %vm7906, %v7627, 0.0
      %v8310 = vadd.f32 %v8308, %v8309
      %v8311 = vsel %vm7906, %v7631, 0.0
      %v8312 = vadd.f32 %v8310, %v8311
      %v8313 = vsel %vm7906, %v7620, 0.0
      %v8314 = vsel %vm7906, %v7624, 0.0
      %v8315 = vadd.f32 %v8313, %v8314
      %v8316 = vsel %vm7906, %v7628, 0.0
      %v8317 = vadd.f32 %v8315, %v8316
      %v8318 = vsel %vm7906, %v7632, 0.0
      %v8319 = vadd.f32 %v8317, %v8318
      %v8320 = vsel %vm7906, %v7621, 0.0
      %v8321 = vsel %vm7906, %v7625, 0.0
      %v8322 = vadd.f32 %v8320, %v8321
      %v8323 = vsel %vm7906, %v7629, 0.0
      %v8324 = vadd.f32 %v8322, %v8323
      %v8325 = vsel %vm7906, %v7633, 0.0
      %v8326 = vadd.f32 %v8324, %v8325
      %v8327 = vsel %vm7906, %v7634, 0.0
      %v8328 = vsel %vm7906, %v7638, 0.0
      %v8329 = vadd.f32 %v8327, %v8328
      %v8330 = vsel %vm7906, %v7642, 0.0
      %v8331 = vadd.f32 %v8329, %v8330
      %v8332 = vsel %vm7906, %v7646, 0.0
      %v8333 = vadd.f32 %v8331, %v8332
      %v8334 = vsel %vm7906, %v7635, 0.0
      %v8335 = vsel %vm7906, %v7639, 0.0
      %v8336 = vadd.f32 %v8334, %v8335
      %v8337 = vsel %vm7906, %v7643, 0.0
      %v8338 = vadd.f32 %v8336, %v8337
      %v8339 = vsel %vm7906, %v7647, 0.0
      %v8340 = vadd.f32 %v8338, %v8339
      %v8341 = vsel %vm7906, %v7636, 0.0
      %v8342 = vsel %vm7906, %v7640, 0.0
      %v8343 = vadd.f32 %v8341, %v8342
      %v8344 = vsel %vm7906, %v7644, 0.0
      %v8345 = vadd.f32 %v8343, %v8344
      %v8346 = vsel %vm7906, %v7648, 0.0
      %v8347 = vadd.f32 %v8345, %v8346
      %v8348 = vsel %vm7906, %v7637, 0.0
      %v8349 = vsel %vm7906, %v7641, 0.0
      %v8350 = vadd.f32 %v8348, %v8349
      %v8351 = vsel %vm7906, %v7645, 0.0
      %v8352 = vadd.f32 %v8350, %v8351
      %v8353 = vsel %vm7906, %v7649, 0.0
      %v8354 = vadd.f32 %v8352, %v8353
      %v8355 = vsel %vm7906, %v7650, 0.0
      %v8356 = vsel %vm7906, %v7654, 0.0
      %v8357 = vadd.f32 %v8355, %v8356
      %v8358 = vsel %vm7906, %v7658, 0.0
      %v8359 = vadd.f32 %v8357, %v8358
      %v8360 = vsel %vm7906, %v7662, 0.0
      %v8361 = vadd.f32 %v8359, %v8360
      %v8362 = vsel %vm7906, %v7651, 0.0
      %v8363 = vsel %vm7906, %v7655, 0.0
      %v8364 = vadd.f32 %v8362, %v8363
      %v8365 = vsel %vm7906, %v7659, 0.0
      %v8366 = vadd.f32 %v8364, %v8365
      %v8367 = vsel %vm7906, %v7663, 0.0
      %v8368 = vadd.f32 %v8366, %v8367
      %v8369 = vsel %vm7906, %v7652, 0.0
      %v8370 = vsel %vm7906, %v7656, 0.0
      %v8371 = vadd.f32 %v8369, %v8370
      %v8372 = vsel %vm7906, %v7660, 0.0
      %v8373 = vadd.f32 %v8371, %v8372
      %v8374 = vsel %vm7906, %v7664, 0.0
      %v8375 = vadd.f32 %v8373, %v8374
      %v8376 = vsel %vm7906, %v7653, 0.0
      %v8377 = vsel %vm7906, %v7657, 0.0
      %v8378 = vadd.f32 %v8376, %v8377
      %v8379 = vsel %vm7906, %v7661, 0.0
      %v8380 = vadd.f32 %v8378, %v8379
      %v8381 = vsel %vm7906, %v7665, 0.0
      %v8382 = vadd.f32 %v8380, %v8381
      %v8383 = vsel %vm7906, %v7666, 0.0
      %v8384 = vsel %vm7906, %v7670, 0.0
      %v8385 = vadd.f32 %v8383, %v8384
      %v8386 = vsel %vm7906, %v7674, 0.0
      %v8387 = vadd.f32 %v8385, %v8386
      %v8388 = vsel %vm7906, %v7678, 0.0
      %v8389 = vadd.f32 %v8387, %v8388
      %v8390 = vsel %vm7906, %v7667, 0.0
      %v8391 = vsel %vm7906, %v7671, 0.0
      %v8392 = vadd.f32 %v8390, %v8391
      %v8393 = vsel %vm7906, %v7675, 0.0
      %v8394 = vadd.f32 %v8392, %v8393
      %v8395 = vsel %vm7906, %v7679, 0.0
      %v8396 = vadd.f32 %v8394, %v8395
      %v8397 = vsel %vm7906, %v7668, 0.0
      %v8398 = vsel %vm7906, %v7672, 0.0
      %v8399 = vadd.f32 %v8397, %v8398
      %v8400 = vsel %vm7906, %v7676, 0.0
      %v8401 = vadd.f32 %v8399, %v8400
      %v8402 = vsel %vm7906, %v7680, 0.0
      %v8403 = vadd.f32 %v8401, %v8402
      %v8404 = vsel %vm7906, %v7669, 0.0
      %v8405 = vsel %vm7906, %v7673, 0.0
      %v8406 = vadd.f32 %v8404, %v8405
      %v8407 = vsel %vm7906, %v7677, 0.0
      %v8408 = vadd.f32 %v8406, %v8407
      %v8409 = vsel %vm7906, %v7681, 0.0
      %v8410 = vadd.f32 %v8408, %v8409
      %v8411 = vsel %vm7906, %v7682, 0.0
      %v8412 = vsel %vm7906, %v7686, 0.0
      %v8413 = vadd.f32 %v8411, %v8412
      %v8414 = vsel %vm7906, %v7690, 0.0
      %v8415 = vadd.f32 %v8413, %v8414
      %v8416 = vsel %vm7906, %v7694, 0.0
      %v8417 = vadd.f32 %v8415, %v8416
      %v8418 = vsel %vm7906, %v7683, 0.0
      %v8419 = vsel %vm7906, %v7687, 0.0
      %v8420 = vadd.f32 %v8418, %v8419
      %v8421 = vsel %vm7906, %v7691, 0.0
      %v8422 = vadd.f32 %v8420, %v8421
      %v8423 = vsel %vm7906, %v7695, 0.0
      %v8424 = vadd.f32 %v8422, %v8423
      %v8425 = vsel %vm7906, %v7684, 0.0
      %v8426 = vsel %vm7906, %v7688, 0.0
      %v8427 = vadd.f32 %v8425, %v8426
      %v8428 = vsel %vm7906, %v7692, 0.0
      %v8429 = vadd.f32 %v8427, %v8428
      %v8430 = vsel %vm7906, %v7696, 0.0
      %v8431 = vadd.f32 %v8429, %v8430
      %v8432 = vsel %vm7906, %v7685, 0.0
      %v8433 = vsel %vm7906, %v7689, 0.0
      %v8434 = vadd.f32 %v8432, %v8433
      %v8435 = vsel %vm7906, %v7693, 0.0
      %v8436 = vadd.f32 %v8434, %v8435
      %v8437 = vsel %vm7906, %v7697, 0.0
      %v8438 = vadd.f32 %v8436, %v8437
      %v8439 = vsel %vm7906, %v7698, 0.0
      %v8440 = vsel %vm7906, %v7702, 0.0
      %v8441 = vadd.f32 %v8439, %v8440
      %v8442 = vsel %vm7906, %v7706, 0.0
      %v8443 = vadd.f32 %v8441, %v8442
      %v8444 = vsel %vm7906, %v7710, 0.0
      %v8445 = vadd.f32 %v8443, %v8444
      %v8446 = vsel %vm7906, %v7699, 0.0
      %v8447 = vsel %vm7906, %v7703, 0.0
      %v8448 = vadd.f32 %v8446, %v8447
      %v8449 = vsel %vm7906, %v7707, 0.0
      %v8450 = vadd.f32 %v8448, %v8449
      %v8451 = vsel %vm7906, %v7711, 0.0
      %v8452 = vadd.f32 %v8450, %v8451
      %v8453 = vsel %vm7906, %v7700, 0.0
      %v8454 = vsel %vm7906, %v7704, 0.0
      %v8455 = vadd.f32 %v8453, %v8454
      %v8456 = vsel %vm7906, %v7708, 0.0
      %v8457 = vadd.f32 %v8455, %v8456
      %v8458 = vsel %vm7906, %v7712, 0.0
      %v8459 = vadd.f32 %v8457, %v8458
      %v8460 = vsel %vm7906, %v7701, 0.0
      %v8461 = vsel %vm7906, %v7705, 0.0
      %v8462 = vadd.f32 %v8460, %v8461
      %v8463 = vsel %vm7906, %v7709, 0.0
      %v8464 = vadd.f32 %v8462, %v8463
      %v8465 = vsel %vm7906, %v7713, 0.0
      %v8466 = vadd.f32 %v8464, %v8465
      %v8467 = vsel %vm7906, %v7714, 0.0
      %v8468 = vsel %vm7906, %v7718, 0.0
      %v8469 = vadd.f32 %v8467, %v8468
      %v8470 = vsel %vm7906, %v7722, 0.0
      %v8471 = vadd.f32 %v8469, %v8470
      %v8472 = vsel %vm7906, %v7726, 0.0
      %v8473 = vadd.f32 %v8471, %v8472
      %v8474 = vsel %vm7906, %v7715, 0.0
      %v8475 = vsel %vm7906, %v7719, 0.0
      %v8476 = vadd.f32 %v8474, %v8475
      %v8477 = vsel %vm7906, %v7723, 0.0
      %v8478 = vadd.f32 %v8476, %v8477
      %v8479 = vsel %vm7906, %v7727, 0.0
      %v8480 = vadd.f32 %v8478, %v8479
      %v8481 = vsel %vm7906, %v7716, 0.0
      %v8482 = vsel %vm7906, %v7720, 0.0
      %v8483 = vadd.f32 %v8481, %v8482
      %v8484 = vsel %vm7906, %v7724, 0.0
      %v8485 = vadd.f32 %v8483, %v8484
      %v8486 = vsel %vm7906, %v7728, 0.0
      %v8487 = vadd.f32 %v8485, %v8486
      %v8488 = vsel %vm7906, %v7717, 0.0
      %v8489 = vsel %vm7906, %v7721, 0.0
      %v8490 = vadd.f32 %v8488, %v8489
      %v8491 = vsel %vm7906, %v7725, 0.0
      %v8492 = vadd.f32 %v8490, %v8491
      %v8493 = vsel %vm7906, %v7729, 0.0
      %v8494 = vadd.f32 %v8492, %v8493
      %v8495 = vsel %vm7906, %v7730, 0.0
      %v8496 = vsel %vm7906, %v7734, 0.0
      %v8497 = vadd.f32 %v8495, %v8496
      %v8498 = vsel %vm7906, %v7738, 0.0
      %v8499 = vadd.f32 %v8497, %v8498
      %v8500 = vsel %vm7906, %v7742, 0.0
      %v8501 = vadd.f32 %v8499, %v8500
      %v8502 = vsel %vm7906, %v7731, 0.0
      %v8503 = vsel %vm7906, %v7735, 0.0
      %v8504 = vadd.f32 %v8502, %v8503
      %v8505 = vsel %vm7906, %v7739, 0.0
      %v8506 = vadd.f32 %v8504, %v8505
      %v8507 = vsel %vm7906, %v7743, 0.0
      %v8508 = vadd.f32 %v8506, %v8507
      %v8509 = vsel %vm7906, %v7732, 0.0
      %v8510 = vsel %vm7906, %v7736, 0.0
      %v8511 = vadd.f32 %v8509, %v8510
      %v8512 = vsel %vm7906, %v7740, 0.0
      %v8513 = vadd.f32 %v8511, %v8512
      %v8514 = vsel %vm7906, %v7744, 0.0
      %v8515 = vadd.f32 %v8513, %v8514
      %v8516 = vsel %vm7906, %v7733, 0.0
      %v8517 = vsel %vm7906, %v7737, 0.0
      %v8518 = vadd.f32 %v8516, %v8517
      %v8519 = vsel %vm7906, %v7741, 0.0
      %v8520 = vadd.f32 %v8518, %v8519
      %v8521 = vsel %vm7906, %v7745, 0.0
      %v8522 = vadd.f32 %v8520, %v8521
      %v8523 = vsel %vm7906, %v7746, 0.0
      %v8524 = vsel %vm7906, %v7750, 0.0
      %v8525 = vadd.f32 %v8523, %v8524
      %v8526 = vsel %vm7906, %v7754, 0.0
      %v8527 = vadd.f32 %v8525, %v8526
      %v8528 = vsel %vm7906, %v7758, 0.0
      %v8529 = vadd.f32 %v8527, %v8528
      %v8530 = vsel %vm7906, %v7747, 0.0
      %v8531 = vsel %vm7906, %v7751, 0.0
      %v8532 = vadd.f32 %v8530, %v8531
      %v8533 = vsel %vm7906, %v7755, 0.0
      %v8534 = vadd.f32 %v8532, %v8533
      %v8535 = vsel %vm7906, %v7759, 0.0
      %v8536 = vadd.f32 %v8534, %v8535
      %v8537 = vsel %vm7906, %v7748, 0.0
      %v8538 = vsel %vm7906, %v7752, 0.0
      %v8539 = vadd.f32 %v8537, %v8538
      %v8540 = vsel %vm7906, %v7756, 0.0
      %v8541 = vadd.f32 %v8539, %v8540
      %v8542 = vsel %vm7906, %v7760, 0.0
      %v8543 = vadd.f32 %v8541, %v8542
      %v8544 = vsel %vm7906, %v7749, 0.0
      %v8545 = vsel %vm7906, %v7753, 0.0
      %v8546 = vadd.f32 %v8544, %v8545
      %v8547 = vsel %vm7906, %v7757, 0.0
      %v8548 = vadd.f32 %v8546, %v8547
      %v8549 = vsel %vm7906, %v7761, 0.0
      %v8550 = vadd.f32 %v8548, %v8549
      %v8551 = vsel %vm7906, %v7762, 0.0
      %v8552 = vsel %vm7906, %v7766, 0.0
      %v8553 = vadd.f32 %v8551, %v8552
      %v8554 = vsel %vm7906, %v7770, 0.0
      %v8555 = vadd.f32 %v8553, %v8554
      %v8556 = vsel %vm7906, %v7774, 0.0
      %v8557 = vadd.f32 %v8555, %v8556
      %v8558 = vsel %vm7906, %v7763, 0.0
      %v8559 = vsel %vm7906, %v7767, 0.0
      %v8560 = vadd.f32 %v8558, %v8559
      %v8561 = vsel %vm7906, %v7771, 0.0
      %v8562 = vadd.f32 %v8560, %v8561
      %v8563 = vsel %vm7906, %v7775, 0.0
      %v8564 = vadd.f32 %v8562, %v8563
      %v8565 = vsel %vm7906, %v7764, 0.0
      %v8566 = vsel %vm7906, %v7768, 0.0
      %v8567 = vadd.f32 %v8565, %v8566
      %v8568 = vsel %vm7906, %v7772, 0.0
      %v8569 = vadd.f32 %v8567, %v8568
      %v8570 = vsel %vm7906, %v7776, 0.0
      %v8571 = vadd.f32 %v8569, %v8570
      %v8572 = vsel %vm7906, %v7765, 0.0
      %v8573 = vsel %vm7906, %v7769, 0.0
      %v8574 = vadd.f32 %v8572, %v8573
      %v8575 = vsel %vm7906, %v7773, 0.0
      %v8576 = vadd.f32 %v8574, %v8575
      %v8577 = vsel %vm7906, %v7777, 0.0
      %v8578 = vadd.f32 %v8576, %v8577
      %v8579 = vsel %vm7906, %v7778, 0.0
      %v8580 = vsel %vm7906, %v7782, 0.0
      %v8581 = vadd.f32 %v8579, %v8580
      %v8582 = vsel %vm7906, %v7786, 0.0
      %v8583 = vadd.f32 %v8581, %v8582
      %v8584 = vsel %vm7906, %v7790, 0.0
      %v8585 = vadd.f32 %v8583, %v8584
      %v8586 = vsel %vm7906, %v7779, 0.0
      %v8587 = vsel %vm7906, %v7783, 0.0
      %v8588 = vadd.f32 %v8586, %v8587
      %v8589 = vsel %vm7906, %v7787, 0.0
      %v8590 = vadd.f32 %v8588, %v8589
      %v8591 = vsel %vm7906, %v7791, 0.0
      %v8592 = vadd.f32 %v8590, %v8591
      %v8593 = vsel %vm7906, %v7780, 0.0
      %v8594 = vsel %vm7906, %v7784, 0.0
      %v8595 = vadd.f32 %v8593, %v8594
      %v8596 = vsel %vm7906, %v7788, 0.0
      %v8597 = vadd.f32 %v8595, %v8596
      %v8598 = vsel %vm7906, %v7792, 0.0
      %v8599 = vadd.f32 %v8597, %v8598
      %v8600 = vsel %vm7906, %v7781, 0.0
      %v8601 = vsel %vm7906, %v7785, 0.0
      %v8602 = vadd.f32 %v8600, %v8601
      %v8603 = vsel %vm7906, %v7789, 0.0
      %v8604 = vadd.f32 %v8602, %v8603
      %v8605 = vsel %vm7906, %v7793, 0.0
      %v8606 = vadd.f32 %v8604, %v8605
      %v8607 = vsel %vm7906, %v7794, 0.0
      %v8608 = vsel %vm7906, %v7798, 0.0
      %v8609 = vadd.f32 %v8607, %v8608
      %v8610 = vsel %vm7906, %v7802, 0.0
      %v8611 = vadd.f32 %v8609, %v8610
      %v8612 = vsel %vm7906, %v7806, 0.0
      %v8613 = vadd.f32 %v8611, %v8612
      %v8614 = vsel %vm7906, %v7795, 0.0
      %v8615 = vsel %vm7906, %v7799, 0.0
      %v8616 = vadd.f32 %v8614, %v8615
      %v8617 = vsel %vm7906, %v7803, 0.0
      %v8618 = vadd.f32 %v8616, %v8617
      %v8619 = vsel %vm7906, %v7807, 0.0
      %v8620 = vadd.f32 %v8618, %v8619
      %v8621 = vsel %vm7906, %v7796, 0.0
      %v8622 = vsel %vm7906, %v7800, 0.0
      %v8623 = vadd.f32 %v8621, %v8622
      %v8624 = vsel %vm7906, %v7804, 0.0
      %v8625 = vadd.f32 %v8623, %v8624
      %v8626 = vsel %vm7906, %v7808, 0.0
      %v8627 = vadd.f32 %v8625, %v8626
      %v8628 = vsel %vm7906, %v7797, 0.0
      %v8629 = vsel %vm7906, %v7801, 0.0
      %v8630 = vadd.f32 %v8628, %v8629
      %v8631 = vsel %vm7906, %v7805, 0.0
      %v8632 = vadd.f32 %v8630, %v8631
      %v8633 = vsel %vm7906, %v7809, 0.0
      %v8634 = vadd.f32 %v8632, %v8633
      %v8635 = vsel %vm7906, %v7810, 0.0
      %v8636 = vsel %vm7906, %v7814, 0.0
      %v8637 = vadd.f32 %v8635, %v8636
      %v8638 = vsel %vm7906, %v7818, 0.0
      %v8639 = vadd.f32 %v8637, %v8638
      %v8640 = vsel %vm7906, %v7822, 0.0
      %v8641 = vadd.f32 %v8639, %v8640
      %v8642 = vsel %vm7906, %v7811, 0.0
      %v8643 = vsel %vm7906, %v7815, 0.0
      %v8644 = vadd.f32 %v8642, %v8643
      %v8645 = vsel %vm7906, %v7819, 0.0
      %v8646 = vadd.f32 %v8644, %v8645
      %v8647 = vsel %vm7906, %v7823, 0.0
      %v8648 = vadd.f32 %v8646, %v8647
      %v8649 = vsel %vm7906, %v7812, 0.0
      %v8650 = vsel %vm7906, %v7816, 0.0
      %v8651 = vadd.f32 %v8649, %v8650
      %v8652 = vsel %vm7906, %v7820, 0.0
      %v8653 = vadd.f32 %v8651, %v8652
      %v8654 = vsel %vm7906, %v7824, 0.0
      %v8655 = vadd.f32 %v8653, %v8654
      %v8656 = vsel %vm7906, %v7813, 0.0
      %v8657 = vsel %vm7906, %v7817, 0.0
      %v8658 = vadd.f32 %v8656, %v8657
      %v8659 = vsel %vm7906, %v7821, 0.0
      %v8660 = vadd.f32 %v8658, %v8659
      %v8661 = vsel %vm7906, %v7825, 0.0
      %v8662 = vadd.f32 %v8660, %v8661
      %v8663 = vsel %vm7906, %v7826, 0.0
      %v8664 = vsel %vm7906, %v7830, 0.0
      %v8665 = vadd.f32 %v8663, %v8664
      %v8666 = vsel %vm7906, %v7834, 0.0
      %v8667 = vadd.f32 %v8665, %v8666
      %v8668 = vsel %vm7906, %v7838, 0.0
      %v8669 = vadd.f32 %v8667, %v8668
      %v8670 = vsel %vm7906, %v7827, 0.0
      %v8671 = vsel %vm7906, %v7831, 0.0
      %v8672 = vadd.f32 %v8670, %v8671
      %v8673 = vsel %vm7906, %v7835, 0.0
      %v8674 = vadd.f32 %v8672, %v8673
      %v8675 = vsel %vm7906, %v7839, 0.0
      %v8676 = vadd.f32 %v8674, %v8675
      %v8677 = vsel %vm7906, %v7828, 0.0
      %v8678 = vsel %vm7906, %v7832, 0.0
      %v8679 = vadd.f32 %v8677, %v8678
      %v8680 = vsel %vm7906, %v7836, 0.0
      %v8681 = vadd.f32 %v8679, %v8680
      %v8682 = vsel %vm7906, %v7840, 0.0
      %v8683 = vadd.f32 %v8681, %v8682
      %v8684 = vsel %vm7906, %v7829, 0.0
      %v8685 = vsel %vm7906, %v7833, 0.0
      %v8686 = vadd.f32 %v8684, %v8685
      %v8687 = vsel %vm7906, %v7837, 0.0
      %v8688 = vadd.f32 %v8686, %v8687
      %v8689 = vsel %vm7906, %v7841, 0.0
      %v8690 = vadd.f32 %v8688, %v8689
      %v8691 = vsel %vm7906, %v7842, 0.0
      %v8692 = vsel %vm7906, %v7846, 0.0
      %v8693 = vadd.f32 %v8691, %v8692
      %v8694 = vsel %vm7906, %v7850, 0.0
      %v8695 = vadd.f32 %v8693, %v8694
      %v8696 = vsel %vm7906, %v7854, 0.0
      %v8697 = vadd.f32 %v8695, %v8696
      %v8698 = vsel %vm7906, %v7843, 0.0
      %v8699 = vsel %vm7906, %v7847, 0.0
      %v8700 = vadd.f32 %v8698, %v8699
      %v8701 = vsel %vm7906, %v7851, 0.0
      %v8702 = vadd.f32 %v8700, %v8701
      %v8703 = vsel %vm7906, %v7855, 0.0
      %v8704 = vadd.f32 %v8702, %v8703
      %v8705 = vsel %vm7906, %v7844, 0.0
      %v8706 = vsel %vm7906, %v7848, 0.0
      %v8707 = vadd.f32 %v8705, %v8706
      %v8708 = vsel %vm7906, %v7852, 0.0
      %v8709 = vadd.f32 %v8707, %v8708
      %v8710 = vsel %vm7906, %v7856, 0.0
      %v8711 = vadd.f32 %v8709, %v8710
      %v8712 = vsel %vm7906, %v7845, 0.0
      %v8713 = vsel %vm7906, %v7849, 0.0
      %v8714 = vadd.f32 %v8712, %v8713
      %v8715 = vsel %vm7906, %v7853, 0.0
      %v8716 = vadd.f32 %v8714, %v8715
      %v8717 = vsel %vm7906, %v7857, 0.0
      %v8718 = vadd.f32 %v8716, %v8717
      %v8719 = vsel %vm7906, %v7858, 0.0
      %v8720 = vsel %vm7906, %v7862, 0.0
      %v8721 = vadd.f32 %v8719, %v8720
      %v8722 = vsel %vm7906, %v7866, 0.0
      %v8723 = vadd.f32 %v8721, %v8722
      %v8724 = vsel %vm7906, %v7870, 0.0
      %v8725 = vadd.f32 %v8723, %v8724
      %v8726 = vsel %vm7906, %v7859, 0.0
      %v8727 = vsel %vm7906, %v7863, 0.0
      %v8728 = vadd.f32 %v8726, %v8727
      %v8729 = vsel %vm7906, %v7867, 0.0
      %v8730 = vadd.f32 %v8728, %v8729
      %v8731 = vsel %vm7906, %v7871, 0.0
      %v8732 = vadd.f32 %v8730, %v8731
      %v8733 = vsel %vm7906, %v7860, 0.0
      %v8734 = vsel %vm7906, %v7864, 0.0
      %v8735 = vadd.f32 %v8733, %v8734
      %v8736 = vsel %vm7906, %v7868, 0.0
      %v8737 = vadd.f32 %v8735, %v8736
      %v8738 = vsel %vm7906, %v7872, 0.0
      %v8739 = vadd.f32 %v8737, %v8738
      %v8740 = vsel %vm7906, %v7861, 0.0
      %v8741 = vsel %vm7906, %v7865, 0.0
      %v8742 = vadd.f32 %v8740, %v8741
      %v8743 = vsel %vm7906, %v7869, 0.0
      %v8744 = vadd.f32 %v8742, %v8743
      %v8745 = vsel %vm7906, %v7873, 0.0
      %v8746 = vadd.f32 %v8744, %v8745
      %v8747 = vsel %vm7906, %v7874, 0.0
      %v8748 = vsel %vm7906, %v7878, 0.0
      %v8749 = vadd.f32 %v8747, %v8748
      %v8750 = vsel %vm7906, %v7882, 0.0
      %v8751 = vadd.f32 %v8749, %v8750
      %v8752 = vsel %vm7906, %v7886, 0.0
      %v8753 = vadd.f32 %v8751, %v8752
      %v8754 = vsel %vm7906, %v7875, 0.0
      %v8755 = vsel %vm7906, %v7879, 0.0
      %v8756 = vadd.f32 %v8754, %v8755
      %v8757 = vsel %vm7906, %v7883, 0.0
      %v8758 = vadd.f32 %v8756, %v8757
      %v8759 = vsel %vm7906, %v7887, 0.0
      %v8760 = vadd.f32 %v8758, %v8759
      %v8761 = vsel %vm7906, %v7876, 0.0
      %v8762 = vsel %vm7906, %v7880, 0.0
      %v8763 = vadd.f32 %v8761, %v8762
      %v8764 = vsel %vm7906, %v7884, 0.0
      %v8765 = vadd.f32 %v8763, %v8764
      %v8766 = vsel %vm7906, %v7888, 0.0
      %v8767 = vadd.f32 %v8765, %v8766
      %v8768 = vsel %vm7906, %v7877, 0.0
      %v8769 = vsel %vm7906, %v7881, 0.0
      %v8770 = vadd.f32 %v8768, %v8769
      %v8771 = vsel %vm7906, %v7885, 0.0
      %v8772 = vadd.f32 %v8770, %v8771
      %v8773 = vsel %vm7906, %v7889, 0.0
      %v8774 = vadd.f32 %v8772, %v8773
      %v8775 = vsel %vm7906, %v7890, 0.0
      %v8776 = vsel %vm7906, %v7894, 0.0
      %v8777 = vadd.f32 %v8775, %v8776
      %v8778 = vsel %vm7906, %v7898, 0.0
      %v8779 = vadd.f32 %v8777, %v8778
      %v8780 = vsel %vm7906, %v7902, 0.0
      %v8781 = vadd.f32 %v8779, %v8780
      %v8782 = vsel %vm7906, %v7891, 0.0
      %v8783 = vsel %vm7906, %v7895, 0.0
      %v8784 = vadd.f32 %v8782, %v8783
      %v8785 = vsel %vm7906, %v7899, 0.0
      %v8786 = vadd.f32 %v8784, %v8785
      %v8787 = vsel %vm7906, %v7903, 0.0
      %v8788 = vadd.f32 %v8786, %v8787
      %v8789 = vsel %vm7906, %v7892, 0.0
      %v8790 = vsel %vm7906, %v7896, 0.0
      %v8791 = vadd.f32 %v8789, %v8790
      %v8792 = vsel %vm7906, %v7900, 0.0
      %v8793 = vadd.f32 %v8791, %v8792
      %v8794 = vsel %vm7906, %v7904, 0.0
      %v8795 = vadd.f32 %v8793, %v8794
      %v8796 = vsel %vm7906, %v7893, 0.0
      %v8797 = vsel %vm7906, %v7897, 0.0
      %v8798 = vadd.f32 %v8796, %v8797
      %v8799 = vsel %vm7906, %v7901, 0.0
      %v8800 = vadd.f32 %v8798, %v8799
      %v8801 = vsel %vm7906, %v7905, 0.0
      %v8802 = vadd.f32 %v8800, %v8801
      %v8803 = vmul.f32 %v7913, 0.0625
      %v8804 = vmul.f32 %v7920, 0.0625
      %v8805 = vmul.f32 %v7927, 0.0625
      %v8806 = vmul.f32 %v7934, 0.0625
      %v8807 = vmul.f32 %v7941, 0.0625
      %v8808 = vmul.f32 %v7948, 0.0625
      %v8809 = vmul.f32 %v7955, 0.0625
      %v8810 = vmul.f32 %v7962, 0.0625
      %v8811 = vmul.f32 %v7969, 0.0625
      %v8812 = vmul.f32 %v7976, 0.0625
      %v8813 = vmul.f32 %v7983, 0.0625
      %v8814 = vmul.f32 %v7990, 0.0625
      %v8815 = vmul.f32 %v7997, 0.0625
      %v8816 = vmul.f32 %v8004, 0.0625
      %v8817 = vmul.f32 %v8011, 0.0625
      %v8818 = vmul.f32 %v8018, 0.0625
      %v8819 = vmul.f32 %v8025, 0.0625
      %v8820 = vmul.f32 %v8032, 0.0625
      %v8821 = vmul.f32 %v8039, 0.0625
      %v8822 = vmul.f32 %v8046, 0.0625
      %v8823 = vmul.f32 %v8053, 0.0625
      %v8824 = vmul.f32 %v8060, 0.0625
      %v8825 = vmul.f32 %v8067, 0.0625
      %v8826 = vmul.f32 %v8074, 0.0625
      %v8827 = vmul.f32 %v8081, 0.0625
      %v8828 = vmul.f32 %v8088, 0.0625
      %v8829 = vmul.f32 %v8095, 0.0625
      %v8830 = vmul.f32 %v8102, 0.0625
      %v8831 = vmul.f32 %v8109, 0.0625
      %v8832 = vmul.f32 %v8116, 0.0625
      %v8833 = vmul.f32 %v8123, 0.0625
      %v8834 = vmul.f32 %v8130, 0.0625
      %v8835 = vmul.f32 %v8137, 0.0625
      %v8836 = vmul.f32 %v8144, 0.0625
      %v8837 = vmul.f32 %v8151, 0.0625
      %v8838 = vmul.f32 %v8158, 0.0625
      %v8839 = vmul.f32 %v8165, 0.0625
      %v8840 = vmul.f32 %v8172, 0.0625
      %v8841 = vmul.f32 %v8179, 0.0625
      %v8842 = vmul.f32 %v8186, 0.0625
      %v8843 = vmul.f32 %v8193, 0.0625
      %v8844 = vmul.f32 %v8200, 0.0625
      %v8845 = vmul.f32 %v8207, 0.0625
      %v8846 = vmul.f32 %v8214, 0.0625
      %v8847 = vmul.f32 %v8221, 0.0625
      %v8848 = vmul.f32 %v8228, 0.0625
      %v8849 = vmul.f32 %v8235, 0.0625
      %v8850 = vmul.f32 %v8242, 0.0625
      %v8851 = vmul.f32 %v8249, 0.0625
      %v8852 = vmul.f32 %v8256, 0.0625
      %v8853 = vmul.f32 %v8263, 0.0625
      %v8854 = vmul.f32 %v8270, 0.0625
      %v8855 = vmul.f32 %v8277, 0.0625
      %v8856 = vmul.f32 %v8284, 0.0625
      %v8857 = vmul.f32 %v8291, 0.0625
      %v8858 = vmul.f32 %v8298, 0.0625
      %v8859 = vmul.f32 %v8305, 0.0625
      %v8860 = vmul.f32 %v8312, 0.0625
      %v8861 = vmul.f32 %v8319, 0.0625
      %v8862 = vmul.f32 %v8326, 0.0625
      %v8863 = vmul.f32 %v8333, 0.0625
      %v8864 = vmul.f32 %v8340, 0.0625
      %v8865 = vmul.f32 %v8347, 0.0625
      %v8866 = vmul.f32 %v8354, 0.0625
      %v8867 = vmul.f32 %v8361, 0.0625
      %v8868 = vmul.f32 %v8368, 0.0625
      %v8869 = vmul.f32 %v8375, 0.0625
      %v8870 = vmul.f32 %v8382, 0.0625
      %v8871 = vmul.f32 %v8389, 0.0625
      %v8872 = vmul.f32 %v8396, 0.0625
      %v8873 = vmul.f32 %v8403, 0.0625
      %v8874 = vmul.f32 %v8410, 0.0625
      %v8875 = vmul.f32 %v8417, 0.0625
      %v8876 = vmul.f32 %v8424, 0.0625
      %v8877 = vmul.f32 %v8431, 0.0625
      %v8878 = vmul.f32 %v8438, 0.0625
      %v8879 = vmul.f32 %v8445, 0.0625
      %v8880 = vmul.f32 %v8452, 0.0625
      %v8881 = vmul.f32 %v8459, 0.0625
      %v8882 = vmul.f32 %v8466, 0.0625
      %v8883 = vmul.f32 %v8473, 0.0625
      %v8884 = vmul.f32 %v8480, 0.0625
      %v8885 = vmul.f32 %v8487, 0.0625
      %v8886 = vmul.f32 %v8494, 0.0625
      %v8887 = vmul.f32 %v8501, 0.0625
      %v8888 = vmul.f32 %v8508, 0.0625
      %v8889 = vmul.f32 %v8515, 0.0625
      %v8890 = vmul.f32 %v8522, 0.0625
      %v8891 = vmul.f32 %v8529, 0.0625
      %v8892 = vmul.f32 %v8536, 0.0625
      %v8893 = vmul.f32 %v8543, 0.0625
      %v8894 = vmul.f32 %v8550, 0.0625
      %v8895 = vmul.f32 %v8557, 0.0625
      %v8896 = vmul.f32 %v8564, 0.0625
      %v8897 = vmul.f32 %v8571, 0.0625
      %v8898 = vmul.f32 %v8578, 0.0625
      %v8899 = vmul.f32 %v8585, 0.0625
      %v8900 = vmul.f32 %v8592, 0.0625
      %v8901 = vmul.f32 %v8599, 0.0625
      %v8902 = vmul.f32 %v8606, 0.0625
      %v8903 = vmul.f32 %v8613, 0.0625
      %v8904 = vmul.f32 %v8620, 0.0625
      %v8905 = vmul.f32 %v8627, 0.0625
      %v8906 = vmul.f32 %v8634, 0.0625
      %v8907 = vmul.f32 %v8641, 0.0625
      %v8908 = vmul.f32 %v8648, 0.0625
      %v8909 = vmul.f32 %v8655, 0.0625
      %v8910 = vmul.f32 %v8662, 0.0625
      %v8911 = vmul.f32 %v8669, 0.0625
      %v8912 = vmul.f32 %v8676, 0.0625
      %v8913 = vmul.f32 %v8683, 0.0625
      %v8914 = vmul.f32 %v8690, 0.0625
      %v8915 = vmul.f32 %v8697, 0.0625
      %v8916 = vmul.f32 %v8704, 0.0625
      %v8917 = vmul.f32 %v8711, 0.0625
      %v8918 = vmul.f32 %v8718, 0.0625
      %v8919 = vmul.f32 %v8725, 0.0625
      %v8920 = vmul.f32 %v8732, 0.0625
      %v8921 = vmul.f32 %v8739, 0.0625
      %v8922 = vmul.f32 %v8746, 0.0625
      %v8923 = vmul.f32 %v8753, 0.0625
      %v8924 = vmul.f32 %v8760, 0.0625
      %v8925 = vmul.f32 %v8767, 0.0625
      %v8926 = vmul.f32 %v8774, 0.0625
      %v8927 = vmul.f32 %v8781, 0.0625
      %v8928 = vmul.f32 %v8788, 0.0625
      %v8929 = vmul.f32 %v8795, 0.0625
      %v8930 = vmul.f32 %v8802, 0.0625
      %v8931 = vpack.c.bf16 %v8804, %v8803
      %v8932 = vpack.c.bf16 %v8806, %v8805
      %v8933 = vpack.c.bf16 %v8808, %v8807
      %v8934 = vpack.c.bf16 %v8810, %v8809
      %v8935 = vpack.c.bf16 %v8812, %v8811
      %v8936 = vpack.c.bf16 %v8814, %v8813
      %v8937 = vpack.c.bf16 %v8816, %v8815
      %v8938 = vpack.c.bf16 %v8818, %v8817
      %v8939 = vpack.c.bf16 %v8820, %v8819
      %v8940 = vpack.c.bf16 %v8822, %v8821
      %v8941 = vpack.c.bf16 %v8824, %v8823
      %v8942 = vpack.c.bf16 %v8826, %v8825
      %v8943 = vpack.c.bf16 %v8828, %v8827
      %v8944 = vpack.c.bf16 %v8830, %v8829
      %v8945 = vpack.c.bf16 %v8832, %v8831
      %v8946 = vpack.c.bf16 %v8834, %v8833
      %v8947 = vpack.c.bf16 %v8836, %v8835
      %v8948 = vpack.c.bf16 %v8838, %v8837
      %v8949 = vpack.c.bf16 %v8840, %v8839
      %v8950 = vpack.c.bf16 %v8842, %v8841
      %v8951 = vpack.c.bf16 %v8844, %v8843
      %v8952 = vpack.c.bf16 %v8846, %v8845
      %v8953 = vpack.c.bf16 %v8848, %v8847
      %v8954 = vpack.c.bf16 %v8850, %v8849
      %v8955 = vpack.c.bf16 %v8852, %v8851
      %v8956 = vpack.c.bf16 %v8854, %v8853
      %v8957 = vpack.c.bf16 %v8856, %v8855
      %v8958 = vpack.c.bf16 %v8858, %v8857
      %v8959 = vpack.c.bf16 %v8860, %v8859
      %v8960 = vpack.c.bf16 %v8862, %v8861
      %v8961 = vpack.c.bf16 %v8864, %v8863
      %v8962 = vpack.c.bf16 %v8866, %v8865
      %v8963 = vpack.c.bf16 %v8868, %v8867
      %v8964 = vpack.c.bf16 %v8870, %v8869
      %v8965 = vpack.c.bf16 %v8872, %v8871
      %v8966 = vpack.c.bf16 %v8874, %v8873
      %v8967 = vpack.c.bf16 %v8876, %v8875
      %v8968 = vpack.c.bf16 %v8878, %v8877
      %v8969 = vpack.c.bf16 %v8880, %v8879
      %v8970 = vpack.c.bf16 %v8882, %v8881
      %v8971 = vpack.c.bf16 %v8884, %v8883
      %v8972 = vpack.c.bf16 %v8886, %v8885
      %v8973 = vpack.c.bf16 %v8888, %v8887
      %v8974 = vpack.c.bf16 %v8890, %v8889
      %v8975 = vpack.c.bf16 %v8892, %v8891
      %v8976 = vpack.c.bf16 %v8894, %v8893
      %v8977 = vpack.c.bf16 %v8896, %v8895
      %v8978 = vpack.c.bf16 %v8898, %v8897
      %v8979 = vpack.c.bf16 %v8900, %v8899
      %v8980 = vpack.c.bf16 %v8902, %v8901
      %v8981 = vpack.c.bf16 %v8904, %v8903
      %v8982 = vpack.c.bf16 %v8906, %v8905
      %v8983 = vpack.c.bf16 %v8908, %v8907
      %v8984 = vpack.c.bf16 %v8910, %v8909
      %v8985 = vpack.c.bf16 %v8912, %v8911
      %v8986 = vpack.c.bf16 %v8914, %v8913
      %v8987 = vpack.c.bf16 %v8916, %v8915
      %v8988 = vpack.c.bf16 %v8918, %v8917
      %v8989 = vpack.c.bf16 %v8920, %v8919
      %v8990 = vpack.c.bf16 %v8922, %v8921
      %v8991 = vpack.c.bf16 %v8924, %v8923
      %v8992 = vpack.c.bf16 %v8926, %v8925
      %v8993 = vpack.c.bf16 %v8928, %v8927
      %v8994 = vpack.c.bf16 %v8930, %v8929
      %v8995 = vld [vmem:[%s1] sm:$0x3]
      %v8996 = vld [vmem:[%s2] sm:$0x1]
      %v8998 = vperm.slane %v8996, 0
      %v9001 = vsel %vm7906, %v8931, 0
      %v9004 = vsel %vm7906, %v8932, 0
      %v9007 = vsel %vm7906, %v8933, 0
      %v9010 = vsel %vm7906, %v8934, 0
      %v9013 = vsel %vm7906, %v8935, 0
      %v9016 = vsel %vm7906, %v8936, 0
      %v9019 = vsel %vm7906, %v8937, 0
      %v9022 = vsel %vm7906, %v8938, 0
      %v9025 = vsel %vm7906, %v8939, 0
      %v9028 = vsel %vm7906, %v8940, 0
      %v9031 = vsel %vm7906, %v8941, 0
      %v9034 = vsel %vm7906, %v8942, 0
      %v9037 = vsel %vm7906, %v8943, 0
      %v9040 = vsel %vm7906, %v8944, 0
      %v9043 = vsel %vm7906, %v8945, 0
      %v9046 = vsel %vm7906, %v8946, 0
      %v9049 = vsel %vm7906, %v8947, 0
      %v9052 = vsel %vm7906, %v8948, 0
      %v9055 = vsel %vm7906, %v8949, 0
      %v9058 = vsel %vm7906, %v8950, 0
      %v9061 = vsel %vm7906, %v8951, 0
      %v9064 = vsel %vm7906, %v8952, 0
      %v9067 = vsel %vm7906, %v8953, 0
      %v9070 = vsel %vm7906, %v8954, 0
      %v9073 = vsel %vm7906, %v8955, 0
      %v9076 = vsel %vm7906, %v8956, 0
      %v9079 = vsel %vm7906, %v8957, 0
      %v9082 = vsel %vm7906, %v8958, 0
      %v9085 = vsel %vm7906, %v8959, 0
      %v9088 = vsel %vm7906, %v8960, 0
      %v9091 = vsel %vm7906, %v8961, 0
      %v9094 = vsel %vm7906, %v8962, 0
      %v9097 = vsel %vm7906, %v8963, 0
      %v9100 = vsel %vm7906, %v8964, 0
      %v9103 = vsel %vm7906, %v8965, 0
      %v9106 = vsel %vm7906, %v8966, 0
      %v9109 = vsel %vm7906, %v8967, 0
      %v9112 = vsel %vm7906, %v8968, 0
      %v9115 = vsel %vm7906, %v8969, 0
      %v9118 = vsel %vm7906, %v8970, 0
      %v9121 = vsel %vm7906, %v8971, 0
      %v9124 = vsel %vm7906, %v8972, 0
      %v9127 = vsel %vm7906, %v8973, 0
      %v9130 = vsel %vm7906, %v8974, 0
      %v9133 = vsel %vm7906, %v8975, 0
      %v9136 = vsel %vm7906, %v8976, 0
      %v9139 = vsel %vm7906, %v8977, 0
      %v9142 = vsel %vm7906, %v8978, 0
      %v9145 = vsel %vm7906, %v8979, 0
      %v9148 = vsel %vm7906, %v8980, 0
      %v9151 = vsel %vm7906, %v8981, 0
      %v9154 = vsel %vm7906, %v8982, 0
      %v9157 = vsel %vm7906, %v8983, 0
      %v9160 = vsel %vm7906, %v8984, 0
      %v9163 = vsel %vm7906, %v8985, 0
      %v9166 = vsel %vm7906, %v8986, 0
      %v9169 = vsel %vm7906, %v8987, 0
      %v9172 = vsel %vm7906, %v8988, 0
      %v9175 = vsel %vm7906, %v8989, 0
      %v9178 = vsel %vm7906, %v8990, 0
      %v9181 = vsel %vm7906, %v8991, 0
      %v9184 = vsel %vm7906, %v8992, 0
      %v9187 = vsel %vm7906, %v8993, 0
      %v9190 = vsel %vm7906, %v8994, 0
      %vm9192 = vcmask 1041408
      %v9194 = vsel %vm9192, %v8995, 0
      %9196 = vmatpush.bf16.msra.mxu0 0
      %9197 = vmatpush.bf16.msra.mxu0 0
      %9198 = vmatpush.bf16.msra.mxu0 0
      %9199 = vmatpush.bf16.msra.mxu0 0
      %9200 = vmatpush.bf16.msra.mxu0 0
      %9201 = vmatpush.bf16.msra.mxu0 0
      %9202 = vmatpush.bf16.msra.mxu0 0
      %9203 = vmatpush.bf16.msra.mxu0 %v9194
      %9204 = vmatmul.bf16.gmra.mxu0 %v9001
      %v9205 = vpop.f32.mrf.mxu0
      %v9206 = vadd.f32 %v8998, %v9205
      %v9207 = vpop.f32.mrf.mxu0
      %v9208 = vadd.f32 %v8998, %v9207
      %9209 = vmatmul.bf16.gmra.mxu0 %v9004
      %v9210 = vpop.f32.mrf.mxu0
      %v9211 = vadd.f32 %v8998, %v9210
      %v9212 = vpop.f32.mrf.mxu0
      %v9213 = vadd.f32 %v8998, %v9212
      %9214 = vmatmul.bf16.gmra.mxu0 %v9007
      %v9215 = vpop.f32.mrf.mxu0
      %v9216 = vadd.f32 %v8998, %v9215
      %v9217 = vpop.f32.mrf.mxu0
      %v9218 = vadd.f32 %v8998, %v9217
      %9219 = vmatmul.bf16.gmra.mxu0 %v9010
      %v9220 = vpop.f32.mrf.mxu0
      %v9221 = vadd.f32 %v8998, %v9220
      %v9222 = vpop.f32.mrf.mxu0
      %v9223 = vadd.f32 %v8998, %v9222
      %9224 = vmatmul.bf16.gmra.mxu0 %v9013
      %v9225 = vpop.f32.mrf.mxu0
      %v9226 = vadd.f32 %v8998, %v9225
      %v9227 = vpop.f32.mrf.mxu0
      %v9228 = vadd.f32 %v8998, %v9227
      %9229 = vmatmul.bf16.gmra.mxu0 %v9016
      %v9230 = vpop.f32.mrf.mxu0
      %v9231 = vadd.f32 %v8998, %v9230
      %v9232 = vpop.f32.mrf.mxu0
      %v9233 = vadd.f32 %v8998, %v9232
      %9234 = vmatmul.bf16.gmra.mxu0 %v9019
      %v9235 = vpop.f32.mrf.mxu0
      %v9236 = vadd.f32 %v8998, %v9235
      %v9237 = vpop.f32.mrf.mxu0
      %v9238 = vadd.f32 %v8998, %v9237
      %9239 = vmatmul.bf16.gmra.mxu0 %v9022
      %v9240 = vpop.f32.mrf.mxu0
      %v9241 = vadd.f32 %v8998, %v9240
      %v9242 = vpop.f32.mrf.mxu0
      %v9243 = vadd.f32 %v8998, %v9242
      %9244 = vmatmul.bf16.gmra.mxu0 %v9025
      %v9245 = vpop.f32.mrf.mxu0
      %v9246 = vadd.f32 %v8998, %v9245
      %v9247 = vpop.f32.mrf.mxu0
      %v9248 = vadd.f32 %v8998, %v9247
      %9249 = vmatmul.bf16.gmra.mxu0 %v9028
      %v9250 = vpop.f32.mrf.mxu0
      %v9251 = vadd.f32 %v8998, %v9250
      %v9252 = vpop.f32.mrf.mxu0
      %v9253 = vadd.f32 %v8998, %v9252
      %9254 = vmatmul.bf16.gmra.mxu0 %v9031
      %v9255 = vpop.f32.mrf.mxu0
      %v9256 = vadd.f32 %v8998, %v9255
      %v9257 = vpop.f32.mrf.mxu0
      %v9258 = vadd.f32 %v8998, %v9257
      %9259 = vmatmul.bf16.gmra.mxu0 %v9034
      %v9260 = vpop.f32.mrf.mxu0
      %v9261 = vadd.f32 %v8998, %v9260
      %v9262 = vpop.f32.mrf.mxu0
      %v9263 = vadd.f32 %v8998, %v9262
      %9264 = vmatmul.bf16.gmra.mxu0 %v9037
      %v9265 = vpop.f32.mrf.mxu0
      %v9266 = vadd.f32 %v8998, %v9265
      %v9267 = vpop.f32.mrf.mxu0
      %v9268 = vadd.f32 %v8998, %v9267
      %9269 = vmatmul.bf16.gmra.mxu0 %v9040
      %v9270 = vpop.f32.mrf.mxu0
      %v9271 = vadd.f32 %v8998, %v9270
      %v9272 = vpop.f32.mrf.mxu0
      %v9273 = vadd.f32 %v8998, %v9272
      %9274 = vmatmul.bf16.gmra.mxu0 %v9043
      %v9275 = vpop.f32.mrf.mxu0
      %v9276 = vadd.f32 %v8998, %v9275
      %v9277 = vpop.f32.mrf.mxu0
      %v9278 = vadd.f32 %v8998, %v9277
      %9279 = vmatmul.bf16.gmra.mxu0 %v9046
      %v9280 = vpop.f32.mrf.mxu0
      %v9281 = vadd.f32 %v8998, %v9280
      %v9282 = vpop.f32.mrf.mxu0
      %v9283 = vadd.f32 %v8998, %v9282
      %9284 = vmatmul.bf16.gmra.mxu0 %v9049
      %v9285 = vpop.f32.mrf.mxu0
      %v9286 = vadd.f32 %v8998, %v9285
      %v9287 = vpop.f32.mrf.mxu0
      %v9288 = vadd.f32 %v8998, %v9287
      %9289 = vmatmul.bf16.gmra.mxu0 %v9052
      %v9290 = vpop.f32.mrf.mxu0
      %v9291 = vadd.f32 %v8998, %v9290
      %v9292 = vpop.f32.mrf.mxu0
      %v9293 = vadd.f32 %v8998, %v9292
      %9294 = vmatmul.bf16.gmra.mxu0 %v9055
      %v9295 = vpop.f32.mrf.mxu0
      %v9296 = vadd.f32 %v8998, %v9295
      %v9297 = vpop.f32.mrf.mxu0
      %v9298 = vadd.f32 %v8998, %v9297
      %9299 = vmatmul.bf16.gmra.mxu0 %v9058
      %v9300 = vpop.f32.mrf.mxu0
      %v9301 = vadd.f32 %v8998, %v9300
      %v9302 = vpop.f32.mrf.mxu0
      %v9303 = vadd.f32 %v8998, %v9302
      %9304 = vmatmul.bf16.gmra.mxu0 %v9061
      %v9305 = vpop.f32.mrf.mxu0
      %v9306 = vadd.f32 %v8998, %v9305
      %v9307 = vpop.f32.mrf.mxu0
      %v9308 = vadd.f32 %v8998, %v9307
      %9309 = vmatmul.bf16.gmra.mxu0 %v9064
      %v9310 = vpop.f32.mrf.mxu0
      %v9311 = vadd.f32 %v8998, %v9310
      %v9312 = vpop.f32.mrf.mxu0
      %v9313 = vadd.f32 %v8998, %v9312
      %9314 = vmatmul.bf16.gmra.mxu0 %v9067
      %v9315 = vpop.f32.mrf.mxu0
      %v9316 = vadd.f32 %v8998, %v9315
      %v9317 = vpop.f32.mrf.mxu0
      %v9318 = vadd.f32 %v8998, %v9317
      %9319 = vmatmul.bf16.gmra.mxu0 %v9070
      %v9320 = vpop.f32.mrf.mxu0
      %v9321 = vadd.f32 %v8998, %v9320
      %v9322 = vpop.f32.mrf.mxu0
      %v9323 = vadd.f32 %v8998, %v9322
      %9324 = vmatmul.bf16.gmra.mxu0 %v9073
      %v9325 = vpop.f32.mrf.mxu0
      %v9326 = vadd.f32 %v8998, %v9325
      %v9327 = vpop.f32.mrf.mxu0
      %v9328 = vadd.f32 %v8998, %v9327
      %9329 = vmatmul.bf16.gmra.mxu0 %v9076
      %v9330 = vpop.f32.mrf.mxu0
      %v9331 = vadd.f32 %v8998, %v9330
      %v9332 = vpop.f32.mrf.mxu0
      %v9333 = vadd.f32 %v8998, %v9332
      %9334 = vmatmul.bf16.gmra.mxu0 %v9079
      %v9335 = vpop.f32.mrf.mxu0
      %v9336 = vadd.f32 %v8998, %v9335
      %v9337 = vpop.f32.mrf.mxu0
      %v9338 = vadd.f32 %v8998, %v9337
      %9339 = vmatmul.bf16.gmra.mxu0 %v9082
      %v9340 = vpop.f32.mrf.mxu0
      %v9341 = vadd.f32 %v8998, %v9340
      %v9342 = vpop.f32.mrf.mxu0
      %v9343 = vadd.f32 %v8998, %v9342
      %9344 = vmatmul.bf16.gmra.mxu0 %v9085
      %v9345 = vpop.f32.mrf.mxu0
      %v9346 = vadd.f32 %v8998, %v9345
      %v9347 = vpop.f32.mrf.mxu0
      %v9348 = vadd.f32 %v8998, %v9347
      %9349 = vmatmul.bf16.gmra.mxu0 %v9088
      %v9350 = vpop.f32.mrf.mxu0
      %v9351 = vadd.f32 %v8998, %v9350
      %v9352 = vpop.f32.mrf.mxu0
      %v9353 = vadd.f32 %v8998, %v9352
      %9354 = vmatmul.bf16.gmra.mxu0 %v9091
      %v9355 = vpop.f32.mrf.mxu0
      %v9356 = vadd.f32 %v8998, %v9355
      %v9357 = vpop.f32.mrf.mxu0
      %v9358 = vadd.f32 %v8998, %v9357
      %9359 = vmatmul.bf16.gmra.mxu0 %v9094
      %v9360 = vpop.f32.mrf.mxu0
      %v9361 = vadd.f32 %v8998, %v9360
      %v9362 = vpop.f32.mrf.mxu0
      %v9363 = vadd.f32 %v8998, %v9362
      %9364 = vmatmul.bf16.gmra.mxu0 %v9097
      %v9365 = vpop.f32.mrf.mxu0
      %v9366 = vadd.f32 %v8998, %v9365
      %v9367 = vpop.f32.mrf.mxu0
      %v9368 = vadd.f32 %v8998, %v9367
      %9369 = vmatmul.bf16.gmra.mxu0 %v9100
      %v9370 = vpop.f32.mrf.mxu0
      %v9371 = vadd.f32 %v8998, %v9370
      %v9372 = vpop.f32.mrf.mxu0
      %v9373 = vadd.f32 %v8998, %v9372
      %9374 = vmatmul.bf16.gmra.mxu0 %v9103
      %v9375 = vpop.f32.mrf.mxu0
      %v9376 = vadd.f32 %v8998, %v9375
      %v9377 = vpop.f32.mrf.mxu0
      %v9378 = vadd.f32 %v8998, %v9377
      %9379 = vmatmul.bf16.gmra.mxu0 %v9106
      %v9380 = vpop.f32.mrf.mxu0
      %v9381 = vadd.f32 %v8998, %v9380
      %v9382 = vpop.f32.mrf.mxu0
      %v9383 = vadd.f32 %v8998, %v9382
      %9384 = vmatmul.bf16.gmra.mxu0 %v9109
      %v9385 = vpop.f32.mrf.mxu0
      %v9386 = vadd.f32 %v8998, %v9385
      %v9387 = vpop.f32.mrf.mxu0
      %v9388 = vadd.f32 %v8998, %v9387
      %9389 = vmatmul.bf16.gmra.mxu0 %v9112
      %v9390 = vpop.f32.mrf.mxu0
      %v9391 = vadd.f32 %v8998, %v9390
      %v9392 = vpop.f32.mrf.mxu0
      %v9393 = vadd.f32 %v8998, %v9392
      %9394 = vmatmul.bf16.gmra.mxu0 %v9115
      %v9395 = vpop.f32.mrf.mxu0
      %v9396 = vadd.f32 %v8998, %v9395
      %v9397 = vpop.f32.mrf.mxu0
      %v9398 = vadd.f32 %v8998, %v9397
      %9399 = vmatmul.bf16.gmra.mxu0 %v9118
      %v9400 = vpop.f32.mrf.mxu0
      %v9401 = vadd.f32 %v8998, %v9400
      %v9402 = vpop.f32.mrf.mxu0
      %v9403 = vadd.f32 %v8998, %v9402
      %9404 = vmatmul.bf16.gmra.mxu0 %v9121
      %v9405 = vpop.f32.mrf.mxu0
      %v9406 = vadd.f32 %v8998, %v9405
      %v9407 = vpop.f32.mrf.mxu0
      %v9408 = vadd.f32 %v8998, %v9407
      %9409 = vmatmul.bf16.gmra.mxu0 %v9124
      %v9410 = vpop.f32.mrf.mxu0
      %v9411 = vadd.f32 %v8998, %v9410
      %v9412 = vpop.f32.mrf.mxu0
      %v9413 = vadd.f32 %v8998, %v9412
      %9414 = vmatmul.bf16.gmra.mxu0 %v9127
      %v9415 = vpop.f32.mrf.mxu0
      %v9416 = vadd.f32 %v8998, %v9415
      %v9417 = vpop.f32.mrf.mxu0
      %v9418 = vadd.f32 %v8998, %v9417
      %9419 = vmatmul.bf16.gmra.mxu0 %v9130
      %v9420 = vpop.f32.mrf.mxu0
      %v9421 = vadd.f32 %v8998, %v9420
      %v9422 = vpop.f32.mrf.mxu0
      %v9423 = vadd.f32 %v8998, %v9422
      %9424 = vmatmul.bf16.gmra.mxu0 %v9133
      %v9425 = vpop.f32.mrf.mxu0
      %v9426 = vadd.f32 %v8998, %v9425
      %v9427 = vpop.f32.mrf.mxu0
      %v9428 = vadd.f32 %v8998, %v9427
      %9429 = vmatmul.bf16.gmra.mxu0 %v9136
      %v9430 = vpop.f32.mrf.mxu0
      %v9431 = vadd.f32 %v8998, %v9430
      %v9432 = vpop.f32.mrf.mxu0
      %v9433 = vadd.f32 %v8998, %v9432
      %9434 = vmatmul.bf16.gmra.mxu0 %v9139
      %v9435 = vpop.f32.mrf.mxu0
      %v9436 = vadd.f32 %v8998, %v9435
      %v9437 = vpop.f32.mrf.mxu0
      %v9438 = vadd.f32 %v8998, %v9437
      %9439 = vmatmul.bf16.gmra.mxu0 %v9142
      %v9440 = vpop.f32.mrf.mxu0
      %v9441 = vadd.f32 %v8998, %v9440
      %v9442 = vpop.f32.mrf.mxu0
      %v9443 = vadd.f32 %v8998, %v9442
      %9444 = vmatmul.bf16.gmra.mxu0 %v9145
      %v9445 = vpop.f32.mrf.mxu0
      %v9446 = vadd.f32 %v8998, %v9445
      %v9447 = vpop.f32.mrf.mxu0
      %v9448 = vadd.f32 %v8998, %v9447
      %9449 = vmatmul.bf16.gmra.mxu0 %v9148
      %v9450 = vpop.f32.mrf.mxu0
      %v9451 = vadd.f32 %v8998, %v9450
      %v9452 = vpop.f32.mrf.mxu0
      %v9453 = vadd.f32 %v8998, %v9452
      %9454 = vmatmul.bf16.gmra.mxu0 %v9151
      %v9455 = vpop.f32.mrf.mxu0
      %v9456 = vadd.f32 %v8998, %v9455
      %v9457 = vpop.f32.mrf.mxu0
      %v9458 = vadd.f32 %v8998, %v9457
      %9459 = vmatmul.bf16.gmra.mxu0 %v9154
      %v9460 = vpop.f32.mrf.mxu0
      %v9461 = vadd.f32 %v8998, %v9460
      %v9462 = vpop.f32.mrf.mxu0
      %v9463 = vadd.f32 %v8998, %v9462
      %9464 = vmatmul.bf16.gmra.mxu0 %v9157
      %v9465 = vpop.f32.mrf.mxu0
      %v9466 = vadd.f32 %v8998, %v9465
      %v9467 = vpop.f32.mrf.mxu0
      %v9468 = vadd.f32 %v8998, %v9467
      %9469 = vmatmul.bf16.gmra.mxu0 %v9160
      %v9470 = vpop.f32.mrf.mxu0
      %v9471 = vadd.f32 %v8998, %v9470
      %v9472 = vpop.f32.mrf.mxu0
      %v9473 = vadd.f32 %v8998, %v9472
      %9474 = vmatmul.bf16.gmra.mxu0 %v9163
      %v9475 = vpop.f32.mrf.mxu0
      %v9476 = vadd.f32 %v8998, %v9475
      %v9477 = vpop.f32.mrf.mxu0
      %v9478 = vadd.f32 %v8998, %v9477
      %9479 = vmatmul.bf16.gmra.mxu0 %v9166
      %v9480 = vpop.f32.mrf.mxu0
      %v9481 = vadd.f32 %v8998, %v9480
      %v9482 = vpop.f32.mrf.mxu0
      %v9483 = vadd.f32 %v8998, %v9482
      %9484 = vmatmul.bf16.gmra.mxu0 %v9169
      %v9485 = vpop.f32.mrf.mxu0
      %v9486 = vadd.f32 %v8998, %v9485
      %v9487 = vpop.f32.mrf.mxu0
      %v9488 = vadd.f32 %v8998, %v9487
      %9489 = vmatmul.bf16.gmra.mxu0 %v9172
      %v9490 = vpop.f32.mrf.mxu0
      %v9491 = vadd.f32 %v8998, %v9490
      %v9492 = vpop.f32.mrf.mxu0
      %v9493 = vadd.f32 %v8998, %v9492
      %9494 = vmatmul.bf16.gmra.mxu0 %v9175
      %v9495 = vpop.f32.mrf.mxu0
      %v9496 = vadd.f32 %v8998, %v9495
      %v9497 = vpop.f32.mrf.mxu0
      %v9498 = vadd.f32 %v8998, %v9497
      %9499 = vmatmul.bf16.gmra.mxu0 %v9178
      %v9500 = vpop.f32.mrf.mxu0
      %v9501 = vadd.f32 %v8998, %v9500
      %v9502 = vpop.f32.mrf.mxu0
      %v9503 = vadd.f32 %v8998, %v9502
      %9504 = vmatmul.bf16.gmra.mxu0 %v9181
      %v9505 = vpop.f32.mrf.mxu0
      %v9506 = vadd.f32 %v8998, %v9505
      %v9507 = vpop.f32.mrf.mxu0
      %v9508 = vadd.f32 %v8998, %v9507
      %9509 = vmatmul.bf16.gmra.mxu0 %v9184
      %v9510 = vpop.f32.mrf.mxu0
      %v9511 = vadd.f32 %v8998, %v9510
      %v9512 = vpop.f32.mrf.mxu0
      %v9513 = vadd.f32 %v8998, %v9512
      %9514 = vmatmul.bf16.gmra.mxu0 %v9187
      %v9515 = vpop.f32.mrf.mxu0
      %v9516 = vadd.f32 %v8998, %v9515
      %v9517 = vpop.f32.mrf.mxu0
      %v9518 = vadd.f32 %v8998, %v9517
      %9519 = vmatmul.bf16.gmra.mxu0 %v9190
      %v9520 = vpop.f32.mrf.mxu0
      %v9521 = vadd.f32 %v8998, %v9520
      %v9522 = vpop.f32.mrf.mxu0
      %v9523 = vadd.f32 %v8998, %v9522
      %9524 = vdwg.mxu0
      %vm9525 = vcmask 64512
      %v9526 = vsel %vm9525, %v9206, 0.0
      %v9527 = vsel %vm9525, %v9208, 0.0
      %v9528 = vadd.f32 %v9526, %v9527
      %v9529 = vsel %vm9525, %v9211, 0.0
      %v9530 = vadd.f32 %v9528, %v9529
      %v9531 = vsel %vm9525, %v9213, 0.0
      %v9532 = vadd.f32 %v9530, %v9531
      %v9533 = vsel %vm9525, %v9216, 0.0
      %v9534 = vadd.f32 %v9532, %v9533
      %v9535 = vsel %vm9525, %v9218, 0.0
      %v9536 = vadd.f32 %v9534, %v9535
      %v9537 = vsel %vm9525, %v9221, 0.0
      %v9538 = vadd.f32 %v9536, %v9537
      %v9539 = vsel %vm9525, %v9223, 0.0
      %v9540 = vadd.f32 %v9538, %v9539
      %v9541 = vsel %vm9525, %v9226, 0.0
      %v9542 = vadd.f32 %v9540, %v9541
      %v9543 = vsel %vm9525, %v9228, 0.0
      %v9544 = vadd.f32 %v9542, %v9543
      %v9545 = vsel %vm9525, %v9231, 0.0
      %v9546 = vadd.f32 %v9544, %v9545
      %v9547 = vsel %vm9525, %v9233, 0.0
      %v9548 = vadd.f32 %v9546, %v9547
      %v9549 = vsel %vm9525, %v9236, 0.0
      %v9550 = vadd.f32 %v9548, %v9549
      %v9551 = vsel %vm9525, %v9238, 0.0
      %v9552 = vadd.f32 %v9550, %v9551
      %v9553 = vsel %vm9525, %v9241, 0.0
      %v9554 = vadd.f32 %v9552, %v9553
      %v9555 = vsel %vm9525, %v9243, 0.0
      %v9556 = vadd.f32 %v9554, %v9555
      %v9557 = vsel %vm9525, %v9246, 0.0
      %v9558 = vadd.f32 %v9556, %v9557
      %v9559 = vsel %vm9525, %v9248, 0.0
      %v9560 = vadd.f32 %v9558, %v9559
      %v9561 = vsel %vm9525, %v9251, 0.0
      %v9562 = vadd.f32 %v9560, %v9561
      %v9563 = vsel %vm9525, %v9253, 0.0
      %v9564 = vadd.f32 %v9562, %v9563
      %v9565 = vsel %vm9525, %v9256, 0.0
      %v9566 = vadd.f32 %v9564, %v9565
      %v9567 = vsel %vm9525, %v9258, 0.0
      %v9568 = vadd.f32 %v9566, %v9567
      %v9569 = vsel %vm9525, %v9261, 0.0
      %v9570 = vadd.f32 %v9568, %v9569
      %v9571 = vsel %vm9525, %v9263, 0.0
      %v9572 = vadd.f32 %v9570, %v9571
      %v9573 = vsel %vm9525, %v9266, 0.0
      %v9574 = vadd.f32 %v9572, %v9573
      %v9575 = vsel %vm9525, %v9268, 0.0
      %v9576 = vadd.f32 %v9574, %v9575
      %v9577 = vsel %vm9525, %v9271, 0.0
      %v9578 = vadd.f32 %v9576, %v9577
      %v9579 = vsel %vm9525, %v9273, 0.0
      %v9580 = vadd.f32 %v9578, %v9579
      %v9581 = vsel %vm9525, %v9276, 0.0
      %v9582 = vadd.f32 %v9580, %v9581
      %v9583 = vsel %vm9525, %v9278, 0.0
      %v9584 = vadd.f32 %v9582, %v9583
      %v9585 = vsel %vm9525, %v9281, 0.0
      %v9586 = vadd.f32 %v9584, %v9585
      %v9587 = vsel %vm9525, %v9283, 0.0
      %v9588 = vadd.f32 %v9586, %v9587
      %v9589 = vsel %vm9525, %v9286, 0.0
      %v9590 = vadd.f32 %v9588, %v9589
      %v9591 = vsel %vm9525, %v9288, 0.0
      %v9592 = vadd.f32 %v9590, %v9591
      %v9593 = vsel %vm9525, %v9291, 0.0
      %v9594 = vadd.f32 %v9592, %v9593
      %v9595 = vsel %vm9525, %v9293, 0.0
      %v9596 = vadd.f32 %v9594, %v9595
      %v9597 = vsel %vm9525, %v9296, 0.0
      %v9598 = vadd.f32 %v9596, %v9597
      %v9599 = vsel %vm9525, %v9298, 0.0
      %v9600 = vadd.f32 %v9598, %v9599
      %v9601 = vsel %vm9525, %v9301, 0.0
      %v9602 = vadd.f32 %v9600, %v9601
      %v9603 = vsel %vm9525, %v9303, 0.0
      %v9604 = vadd.f32 %v9602, %v9603
      %v9605 = vsel %vm9525, %v9306, 0.0
      %v9606 = vadd.f32 %v9604, %v9605
      %v9607 = vsel %vm9525, %v9308, 0.0
      %v9608 = vadd.f32 %v9606, %v9607
      %v9609 = vsel %vm9525, %v9311, 0.0
      %v9610 = vadd.f32 %v9608, %v9609
      %v9611 = vsel %vm9525, %v9313, 0.0
      %v9612 = vadd.f32 %v9610, %v9611
      %v9613 = vsel %vm9525, %v9316, 0.0
      %v9614 = vadd.f32 %v9612, %v9613
      %v9615 = vsel %vm9525, %v9318, 0.0
      %v9616 = vadd.f32 %v9614, %v9615
      %v9617 = vsel %vm9525, %v9321, 0.0
      %v9618 = vadd.f32 %v9616, %v9617
      %v9619 = vsel %vm9525, %v9323, 0.0
      %v9620 = vadd.f32 %v9618, %v9619
      %v9621 = vsel %vm9525, %v9326, 0.0
      %v9622 = vadd.f32 %v9620, %v9621
      %v9623 = vsel %vm9525, %v9328, 0.0
      %v9624 = vadd.f32 %v9622, %v9623
      %v9625 = vsel %vm9525, %v9331, 0.0
      %v9626 = vadd.f32 %v9624, %v9625
      %v9627 = vsel %vm9525, %v9333, 0.0
      %v9628 = vadd.f32 %v9626, %v9627
      %v9629 = vsel %vm9525, %v9336, 0.0
      %v9630 = vadd.f32 %v9628, %v9629
      %v9631 = vsel %vm9525, %v9338, 0.0
      %v9632 = vadd.f32 %v9630, %v9631
      %v9633 = vsel %vm9525, %v9341, 0.0
      %v9634 = vadd.f32 %v9632, %v9633
      %v9635 = vsel %vm9525, %v9343, 0.0
      %v9636 = vadd.f32 %v9634, %v9635
      %v9637 = vsel %vm9525, %v9346, 0.0
      %v9638 = vadd.f32 %v9636, %v9637
      %v9639 = vsel %vm9525, %v9348, 0.0
      %v9640 = vadd.f32 %v9638, %v9639
      %v9641 = vsel %vm9525, %v9351, 0.0
      %v9642 = vadd.f32 %v9640, %v9641
      %v9643 = vsel %vm9525, %v9353, 0.0
      %v9644 = vadd.f32 %v9642, %v9643
      %v9645 = vsel %vm9525, %v9356, 0.0
      %v9646 = vadd.f32 %v9644, %v9645
      %v9647 = vsel %vm9525, %v9358, 0.0
      %v9648 = vadd.f32 %v9646, %v9647
      %v9649 = vsel %vm9525, %v9361, 0.0
      %v9650 = vadd.f32 %v9648, %v9649
      %v9651 = vsel %vm9525, %v9363, 0.0
      %v9652 = vadd.f32 %v9650, %v9651
      %v9653 = vsel %vm9525, %v9366, 0.0
      %v9654 = vadd.f32 %v9652, %v9653
      %v9655 = vsel %vm9525, %v9368, 0.0
      %v9656 = vadd.f32 %v9654, %v9655
      %v9657 = vsel %vm9525, %v9371, 0.0
      %v9658 = vadd.f32 %v9656, %v9657
      %v9659 = vsel %vm9525, %v9373, 0.0
      %v9660 = vadd.f32 %v9658, %v9659
      %v9661 = vsel %vm9525, %v9376, 0.0
      %v9662 = vadd.f32 %v9660, %v9661
      %v9663 = vsel %vm9525, %v9378, 0.0
      %v9664 = vadd.f32 %v9662, %v9663
      %v9665 = vsel %vm9525, %v9381, 0.0
      %v9666 = vadd.f32 %v9664, %v9665
      %v9667 = vsel %vm9525, %v9383, 0.0
      %v9668 = vadd.f32 %v9666, %v9667
      %v9669 = vsel %vm9525, %v9386, 0.0
      %v9670 = vadd.f32 %v9668, %v9669
      %v9671 = vsel %vm9525, %v9388, 0.0
      %v9672 = vadd.f32 %v9670, %v9671
      %v9673 = vsel %vm9525, %v9391, 0.0
      %v9674 = vadd.f32 %v9672, %v9673
      %v9675 = vsel %vm9525, %v9393, 0.0
      %v9676 = vadd.f32 %v9674, %v9675
      %v9677 = vsel %vm9525, %v9396, 0.0
      %v9678 = vadd.f32 %v9676, %v9677
      %v9679 = vsel %vm9525, %v9398, 0.0
      %v9680 = vadd.f32 %v9678, %v9679
      %v9681 = vsel %vm9525, %v9401, 0.0
      %v9682 = vadd.f32 %v9680, %v9681
      %v9683 = vsel %vm9525, %v9403, 0.0
      %v9684 = vadd.f32 %v9682, %v9683
      %v9685 = vsel %vm9525, %v9406, 0.0
      %v9686 = vadd.f32 %v9684, %v9685
      %v9687 = vsel %vm9525, %v9408, 0.0
      %v9688 = vadd.f32 %v9686, %v9687
      %v9689 = vsel %vm9525, %v9411, 0.0
      %v9690 = vadd.f32 %v9688, %v9689
      %v9691 = vsel %vm9525, %v9413, 0.0
      %v9692 = vadd.f32 %v9690, %v9691
      %v9693 = vsel %vm9525, %v9416, 0.0
      %v9694 = vadd.f32 %v9692, %v9693
      %v9695 = vsel %vm9525, %v9418, 0.0
      %v9696 = vadd.f32 %v9694, %v9695
      %v9697 = vsel %vm9525, %v9421, 0.0
      %v9698 = vadd.f32 %v9696, %v9697
      %v9699 = vsel %vm9525, %v9423, 0.0
      %v9700 = vadd.f32 %v9698, %v9699
      %v9701 = vsel %vm9525, %v9426, 0.0
      %v9702 = vadd.f32 %v9700, %v9701
      %v9703 = vsel %vm9525, %v9428, 0.0
      %v9704 = vadd.f32 %v9702, %v9703
      %v9705 = vsel %vm9525, %v9431, 0.0
      %v9706 = vadd.f32 %v9704, %v9705
      %v9707 = vsel %vm9525, %v9433, 0.0
      %v9708 = vadd.f32 %v9706, %v9707
      %v9709 = vsel %vm9525, %v9436, 0.0
      %v9710 = vadd.f32 %v9708, %v9709
      %v9711 = vsel %vm9525, %v9438, 0.0
      %v9712 = vadd.f32 %v9710, %v9711
      %v9713 = vsel %vm9525, %v9441, 0.0
      %v9714 = vadd.f32 %v9712, %v9713
      %v9715 = vsel %vm9525, %v9443, 0.0
      %v9716 = vadd.f32 %v9714, %v9715
      %v9717 = vsel %vm9525, %v9446, 0.0
      %v9718 = vadd.f32 %v9716, %v9717
      %v9719 = vsel %vm9525, %v9448, 0.0
      %v9720 = vadd.f32 %v9718, %v9719
      %v9721 = vsel %vm9525, %v9451, 0.0
      %v9722 = vadd.f32 %v9720, %v9721
      %v9723 = vsel %vm9525, %v9453, 0.0
      %v9724 = vadd.f32 %v9722, %v9723
      %v9725 = vsel %vm9525, %v9456, 0.0
      %v9726 = vadd.f32 %v9724, %v9725
      %v9727 = vsel %vm9525, %v9458, 0.0
      %v9728 = vadd.f32 %v9726, %v9727
      %v9729 = vsel %vm9525, %v9461, 0.0
      %v9730 = vadd.f32 %v9728, %v9729
      %v9731 = vsel %vm9525, %v9463, 0.0
      %v9732 = vadd.f32 %v9730, %v9731
      %v9733 = vsel %vm9525, %v9466, 0.0
      %v9734 = vadd.f32 %v9732, %v9733
      %v9735 = vsel %vm9525, %v9468, 0.0
      %v9736 = vadd.f32 %v9734, %v9735
      %v9737 = vsel %vm9525, %v9471, 0.0
      %v9738 = vadd.f32 %v9736, %v9737
      %v9739 = vsel %vm9525, %v9473, 0.0
      %v9740 = vadd.f32 %v9738, %v9739
      %v9741 = vsel %vm9525, %v9476, 0.0
      %v9742 = vadd.f32 %v9740, %v9741
      %v9743 = vsel %vm9525, %v9478, 0.0
      %v9744 = vadd.f32 %v9742, %v9743
      %v9745 = vsel %vm9525, %v9481, 0.0
      %v9746 = vadd.f32 %v9744, %v9745
      %v9747 = vsel %vm9525, %v9483, 0.0
      %v9748 = vadd.f32 %v9746, %v9747
      %v9749 = vsel %vm9525, %v9486, 0.0
      %v9750 = vadd.f32 %v9748, %v9749
      %v9751 = vsel %vm9525, %v9488, 0.0
      %v9752 = vadd.f32 %v9750, %v9751
      %v9753 = vsel %vm9525, %v9491, 0.0
      %v9754 = vadd.f32 %v9752, %v9753
      %v9755 = vsel %vm9525, %v9493, 0.0
      %v9756 = vadd.f32 %v9754, %v9755
      %v9757 = vsel %vm9525, %v9496, 0.0
      %v9758 = vadd.f32 %v9756, %v9757
      %v9759 = vsel %vm9525, %v9498, 0.0
      %v9760 = vadd.f32 %v9758, %v9759
      %v9761 = vsel %vm9525, %v9501, 0.0
      %v9762 = vadd.f32 %v9760, %v9761
      %v9763 = vsel %vm9525, %v9503, 0.0
      %v9764 = vadd.f32 %v9762, %v9763
      %v9765 = vsel %vm9525, %v9506, 0.0
      %v9766 = vadd.f32 %v9764, %v9765
      %v9767 = vsel %vm9525, %v9508, 0.0
      %v9768 = vadd.f32 %v9766, %v9767
      %v9769 = vsel %vm9525, %v9511, 0.0
      %v9770 = vadd.f32 %v9768, %v9769
      %v9771 = vsel %vm9525, %v9513, 0.0
      %v9772 = vadd.f32 %v9770, %v9771
      %v9773 = vsel %vm9525, %v9516, 0.0
      %v9774 = vadd.f32 %v9772, %v9773
      %v9775 = vsel %vm9525, %v9518, 0.0
      %v9776 = vadd.f32 %v9774, %v9775
      %v9777 = vsel %vm9525, %v9521, 0.0
      %v9778 = vadd.f32 %v9776, %v9777
      %v9779 = vsel %vm9525, %v9523, 0.0
      %v9780 = vadd.f32 %v9778, %v9779
      %9781 = vadd.xlane.f32.xlu0 %v9780
      %v9782 = vpop.xlane.xlu0 %9781
      %v9783 = vrot.slane %v9782, 4
      %v9784 = vadd.f32 %v9782, %v9783
      %v9785 = vrot.slane %v9784, 2
      %v9786 = vadd.f32 %v9784, %v9785
      %v9787 = vrot.slane %v9786, 1
      %v9788 = vadd.f32 %v9786, %v9787
      %s9789 = vtos %v9788
      %v9790 = vstv %s9789
      %v9791 = vrcp.pop 8192.0
      %v9792 = vmul.f32 8192.0, %v9791
      %v9793 = vsub.f32 1.0, %v9792
      %v9794 = vmul.f32 %v9791, %v9793
      %v9795 = vadd.f32 %v9791, %v9794
      %vm9796 = vweird.f32 %v9791
      %v9797 = vsel %vm9796, %v9791, %v9795
      %v9798 = vmul.f32 %v9790, %v9797
      %v9799 = vsub.f32 %v9206, %v9798
      %v9800 = vsub.f32 %v9208, %v9798
      %v9801 = vsub.f32 %v9211, %v9798
      %v9802 = vsub.f32 %v9213, %v9798
      %v9803 = vsub.f32 %v9216, %v9798
      %v9804 = vsub.f32 %v9218, %v9798
      %v9805 = vsub.f32 %v9221, %v9798
      %v9806 = vsub.f32 %v9223, %v9798
      %v9807 = vsub.f32 %v9226, %v9798
      %v9808 = vsub.f32 %v9228, %v9798
      %v9809 = vsub.f32 %v9231, %v9798
      %v9810 = vsub.f32 %v9233, %v9798
      %v9811 = vsub.f32 %v9236, %v9798
      %v9812 = vsub.f32 %v9238, %v9798
      %v9813 = vsub.f32 %v9241, %v9798
      %v9814 = vsub.f32 %v9243, %v9798
      %v9815 = vsub.f32 %v9246, %v9798
      %v9816 = vsub.f32 %v9248, %v9798
      %v9817 = vsub.f32 %v9251, %v9798
      %v9818 = vsub.f32 %v9253, %v9798
      %v9819 = vsub.f32 %v9256, %v9798
      %v9820 = vsub.f32 %v9258, %v9798
      %v9821 = vsub.f32 %v9261, %v9798
      %v9822 = vsub.f32 %v9263, %v9798
      %v9823 = vsub.f32 %v9266, %v9798
      %v9824 = vsub.f32 %v9268, %v9798
      %v9825 = vsub.f32 %v9271, %v9798
      %v9826 = vsub.f32 %v9273, %v9798
      %v9827 = vsub.f32 %v9276, %v9798
      %v9828 = vsub.f32 %v9278, %v9798
      %v9829 = vsub.f32 %v9281, %v9798
      %v9830 = vsub.f32 %v9283, %v9798
      %v9831 = vsub.f32 %v9286, %v9798
      %v9832 = vsub.f32 %v9288, %v9798
      %v9833 = vsub.f32 %v9291, %v9798
      %v9834 = vsub.f32 %v9293, %v9798
      %v9835 = vsub.f32 %v9296, %v9798
      %v9836 = vsub.f32 %v9298, %v9798
      %v9837 = vsub.f32 %v9301, %v9798
      %v9838 = vsub.f32 %v9303, %v9798
      %v9839 = vsub.f32 %v9306, %v9798
      %v9840 = vsub.f32 %v9308, %v9798
      %v9841 = vsub.f32 %v9311, %v9798
      %v9842 = vsub.f32 %v9313, %v9798
      %v9843 = vsub.f32 %v9316, %v9798
      %v9844 = vsub.f32 %v9318, %v9798
      %v9845 = vsub.f32 %v9321, %v9798
      %v9846 = vsub.f32 %v9323, %v9798
      %v9847 = vsub.f32 %v9326, %v9798
      %v9848 = vsub.f32 %v9328, %v9798
      %v9849 = vsub.f32 %v9331, %v9798
      %v9850 = vsub.f32 %v9333, %v9798
      %v9851 = vsub.f32 %v9336, %v9798
      %v9852 = vsub.f32 %v9338, %v9798
      %v9853 = vsub.f32 %v9341, %v9798
      %v9854 = vsub.f32 %v9343, %v9798
      %v9855 = vsub.f32 %v9346, %v9798
      %v9856 = vsub.f32 %v9348, %v9798
      %v9857 = vsub.f32 %v9351, %v9798
      %v9858 = vsub.f32 %v9353, %v9798
      %v9859 = vsub.f32 %v9356, %v9798
      %v9860 = vsub.f32 %v9358, %v9798
      %v9861 = vsub.f32 %v9361, %v9798
      %v9862 = vsub.f32 %v9363, %v9798
      %v9863 = vsub.f32 %v9366, %v9798
      %v9864 = vsub.f32 %v9368, %v9798
      %v9865 = vsub.f32 %v9371, %v9798
      %v9866 = vsub.f32 %v9373, %v9798
      %v9867 = vsub.f32 %v9376, %v9798
      %v9868 = vsub.f32 %v9378, %v9798
      %v9869 = vsub.f32 %v9381, %v9798
      %v9870 = vsub.f32 %v9383, %v9798
      %v9871 = vsub.f32 %v9386, %v9798
      %v9872 = vsub.f32 %v9388, %v9798
      %v9873 = vsub.f32 %v9391, %v9798
      %v9874 = vsub.f32 %v9393, %v9798
      %v9875 = vsub.f32 %v9396, %v9798
      %v9876 = vsub.f32 %v9398, %v9798
      %v9877 = vsub.f32 %v9401, %v9798
      %v9878 = vsub.f32 %v9403, %v9798
      %v9879 = vsub.f32 %v9406, %v9798
      %v9880 = vsub.f32 %v9408, %v9798
      %v9881 = vsub.f32 %v9411, %v9798
      %v9882 = vsub.f32 %v9413, %v9798
      %v9883 = vsub.f32 %v9416, %v9798
      %v9884 = vsub.f32 %v9418, %v9798
      %v9885 = vsub.f32 %v9421, %v9798
      %v9886 = vsub.f32 %v9423, %v9798
      %v9887 = vsub.f32 %v9426, %v9798
      %v9888 = vsub.f32 %v9428, %v9798
      %v9889 = vsub.f32 %v9431, %v9798
      %v9890 = vsub.f32 %v9433, %v9798
      %v9891 = vsub.f32 %v9436, %v9798
      %v9892 = vsub.f32 %v9438, %v9798
      %v9893 = vsub.f32 %v9441, %v9798
      %v9894 = vsub.f32 %v9443, %v9798
      %v9895 = vsub.f32 %v9446, %v9798
      %v9896 = vsub.f32 %v9448, %v9798
      %v9897 = vsub.f32 %v9451, %v9798
      %v9898 = vsub.f32 %v9453, %v9798
      %v9899 = vsub.f32 %v9456, %v9798
      %v9900 = vsub.f32 %v9458, %v9798
      %v9901 = vsub.f32 %v9461, %v9798
      %v9902 = vsub.f32 %v9463, %v9798
      %v9903 = vsub.f32 %v9466, %v9798
      %v9904 = vsub.f32 %v9468, %v9798
      %v9905 = vsub.f32 %v9471, %v9798
      %v9906 = vsub.f32 %v9473, %v9798
      %v9907 = vsub.f32 %v9476, %v9798
      %v9908 = vsub.f32 %v9478, %v9798
      %v9909 = vsub.f32 %v9481, %v9798
      %v9910 = vsub.f32 %v9483, %v9798
      %v9911 = vsub.f32 %v9486, %v9798
      %v9912 = vsub.f32 %v9488, %v9798
      %v9913 = vsub.f32 %v9491, %v9798
      %v9914 = vsub.f32 %v9493, %v9798
      %v9915 = vsub.f32 %v9496, %v9798
      %v9916 = vsub.f32 %v9498, %v9798
      %v9917 = vsub.f32 %v9501, %v9798
      %v9918 = vsub.f32 %v9503, %v9798
      %v9919 = vsub.f32 %v9506, %v9798
      %v9920 = vsub.f32 %v9508, %v9798
      %v9921 = vsub.f32 %v9511, %v9798
      %v9922 = vsub.f32 %v9513, %v9798
      %v9923 = vsub.f32 %v9516, %v9798
      %v9924 = vsub.f32 %v9518, %v9798
      %v9925 = vsub.f32 %v9521, %v9798
      %v9926 = vsub.f32 %v9523, %v9798
      %v9927 = vmul.f32 %v9799, %v9799
      %v9928 = vmul.f32 %v9800, %v9800
      %v9929 = vmul.f32 %v9801, %v9801
      %v9930 = vmul.f32 %v9802, %v9802
      %v9931 = vmul.f32 %v9803, %v9803
      %v9932 = vmul.f32 %v9804, %v9804
      %v9933 = vmul.f32 %v9805, %v9805
      %v9934 = vmul.f32 %v9806, %v9806
      %v9935 = vmul.f32 %v9807, %v9807
      %v9936 = vmul.f32 %v9808, %v9808
      %v9937 = vmul.f32 %v9809, %v9809
      %v9938 = vmul.f32 %v9810, %v9810
      %v9939 = vmul.f32 %v9811, %v9811
      %v9940 = vmul.f32 %v9812, %v9812
      %v9941 = vmul.f32 %v9813, %v9813
      %v9942 = vmul.f32 %v9814, %v9814
      %v9943 = vmul.f32 %v9815, %v9815
      %v9944 = vmul.f32 %v9816, %v9816
      %v9945 = vmul.f32 %v9817, %v9817
      %v9946 = vmul.f32 %v9818, %v9818
      %v9947 = vmul.f32 %v9819, %v9819
      %v9948 = vmul.f32 %v9820, %v9820
      %v9949 = vmul.f32 %v9821, %v9821
      %v9950 = vmul.f32 %v9822, %v9822
      %v9951 = vmul.f32 %v9823, %v9823
      %v9952 = vmul.f32 %v9824, %v9824
      %v9953 = vmul.f32 %v9825, %v9825
      %v9954 = vmul.f32 %v9826, %v9826
      %v9955 = vmul.f32 %v9827, %v9827
      %v9956 = vmul.f32 %v9828, %v9828
      %v9957 = vmul.f32 %v9829, %v9829
      %v9958 = vmul.f32 %v9830, %v9830
      %v9959 = vmul.f32 %v9831, %v9831
      %v9960 = vmul.f32 %v9832, %v9832
      %v9961 = vmul.f32 %v9833, %v9833
      %v9962 = vmul.f32 %v9834, %v9834
      %v9963 = vmul.f32 %v9835, %v9835
      %v9964 = vmul.f32 %v9836, %v9836
      %v9965 = vmul.f32 %v9837, %v9837
      %v9966 = vmul.f32 %v9838, %v9838
      %v9967 = vmul.f32 %v9839, %v9839
      %v9968 = vmul.f32 %v9840, %v9840
      %v9969 = vmul.f32 %v9841, %v9841
      %v9970 = vmul.f32 %v9842, %v9842
      %v9971 = vmul.f32 %v9843, %v9843
      %v9972 = vmul.f32 %v9844, %v9844
      %v9973 = vmul.f32 %v9845, %v9845
      %v9974 = vmul.f32 %v9846, %v9846
      %v9975 = vmul.f32 %v9847, %v9847
      %v9976 = vmul.f32 %v9848, %v9848
      %v9977 = vmul.f32 %v9849, %v9849
      %v9978 = vmul.f32 %v9850, %v9850
      %v9979 = vmul.f32 %v9851, %v9851
      %v9980 = vmul.f32 %v9852, %v9852
      %v9981 = vmul.f32 %v9853, %v9853
      %v9982 = vmul.f32 %v9854, %v9854
      %v9983 = vmul.f32 %v9855, %v9855
      %v9984 = vmul.f32 %v9856, %v9856
      %v9985 = vmul.f32 %v9857, %v9857
      %v9986 = vmul.f32 %v9858, %v9858
      %v9987 = vmul.f32 %v9859, %v9859
      %v9988 = vmul.f32 %v9860, %v9860
      %v9989 = vmul.f32 %v9861, %v9861
      %v9990 = vmul.f32 %v9862, %v9862
      %v9991 = vmul.f32 %v9863, %v9863
      %v9992 = vmul.f32 %v9864, %v9864
      %v9993 = vmul.f32 %v9865, %v9865
      %v9994 = vmul.f32 %v9866, %v9866
      %v9995 = vmul.f32 %v9867, %v9867
      %v9996 = vmul.f32 %v9868, %v9868
      %v9997 = vmul.f32 %v9869, %v9869
      %v9998 = vmul.f32 %v9870, %v9870
      %v9999 = vmul.f32 %v9871, %v9871
      %v10000 = vmul.f32 %v9872, %v9872
      %v10001 = vmul.f32 %v9873, %v9873
      %v10002 = vmul.f32 %v9874, %v9874
      %v10003 = vmul.f32 %v9875, %v9875
      %v10004 = vmul.f32 %v9876, %v9876
      %v10005 = vmul.f32 %v9877, %v9877
      %v10006 = vmul.f32 %v9878, %v9878
      %v10007 = vmul.f32 %v9879, %v9879
      %v10008 = vmul.f32 %v9880, %v9880
      %v10009 = vmul.f32 %v9881, %v9881
      %v10010 = vmul.f32 %v9882, %v9882
      %v10011 = vmul.f32 %v9883, %v9883
      %v10012 = vmul.f32 %v9884, %v9884
      %v10013 = vmul.f32 %v9885, %v9885
      %v10014 = vmul.f32 %v9886, %v9886
      %v10015 = vmul.f32 %v9887, %v9887
      %v10016 = vmul.f32 %v9888, %v9888
      %v10017 = vmul.f32 %v9889, %v9889
      %v10018 = vmul.f32 %v9890, %v9890
      %v10019 = vmul.f32 %v9891, %v9891
      %v10020 = vmul.f32 %v9892, %v9892
      %v10021 = vmul.f32 %v9893, %v9893
      %v10022 = vmul.f32 %v9894, %v9894
      %v10023 = vmul.f32 %v9895, %v9895
      %v10024 = vmul.f32 %v9896, %v9896
      %v10025 = vmul.f32 %v9897, %v9897
      %v10026 = vmul.f32 %v9898, %v9898
      %v10027 = vmul.f32 %v9899, %v9899
      %v10028 = vmul.f32 %v9900, %v9900
      %v10029 = vmul.f32 %v9901, %v9901
      %v10030 = vmul.f32 %v9902, %v9902
      %v10031 = vmul.f32 %v9903, %v9903
      %v10032 = vmul.f32 %v9904, %v9904
      %v10033 = vmul.f32 %v9905, %v9905
      %v10034 = vmul.f32 %v9906, %v9906
      %v10035 = vmul.f32 %v9907, %v9907
      %v10036 = vmul.f32 %v9908, %v9908
      %v10037 = vmul.f32 %v9909, %v9909
      %v10038 = vmul.f32 %v9910, %v9910
      %v10039 = vmul.f32 %v9911, %v9911
      %v10040 = vmul.f32 %v9912, %v9912
      %v10041 = vmul.f32 %v9913, %v9913
      %v10042 = vmul.f32 %v9914, %v9914
      %v10043 = vmul.f32 %v9915, %v9915
      %v10044 = vmul.f32 %v9916, %v9916
      %v10045 = vmul.f32 %v9917, %v9917
      %v10046 = vmul.f32 %v9918, %v9918
      %v10047 = vmul.f32 %v9919, %v9919
      %v10048 = vmul.f32 %v9920, %v9920
      %v10049 = vmul.f32 %v9921, %v9921
      %v10050 = vmul.f32 %v9922, %v9922
      %v10051 = vmul.f32 %v9923, %v9923
      %v10052 = vmul.f32 %v9924, %v9924
      %v10053 = vmul.f32 %v9925, %v9925
      %v10054 = vmul.f32 %v9926, %v9926
      %v10055 = vsel %vm9525, %v9927, 0.0
      %v10056 = vsel %vm9525, %v9928, 0.0
      %v10057 = vadd.f32 %v10055, %v10056
      %v10058 = vsel %vm9525, %v9929, 0.0
      %v10059 = vadd.f32 %v10057, %v10058
      %v10060 = vsel %vm9525, %v9930, 0.0
      %v10061 = vadd.f32 %v10059, %v10060
      %v10062 = vsel %vm9525, %v9931, 0.0
      %v10063 = vadd.f32 %v10061, %v10062
      %v10064 = vsel %vm9525, %v9932, 0.0
      %v10065 = vadd.f32 %v10063, %v10064
      %v10066 = vsel %vm9525, %v9933, 0.0
      %v10067 = vadd.f32 %v10065, %v10066
      %v10068 = vsel %vm9525, %v9934, 0.0
      %v10069 = vadd.f32 %v10067, %v10068
      %v10070 = vsel %vm9525, %v9935, 0.0
      %v10071 = vadd.f32 %v10069, %v10070
      %v10072 = vsel %vm9525, %v9936, 0.0
      %v10073 = vadd.f32 %v10071, %v10072
      %v10074 = vsel %vm9525, %v9937, 0.0
      %v10075 = vadd.f32 %v10073, %v10074
      %v10076 = vsel %vm9525, %v9938, 0.0
      %v10077 = vadd.f32 %v10075, %v10076
      %v10078 = vsel %vm9525, %v9939, 0.0
      %v10079 = vadd.f32 %v10077, %v10078
      %v10080 = vsel %vm9525, %v9940, 0.0
      %v10081 = vadd.f32 %v10079, %v10080
      %v10082 = vsel %vm9525, %v9941, 0.0
      %v10083 = vadd.f32 %v10081, %v10082
      %v10084 = vsel %vm9525, %v9942, 0.0
      %v10085 = vadd.f32 %v10083, %v10084
      %v10086 = vsel %vm9525, %v9943, 0.0
      %v10087 = vadd.f32 %v10085, %v10086
      %v10088 = vsel %vm9525, %v9944, 0.0
      %v10089 = vadd.f32 %v10087, %v10088
      %v10090 = vsel %vm9525, %v9945, 0.0
      %v10091 = vadd.f32 %v10089, %v10090
      %v10092 = vsel %vm9525, %v9946, 0.0
      %v10093 = vadd.f32 %v10091, %v10092
      %v10094 = vsel %vm9525, %v9947, 0.0
      %v10095 = vadd.f32 %v10093, %v10094
      %v10096 = vsel %vm9525, %v9948, 0.0
      %v10097 = vadd.f32 %v10095, %v10096
      %v10098 = vsel %vm9525, %v9949, 0.0
      %v10099 = vadd.f32 %v10097, %v10098
      %v10100 = vsel %vm9525, %v9950, 0.0
      %v10101 = vadd.f32 %v10099, %v10100
      %v10102 = vsel %vm9525, %v9951, 0.0
      %v10103 = vadd.f32 %v10101, %v10102
      %v10104 = vsel %vm9525, %v9952, 0.0
      %v10105 = vadd.f32 %v10103, %v10104
      %v10106 = vsel %vm9525, %v9953, 0.0
      %v10107 = vadd.f32 %v10105, %v10106
      %v10108 = vsel %vm9525, %v9954, 0.0
      %v10109 = vadd.f32 %v10107, %v10108
      %v10110 = vsel %vm9525, %v9955, 0.0
      %v10111 = vadd.f32 %v10109, %v10110
      %v10112 = vsel %vm9525, %v9956, 0.0
      %v10113 = vadd.f32 %v10111, %v10112
      %v10114 = vsel %vm9525, %v9957, 0.0
      %v10115 = vadd.f32 %v10113, %v10114
      %v10116 = vsel %vm9525, %v9958, 0.0
      %v10117 = vadd.f32 %v10115, %v10116
      %v10118 = vsel %vm9525, %v9959, 0.0
      %v10119 = vadd.f32 %v10117, %v10118
      %v10120 = vsel %vm9525, %v9960, 0.0
      %v10121 = vadd.f32 %v10119, %v10120
      %v10122 = vsel %vm9525, %v9961, 0.0
      %v10123 = vadd.f32 %v10121, %v10122
      %v10124 = vsel %vm9525, %v9962, 0.0
      %v10125 = vadd.f32 %v10123, %v10124
      %v10126 = vsel %vm9525, %v9963, 0.0
      %v10127 = vadd.f32 %v10125, %v10126
      %v10128 = vsel %vm9525, %v9964, 0.0
      %v10129 = vadd.f32 %v10127, %v10128
      %v10130 = vsel %vm9525, %v9965, 0.0
      %v10131 = vadd.f32 %v10129, %v10130
      %v10132 = vsel %vm9525, %v9966, 0.0
      %v10133 = vadd.f32 %v10131, %v10132
      %v10134 = vsel %vm9525, %v9967, 0.0
      %v10135 = vadd.f32 %v10133, %v10134
      %v10136 = vsel %vm9525, %v9968, 0.0
      %v10137 = vadd.f32 %v10135, %v10136
      %v10138 = vsel %vm9525, %v9969, 0.0
      %v10139 = vadd.f32 %v10137, %v10138
      %v10140 = vsel %vm9525, %v9970, 0.0
      %v10141 = vadd.f32 %v10139, %v10140
      %v10142 = vsel %vm9525, %v9971, 0.0
      %v10143 = vadd.f32 %v10141, %v10142
      %v10144 = vsel %vm9525, %v9972, 0.0
      %v10145 = vadd.f32 %v10143, %v10144
      %v10146 = vsel %vm9525, %v9973, 0.0
      %v10147 = vadd.f32 %v10145, %v10146
      %v10148 = vsel %vm9525, %v9974, 0.0
      %v10149 = vadd.f32 %v10147, %v10148
      %v10150 = vsel %vm9525, %v9975, 0.0
      %v10151 = vadd.f32 %v10149, %v10150
      %v10152 = vsel %vm9525, %v9976, 0.0
      %v10153 = vadd.f32 %v10151, %v10152
      %v10154 = vsel %vm9525, %v9977, 0.0
      %v10155 = vadd.f32 %v10153, %v10154
      %v10156 = vsel %vm9525, %v9978, 0.0
      %v10157 = vadd.f32 %v10155, %v10156
      %v10158 = vsel %vm9525, %v9979, 0.0
      %v10159 = vadd.f32 %v10157, %v10158
      %v10160 = vsel %vm9525, %v9980, 0.0
      %v10161 = vadd.f32 %v10159, %v10160
      %v10162 = vsel %vm9525, %v9981, 0.0
      %v10163 = vadd.f32 %v10161, %v10162
      %v10164 = vsel %vm9525, %v9982, 0.0
      %v10165 = vadd.f32 %v10163, %v10164
      %v10166 = vsel %vm9525, %v9983, 0.0
      %v10167 = vadd.f32 %v10165, %v10166
      %v10168 = vsel %vm9525, %v9984, 0.0
      %v10169 = vadd.f32 %v10167, %v10168
      %v10170 = vsel %vm9525, %v9985, 0.0
      %v10171 = vadd.f32 %v10169, %v10170
      %v10172 = vsel %vm9525, %v9986, 0.0
      %v10173 = vadd.f32 %v10171, %v10172
      %v10174 = vsel %vm9525, %v9987, 0.0
      %v10175 = vadd.f32 %v10173, %v10174
      %v10176 = vsel %vm9525, %v9988, 0.0
      %v10177 = vadd.f32 %v10175, %v10176
      %v10178 = vsel %vm9525, %v9989, 0.0
      %v10179 = vadd.f32 %v10177, %v10178
      %v10180 = vsel %vm9525, %v9990, 0.0
      %v10181 = vadd.f32 %v10179, %v10180
      %v10182 = vsel %vm9525, %v9991, 0.0
      %v10183 = vadd.f32 %v10181, %v10182
      %v10184 = vsel %vm9525, %v9992, 0.0
      %v10185 = vadd.f32 %v10183, %v10184
      %v10186 = vsel %vm9525, %v9993, 0.0
      %v10187 = vadd.f32 %v10185, %v10186
      %v10188 = vsel %vm9525, %v9994, 0.0
      %v10189 = vadd.f32 %v10187, %v10188
      %v10190 = vsel %vm9525, %v9995, 0.0
      %v10191 = vadd.f32 %v10189, %v10190
      %v10192 = vsel %vm9525, %v9996, 0.0
      %v10193 = vadd.f32 %v10191, %v10192
      %v10194 = vsel %vm9525, %v9997, 0.0
      %v10195 = vadd.f32 %v10193, %v10194
      %v10196 = vsel %vm9525, %v9998, 0.0
      %v10197 = vadd.f32 %v10195, %v10196
      %v10198 = vsel %vm9525, %v9999, 0.0
      %v10199 = vadd.f32 %v10197, %v10198
      %v10200 = vsel %vm9525, %v10000, 0.0
      %v10201 = vadd.f32 %v10199, %v10200
      %v10202 = vsel %vm9525, %v10001, 0.0
      %v10203 = vadd.f32 %v10201, %v10202
      %v10204 = vsel %vm9525, %v10002, 0.0
      %v10205 = vadd.f32 %v10203, %v10204
      %v10206 = vsel %vm9525, %v10003, 0.0
      %v10207 = vadd.f32 %v10205, %v10206
      %v10208 = vsel %vm9525, %v10004, 0.0
      %v10209 = vadd.f32 %v10207, %v10208
      %v10210 = vsel %vm9525, %v10005, 0.0
      %v10211 = vadd.f32 %v10209, %v10210
      %v10212 = vsel %vm9525, %v10006, 0.0
      %v10213 = vadd.f32 %v10211, %v10212
      %v10214 = vsel %vm9525, %v10007, 0.0
      %v10215 = vadd.f32 %v10213, %v10214
      %v10216 = vsel %vm9525, %v10008, 0.0
      %v10217 = vadd.f32 %v10215, %v10216
      %v10218 = vsel %vm9525, %v10009, 0.0
      %v10219 = vadd.f32 %v10217, %v10218
      %v10220 = vsel %vm9525, %v10010, 0.0
      %v10221 = vadd.f32 %v10219, %v10220
      %v10222 = vsel %vm9525, %v10011, 0.0
      %v10223 = vadd.f32 %v10221, %v10222
      %v10224 = vsel %vm9525, %v10012, 0.0
      %v10225 = vadd.f32 %v10223, %v10224
      %v10226 = vsel %vm9525, %v10013, 0.0
      %v10227 = vadd.f32 %v10225, %v10226
      %v10228 = vsel %vm9525, %v10014, 0.0
      %v10229 = vadd.f32 %v10227, %v10228
      %v10230 = vsel %vm9525, %v10015, 0.0
      %v10231 = vadd.f32 %v10229, %v10230
      %v10232 = vsel %vm9525, %v10016, 0.0
      %v10233 = vadd.f32 %v10231, %v10232
      %v10234 = vsel %vm9525, %v10017, 0.0
      %v10235 = vadd.f32 %v10233, %v10234
      %v10236 = vsel %vm9525, %v10018, 0.0
      %v10237 = vadd.f32 %v10235, %v10236
      %v10238 = vsel %vm9525, %v10019, 0.0
      %v10239 = vadd.f32 %v10237, %v10238
      %v10240 = vsel %vm9525, %v10020, 0.0
      %v10241 = vadd.f32 %v10239, %v10240
      %v10242 = vsel %vm9525, %v10021, 0.0
      %v10243 = vadd.f32 %v10241, %v10242
      %v10244 = vsel %vm9525, %v10022, 0.0
      %v10245 = vadd.f32 %v10243, %v10244
      %v10246 = vsel %vm9525, %v10023, 0.0
      %v10247 = vadd.f32 %v10245, %v10246
      %v10248 = vsel %vm9525, %v10024, 0.0
      %v10249 = vadd.f32 %v10247, %v10248
      %v10250 = vsel %vm9525, %v10025, 0.0
      %v10251 = vadd.f32 %v10249, %v10250
      %v10252 = vsel %vm9525, %v10026, 0.0
      %v10253 = vadd.f32 %v10251, %v10252
      %v10254 = vsel %vm9525, %v10027, 0.0
      %v10255 = vadd.f32 %v10253, %v10254
      %v10256 = vsel %vm9525, %v10028, 0.0
      %v10257 = vadd.f32 %v10255, %v10256
      %v10258 = vsel %vm9525, %v10029, 0.0
      %v10259 = vadd.f32 %v10257, %v10258
      %v10260 = vsel %vm9525, %v10030, 0.0
      %v10261 = vadd.f32 %v10259, %v10260
      %v10262 = vsel %vm9525, %v10031, 0.0
      %v10263 = vadd.f32 %v10261, %v10262
      %v10264 = vsel %vm9525, %v10032, 0.0
      %v10265 = vadd.f32 %v10263, %v10264
      %v10266 = vsel %vm9525, %v10033, 0.0
      %v10267 = vadd.f32 %v10265, %v10266
      %v10268 = vsel %vm9525, %v10034, 0.0
      %v10269 = vadd.f32 %v10267, %v10268
      %v10270 = vsel %vm9525, %v10035, 0.0
      %v10271 = vadd.f32 %v10269, %v10270
      %v10272 = vsel %vm9525, %v10036, 0.0
      %v10273 = vadd.f32 %v10271, %v10272
      %v10274 = vsel %vm9525, %v10037, 0.0
      %v10275 = vadd.f32 %v10273, %v10274
      %v10276 = vsel %vm9525, %v10038, 0.0
      %v10277 = vadd.f32 %v10275, %v10276
      %v10278 = vsel %vm9525, %v10039, 0.0
      %v10279 = vadd.f32 %v10277, %v10278
      %v10280 = vsel %vm9525, %v10040, 0.0
      %v10281 = vadd.f32 %v10279, %v10280
      %v10282 = vsel %vm9525, %v10041, 0.0
      %v10283 = vadd.f32 %v10281, %v10282
      %v10284 = vsel %vm9525, %v10042, 0.0
      %v10285 = vadd.f32 %v10283, %v10284
      %v10286 = vsel %vm9525, %v10043, 0.0
      %v10287 = vadd.f32 %v10285, %v10286
      %v10288 = vsel %vm9525, %v10044, 0.0
      %v10289 = vadd.f32 %v10287, %v10288
      %v10290 = vsel %vm9525, %v10045, 0.0
      %v10291 = vadd.f32 %v10289, %v10290
      %v10292 = vsel %vm9525, %v10046, 0.0
      %v10293 = vadd.f32 %v10291, %v10292
      %v10294 = vsel %vm9525, %v10047, 0.0
      %v10295 = vadd.f32 %v10293, %v10294
      %v10296 = vsel %vm9525, %v10048, 0.0
      %v10297 = vadd.f32 %v10295, %v10296
      %v10298 = vsel %vm9525, %v10049, 0.0
      %v10299 = vadd.f32 %v10297, %v10298
      %v10300 = vsel %vm9525, %v10050, 0.0
      %v10301 = vadd.f32 %v10299, %v10300
      %v10302 = vsel %vm9525, %v10051, 0.0
      %v10303 = vadd.f32 %v10301, %v10302
      %v10304 = vsel %vm9525, %v10052, 0.0
      %v10305 = vadd.f32 %v10303, %v10304
      %v10306 = vsel %vm9525, %v10053, 0.0
      %v10307 = vadd.f32 %v10305, %v10306
      %v10308 = vsel %vm9525, %v10054, 0.0
      %v10309 = vadd.f32 %v10307, %v10308
      %10310 = vadd.xlane.f32.xlu0 %v10309
      %v10311 = vpop.xlane.xlu0 %10310
      %v10312 = vrot.slane %v10311, 4
      %v10313 = vadd.f32 %v10311, %v10312
      %v10314 = vrot.slane %v10313, 2
      %v10315 = vadd.f32 %v10313, %v10314
      %v10316 = vrot.slane %v10315, 1
      %v10317 = vadd.f32 %v10315, %v10316
      %s10318 = vtos %v10317
      %v10319 = vstv %s10318
      %v10320 = vmul.f32 %v10319, %v9797
      %v10321 = vadd.f32 %v10320, 1e-05
      %v10322 = vrsqrt.pop %v10321
      %v10323 = vmul.f32 %v10322, %v10321
      %v10324 = vmul.f32 %v10323, %v10322
      %v10325 = vmul.f32 0.5, %v10324
      %v10326 = vsub.f32 1.5, %v10325
      %v10327 = vmul.f32 %v10322, %v10326
      %vm10328 = vweird.f32 %v10321
      %vm10329 = vweird.f32 %v10322
      %vm10330 = vmor %vm10328, %vm10329
      %v10331 = vsel %vm10330, %v10322, %v10327
      %v10332 = vmul.f32 %v9799, %v10331
      %v10333 = vmul.f32 %v9800, %v10331
      %v10334 = vmul.f32 %v9801, %v10331
      %v10335 = vmul.f32 %v9802, %v10331
      %v10336 = vmul.f32 %v9803, %v10331
      %v10337 = vmul.f32 %v9804, %v10331
      %v10338 = vmul.f32 %v9805, %v10331
      %v10339 = vmul.f32 %v9806, %v10331
      %v10340 = vmul.f32 %v9807, %v10331
      %v10341 = vmul.f32 %v9808, %v10331
      %v10342 = vmul.f32 %v9809, %v10331
      %v10343 = vmul.f32 %v9810, %v10331
      %v10344 = vmul.f32 %v9811, %v10331
      %v10345 = vmul.f32 %v9812, %v10331
      %v10346 = vmul.f32 %v9813, %v10331
      %v10347 = vmul.f32 %v9814, %v10331
      %v10348 = vmul.f32 %v9815, %v10331
      %v10349 = vmul.f32 %v9816, %v10331
      %v10350 = vmul.f32 %v9817, %v10331
      %v10351 = vmul.f32 %v9818, %v10331
      %v10352 = vmul.f32 %v9819, %v10331
      %v10353 = vmul.f32 %v9820, %v10331
      %v10354 = vmul.f32 %v9821, %v10331
      %v10355 = vmul.f32 %v9822, %v10331
      %v10356 = vmul.f32 %v9823, %v10331
      %v10357 = vmul.f32 %v9824, %v10331
      %v10358 = vmul.f32 %v9825, %v10331
      %v10359 = vmul.f32 %v9826, %v10331
      %v10360 = vmul.f32 %v9827, %v10331
      %v10361 = vmul.f32 %v9828, %v10331
      %v10362 = vmul.f32 %v9829, %v10331
      %v10363 = vmul.f32 %v9830, %v10331
      %v10364 = vmul.f32 %v9831, %v10331
      %v10365 = vmul.f32 %v9832, %v10331
      %v10366 = vmul.f32 %v9833, %v10331
      %v10367 = vmul.f32 %v9834, %v10331
      %v10368 = vmul.f32 %v9835, %v10331
      %v10369 = vmul.f32 %v9836, %v10331
      %v10370 = vmul.f32 %v9837, %v10331
      %v10371 = vmul.f32 %v9838, %v10331
      %v10372 = vmul.f32 %v9839, %v10331
      %v10373 = vmul.f32 %v9840, %v10331
      %v10374 = vmul.f32 %v9841, %v10331
      %v10375 = vmul.f32 %v9842, %v10331
      %v10376 = vmul.f32 %v9843, %v10331
      %v10377 = vmul.f32 %v9844, %v10331
      %v10378 = vmul.f32 %v9845, %v10331
      %v10379 = vmul.f32 %v9846, %v10331
      %v10380 = vmul.f32 %v9847, %v10331
      %v10381 = vmul.f32 %v9848, %v10331
      %v10382 = vmul.f32 %v9849, %v10331
      %v10383 = vmul.f32 %v9850, %v10331
      %v10384 = vmul.f32 %v9851, %v10331
      %v10385 = vmul.f32 %v9852, %v10331
      %v10386 = vmul.f32 %v9853, %v10331
      %v10387 = vmul.f32 %v9854, %v10331
      %v10388 = vmul.f32 %v9855, %v10331
      %v10389 = vmul.f32 %v9856, %v10331
      %v10390 = vmul.f32 %v9857, %v10331
      %v10391 = vmul.f32 %v9858, %v10331
      %v10392 = vmul.f32 %v9859, %v10331
      %v10393 = vmul.f32 %v9860, %v10331
      %v10394 = vmul.f32 %v9861, %v10331
      %v10395 = vmul.f32 %v9862, %v10331
      %v10396 = vmul.f32 %v9863, %v10331
      %v10397 = vmul.f32 %v9864, %v10331
      %v10398 = vmul.f32 %v9865, %v10331
      %v10399 = vmul.f32 %v9866, %v10331
      %v10400 = vmul.f32 %v9867, %v10331
      %v10401 = vmul.f32 %v9868, %v10331
      %v10402 = vmul.f32 %v9869, %v10331
      %v10403 = vmul.f32 %v9870, %v10331
      %v10404 = vmul.f32 %v9871, %v10331
      %v10405 = vmul.f32 %v9872, %v10331
      %v10406 = vmul.f32 %v9873, %v10331
      %v10407 = vmul.f32 %v9874, %v10331
      %v10408 = vmul.f32 %v9875, %v10331
      %v10409 = vmul.f32 %v9876, %v10331
      %v10410 = vmul.f32 %v9877, %v10331
      %v10411 = vmul.f32 %v9878, %v10331
      %v10412 = vmul.f32 %v9879, %v10331
      %v10413 = vmul.f32 %v9880, %v10331
      %v10414 = vmul.f32 %v9881, %v10331
      %v10415 = vmul.f32 %v9882, %v10331
      %v10416 = vmul.f32 %v9883, %v10331
      %v10417 = vmul.f32 %v9884, %v10331
      %v10418 = vmul.f32 %v9885, %v10331
      %v10419 = vmul.f32 %v9886, %v10331
      %v10420 = vmul.f32 %v9887, %v10331
      %v10421 = vmul.f32 %v9888, %v10331
      %v10422 = vmul.f32 %v9889, %v10331
      %v10423 = vmul.f32 %v9890, %v10331
      %v10424 = vmul.f32 %v9891, %v10331
      %v10425 = vmul.f32 %v9892, %v10331
      %v10426 = vmul.f32 %v9893, %v10331
      %v10427 = vmul.f32 %v9894, %v10331
      %v10428 = vmul.f32 %v9895, %v10331
      %v10429 = vmul.f32 %v9896, %v10331
      %v10430 = vmul.f32 %v9897, %v10331
      %v10431 = vmul.f32 %v9898, %v10331
      %v10432 = vmul.f32 %v9899, %v10331
      %v10433 = vmul.f32 %v9900, %v10331
      %v10434 = vmul.f32 %v9901, %v10331
      %v10435 = vmul.f32 %v9902, %v10331
      %v10436 = vmul.f32 %v9903, %v10331
      %v10437 = vmul.f32 %v9904, %v10331
      %v10438 = vmul.f32 %v9905, %v10331
      %v10439 = vmul.f32 %v9906, %v10331
      %v10440 = vmul.f32 %v9907, %v10331
      %v10441 = vmul.f32 %v9908, %v10331
      %v10442 = vmul.f32 %v9909, %v10331
      %v10443 = vmul.f32 %v9910, %v10331
      %v10444 = vmul.f32 %v9911, %v10331
      %v10445 = vmul.f32 %v9912, %v10331
      %v10446 = vmul.f32 %v9913, %v10331
      %v10447 = vmul.f32 %v9914, %v10331
      %v10448 = vmul.f32 %v9915, %v10331
      %v10449 = vmul.f32 %v9916, %v10331
      %v10450 = vmul.f32 %v9917, %v10331
      %v10451 = vmul.f32 %v9918, %v10331
      %v10452 = vmul.f32 %v9919, %v10331
      %v10453 = vmul.f32 %v9920, %v10331
      %v10454 = vmul.f32 %v9921, %v10331
      %v10455 = vmul.f32 %v9922, %v10331
      %v10456 = vmul.f32 %v9923, %v10331
      %v10457 = vmul.f32 %v9924, %v10331
      %v10458 = vmul.f32 %v9925, %v10331
      %v10459 = vmul.f32 %v9926, %v10331
      %v10460 = vld [vmem:[%s3] sm:$0xff]
      %v10461 = vld [vmem:[%s3 + $0x8] sm:$0xff]
      %v10462 = vld [vmem:[%s3 + $0x10] sm:$0xff]
      %v10463 = vld [vmem:[%s3 + $0x18] sm:$0xff]
      %v10464 = vld [vmem:[%s3 + $0x20] sm:$0xff]
      %v10465 = vld [vmem:[%s3 + $0x28] sm:$0xff]
      %v10466 = vld [vmem:[%s3 + $0x30] sm:$0xff]
      %v10467 = vld [vmem:[%s3 + $0x38] sm:$0xff]
      %v10468 = vld [vmem:[%s3 + $0x40] sm:$0xff]
      %v10469 = vld [vmem:[%s3 + $0x48] sm:$0xff]
      %v10470 = vld [vmem:[%s3 + $0x50] sm:$0xff]
      %v10471 = vld [vmem:[%s3 + $0x58] sm:$0xff]
      %v10472 = vld [vmem:[%s3 + $0x60] sm:$0xff]
      %v10473 = vld [vmem:[%s3 + $0x68] sm:$0xff]
      %v10474 = vld [vmem:[%s3 + $0x70] sm:$0xff]
      %v10475 = vld [vmem:[%s3 + $0x78] sm:$0xff]
      %v10476 = vld [vmem:[%s3 + $0x80] sm:$0xff]
      %v10477 = vld [vmem:[%s3 + $0x88] sm:$0xff]
      %v10478 = vld [vmem:[%s3 + $0x90] sm:$0xff]
      %v10479 = vld [vmem:[%s3 + $0x98] sm:$0xff]
      %v10480 = vld [vmem:[%s3 + $0xa0] sm:$0xff]
      %v10481 = vld [vmem:[%s3 + $0xa8] sm:$0xff]
      %v10482 = vld [vmem:[%s3 + $0xb0] sm:$0xff]
      %v10483 = vld [vmem:[%s3 + $0xb8] sm:$0xff]
      %v10484 = vld [vmem:[%s3 + $0xc0] sm:$0xff]
      %v10485 = vld [vmem:[%s3 + $0xc8] sm:$0xff]
      %v10486 = vld [vmem:[%s3 + $0xd0] sm:$0xff]
      %v10487 = vld [vmem:[%s3 + $0xd8] sm:$0xff]
      %v10488 = vld [vmem:[%s3 + $0xe0] sm:$0xff]
      %v10489 = vld [vmem:[%s3 + $0xe8] sm:$0xff]
      %v10490 = vld [vmem:[%s3 + $0xf0] sm:$0xff]
      %v10491 = vld [vmem:[%s3 + $0xf8] sm:$0xff]
      %v10492 = vld [vmem:[%s3 + $0x100] sm:$0xff]
      %v10493 = vld [vmem:[%s3 + $0x108] sm:$0xff]
      %v10494 = vld [vmem:[%s3 + $0x110] sm:$0xff]
      %v10495 = vld [vmem:[%s3 + $0x118] sm:$0xff]
      %v10496 = vld [vmem:[%s3 + $0x120] sm:$0xff]
      %v10497 = vld [vmem:[%s3 + $0x128] sm:$0xff]
      %v10498 = vld [vmem:[%s3 + $0x130] sm:$0xff]
      %v10499 = vld [vmem:[%s3 + $0x138] sm:$0xff]
      %v10500 = vld [vmem:[%s3 + $0x140] sm:$0xff]
      %v10501 = vld [vmem:[%s3 + $0x148] sm:$0xff]
      %v10502 = vld [vmem:[%s3 + $0x150] sm:$0xff]
      %v10503 = vld [vmem:[%s3 + $0x158] sm:$0xff]
      %v10504 = vld [vmem:[%s3 + $0x160] sm:$0xff]
      %v10505 = vld [vmem:[%s3 + $0x168] sm:$0xff]
      %v10506 = vld [vmem:[%s3 + $0x170] sm:$0xff]
      %v10507 = vld [vmem:[%s3 + $0x178] sm:$0xff]
      %v10508 = vld [vmem:[%s3 + $0x180] sm:$0xff]
      %v10509 = vld [vmem:[%s3 + $0x188] sm:$0xff]
      %v10510 = vld [vmem:[%s3 + $0x190] sm:$0xff]
      %v10511 = vld [vmem:[%s3 + $0x198] sm:$0xff]
      %v10512 = vld [vmem:[%s3 + $0x1a0] sm:$0xff]
      %v10513 = vld [vmem:[%s3 + $0x1a8] sm:$0xff]
      %v10514 = vld [vmem:[%s3 + $0x1b0] sm:$0xff]
      %v10515 = vld [vmem:[%s3 + $0x1b8] sm:$0xff]
      %v10516 = vld [vmem:[%s3 + $0x1c0] sm:$0xff]
      %v10517 = vld [vmem:[%s3 + $0x1c8] sm:$0xff]
      %v10518 = vld [vmem:[%s3 + $0x1d0] sm:$0xff]
      %v10519 = vld [vmem:[%s3 + $0x1d8] sm:$0xff]
      %v10520 = vld [vmem:[%s3 + $0x1e0] sm:$0xff]
      %v10521 = vld [vmem:[%s3 + $0x1e8] sm:$0xff]
      %v10522 = vld [vmem:[%s3 + $0x1f0] sm:$0xff]
      %v10523 = vld [vmem:[%s3 + $0x1f8] sm:$0xff]
      %v10524 = vld [vmem:[%s3 + $0x200] sm:$0xff]
      %v10525 = vld [vmem:[%s3 + $0x208] sm:$0xff]
      %v10526 = vld [vmem:[%s3 + $0x210] sm:$0xff]
      %v10527 = vld [vmem:[%s3 + $0x218] sm:$0xff]
      %v10528 = vld [vmem:[%s3 + $0x220] sm:$0xff]
      %v10529 = vld [vmem:[%s3 + $0x228] sm:$0xff]
      %v10530 = vld [vmem:[%s3 + $0x230] sm:$0xff]
      %v10531 = vld [vmem:[%s3 + $0x238] sm:$0xff]
      %v10532 = vld [vmem:[%s3 + $0x240] sm:$0xff]
      %v10533 = vld [vmem:[%s3 + $0x248] sm:$0xff]
      %v10534 = vld [vmem:[%s3 + $0x250] sm:$0xff]
      %v10535 = vld [vmem:[%s3 + $0x258] sm:$0xff]
      %v10536 = vld [vmem:[%s3 + $0x260] sm:$0xff]
      %v10537 = vld [vmem:[%s3 + $0x268] sm:$0xff]
      %v10538 = vld [vmem:[%s3 + $0x270] sm:$0xff]
      %v10539 = vld [vmem:[%s3 + $0x278] sm:$0xff]
      %v10540 = vld [vmem:[%s3 + $0x280] sm:$0xff]
      %v10541 = vld [vmem:[%s3 + $0x288] sm:$0xff]
      %v10542 = vld [vmem:[%s3 + $0x290] sm:$0xff]
      %v10543 = vld [vmem:[%s3 + $0x298] sm:$0xff]
      %v10544 = vld [vmem:[%s3 + $0x2a0] sm:$0xff]
      %v10545 = vld [vmem:[%s3 + $0x2a8] sm:$0xff]
      %v10546 = vld [vmem:[%s3 + $0x2b0] sm:$0xff]
      %v10547 = vld [vmem:[%s3 + $0x2b8] sm:$0xff]
      %v10548 = vld [vmem:[%s3 + $0x2c0] sm:$0xff]
      %v10549 = vld [vmem:[%s3 + $0x2c8] sm:$0xff]
      %v10550 = vld [vmem:[%s3 + $0x2d0] sm:$0xff]
      %v10551 = vld [vmem:[%s3 + $0x2d8] sm:$0xff]
      %v10552 = vld [vmem:[%s3 + $0x2e0] sm:$0xff]
      %v10553 = vld [vmem:[%s3 + $0x2e8] sm:$0xff]
      %v10554 = vld [vmem:[%s3 + $0x2f0] sm:$0xff]
      %v10555 = vld [vmem:[%s3 + $0x2f8] sm:$0xff]
      %v10556 = vld [vmem:[%s3 + $0x300] sm:$0xff]
      %v10557 = vld [vmem:[%s3 + $0x308] sm:$0xff]
      %v10558 = vld [vmem:[%s3 + $0x310] sm:$0xff]
      %v10559 = vld [vmem:[%s3 + $0x318] sm:$0xff]
      %v10560 = vld [vmem:[%s3 + $0x320] sm:$0xff]
      %v10561 = vld [vmem:[%s3 + $0x328] sm:$0xff]
      %v10562 = vld [vmem:[%s3 + $0x330] sm:$0xff]
      %v10563 = vld [vmem:[%s3 + $0x338] sm:$0xff]
      %v10564 = vld [vmem:[%s3 + $0x340] sm:$0xff]
      %v10565 = vld [vmem:[%s3 + $0x348] sm:$0xff]
      %v10566 = vld [vmem:[%s3 + $0x350] sm:$0xff]
      %v10567 = vld [vmem:[%s3 + $0x358] sm:$0xff]
      %v10568 = vld [vmem:[%s3 + $0x360] sm:$0xff]
      %v10569 = vld [vmem:[%s3 + $0x368] sm:$0xff]
      %v10570 = vld [vmem:[%s3 + $0x370] sm:$0xff]
      %v10571 = vld [vmem:[%s3 + $0x378] sm:$0xff]
      %v10572 = vld [vmem:[%s3 + $0x380] sm:$0xff]
      %v10573 = vld [vmem:[%s3 + $0x388] sm:$0xff]
      %v10574 = vld [vmem:[%s3 + $0x390] sm:$0xff]
      %v10575 = vld [vmem:[%s3 + $0x398] sm:$0xff]
      %v10576 = vld [vmem:[%s3 + $0x3a0] sm:$0xff]
      %v10577 = vld [vmem:[%s3 + $0x3a8] sm:$0xff]
      %v10578 = vld [vmem:[%s3 + $0x3b0] sm:$0xff]
      %v10579 = vld [vmem:[%s3 + $0x3b8] sm:$0xff]
      %v10580 = vld [vmem:[%s3 + $0x3c0] sm:$0xff]
      %v10581 = vld [vmem:[%s3 + $0x3c8] sm:$0xff]
      %v10582 = vld [vmem:[%s3 + $0x3d0] sm:$0xff]
      %v10583 = vld [vmem:[%s3 + $0x3d8] sm:$0xff]
      %v10584 = vld [vmem:[%s3 + $0x3e0] sm:$0xff]
      %v10585 = vld [vmem:[%s3 + $0x3e8] sm:$0xff]
      %v10586 = vld [vmem:[%s3 + $0x3f0] sm:$0xff]
      %v10587 = vld [vmem:[%s3 + $0x3f8] sm:$0xff]
      %v10588 = vmul.f32 %v10332, %v10460
      %v10589 = vmul.f32 %v10333, %v10461
      %v10590 = vmul.f32 %v10334, %v10462
      %v10591 = vmul.f32 %v10335, %v10463
      %v10592 = vmul.f32 %v10336, %v10464
      %v10593 = vmul.f32 %v10337, %v10465
      %v10594 = vmul.f32 %v10338, %v10466
      %v10595 = vmul.f32 %v10339, %v10467
      %v10596 = vmul.f32 %v10340, %v10468
      %v10597 = vmul.f32 %v10341, %v10469
      %v10598 = vmul.f32 %v10342, %v10470
      %v10599 = vmul.f32 %v10343, %v10471
      %v10600 = vmul.f32 %v10344, %v10472
      %v10601 = vmul.f32 %v10345, %v10473
      %v10602 = vmul.f32 %v10346, %v10474
      %v10603 = vmul.f32 %v10347, %v10475
      %v10604 = vmul.f32 %v10348, %v10476
      %v10605 = vmul.f32 %v10349, %v10477
      %v10606 = vmul.f32 %v10350, %v10478
      %v10607 = vmul.f32 %v10351, %v10479
      %v10608 = vmul.f32 %v10352, %v10480
      %v10609 = vmul.f32 %v10353, %v10481
      %v10610 = vmul.f32 %v10354, %v10482
      %v10611 = vmul.f32 %v10355, %v10483
      %v10612 = vmul.f32 %v10356, %v10484
      %v10613 = vmul.f32 %v10357, %v10485
      %v10614 = vmul.f32 %v10358, %v10486
      %v10615 = vmul.f32 %v10359, %v10487
      %v10616 = vmul.f32 %v10360, %v10488
      %v10617 = vmul.f32 %v10361, %v10489
      %v10618 = vmul.f32 %v10362, %v10490
      %v10619 = vmul.f32 %v10363, %v10491
      %v10620 = vmul.f32 %v10364, %v10492
      %v10621 = vmul.f32 %v10365, %v10493
      %v10622 = vmul.f32 %v10366, %v10494
      %v10623 = vmul.f32 %v10367, %v10495
      %v10624 = vmul.f32 %v10368, %v10496
      %v10625 = vmul.f32 %v10369, %v10497
      %v10626 = vmul.f32 %v10370, %v10498
      %v10627 = vmul.f32 %v10371, %v10499
      %v10628 = vmul.f32 %v10372, %v10500
      %v10629 = vmul.f32 %v10373, %v10501
      %v10630 = vmul.f32 %v10374, %v10502
      %v10631 = vmul.f32 %v10375, %v10503
      %v10632 = vmul.f32 %v10376, %v10504
      %v10633 = vmul.f32 %v10377, %v10505
      %v10634 = vmul.f32 %v10378, %v10506
      %v10635 = vmul.f32 %v10379, %v10507
      %v10636 = vmul.f32 %v10380, %v10508
      %v10637 = vmul.f32 %v10381, %v10509
      %v10638 = vmul.f32 %v10382, %v10510
      %v10639 = vmul.f32 %v10383, %v10511
      %v10640 = vmul.f32 %v10384, %v10512
      %v10641 = vmul.f32 %v10385, %v10513
      %v10642 = vmul.f32 %v10386, %v10514
      %v10643 = vmul.f32 %v10387, %v10515
      %v10644 = vmul.f32 %v10388, %v10516
      %v10645 = vmul.f32 %v10389, %v10517
      %v10646 = vmul.f32 %v10390, %v10518
      %v10647 = vmul.f32 %v10391, %v10519
      %v10648 = vmul.f32 %v10392, %v10520
      %v10649 = vmul.f32 %v10393, %v10521
      %v10650 = vmul.f32 %v10394, %v10522
      %v10651 = vmul.f32 %v10395, %v10523
      %v10652 = vmul.f32 %v10396, %v10524
      %v10653 = vmul.f32 %v10397, %v10525
      %v10654 = vmul.f32 %v10398, %v10526
      %v10655 = vmul.f32 %v10399, %v10527
      %v10656 = vmul.f32 %v10400, %v10528
      %v10657 = vmul.f32 %v10401, %v10529
      %v10658 = vmul.f32 %v10402, %v10530
      %v10659 = vmul.f32 %v10403, %v10531
      %v10660 = vmul.f32 %v10404, %v10532
      %v10661 = vmul.f32 %v10405, %v10533
      %v10662 = vmul.f32 %v10406, %v10534
      %v10663 = vmul.f32 %v10407, %v10535
      %v10664 = vmul.f32 %v10408, %v10536
      %v10665 = vmul.f32 %v10409, %v10537
      %v10666 = vmul.f32 %v10410, %v10538
      %v10667 = vmul.f32 %v10411, %v10539
      %v10668 = vmul.f32 %v10412, %v10540
      %v10669 = vmul.f32 %v10413, %v10541
      %v10670 = vmul.f32 %v10414, %v10542
      %v10671 = vmul.f32 %v10415, %v10543
      %v10672 = vmul.f32 %v10416, %v10544
      %v10673 = vmul.f32 %v10417, %v10545
      %v10674 = vmul.f32 %v10418, %v10546
      %v10675 = vmul.f32 %v10419, %v10547
      %v10676 = vmul.f32 %v10420, %v10548
      %v10677 = vmul.f32 %v10421, %v10549
      %v10678 = vmul.f32 %v10422, %v10550
      %v10679 = vmul.f32 %v10423, %v10551
      %v10680 = vmul.f32 %v10424, %v10552
      %v10681 = vmul.f32 %v10425, %v10553
      %v10682 = vmul.f32 %v10426, %v10554
      %v10683 = vmul.f32 %v10427, %v10555
      %v10684 = vmul.f32 %v10428, %v10556
      %v10685 = vmul.f32 %v10429, %v10557
      %v10686 = vmul.f32 %v10430, %v10558
      %v10687 = vmul.f32 %v10431, %v10559
      %v10688 = vmul.f32 %v10432, %v10560
      %v10689 = vmul.f32 %v10433, %v10561
      %v10690 = vmul.f32 %v10434, %v10562
      %v10691 = vmul.f32 %v10435, %v10563
      %v10692 = vmul.f32 %v10436, %v10564
      %v10693 = vmul.f32 %v10437, %v10565
      %v10694 = vmul.f32 %v10438, %v10566
      %v10695 = vmul.f32 %v10439, %v10567
      %v10696 = vmul.f32 %v10440, %v10568
      %v10697 = vmul.f32 %v10441, %v10569
      %v10698 = vmul.f32 %v10442, %v10570
      %v10699 = vmul.f32 %v10443, %v10571
      %v10700 = vmul.f32 %v10444, %v10572
      %v10701 = vmul.f32 %v10445, %v10573
      %v10702 = vmul.f32 %v10446, %v10574
      %v10703 = vmul.f32 %v10447, %v10575
      %v10704 = vmul.f32 %v10448, %v10576
      %v10705 = vmul.f32 %v10449, %v10577
      %v10706 = vmul.f32 %v10450, %v10578
      %v10707 = vmul.f32 %v10451, %v10579
      %v10708 = vmul.f32 %v10452, %v10580
      %v10709 = vmul.f32 %v10453, %v10581
      %v10710 = vmul.f32 %v10454, %v10582
      %v10711 = vmul.f32 %v10455, %v10583
      %v10712 = vmul.f32 %v10456, %v10584
      %v10713 = vmul.f32 %v10457, %v10585
      %v10714 = vmul.f32 %v10458, %v10586
      %v10715 = vmul.f32 %v10459, %v10587
      %v10716 = vld [vmem:[%s4] sm:$0xff]
      %v10717 = vld [vmem:[%s4 + $0x8] sm:$0xff]
      %v10718 = vld [vmem:[%s4 + $0x10] sm:$0xff]
      %v10719 = vld [vmem:[%s4 + $0x18] sm:$0xff]
      %v10720 = vld [vmem:[%s4 + $0x20] sm:$0xff]
      %v10721 = vld [vmem:[%s4 + $0x28] sm:$0xff]
      %v10722 = vld [vmem:[%s4 + $0x30] sm:$0xff]
      %v10723 = vld [vmem:[%s4 + $0x38] sm:$0xff]
      %v10724 = vld [vmem:[%s4 + $0x40] sm:$0xff]
      %v10725 = vld [vmem:[%s4 + $0x48] sm:$0xff]
      %v10726 = vld [vmem:[%s4 + $0x50] sm:$0xff]
      %v10727 = vld [vmem:[%s4 + $0x58] sm:$0xff]
      %v10728 = vld [vmem:[%s4 + $0x60] sm:$0xff]
      %v10729 = vld [vmem:[%s4 + $0x68] sm:$0xff]
      %v10730 = vld [vmem:[%s4 + $0x70] sm:$0xff]
      %v10731 = vld [vmem:[%s4 + $0x78] sm:$0xff]
      %v10732 = vld [vmem:[%s4 + $0x80] sm:$0xff]
      %v10733 = vld [vmem:[%s4 + $0x88] sm:$0xff]
      %v10734 = vld [vmem:[%s4 + $0x90] sm:$0xff]
      %v10735 = vld [vmem:[%s4 + $0x98] sm:$0xff]
      %v10736 = vld [vmem:[%s4 + $0xa0] sm:$0xff]
      %v10737 = vld [vmem:[%s4 + $0xa8] sm:$0xff]
      %v10738 = vld [vmem:[%s4 + $0xb0] sm:$0xff]
      %v10739 = vld [vmem:[%s4 + $0xb8] sm:$0xff]
      %v10740 = vld [vmem:[%s4 + $0xc0] sm:$0xff]
      %v10741 = vld [vmem:[%s4 + $0xc8] sm:$0xff]
      %v10742 = vld [vmem:[%s4 + $0xd0] sm:$0xff]
      %v10743 = vld [vmem:[%s4 + $0xd8] sm:$0xff]
      %v10744 = vld [vmem:[%s4 + $0xe0] sm:$0xff]
      %v10745 = vld [vmem:[%s4 + $0xe8] sm:$0xff]
      %v10746 = vld [vmem:[%s4 + $0xf0] sm:$0xff]
      %v10747 = vld [vmem:[%s4 + $0xf8] sm:$0xff]
      %v10748 = vld [vmem:[%s4 + $0x100] sm:$0xff]
      %v10749 = vld [vmem:[%s4 + $0x108] sm:$0xff]
      %v10750 = vld [vmem:[%s4 + $0x110] sm:$0xff]
      %v10751 = vld [vmem:[%s4 + $0x118] sm:$0xff]
      %v10752 = vld [vmem:[%s4 + $0x120] sm:$0xff]
      %v10753 = vld [vmem:[%s4 + $0x128] sm:$0xff]
      %v10754 = vld [vmem:[%s4 + $0x130] sm:$0xff]
      %v10755 = vld [vmem:[%s4 + $0x138] sm:$0xff]
      %v10756 = vld [vmem:[%s4 + $0x140] sm:$0xff]
      %v10757 = vld [vmem:[%s4 + $0x148] sm:$0xff]
      %v10758 = vld [vmem:[%s4 + $0x150] sm:$0xff]
      %v10759 = vld [vmem:[%s4 + $0x158] sm:$0xff]
      %v10760 = vld [vmem:[%s4 + $0x160] sm:$0xff]
      %v10761 = vld [vmem:[%s4 + $0x168] sm:$0xff]
      %v10762 = vld [vmem:[%s4 + $0x170] sm:$0xff]
      %v10763 = vld [vmem:[%s4 + $0x178] sm:$0xff]
      %v10764 = vld [vmem:[%s4 + $0x180] sm:$0xff]
      %v10765 = vld [vmem:[%s4 + $0x188] sm:$0xff]
      %v10766 = vld [vmem:[%s4 + $0x190] sm:$0xff]
      %v10767 = vld [vmem:[%s4 + $0x198] sm:$0xff]
      %v10768 = vld [vmem:[%s4 + $0x1a0] sm:$0xff]
      %v10769 = vld [vmem:[%s4 + $0x1a8] sm:$0xff]
      %v10770 = vld [vmem:[%s4 + $0x1b0] sm:$0xff]
      %v10771 = vld [vmem:[%s4 + $0x1b8] sm:$0xff]
      %v10772 = vld [vmem:[%s4 + $0x1c0] sm:$0xff]
      %v10773 = vld [vmem:[%s4 + $0x1c8] sm:$0xff]
      %v10774 = vld [vmem:[%s4 + $0x1d0] sm:$0xff]
      %v10775 = vld [vmem:[%s4 + $0x1d8] sm:$0xff]
      %v10776 = vld [vmem:[%s4 + $0x1e0] sm:$0xff]
      %v10777 = vld [vmem:[%s4 + $0x1e8] sm:$0xff]
      %v10778 = vld [vmem:[%s4 + $0x1f0] sm:$0xff]
      %v10779 = vld [vmem:[%s4 + $0x1f8] sm:$0xff]
      %v10780 = vld [vmem:[%s4 + $0x200] sm:$0xff]
      %v10781 = vld [vmem:[%s4 + $0x208] sm:$0xff]
      %v10782 = vld [vmem:[%s4 + $0x210] sm:$0xff]
      %v10783 = vld [vmem:[%s4 + $0x218] sm:$0xff]
      %v10784 = vld [vmem:[%s4 + $0x220] sm:$0xff]
      %v10785 = vld [vmem:[%s4 + $0x228] sm:$0xff]
      %v10786 = vld [vmem:[%s4 + $0x230] sm:$0xff]
      %v10787 = vld [vmem:[%s4 + $0x238] sm:$0xff]
      %v10788 = vld [vmem:[%s4 + $0x240] sm:$0xff]
      %v10789 = vld [vmem:[%s4 + $0x248] sm:$0xff]
      %v10790 = vld [vmem:[%s4 + $0x250] sm:$0xff]
      %v10791 = vld [vmem:[%s4 + $0x258] sm:$0xff]
      %v10792 = vld [vmem:[%s4 + $0x260] sm:$0xff]
      %v10793 = vld [vmem:[%s4 + $0x268] sm:$0xff]
      %v10794 = vld [vmem:[%s4 + $0x270] sm:$0xff]
      %v10795 = vld [vmem:[%s4 + $0x278] sm:$0xff]
      %v10796 = vld [vmem:[%s4 + $0x280] sm:$0xff]
      %v10797 = vld [vmem:[%s4 + $0x288] sm:$0xff]
      %v10798 = vld [vmem:[%s4 + $0x290] sm:$0xff]
      %v10799 = vld [vmem:[%s4 + $0x298] sm:$0xff]
      %v10800 = vld [vmem:[%s4 + $0x2a0] sm:$0xff]
      %v10801 = vld [vmem:[%s4 + $0x2a8] sm:$0xff]
      %v10802 = vld [vmem:[%s4 + $0x2b0] sm:$0xff]
      %v10803 = vld [vmem:[%s4 + $0x2b8] sm:$0xff]
      %v10804 = vld [vmem:[%s4 + $0x2c0] sm:$0xff]
      %v10805 = vld [vmem:[%s4 + $0x2c8] sm:$0xff]
      %v10806 = vld [vmem:[%s4 + $0x2d0] sm:$0xff]
      %v10807 = vld [vmem:[%s4 + $0x2d8] sm:$0xff]
      %v10808 = vld [vmem:[%s4 + $0x2e0] sm:$0xff]
      %v10809 = vld [vmem:[%s4 + $0x2e8] sm:$0xff]
      %v10810 = vld [vmem:[%s4 + $0x2f0] sm:$0xff]
      %v10811 = vld [vmem:[%s4 + $0x2f8] sm:$0xff]
      %v10812 = vld [vmem:[%s4 + $0x300] sm:$0xff]
      %v10813 = vld [vmem:[%s4 + $0x308] sm:$0xff]
      %v10814 = vld [vmem:[%s4 + $0x310] sm:$0xff]
      %v10815 = vld [vmem:[%s4 + $0x318] sm:$0xff]
      %v10816 = vld [vmem:[%s4 + $0x320] sm:$0xff]
      %v10817 = vld [vmem:[%s4 + $0x328] sm:$0xff]
      %v10818 = vld [vmem:[%s4 + $0x330] sm:$0xff]
      %v10819 = vld [vmem:[%s4 + $0x338] sm:$0xff]
      %v10820 = vld [vmem:[%s4 + $0x340] sm:$0xff]
      %v10821 = vld [vmem:[%s4 + $0x348] sm:$0xff]
      %v10822 = vld [vmem:[%s4 + $0x350] sm:$0xff]
      %v10823 = vld [vmem:[%s4 + $0x358] sm:$0xff]
      %v10824 = vld [vmem:[%s4 + $0x360] sm:$0xff]
      %v10825 = vld [vmem:[%s4 + $0x368] sm:$0xff]
      %v10826 = vld [vmem:[%s4 + $0x370] sm:$0xff]
      %v10827 = vld [vmem:[%s4 + $0x378] sm:$0xff]
      %v10828 = vld [vmem:[%s4 + $0x380] sm:$0xff]
      %v10829 = vld [vmem:[%s4 + $0x388] sm:$0xff]
      %v10830 = vld [vmem:[%s4 + $0x390] sm:$0xff]
      %v10831 = vld [vmem:[%s4 + $0x398] sm:$0xff]
      %v10832 = vld [vmem:[%s4 + $0x3a0] sm:$0xff]
      %v10833 = vld [vmem:[%s4 + $0x3a8] sm:$0xff]
      %v10834 = vld [vmem:[%s4 + $0x3b0] sm:$0xff]
      %v10835 = vld [vmem:[%s4 + $0x3b8] sm:$0xff]
      %v10836 = vld [vmem:[%s4 + $0x3c0] sm:$0xff]
      %v10837 = vld [vmem:[%s4 + $0x3c8] sm:$0xff]
      %v10838 = vld [vmem:[%s4 + $0x3d0] sm:$0xff]
      %v10839 = vld [vmem:[%s4 + $0x3d8] sm:$0xff]
      %v10840 = vld [vmem:[%s4 + $0x3e0] sm:$0xff]
      %v10841 = vld [vmem:[%s4 + $0x3e8] sm:$0xff]
      %v10842 = vld [vmem:[%s4 + $0x3f0] sm:$0xff]
      %v10843 = vld [vmem:[%s4 + $0x3f8] sm:$0xff]
      %v10844 = vadd.f32 %v10588, %v10716
      %v10845 = vadd.f32 %v10589, %v10717
      %v10846 = vadd.f32 %v10590, %v10718
      %v10847 = vadd.f32 %v10591, %v10719
      %v10848 = vadd.f32 %v10592, %v10720
      %v10849 = vadd.f32 %v10593, %v10721
      %v10850 = vadd.f32 %v10594, %v10722
      %v10851 = vadd.f32 %v10595, %v10723
      %v10852 = vadd.f32 %v10596, %v10724
      %v10853 = vadd.f32 %v10597, %v10725
      %v10854 = vadd.f32 %v10598, %v10726
      %v10855 = vadd.f32 %v10599, %v10727
      %v10856 = vadd.f32 %v10600, %v10728
      %v10857 = vadd.f32 %v10601, %v10729
      %v10858 = vadd.f32 %v10602, %v10730
      %v10859 = vadd.f32 %v10603, %v10731
      %v10860 = vadd.f32 %v10604, %v10732
      %v10861 = vadd.f32 %v10605, %v10733
      %v10862 = vadd.f32 %v10606, %v10734
      %v10863 = vadd.f32 %v10607, %v10735
      %v10864 = vadd.f32 %v10608, %v10736
      %v10865 = vadd.f32 %v10609, %v10737
      %v10866 = vadd.f32 %v10610, %v10738
      %v10867 = vadd.f32 %v10611, %v10739
      %v10868 = vadd.f32 %v10612, %v10740
      %v10869 = vadd.f32 %v10613, %v10741
      %v10870 = vadd.f32 %v10614, %v10742
      %v10871 = vadd.f32 %v10615, %v10743
      %v10872 = vadd.f32 %v10616, %v10744
      %v10873 = vadd.f32 %v10617, %v10745
      %v10874 = vadd.f32 %v10618, %v10746
      %v10875 = vadd.f32 %v10619, %v10747
      %v10876 = vadd.f32 %v10620, %v10748
      %v10877 = vadd.f32 %v10621, %v10749
      %v10878 = vadd.f32 %v10622, %v10750
      %v10879 = vadd.f32 %v10623, %v10751
      %v10880 = vadd.f32 %v10624, %v10752
      %v10881 = vadd.f32 %v10625, %v10753
      %v10882 = vadd.f32 %v10626, %v10754
      %v10883 = vadd.f32 %v10627, %v10755
      %v10884 = vadd.f32 %v10628, %v10756
      %v10885 = vadd.f32 %v10629, %v10757
      %v10886 = vadd.f32 %v10630, %v10758
      %v10887 = vadd.f32 %v10631, %v10759
      %v10888 = vadd.f32 %v10632, %v10760
      %v10889 = vadd.f32 %v10633, %v10761
      %v10890 = vadd.f32 %v10634, %v10762
      %v10891 = vadd.f32 %v10635, %v10763
      %v10892 = vadd.f32 %v10636, %v10764
      %v10893 = vadd.f32 %v10637, %v10765
      %v10894 = vadd.f32 %v10638, %v10766
      %v10895 = vadd.f32 %v10639, %v10767
      %v10896 = vadd.f32 %v10640, %v10768
      %v10897 = vadd.f32 %v10641, %v10769
      %v10898 = vadd.f32 %v10642, %v10770
      %v10899 = vadd.f32 %v10643, %v10771
      %v10900 = vadd.f32 %v10644, %v10772
      %v10901 = vadd.f32 %v10645, %v10773
      %v10902 = vadd.f32 %v10646, %v10774
      %v10903 = vadd.f32 %v10647, %v10775
      %v10904 = vadd.f32 %v10648, %v10776
      %v10905 = vadd.f32 %v10649, %v10777
      %v10906 = vadd.f32 %v10650, %v10778
      %v10907 = vadd.f32 %v10651, %v10779
      %v10908 = vadd.f32 %v10652, %v10780
      %v10909 = vadd.f32 %v10653, %v10781
      %v10910 = vadd.f32 %v10654, %v10782
      %v10911 = vadd.f32 %v10655, %v10783
      %v10912 = vadd.f32 %v10656, %v10784
      %v10913 = vadd.f32 %v10657, %v10785
      %v10914 = vadd.f32 %v10658, %v10786
      %v10915 = vadd.f32 %v10659, %v10787
      %v10916 = vadd.f32 %v10660, %v10788
      %v10917 = vadd.f32 %v10661, %v10789
      %v10918 = vadd.f32 %v10662, %v10790
      %v10919 = vadd.f32 %v10663, %v10791
      %v10920 = vadd.f32 %v10664, %v10792
      %v10921 = vadd.f32 %v10665, %v10793
      %v10922 = vadd.f32 %v10666, %v10794
      %v10923 = vadd.f32 %v10667, %v10795
      %v10924 = vadd.f32 %v10668, %v10796
      %v10925 = vadd.f32 %v10669, %v10797
      %v10926 = vadd.f32 %v10670, %v10798
      %v10927 = vadd.f32 %v10671, %v10799
      %v10928 = vadd.f32 %v10672, %v10800
      %v10929 = vadd.f32 %v10673, %v10801
      %v10930 = vadd.f32 %v10674, %v10802
      %v10931 = vadd.f32 %v10675, %v10803
      %v10932 = vadd.f32 %v10676, %v10804
      %v10933 = vadd.f32 %v10677, %v10805
      %v10934 = vadd.f32 %v10678, %v10806
      %v10935 = vadd.f32 %v10679, %v10807
      %v10936 = vadd.f32 %v10680, %v10808
      %v10937 = vadd.f32 %v10681, %v10809
      %v10938 = vadd.f32 %v10682, %v10810
      %v10939 = vadd.f32 %v10683, %v10811
      %v10940 = vadd.f32 %v10684, %v10812
      %v10941 = vadd.f32 %v10685, %v10813
      %v10942 = vadd.f32 %v10686, %v10814
      %v10943 = vadd.f32 %v10687, %v10815
      %v10944 = vadd.f32 %v10688, %v10816
      %v10945 = vadd.f32 %v10689, %v10817
      %v10946 = vadd.f32 %v10690, %v10818
      %v10947 = vadd.f32 %v10691, %v10819
      %v10948 = vadd.f32 %v10692, %v10820
      %v10949 = vadd.f32 %v10693, %v10821
      %v10950 = vadd.f32 %v10694, %v10822
      %v10951 = vadd.f32 %v10695, %v10823
      %v10952 = vadd.f32 %v10696, %v10824
      %v10953 = vadd.f32 %v10697, %v10825
      %v10954 = vadd.f32 %v10698, %v10826
      %v10955 = vadd.f32 %v10699, %v10827
      %v10956 = vadd.f32 %v10700, %v10828
      %v10957 = vadd.f32 %v10701, %v10829
      %v10958 = vadd.f32 %v10702, %v10830
      %v10959 = vadd.f32 %v10703, %v10831
      %v10960 = vadd.f32 %v10704, %v10832
      %v10961 = vadd.f32 %v10705, %v10833
      %v10962 = vadd.f32 %v10706, %v10834
      %v10963 = vadd.f32 %v10707, %v10835
      %v10964 = vadd.f32 %v10708, %v10836
      %v10965 = vadd.f32 %v10709, %v10837
      %v10966 = vadd.f32 %v10710, %v10838
      %v10967 = vadd.f32 %v10711, %v10839
      %v10968 = vadd.f32 %v10712, %v10840
      %v10969 = vadd.f32 %v10713, %v10841
      %v10970 = vadd.f32 %v10714, %v10842
      %v10971 = vadd.f32 %v10715, %v10843
      %10972 = vst.msk [vmem:[%s224] sm:$0xff] %vm9525, %v10844
      %10973 = vst.msk [vmem:[%s224 + $0x8] sm:$0xff] %vm9525, %v10845
      %10974 = vst.msk [vmem:[%s224 + $0x10] sm:$0xff] %vm9525, %v10846
      %10975 = vst.msk [vmem:[%s224 + $0x18] sm:$0xff] %vm9525, %v10847
      %10976 = vst.msk [vmem:[%s224 + $0x20] sm:$0xff] %vm9525, %v10848
      %10977 = vst.msk [vmem:[%s224 + $0x28] sm:$0xff] %vm9525, %v10849
      %10978 = vst.msk [vmem:[%s224 + $0x30] sm:$0xff] %vm9525, %v10850
      %10979 = vst.msk [vmem:[%s224 + $0x38] sm:$0xff] %vm9525, %v10851
      %10980 = vst.msk [vmem:[%s224 + $0x40] sm:$0xff] %vm9525, %v10852
      %10981 = vst.msk [vmem:[%s224 + $0x48] sm:$0xff] %vm9525, %v10853
      %10982 = vst.msk [vmem:[%s224 + $0x50] sm:$0xff] %vm9525, %v10854
      %10983 = vst.msk [vmem:[%s224 + $0x58] sm:$0xff] %vm9525, %v10855
      %10984 = vst.msk [vmem:[%s224 + $0x60] sm:$0xff] %vm9525, %v10856
      %10985 = vst.msk [vmem:[%s224 + $0x68] sm:$0xff] %vm9525, %v10857
      %10986 = vst.msk [vmem:[%s224 + $0x70] sm:$0xff] %vm9525, %v10858
      %10987 = vst.msk [vmem:[%s224 + $0x78] sm:$0xff] %vm9525, %v10859
      %10988 = vst.msk [vmem:[%s224 + $0x80] sm:$0xff] %vm9525, %v10860
      %10989 = vst.msk [vmem:[%s224 + $0x88] sm:$0xff] %vm9525, %v10861
      %10990 = vst.msk [vmem:[%s224 + $0x90] sm:$0xff] %vm9525, %v10862
      %10991 = vst.msk [vmem:[%s224 + $0x98] sm:$0xff] %vm9525, %v10863
      %10992 = vst.msk [vmem:[%s224 + $0xa0] sm:$0xff] %vm9525, %v10864
      %10993 = vst.msk [vmem:[%s224 + $0xa8] sm:$0xff] %vm9525, %v10865
      %10994 = vst.msk [vmem:[%s224 + $0xb0] sm:$0xff] %vm9525, %v10866
      %10995 = vst.msk [vmem:[%s224 + $0xb8] sm:$0xff] %vm9525, %v10867
      %10996 = vst.msk [vmem:[%s224 + $0xc0] sm:$0xff] %vm9525, %v10868
      %10997 = vst.msk [vmem:[%s224 + $0xc8] sm:$0xff] %vm9525, %v10869
      %10998 = vst.msk [vmem:[%s224 + $0xd0] sm:$0xff] %vm9525, %v10870
      %10999 = vst.msk [vmem:[%s224 + $0xd8] sm:$0xff] %vm9525, %v10871
      %11000 = vst.msk [vmem:[%s224 + $0xe0] sm:$0xff] %vm9525, %v10872
      %11001 = vst.msk [vmem:[%s224 + $0xe8] sm:$0xff] %vm9525, %v10873
      %11002 = vst.msk [vmem:[%s224 + $0xf0] sm:$0xff] %vm9525, %v10874
      %11003 = vst.msk [vmem:[%s224 + $0xf8] sm:$0xff] %vm9525, %v10875
      %11004 = vst.msk [vmem:[%s224 + $0x100] sm:$0xff] %vm9525, %v10876
      %11005 = vst.msk [vmem:[%s224 + $0x108] sm:$0xff] %vm9525, %v10877
      %11006 = vst.msk [vmem:[%s224 + $0x110] sm:$0xff] %vm9525, %v10878
      %11007 = vst.msk [vmem:[%s224 + $0x118] sm:$0xff] %vm9525, %v10879
      %11008 = vst.msk [vmem:[%s224 + $0x120] sm:$0xff] %vm9525, %v10880
      %11009 = vst.msk [vmem:[%s224 + $0x128] sm:$0xff] %vm9525, %v10881
      %11010 = vst.msk [vmem:[%s224 + $0x130] sm:$0xff] %vm9525, %v10882
      %11011 = vst.msk [vmem:[%s224 + $0x138] sm:$0xff] %vm9525, %v10883
      %11012 = vst.msk [vmem:[%s224 + $0x140] sm:$0xff] %vm9525, %v10884
      %11013 = vst.msk [vmem:[%s224 + $0x148] sm:$0xff] %vm9525, %v10885
      %11014 = vst.msk [vmem:[%s224 + $0x150] sm:$0xff] %vm9525, %v10886
      %11015 = vst.msk [vmem:[%s224 + $0x158] sm:$0xff] %vm9525, %v10887
      %11016 = vst.msk [vmem:[%s224 + $0x160] sm:$0xff] %vm9525, %v10888
      %11017 = vst.msk [vmem:[%s224 + $0x168] sm:$0xff] %vm9525, %v10889
      %11018 = vst.msk [vmem:[%s224 + $0x170] sm:$0xff] %vm9525, %v10890
      %11019 = vst.msk [vmem:[%s224 + $0x178] sm:$0xff] %vm9525, %v10891
      %11020 = vst.msk [vmem:[%s224 + $0x180] sm:$0xff] %vm9525, %v10892
      %11021 = vst.msk [vmem:[%s224 + $0x188] sm:$0xff] %vm9525, %v10893
      %11022 = vst.msk [vmem:[%s224 + $0x190] sm:$0xff] %vm9525, %v10894
      %11023 = vst.msk [vmem:[%s224 + $0x198] sm:$0xff] %vm9525, %v10895
      %11024 = vst.msk [vmem:[%s224 + $0x1a0] sm:$0xff] %vm9525, %v10896
      %11025 = vst.msk [vmem:[%s224 + $0x1a8] sm:$0xff] %vm9525, %v10897
      %11026 = vst.msk [vmem:[%s224 + $0x1b0] sm:$0xff] %vm9525, %v10898
      %11027 = vst.msk [vmem:[%s224 + $0x1b8] sm:$0xff] %vm9525, %v10899
      %11028 = vst.msk [vmem:[%s224 + $0x1c0] sm:$0xff] %vm9525, %v10900
      %11029 = vst.msk [vmem:[%s224 + $0x1c8] sm:$0xff] %vm9525, %v10901
      %11030 = vst.msk [vmem:[%s224 + $0x1d0] sm:$0xff] %vm9525, %v10902
      %11031 = vst.msk [vmem:[%s224 + $0x1d8] sm:$0xff] %vm9525, %v10903
      %11032 = vst.msk [vmem:[%s224 + $0x1e0] sm:$0xff] %vm9525, %v10904
      %11033 = vst.msk [vmem:[%s224 + $0x1e8] sm:$0xff] %vm9525, %v10905
      %11034 = vst.msk [vmem:[%s224 + $0x1f0] sm:$0xff] %vm9525, %v10906
      %11035 = vst.msk [vmem:[%s224 + $0x1f8] sm:$0xff] %vm9525, %v10907
      %11036 = vst.msk [vmem:[%s224 + $0x200] sm:$0xff] %vm9525, %v10908
      %11037 = vst.msk [vmem:[%s224 + $0x208] sm:$0xff] %vm9525, %v10909
      %11038 = vst.msk [vmem:[%s224 + $0x210] sm:$0xff] %vm9525, %v10910
      %11039 = vst.msk [vmem:[%s224 + $0x218] sm:$0xff] %vm9525, %v10911
      %11040 = vst.msk [vmem:[%s224 + $0x220] sm:$0xff] %vm9525, %v10912
      %11041 = vst.msk [vmem:[%s224 + $0x228] sm:$0xff] %vm9525, %v10913
      %11042 = vst.msk [vmem:[%s224 + $0x230] sm:$0xff] %vm9525, %v10914
      %11043 = vst.msk [vmem:[%s224 + $0x238] sm:$0xff] %vm9525, %v10915
      %11044 = vst.msk [vmem:[%s224 + $0x240] sm:$0xff] %vm9525, %v10916
      %11045 = vst.msk [vmem:[%s224 + $0x248] sm:$0xff] %vm9525, %v10917
      %11046 = vst.msk [vmem:[%s224 + $0x250] sm:$0xff] %vm9525, %v10918
      %11047 = vst.msk [vmem:[%s224 + $0x258] sm:$0xff] %vm9525, %v10919
      %11048 = vst.msk [vmem:[%s224 + $0x260] sm:$0xff] %vm9525, %v10920
      %11049 = vst.msk [vmem:[%s224 + $0x268] sm:$0xff] %vm9525, %v10921
      %11050 = vst.msk [vmem:[%s224 + $0x270] sm:$0xff] %vm9525, %v10922
      %11051 = vst.msk [vmem:[%s224 + $0x278] sm:$0xff] %vm9525, %v10923
      %11052 = vst.msk [vmem:[%s224 + $0x280] sm:$0xff] %vm9525, %v10924
      %11053 = vst.msk [vmem:[%s224 + $0x288] sm:$0xff] %vm9525, %v10925
      %11054 = vst.msk [vmem:[%s224 + $0x290] sm:$0xff] %vm9525, %v10926
      %11055 = vst.msk [vmem:[%s224 + $0x298] sm:$0xff] %vm9525, %v10927
      %11056 = vst.msk [vmem:[%s224 + $0x2a0] sm:$0xff] %vm9525, %v10928
      %11057 = vst.msk [vmem:[%s224 + $0x2a8] sm:$0xff] %vm9525, %v10929
      %11058 = vst.msk [vmem:[%s224 + $0x2b0] sm:$0xff] %vm9525, %v10930
      %11059 = vst.msk [vmem:[%s224 + $0x2b8] sm:$0xff] %vm9525, %v10931
      %11060 = vst.msk [vmem:[%s224 + $0x2c0] sm:$0xff] %vm9525, %v10932
      %11061 = vst.msk [vmem:[%s224 + $0x2c8] sm:$0xff] %vm9525, %v10933
      %11062 = vst.msk [vmem:[%s224 + $0x2d0] sm:$0xff] %vm9525, %v10934
      %11063 = vst.msk [vmem:[%s224 + $0x2d8] sm:$0xff] %vm9525, %v10935
      %11064 = vst.msk [vmem:[%s224 + $0x2e0] sm:$0xff] %vm9525, %v10936
      %11065 = vst.msk [vmem:[%s224 + $0x2e8] sm:$0xff] %vm9525, %v10937
      %11066 = vst.msk [vmem:[%s224 + $0x2f0] sm:$0xff] %vm9525, %v10938
      %11067 = vst.msk [vmem:[%s224 + $0x2f8] sm:$0xff] %vm9525, %v10939
      %11068 = vst.msk [vmem:[%s224 + $0x300] sm:$0xff] %vm9525, %v10940
      %11069 = vst.msk [vmem:[%s224 + $0x308] sm:$0xff] %vm9525, %v10941
      %11070 = vst.msk [vmem:[%s224 + $0x310] sm:$0xff] %vm9525, %v10942
      %11071 = vst.msk [vmem:[%s224 + $0x318] sm:$0xff] %vm9525, %v10943
      %11072 = vst.msk [vmem:[%s224 + $0x320] sm:$0xff] %vm9525, %v10944
      %11073 = vst.msk [vmem:[%s224 + $0x328] sm:$0xff] %vm9525, %v10945
      %11074 = vst.msk [vmem:[%s224 + $0x330] sm:$0xff] %vm9525, %v10946
      %11075 = vst.msk [vmem:[%s224 + $0x338] sm:$0xff] %vm9525, %v10947
      %11076 = vst.msk [vmem:[%s224 + $0x340] sm:$0xff] %vm9525, %v10948
      %11077 = vst.msk [vmem:[%s224 + $0x348] sm:$0xff] %vm9525, %v10949
      %11078 = vst.msk [vmem:[%s224 + $0x350] sm:$0xff] %vm9525, %v10950
      %11079 = vst.msk [vmem:[%s224 + $0x358] sm:$0xff] %vm9525, %v10951
      %11080 = vst.msk [vmem:[%s224 + $0x360] sm:$0xff] %vm9525, %v10952
      %11081 = vst.msk [vmem:[%s224 + $0x368] sm:$0xff] %vm9525, %v10953
      %11082 = vst.msk [vmem:[%s224 + $0x370] sm:$0xff] %vm9525, %v10954
      %11083 = vst.msk [vmem:[%s224 + $0x378] sm:$0xff] %vm9525, %v10955
      %11084 = vst.msk [vmem:[%s224 + $0x380] sm:$0xff] %vm9525, %v10956
      %11085 = vst.msk [vmem:[%s224 + $0x388] sm:$0xff] %vm9525, %v10957
      %11086 = vst.msk [vmem:[%s224 + $0x390] sm:$0xff] %vm9525, %v10958
      %11087 = vst.msk [vmem:[%s224 + $0x398] sm:$0xff] %vm9525, %v10959
      %11088 = vst.msk [vmem:[%s224 + $0x3a0] sm:$0xff] %vm9525, %v10960
      %11089 = vst.msk [vmem:[%s224 + $0x3a8] sm:$0xff] %vm9525, %v10961
      %11090 = vst.msk [vmem:[%s224 + $0x3b0] sm:$0xff] %vm9525, %v10962
      %11091 = vst.msk [vmem:[%s224 + $0x3b8] sm:$0xff] %vm9525, %v10963
      %11092 = vst.msk [vmem:[%s224 + $0x3c0] sm:$0xff] %vm9525, %v10964
      %11093 = vst.msk [vmem:[%s224 + $0x3c8] sm:$0xff] %vm9525, %v10965
      %11094 = vst.msk [vmem:[%s224 + $0x3d0] sm:$0xff] %vm9525, %v10966
      %11095 = vst.msk [vmem:[%s224 + $0x3d8] sm:$0xff] %vm9525, %v10967
      %11096 = vst.msk [vmem:[%s224 + $0x3e0] sm:$0xff] %vm9525, %v10968
      %11097 = vst.msk [vmem:[%s224 + $0x3e8] sm:$0xff] %vm9525, %v10969
      %11098 = vst.msk [vmem:[%s224 + $0x3f0] sm:$0xff] %vm9525, %v10970
      %11099 = vst.msk [vmem:[%s224 + $0x3f8] sm:$0xff] %vm9525, %v10971
      %p11100 = scmp.lt.s32.totalorder %s16, 1
      %s11101 = scalar_select %p11100, %s16, 1
      %s11102 = smul.addr %s11101, 128
      %s11103 = smul.addr %s11102, 8
      %s11104 = scalar_lea.vmem %s5, %s11103
      // Predicated region
      $region41: #{tpu_custom_call.1} parent=39 // pred_check
        %p11105 = pneg %p144
      $region42: #{tpu_custom_call.1} parent=39 // pred_check_branch
        %11107 = sbr.rel (%p11105) target = $region44
      $region43: #{tpu_custom_call.1} parent=39 // pred_region
        _
      $region44: #{tpu_custom_call.1} parent=39 // pred_fallthru
        _
    $region40: #{tpu_custom_call.1} parent=5 // pred_fallthru
      _
    %p11108 = scmp.le.s32.totalorder 2, %s11
    // Predicated region
    $region45: #{tpu_custom_call.1} parent=5 // pred_check
      %p11109 = pneg %p11108
    $region46: #{tpu_custom_call.1} parent=5 // pred_check_branch
      %11111 = sbr.rel (%p11109) target = $region48
    $region47: #{tpu_custom_call.1} parent=5 // pred_region
      %s11112 = ssub.s32 %s11, 2
      // Predicated region
      $region49: #{tpu_custom_call.1} parent=47 // pred_check
        %p11113 = pneg %p150
      $region50: #{tpu_custom_call.1} parent=47 // pred_check_branch
        %11115 = sbr.rel (%p11113) target = $region52
      $region51: #{tpu_custom_call.1} parent=47 // pred_region
        %p11116 = scmp.lt.s32.totalorder %s17, 1
        %s11117 = scalar_select %p11116, %s17, 1
        %s11118 = smul.addr %s11117, 128
        %s11119 = smul.addr %s11118, 8
        %s11120 = scalar_lea.vmem %s5, %s11119
      $region52: #{tpu_custom_call.1} parent=47 // pred_fallthru
        _
    $region48: #{tpu_custom_call.1} parent=5 // pred_fallthru
      _
  $region6: #{tpu_custom_call.1} parent=0 // loop_footer
    %s15 = sadd.s32 1, %s11
  $region7: #{tpu_custom_call.1} parent=0 // loop_footer_branch
    %10 = sbr.rel target = $region3
  $region8: #{tpu_custom_call.1} parent=0 // loop_exit
    _

</llo_original>
